<compile_context>
chip_gen: v6e
topology: v6e:2x2x1
jax: 0.10.0
libtpu: 0.0.40
codegen_flags: <defaults>
</compile_context>

<pallas_src>
import math

import jax
import jax.numpy as jnp
from jax.experimental import pallas as pl
from jax.experimental.pallas import tpu as pltpu

HIDDEN = 32
NUM_CFG = 8
NUM_CONTRACTS = 2
NUM_NODES = 64
NUM_EDGES = 128
IN_FEATS = 100
IN_PAD = 128              # conv1 contraction dim padded to lane width
FFN_DIM = 2048            # PyTorch TransformerEncoderLayer default dim_feedforward
NUM_HEADS = 2
HEAD_DIM = HIDDEN // NUM_HEADS
NUM_LAYERS = 2
LN_EPS = 1e-5
S_REAL = 1 + NUM_CFG      # CLS + cfg tokens = 9
S_PAD = 16                # padded sequence length (8-aligned row blocks)
BT = NUM_CONTRACTS * S_PAD


# ---------------------------------------------------------------------------
# Fused Pallas kernel
# ---------------------------------------------------------------------------

def _layer_norm(v, gamma, beta):
    mu = jnp.mean(v, axis=-1, keepdims=True)
    var = jnp.mean((v - mu) ** 2, axis=-1, keepdims=True)
    return (v - mu) * jax.lax.rsqrt(var + LN_EPS) * gamma + beta


def fused_gcn_kernel(a_ref, x_ref,
                     c1w_ref, c1b_ref, c2w_ref, c2b_ref, c3w_ref, c3b_ref,
                     pool_ref, clsind_ref, embed_ref, madd_ref,
                     wq_ref, wk_ref, wv_ref, bq_ref, bk_ref, bv_ref,
                     wo_ref, bo_ref, g1_ref, be1_ref,
                     fw1_ref, fb1_ref, fw2_ref, fb2_ref, g2_ref, be2_ref,
                     lw1_ref, lb1_ref, lw2_ref, lb2_ref,
                     o_ref):
    f32 = jnp.float32

    def mm(a, b):
        return jnp.dot(a, b, preferred_element_type=f32)

    # ---- 3x GCNConv: A_hat @ (X @ W) + b (relu on the first two) ----
    a_hat = a_ref[...]
    h = jnp.maximum(mm(a_hat, mm(x_ref[...], c1w_ref[...])) + c1b_ref[...], 0.0)
    h = jnp.maximum(mm(a_hat, mm(h, c2w_ref[...])) + c2b_ref[...], 0.0)
    h = mm(a_hat, mm(h, c3w_ref[...])) + c3b_ref[...]

    # ---- global_mean_pool scattered straight into the padded (B*S_PAD, D) slab ----
    #      + CLS embedding placed on rows b*S_PAD via an indicator column.
    seq = mm(pool_ref[...], h) + clsind_ref[...] * embed_ref[...]

    # ---- per-head lane masks (no 16-lane slices anywhere) ----
    lane = jax.lax.broadcasted_iota(jnp.int32, (1, HIDDEN), 1)
    head_masks = [
        jnp.where((lane >= hh * HEAD_DIM) & (lane < (hh + 1) * HEAD_DIM),
                  1.0, 0.0).astype(f32)
        for hh in range(NUM_HEADS)
    ]
    scale = 1.0 / math.sqrt(HEAD_DIM)

    # ---- 2x post-norm TransformerEncoderLayer ----
    for l in range(NUM_LAYERS):
        xl = seq
        q = mm(xl, wq_ref[l]) + bq_ref[l]          # (BT, D)
        k = mm(xl, wk_ref[l]) + bk_ref[l]
        v = mm(xl, wv_ref[l]) + bv_ref[l]

        parts = []
        for b in range(NUM_CONTRACTS):             # static B=2 loop
            lo = b * S_PAD
            qb = q[lo:lo + S_PAD, :]
            kb = k[lo:lo + S_PAD, :]
            vb = v[lo:lo + S_PAD, :]
            madd = madd_ref[b]                     # (1, S_PAD) additive key mask
            acc = jnp.zeros((S_PAD, HIDDEN), f32)
            for hm in head_masks:                  # static 2-head loop
                s = jnp.einsum('qd,kd->qk', qb * hm, kb,
                               preferred_element_type=f32) * scale + madd
                s = s - jnp.max(s, axis=-1, keepdims=True)
                p = jnp.exp(s)
                p = p * pl.reciprocal(jnp.sum(p, axis=-1, keepdims=True),
                                      approx=True)
                acc = acc + mm(p, vb * hm)         # each head lands in its own lanes
            parts.append(acc)
        concat = jnp.concatenate(parts, axis=0)    # (BT, D) concatenated heads
        attn = mm(concat, wo_ref[l]) + bo_ref[l]

        y = _layer_norm(xl + attn, g1_ref[l], be1_ref[l])
        h1 = jnp.maximum(
            jnp.dot(y.astype(jnp.bfloat16), fw1_ref[l],
                    preferred_element_type=f32) + fb1_ref[l], 0.0)
        ff = jnp.dot(h1.astype(jnp.bfloat16), fw2_ref[l],
                     preferred_element_type=f32) + fb2_ref[l]
        seq = _layer_norm(y + ff, g2_ref[l], be2_ref[l])

    # ---- CLS rows -> lin1 -> relu -> lin2 (dropout is identity at inference) ----
    x_cls = jnp.concatenate(
        [seq[b * S_PAD: b * S_PAD + 1, :] for b in range(NUM_CONTRACTS)], axis=0)
    hc = jnp.maximum(mm(x_cls, lw1_ref[...]) + lb1_ref[...], 0.0)
    o_ref[...] = mm(hc, lw2_ref[...]) + lb2_ref[...]


# ---------------------------------------------------------------------------
# Host-side glue (plain JAX): graph densification, placement matrices, masks
# ---------------------------------------------------------------------------

def build_normalized_adj(edge_index, num_nodes):
    # PyG GCNConv semantics: add self-loops, symmetric D^-1/2 (A+I) D^-1/2.
    src, dst = edge_index[0], edge_index[1]
    a = jnp.zeros((num_nodes, num_nodes), jnp.float32)
    a = a.at[dst, src].add(1.0)                    # message j -> i stored at A[i, j]
    a = a + jnp.eye(num_nodes, dtype=jnp.float32)  # self loops
    deg = jnp.sum(a, axis=1)
    dinv = jax.lax.rsqrt(deg)                      # deg >= 1 thanks to self loops
    return a * dinv[:, None] * dinv[None, :]


def build_seq_pool_matrix(batch, num_contracts, num_nodes):
    # (B*S_PAD, N): row b*S_PAD+1+c holds the mean-pool weights of graph b*NUM_CFG+c;
    # CLS and padding rows stay zero.
    num_graphs = num_contracts * NUM_CFG
    onehot = (batch[None, :] == jnp.arange(num_graphs)[:, None]).astype(jnp.float32)
    counts = jnp.maximum(jnp.sum(onehot, axis=1, keepdims=True), 1.0)
    pool = onehot / counts                                    # (G, N)
    g = jnp.arange(num_graphs)
    rows = (g // NUM_CFG) * S_PAD + 1 + (g % NUM_CFG)
    place = jnp.zeros((num_contracts * S_PAD, num_nodes), jnp.float32)
    return place.at[rows].set(pool)


def build_cls_indicator(num_contracts):
    ind = jnp.zeros((num_contracts * S_PAD, 1), jnp.float32)
    return ind.at[jnp.arange(num_contracts) * S_PAD, 0].set(1.0)


def build_additive_mask(mask, num_contracts):
    # key-padding mask: CLS never masked, user cfg mask, then padded positions masked.
    cls_mask = jnp.zeros((num_contracts, 1), dtype=bool)
    pad_mask = jnp.ones((num_contracts, S_PAD - S_REAL), dtype=bool)
    full = jnp.concatenate([cls_mask, mask, pad_mask], axis=1)    # (B, S_PAD)
    return jnp.where(full, -1e9, 0.0).astype(jnp.float32).reshape(
        num_contracts, 1, S_PAD)


def init_params(key):
    keys = list(jax.random.split(key, 40))
    it = iter(keys)

    def dense(shape, fan_in):
        return (jax.random.normal(next(it), shape, jnp.float32)
                * (1.0 / math.sqrt(fan_in)))

    params = {
        'conv1_w': dense((IN_FEATS, HIDDEN), IN_FEATS),
        'conv1_b': jnp.zeros((1, HIDDEN), jnp.float32),
        'conv2_w': dense((HIDDEN, HIDDEN), HIDDEN),
        'conv2_b': jnp.zeros((1, HIDDEN), jnp.float32),
        'conv3_w': dense((HIDDEN, HIDDEN), HIDDEN),
        'conv3_b': jnp.zeros((1, HIDDEN), jnp.float32),
        'embed': dense((1, HIDDEN), 1),
        'lin1_w': dense((HIDDEN, HIDDEN), HIDDEN),
        'lin1_b': jnp.zeros((1, HIDDEN), jnp.float32),
        'lin2_w': dense((HIDDEN, 2), HIDDEN),
        'lin2_b': jnp.zeros((1, 2), jnp.float32),
    }
    layers = []
    for _ in range(NUM_LAYERS):
        layers.append({
            'wq': dense((HIDDEN, HIDDEN), HIDDEN),
            'wk': dense((HIDDEN, HIDDEN), HIDDEN),
            'wv': dense((HIDDEN, HIDDEN), HIDDEN),
            'bq': jnp.zeros((1, HIDDEN), jnp.float32),
            'bk': jnp.zeros((1, HIDDEN), jnp.float32),
            'bv': jnp.zeros((1, HIDDEN), jnp.float32),
            'wo': dense((HIDDEN, HIDDEN), HIDDEN),
            'bo': jnp.zeros((1, HIDDEN), jnp.float32),
            'g1': jnp.ones((1, HIDDEN), jnp.float32),
            'be1': jnp.zeros((1, HIDDEN), jnp.float32),
            'w1': dense((HIDDEN, FFN_DIM), HIDDEN),
            'b1': jnp.zeros((1, FFN_DIM), jnp.float32),
            'w2': dense((FFN_DIM, HIDDEN), FFN_DIM),
            'b2': jnp.zeros((1, HIDDEN), jnp.float32),
            'g2': jnp.ones((1, HIDDEN), jnp.float32),
            'be2': jnp.zeros((1, HIDDEN), jnp.float32),
        })
    params['encoder'] = layers
    return params


# ---------------------------------------------------------------------------
# Forward: single fused pallas_call
# ---------------------------------------------------------------------------

def gcn_forward(params, x, edge_index, batch, mask, num_contracts):
    assert num_contracts == NUM_CONTRACTS, "kernel is specialized to NUM_CONTRACTS"
    n = x.shape[0]

    a_hat = build_normalized_adj(edge_index, n)

    # pad the conv1 contraction dim 100 -> 128 (zeros contribute nothing)
    x_pad = jnp.zeros((n, IN_PAD), jnp.float32).at[:, :IN_FEATS].set(x)
    c1w_pad = jnp.zeros((IN_PAD, HIDDEN), jnp.float32).at[:IN_FEATS, :].set(
        params['conv1_w'])

    pool_place = build_seq_pool_matrix(batch, num_contracts, n)
    cls_ind = build_cls_indicator(num_contracts)
    madd = build_additive_mask(mask, num_contracts)

    enc = params['encoder']

    def stack(name, dtype=jnp.float32):
        return jnp.stack([lp[name] for lp in enc]).astype(dtype)

    inputs = [
        a_hat, x_pad,
        c1w_pad, params['conv1_b'],
        params['conv2_w'], params['conv2_b'],
        params['conv3_w'], params['conv3_b'],
        pool_place, cls_ind, params['embed'], madd,
        stack('wq'), stack('wk'), stack('wv'),
        stack('bq'), stack('bk'), stack('bv'),
        stack('wo'), stack('bo'), stack('g1'), stack('be1'),
        stack('w1', jnp.bfloat16), stack('b1'),
        stack('w2', jnp.bfloat16), stack('b2'),
        stack('g2'), stack('be2'),
        params['lin1_w'], params['lin1_b'],
        params['lin2_w'], params['lin2_b'],
    ]

    # advisory cost estimate so XLA schedules the fused call sensibly
    flops = (2 * n * IN_PAD * HIDDEN
             + 3 * 2 * n * n * HIDDEN
             + 2 * 2 * n * HIDDEN * HIDDEN
             + 2 * BT * n * HIDDEN
             + NUM_LAYERS * (4 * 2 * BT * HIDDEN * HIDDEN
                             + 2 * 2 * BT * HIDDEN * FFN_DIM
                             + NUM_CONTRACTS * NUM_HEADS * 4 * S_PAD * S_PAD * HIDDEN)
             + 2 * num_contracts * HIDDEN * (HIDDEN + 2))
    transcendentals = NUM_LAYERS * NUM_CONTRACTS * NUM_HEADS * S_PAD * S_PAD + 4 * BT
    bytes_accessed = sum(int(a.size) * a.dtype.itemsize for a in inputs) \
        + num_contracts * 2 * 4

    vmem = pl.BlockSpec(memory_space=pltpu.MemorySpace.VMEM)
    return pl.pallas_call(
        fused_gcn_kernel,
        out_shape=jax.ShapeDtypeStruct((num_contracts, 2), jnp.float32),
        in_specs=[vmem] * len(inputs),
        out_specs=vmem,
        cost_estimate=pl.CostEstimate(flops=int(flops),
                                      transcendentals=int(transcendentals),
                                      bytes_accessed=int(bytes_accessed)),
    )(*inputs)


if __name__ == "__main__":
    key = jax.random.PRNGKey(0)
    k_x, k_src, k_dst = jax.random.split(key, 3)

    x = jax.random.normal(k_x, (NUM_NODES, IN_FEATS), jnp.float32)
    src = jax.random.randint(k_src, (NUM_EDGES,), 0, NUM_NODES)
    dst = jax.random.randint(k_dst, (NUM_EDGES,), 0, NUM_NODES)
    edge_index = jnp.stack([src, dst], axis=0)                    # (2, E)

    nodes_per_graph = NUM_NODES // (NUM_CONTRACTS * NUM_CFG)
    batch = jnp.repeat(jnp.arange(NUM_CONTRACTS * NUM_CFG, dtype=jnp.int32),
                       nodes_per_graph)                           # (N,)
    # last two cfgs of each contract are padded
    mask = jnp.zeros((NUM_CONTRACTS, NUM_CFG), dtype=bool).at[:, -2:].set(True)

    params = init_params(jax.random.PRNGKey(12345))
    out = gcn_forward(params, x, edge_index, batch, mask, NUM_CONTRACTS)
    out = jax.block_until_ready(out)

    assert out.shape == (NUM_CONTRACTS, 2)
    assert bool(jnp.all(jnp.isfinite(out)))
    print("KERNEL_OK")
</pallas_src>

<mosaic_0001>
module attributes {stable_mosaic.version = 11 : i64} {
  func.func @fused_gcn_kernel(%arg0: memref<64x64xf32, #tpu.memory_space<vmem>>, %arg1: memref<64x128xf32, #tpu.memory_space<vmem>>, %arg2: memref<128x32xf32, #tpu.memory_space<vmem>>, %arg3: memref<1x32xf32, #tpu.memory_space<vmem>>, %arg4: memref<32x32xf32, #tpu.memory_space<vmem>>, %arg5: memref<1x32xf32, #tpu.memory_space<vmem>>, %arg6: memref<32x32xf32, #tpu.memory_space<vmem>>, %arg7: memref<1x32xf32, #tpu.memory_space<vmem>>, %arg8: memref<32x64xf32, #tpu.memory_space<vmem>>, %arg9: memref<32x1xf32, #tpu.memory_space<vmem>>, %arg10: memref<1x32xf32, #tpu.memory_space<vmem>>, %arg11: memref<2x1x16xf32, #tpu.memory_space<vmem>>, %arg12: memref<2x32x32xf32, #tpu.memory_space<vmem>>, %arg13: memref<2x32x32xf32, #tpu.memory_space<vmem>>, %arg14: memref<2x32x32xf32, #tpu.memory_space<vmem>>, %arg15: memref<2x1x32xf32, #tpu.memory_space<vmem>>, %arg16: memref<2x1x32xf32, #tpu.memory_space<vmem>>, %arg17: memref<2x1x32xf32, #tpu.memory_space<vmem>>, %arg18: memref<2x32x32xf32, #tpu.memory_space<vmem>>, %arg19: memref<2x1x32xf32, #tpu.memory_space<vmem>>, %arg20: memref<2x1x32xf32, #tpu.memory_space<vmem>>, %arg21: memref<2x1x32xf32, #tpu.memory_space<vmem>>, %arg22: memref<2x32x2048xbf16, #tpu.memory_space<vmem>>, %arg23: memref<2x1x2048xf32, #tpu.memory_space<vmem>>, %arg24: memref<2x2048x32xbf16, #tpu.memory_space<vmem>>, %arg25: memref<2x1x32xf32, #tpu.memory_space<vmem>>, %arg26: memref<2x1x32xf32, #tpu.memory_space<vmem>>, %arg27: memref<2x1x32xf32, #tpu.memory_space<vmem>>, %arg28: memref<32x32xf32, #tpu.memory_space<vmem>>, %arg29: memref<1x32xf32, #tpu.memory_space<vmem>>, %arg30: memref<32x2xf32, #tpu.memory_space<vmem>>, %arg31: memref<1x2xf32, #tpu.memory_space<vmem>>, %arg32: memref<2x2xf32, #tpu.memory_space<vmem>>) attributes {dimension_semantics = [], scalar_prefetch = 0 : i64, scratch_operands = 0 : i64, tpu.core_type = #tpu.core_type<tc>} {
    %c0 = arith.constant 0 : index
    %c0_0 = arith.constant 0 : index
    %0 = vector.load %arg0[%c0, %c0_0] : memref<64x64xf32, #tpu.memory_space<vmem>>, vector<64x64xf32>
    %c0_1 = arith.constant 0 : index
    %c0_2 = arith.constant 0 : index
    %1 = vector.load %arg1[%c0_1, %c0_2] : memref<64x128xf32, #tpu.memory_space<vmem>>, vector<64x128xf32>
    %c0_3 = arith.constant 0 : index
    %c0_4 = arith.constant 0 : index
    %2 = vector.load %arg2[%c0_3, %c0_4] : memref<128x32xf32, #tpu.memory_space<vmem>>, vector<128x32xf32>
    %cst = arith.constant dense<0.000000e+00> : vector<64x32xf32>
    %3 = tpu.matmul %1, %2, %cst {dimension_numbers = #tpu.dot_dimension_numbers<[1], [0], [0], [1], [0, 0, 1, 1], [], []>} : vector<64x128xf32>, vector<128x32xf32>, vector<64x32xf32> -> vector<64x32xf32>
    %cst_5 = arith.constant dense<0.000000e+00> : vector<64x32xf32>
    %4 = tpu.matmul %0, %3, %cst_5 {dimension_numbers = #tpu.dot_dimension_numbers<[1], [0], [0], [1], [0, 0, 1, 1], [], []>} : vector<64x64xf32>, vector<64x32xf32>, vector<64x32xf32> -> vector<64x32xf32>
    %c0_6 = arith.constant 0 : index
    %c0_7 = arith.constant 0 : index
    %5 = vector.load %arg3[%c0_6, %c0_7] : memref<1x32xf32, #tpu.memory_space<vmem>>, vector<1x32xf32>
    %6 = vector.broadcast %5 : vector<1x32xf32> to vector<64x32xf32>
    %7 = arith.addf %4, %6 : vector<64x32xf32>
    %cst_8 = arith.constant 0.000000e+00 : f32
    %8 = vector.broadcast %cst_8 : f32 to vector<64x32xf32>
    %9 = arith.maximumf %7, %8 : vector<64x32xf32>
    %c0_9 = arith.constant 0 : index
    %c0_10 = arith.constant 0 : index
    %10 = vector.load %arg4[%c0_9, %c0_10] : memref<32x32xf32, #tpu.memory_space<vmem>>, vector<32x32xf32>
    %cst_11 = arith.constant dense<0.000000e+00> : vector<64x32xf32>
    %11 = tpu.matmul %9, %10, %cst_11 {dimension_numbers = #tpu.dot_dimension_numbers<[1], [0], [0], [1], [0, 0, 1, 1], [], []>} : vector<64x32xf32>, vector<32x32xf32>, vector<64x32xf32> -> vector<64x32xf32>
    %cst_12 = arith.constant dense<0.000000e+00> : vector<64x32xf32>
    %12 = tpu.matmul %0, %11, %cst_12 {dimension_numbers = #tpu.dot_dimension_numbers<[1], [0], [0], [1], [0, 0, 1, 1], [], []>} : vector<64x64xf32>, vector<64x32xf32>, vector<64x32xf32> -> vector<64x32xf32>
    %c0_13 = arith.constant 0 : index
    %c0_14 = arith.constant 0 : index
    %13 = vector.load %arg5[%c0_13, %c0_14] : memref<1x32xf32, #tpu.memory_space<vmem>>, vector<1x32xf32>
    %14 = vector.broadcast %13 : vector<1x32xf32> to vector<64x32xf32>
    %15 = arith.addf %12, %14 : vector<64x32xf32>
    %cst_15 = arith.constant 0.000000e+00 : f32
    %16 = vector.broadcast %cst_15 : f32 to vector<64x32xf32>
    %17 = arith.maximumf %15, %16 : vector<64x32xf32>
    %c0_16 = arith.constant 0 : index
    %c0_17 = arith.constant 0 : index
    %18 = vector.load %arg6[%c0_16, %c0_17] : memref<32x32xf32, #tpu.memory_space<vmem>>, vector<32x32xf32>
    %cst_18 = arith.constant dense<0.000000e+00> : vector<64x32xf32>
    %19 = tpu.matmul %17, %18, %cst_18 {dimension_numbers = #tpu.dot_dimension_numbers<[1], [0], [0], [1], [0, 0, 1, 1], [], []>} : vector<64x32xf32>, vector<32x32xf32>, vector<64x32xf32> -> vector<64x32xf32>
    %cst_19 = arith.constant dense<0.000000e+00> : vector<64x32xf32>
    %20 = tpu.matmul %0, %19, %cst_19 {dimension_numbers = #tpu.dot_dimension_numbers<[1], [0], [0], [1], [0, 0, 1, 1], [], []>} : vector<64x64xf32>, vector<64x32xf32>, vector<64x32xf32> -> vector<64x32xf32>
    %c0_20 = arith.constant 0 : index
    %c0_21 = arith.constant 0 : index
    %21 = vector.load %arg7[%c0_20, %c0_21] : memref<1x32xf32, #tpu.memory_space<vmem>>, vector<1x32xf32>
    %22 = vector.broadcast %21 : vector<1x32xf32> to vector<64x32xf32>
    %23 = arith.addf %20, %22 : vector<64x32xf32>
    %c0_22 = arith.constant 0 : index
    %c0_23 = arith.constant 0 : index
    %24 = vector.load %arg8[%c0_22, %c0_23] : memref<32x64xf32, #tpu.memory_space<vmem>>, vector<32x64xf32>
    %cst_24 = arith.constant dense<0.000000e+00> : vector<32x32xf32>
    %25 = tpu.matmul %24, %23, %cst_24 {dimension_numbers = #tpu.dot_dimension_numbers<[1], [0], [0], [1], [0, 0, 1, 1], [], []>} : vector<32x64xf32>, vector<64x32xf32>, vector<32x32xf32> -> vector<32x32xf32>
    %c0_25 = arith.constant 0 : index
    %c0_26 = arith.constant 0 : index
    %26 = vector.load %arg9[%c0_25, %c0_26] : memref<32x1xf32, #tpu.memory_space<vmem>>, vector<32x1xf32>
    %c0_27 = arith.constant 0 : index
    %c0_28 = arith.constant 0 : index
    %27 = vector.load %arg10[%c0_27, %c0_28] : memref<1x32xf32, #tpu.memory_space<vmem>>, vector<1x32xf32>
    %28 = vector.broadcast %26 : vector<32x1xf32> to vector<32x32xf32>
    %29 = vector.broadcast %27 : vector<1x32xf32> to vector<32x32xf32>
    %30 = arith.mulf %28, %29 : vector<32x32xf32>
    %31 = arith.addf %25, %30 : vector<32x32xf32>
    %32 = tpu.iota {dimensions = array<i32: 1>} : vector<1x32xi32>
    %c0_i32 = arith.constant 0 : i32
    %33 = vector.broadcast %c0_i32 : i32 to vector<1x32xi32>
    %34 = arith.cmpi sge, %32, %33 : vector<1x32xi32>
    %c16_i32 = arith.constant 16 : i32
    %35 = vector.broadcast %c16_i32 : i32 to vector<1x32xi32>
    %36 = arith.cmpi slt, %32, %35 : vector<1x32xi32>
    %37 = arith.andi %34, %36 : vector<1x32xi1>
    %cst_29 = arith.constant 1.000000e+00 : f32
    %cst_30 = arith.constant 0.000000e+00 : f32
    %38 = vector.broadcast %cst_29 : f32 to vector<1x32xf32>
    %39 = vector.broadcast %cst_30 : f32 to vector<1x32xf32>
    %40 = arith.select %37, %38, %39 : vector<1x32xi1>, vector<1x32xf32>
    %c16_i32_31 = arith.constant 16 : i32
    %41 = vector.broadcast %c16_i32_31 : i32 to vector<1x32xi32>
    %42 = arith.cmpi sge, %32, %41 : vector<1x32xi32>
    %c32_i32 = arith.constant 32 : i32
    %43 = vector.broadcast %c32_i32 : i32 to vector<1x32xi32>
    %44 = arith.cmpi slt, %32, %43 : vector<1x32xi32>
    %45 = arith.andi %42, %44 : vector<1x32xi1>
    %cst_32 = arith.constant 1.000000e+00 : f32
    %cst_33 = arith.constant 0.000000e+00 : f32
    %46 = vector.broadcast %cst_32 : f32 to vector<1x32xf32>
    %47 = vector.broadcast %cst_33 : f32 to vector<1x32xf32>
    %48 = arith.select %45, %46, %47 : vector<1x32xi1>, vector<1x32xf32>
    %c0_34 = arith.constant 0 : index
    %c0_35 = arith.constant 0 : index
    %c0_36 = arith.constant 0 : index
    %49 = vector.load %arg12[%c0_34, %c0_35, %c0_36] : memref<2x32x32xf32, #tpu.memory_space<vmem>>, vector<1x32x32xf32>
    %50 = vector.shape_cast %49 : vector<1x32x32xf32> to vector<32x32xf32>
    %cst_37 = arith.constant dense<0.000000e+00> : vector<32x32xf32>
    %51 = tpu.matmul %31, %50, %cst_37 {dimension_numbers = #tpu.dot_dimension_numbers<[1], [0], [0], [1], [0, 0, 1, 1], [], []>} : vector<32x32xf32>, vector<32x32xf32>, vector<32x32xf32> -> vector<32x32xf32>
    %c0_38 = arith.constant 0 : index
    %c0_39 = arith.constant 0 : index
    %c0_40 = arith.constant 0 : index
    %52 = vector.load %arg15[%c0_38, %c0_39, %c0_40] : memref<2x1x32xf32, #tpu.memory_space<vmem>>, vector<1x1x32xf32>
    %53 = vector.shape_cast %52 : vector<1x1x32xf32> to vector<1x32xf32>
    %54 = vector.broadcast %53 : vector<1x32xf32> to vector<32x32xf32>
    %55 = arith.addf %51, %54 : vector<32x32xf32>
    %c0_41 = arith.constant 0 : index
    %c0_42 = arith.constant 0 : index
    %c0_43 = arith.constant 0 : index
    %56 = vector.load %arg13[%c0_41, %c0_42, %c0_43] : memref<2x32x32xf32, #tpu.memory_space<vmem>>, vector<1x32x32xf32>
    %57 = vector.shape_cast %56 : vector<1x32x32xf32> to vector<32x32xf32>
    %cst_44 = arith.constant dense<0.000000e+00> : vector<32x32xf32>
    %58 = tpu.matmul %31, %57, %cst_44 {dimension_numbers = #tpu.dot_dimension_numbers<[1], [0], [0], [1], [0, 0, 1, 1], [], []>} : vector<32x32xf32>, vector<32x32xf32>, vector<32x32xf32> -> vector<32x32xf32>
    %c0_45 = arith.constant 0 : index
    %c0_46 = arith.constant 0 : index
    %c0_47 = arith.constant 0 : index
    %59 = vector.load %arg16[%c0_45, %c0_46, %c0_47] : memref<2x1x32xf32, #tpu.memory_space<vmem>>, vector<1x1x32xf32>
    %60 = vector.shape_cast %59 : vector<1x1x32xf32> to vector<1x32xf32>
    %61 = vector.broadcast %60 : vector<1x32xf32> to vector<32x32xf32>
    %62 = arith.addf %58, %61 : vector<32x32xf32>
    %c0_48 = arith.constant 0 : index
    %c0_49 = arith.constant 0 : index
    %c0_50 = arith.constant 0 : index
    %63 = vector.load %arg14[%c0_48, %c0_49, %c0_50] : memref<2x32x32xf32, #tpu.memory_space<vmem>>, vector<1x32x32xf32>
    %64 = vector.shape_cast %63 : vector<1x32x32xf32> to vector<32x32xf32>
    %cst_51 = arith.constant dense<0.000000e+00> : vector<32x32xf32>
    %65 = tpu.matmul %31, %64, %cst_51 {dimension_numbers = #tpu.dot_dimension_numbers<[1], [0], [0], [1], [0, 0, 1, 1], [], []>} : vector<32x32xf32>, vector<32x32xf32>, vector<32x32xf32> -> vector<32x32xf32>
    %c0_52 = arith.constant 0 : index
    %c0_53 = arith.constant 0 : index
    %c0_54 = arith.constant 0 : index
    %66 = vector.load %arg17[%c0_52, %c0_53, %c0_54] : memref<2x1x32xf32, #tpu.memory_space<vmem>>, vector<1x1x32xf32>
    %67 = vector.shape_cast %66 : vector<1x1x32xf32> to vector<1x32xf32>
    %68 = vector.broadcast %67 : vector<1x32xf32> to vector<32x32xf32>
    %69 = arith.addf %65, %68 : vector<32x32xf32>
    %70 = vector.extract_strided_slice %55 {offsets = [0, 0], sizes = [16, 32], strides = [1, 1]} : vector<32x32xf32> to vector<16x32xf32>
    %71 = vector.extract_strided_slice %62 {offsets = [0, 0], sizes = [16, 32], strides = [1, 1]} : vector<32x32xf32> to vector<16x32xf32>
    %72 = vector.extract_strided_slice %69 {offsets = [0, 0], sizes = [16, 32], strides = [1, 1]} : vector<32x32xf32> to vector<16x32xf32>
    %c0_55 = arith.constant 0 : index
    %c0_56 = arith.constant 0 : index
    %c0_57 = arith.constant 0 : index
    %73 = vector.load %arg11[%c0_55, %c0_56, %c0_57] : memref<2x1x16xf32, #tpu.memory_space<vmem>>, vector<1x1x16xf32>
    %74 = vector.shape_cast %73 : vector<1x1x16xf32> to vector<1x16xf32>
    %cst_58 = arith.constant 0.000000e+00 : f32
    %75 = vector.broadcast %cst_58 : f32 to vector<16x32xf32>
    %76 = vector.broadcast %40 : vector<1x32xf32> to vector<16x32xf32>
    %77 = arith.mulf %70, %76 : vector<16x32xf32>
    "tpu.trace_start"() <{level = 10 : i32, message = "qd,kd->qk"}> : () -> ()
    %cst_59 = arith.constant dense<0.000000e+00> : vector<16x16xf32>
    %78 = tpu.matmul %77, %71, %cst_59 {dimension_numbers = #tpu.dot_dimension_numbers<[1], [1], [0], [0], [0, 0, 1, 0], [], []>} : vector<16x32xf32>, vector<16x32xf32>, vector<16x16xf32> -> vector<16x16xf32>
    "tpu.trace_stop"() : () -> ()
    %cst_60 = arith.constant 2.500000e-01 : f32
    %79 = vector.broadcast %cst_60 : f32 to vector<16x16xf32>
    %80 = arith.mulf %78, %79 : vector<16x16xf32>
    %81 = vector.broadcast %74 : vector<1x16xf32> to vector<16x16xf32>
    %82 = arith.addf %80, %81 : vector<16x16xf32>
    %cst_61 = arith.constant dense<0xFF800000> : vector<16xf32>
    %83 = vector.multi_reduction <maximumf>, %82, %cst_61 [1] : vector<16x16xf32> to vector<16xf32>
    %84 = vector.shape_cast %83 : vector<16xf32> to vector<16x1xf32>
    %85 = vector.broadcast %84 : vector<16x1xf32> to vector<16x16xf32>
    %86 = arith.subf %82, %85 : vector<16x16xf32>
    %87 = math.exp %86 : vector<16x16xf32>
    %cst_62 = arith.constant dense<0.000000e+00> : vector<16xf32>
    %88 = vector.multi_reduction <add>, %87, %cst_62 [1] : vector<16x16xf32> to vector<16xf32>
    %89 = vector.shape_cast %88 : vector<16xf32> to vector<16x1xf32>
    %90 = tpu.reciprocal %89 {approx = true} : vector<16x1xf32> -> vector<16x1xf32>
    %91 = vector.broadcast %90 : vector<16x1xf32> to vector<16x16xf32>
    %92 = arith.mulf %87, %91 : vector<16x16xf32>
    %93 = vector.broadcast %40 : vector<1x32xf32> to vector<16x32xf32>
    %94 = arith.mulf %72, %93 : vector<16x32xf32>
    %cst_63 = arith.constant dense<0.000000e+00> : vector<16x32xf32>
    %95 = tpu.matmul %92, %94, %cst_63 {dimension_numbers = #tpu.dot_dimension_numbers<[1], [0], [0], [1], [0, 0, 1, 1], [], []>} : vector<16x16xf32>, vector<16x32xf32>, vector<16x32xf32> -> vector<16x32xf32>
    %96 = arith.addf %75, %95 : vector<16x32xf32>
    %97 = vector.broadcast %48 : vector<1x32xf32> to vector<16x32xf32>
    %98 = arith.mulf %70, %97 : vector<16x32xf32>
    "tpu.trace_start"() <{level = 10 : i32, message = "qd,kd->qk"}> : () -> ()
    %cst_64 = arith.constant dense<0.000000e+00> : vector<16x16xf32>
    %99 = tpu.matmul %98, %71, %cst_64 {dimension_numbers = #tpu.dot_dimension_numbers<[1], [1], [0], [0], [0, 0, 1, 0], [], []>} : vector<16x32xf32>, vector<16x32xf32>, vector<16x16xf32> -> vector<16x16xf32>
    "tpu.trace_stop"() : () -> ()
    %cst_65 = arith.constant 2.500000e-01 : f32
    %100 = vector.broadcast %cst_65 : f32 to vector<16x16xf32>
    %101 = arith.mulf %99, %100 : vector<16x16xf32>
    %102 = vector.broadcast %74 : vector<1x16xf32> to vector<16x16xf32>
    %103 = arith.addf %101, %102 : vector<16x16xf32>
    %cst_66 = arith.constant dense<0xFF800000> : vector<16xf32>
    %104 = vector.multi_reduction <maximumf>, %103, %cst_66 [1] : vector<16x16xf32> to vector<16xf32>
    %105 = vector.shape_cast %104 : vector<16xf32> to vector<16x1xf32>
    %106 = vector.broadcast %105 : vector<16x1xf32> to vector<16x16xf32>
    %107 = arith.subf %103, %106 : vector<16x16xf32>
    %108 = math.exp %107 : vector<16x16xf32>
    %cst_67 = arith.constant dense<0.000000e+00> : vector<16xf32>
    %109 = vector.multi_reduction <add>, %108, %cst_67 [1] : vector<16x16xf32> to vector<16xf32>
    %110 = vector.shape_cast %109 : vector<16xf32> to vector<16x1xf32>
    %111 = tpu.reciprocal %110 {approx = true} : vector<16x1xf32> -> vector<16x1xf32>
    %112 = vector.broadcast %111 : vector<16x1xf32> to vector<16x16xf32>
    %113 = arith.mulf %108, %112 : vector<16x16xf32>
    %114 = vector.broadcast %48 : vector<1x32xf32> to vector<16x32xf32>
    %115 = arith.mulf %72, %114 : vector<16x32xf32>
    %cst_68 = arith.constant dense<0.000000e+00> : vector<16x32xf32>
    %116 = tpu.matmul %113, %115, %cst_68 {dimension_numbers = #tpu.dot_dimension_numbers<[1], [0], [0], [1], [0, 0, 1, 1], [], []>} : vector<16x16xf32>, vector<16x32xf32>, vector<16x32xf32> -> vector<16x32xf32>
    %117 = arith.addf %96, %116 : vector<16x32xf32>
    %118 = vector.extract_strided_slice %55 {offsets = [16, 0], sizes = [16, 32], strides = [1, 1]} : vector<32x32xf32> to vector<16x32xf32>
    %119 = vector.extract_strided_slice %62 {offsets = [16, 0], sizes = [16, 32], strides = [1, 1]} : vector<32x32xf32> to vector<16x32xf32>
    %120 = vector.extract_strided_slice %69 {offsets = [16, 0], sizes = [16, 32], strides = [1, 1]} : vector<32x32xf32> to vector<16x32xf32>
    %c1 = arith.constant 1 : index
    %c0_69 = arith.constant 0 : index
    %c0_70 = arith.constant 0 : index
    %121 = vector.load %arg11[%c1, %c0_69, %c0_70] : memref<2x1x16xf32, #tpu.memory_space<vmem>>, vector<1x1x16xf32>
    %122 = vector.shape_cast %121 : vector<1x1x16xf32> to vector<1x16xf32>
    %cst_71 = arith.constant 0.000000e+00 : f32
    %123 = vector.broadcast %cst_71 : f32 to vector<16x32xf32>
    %124 = vector.broadcast %40 : vector<1x32xf32> to vector<16x32xf32>
    %125 = arith.mulf %118, %124 : vector<16x32xf32>
    "tpu.trace_start"() <{level = 10 : i32, message = "qd,kd->qk"}> : () -> ()
    %cst_72 = arith.constant dense<0.000000e+00> : vector<16x16xf32>
    %126 = tpu.matmul %125, %119, %cst_72 {dimension_numbers = #tpu.dot_dimension_numbers<[1], [1], [0], [0], [0, 0, 1, 0], [], []>} : vector<16x32xf32>, vector<16x32xf32>, vector<16x16xf32> -> vector<16x16xf32>
    "tpu.trace_stop"() : () -> ()
    %cst_73 = arith.constant 2.500000e-01 : f32
    %127 = vector.broadcast %cst_73 : f32 to vector<16x16xf32>
    %128 = arith.mulf %126, %127 : vector<16x16xf32>
    %129 = vector.broadcast %122 : vector<1x16xf32> to vector<16x16xf32>
    %130 = arith.addf %128, %129 : vector<16x16xf32>
    %cst_74 = arith.constant dense<0xFF800000> : vector<16xf32>
    %131 = vector.multi_reduction <maximumf>, %130, %cst_74 [1] : vector<16x16xf32> to vector<16xf32>
    %132 = vector.shape_cast %131 : vector<16xf32> to vector<16x1xf32>
    %133 = vector.broadcast %132 : vector<16x1xf32> to vector<16x16xf32>
    %134 = arith.subf %130, %133 : vector<16x16xf32>
    %135 = math.exp %134 : vector<16x16xf32>
    %cst_75 = arith.constant dense<0.000000e+00> : vector<16xf32>
    %136 = vector.multi_reduction <add>, %135, %cst_75 [1] : vector<16x16xf32> to vector<16xf32>
    %137 = vector.shape_cast %136 : vector<16xf32> to vector<16x1xf32>
    %138 = tpu.reciprocal %137 {approx = true} : vector<16x1xf32> -> vector<16x1xf32>
    %139 = vector.broadcast %138 : vector<16x1xf32> to vector<16x16xf32>
    %140 = arith.mulf %135, %139 : vector<16x16xf32>
    %141 = vector.broadcast %40 : vector<1x32xf32> to vector<16x32xf32>
    %142 = arith.mulf %120, %141 : vector<16x32xf32>
    %cst_76 = arith.constant dense<0.000000e+00> : vector<16x32xf32>
    %143 = tpu.matmul %140, %142, %cst_76 {dimension_numbers = #tpu.dot_dimension_numbers<[1], [0], [0], [1], [0, 0, 1, 1], [], []>} : vector<16x16xf32>, vector<16x32xf32>, vector<16x32xf32> -> vector<16x32xf32>
    %144 = arith.addf %123, %143 : vector<16x32xf32>
    %145 = vector.broadcast %48 : vector<1x32xf32> to vector<16x32xf32>
    %146 = arith.mulf %118, %145 : vector<16x32xf32>
    "tpu.trace_start"() <{level = 10 : i32, message = "qd,kd->qk"}> : () -> ()
    %cst_77 = arith.constant dense<0.000000e+00> : vector<16x16xf32>
    %147 = tpu.matmul %146, %119, %cst_77 {dimension_numbers = #tpu.dot_dimension_numbers<[1], [1], [0], [0], [0, 0, 1, 0], [], []>} : vector<16x32xf32>, vector<16x32xf32>, vector<16x16xf32> -> vector<16x16xf32>
    "tpu.trace_stop"() : () -> ()
    %cst_78 = arith.constant 2.500000e-01 : f32
    %148 = vector.broadcast %cst_78 : f32 to vector<16x16xf32>
    %149 = arith.mulf %147, %148 : vector<16x16xf32>
    %150 = vector.broadcast %122 : vector<1x16xf32> to vector<16x16xf32>
    %151 = arith.addf %149, %150 : vector<16x16xf32>
    %cst_79 = arith.constant dense<0xFF800000> : vector<16xf32>
    %152 = vector.multi_reduction <maximumf>, %151, %cst_79 [1] : vector<16x16xf32> to vector<16xf32>
    %153 = vector.shape_cast %152 : vector<16xf32> to vector<16x1xf32>
    %154 = vector.broadcast %153 : vector<16x1xf32> to vector<16x16xf32>
    %155 = arith.subf %151, %154 : vector<16x16xf32>
    %156 = math.exp %155 : vector<16x16xf32>
    %cst_80 = arith.constant dense<0.000000e+00> : vector<16xf32>
    %157 = vector.multi_reduction <add>, %156, %cst_80 [1] : vector<16x16xf32> to vector<16xf32>
    %158 = vector.shape_cast %157 : vector<16xf32> to vector<16x1xf32>
    %159 = tpu.reciprocal %158 {approx = true} : vector<16x1xf32> -> vector<16x1xf32>
    %160 = vector.broadcast %159 : vector<16x1xf32> to vector<16x16xf32>
    %161 = arith.mulf %156, %160 : vector<16x16xf32>
    %162 = vector.broadcast %48 : vector<1x32xf32> to vector<16x32xf32>
    %163 = arith.mulf %120, %162 : vector<16x32xf32>
    %cst_81 = arith.constant dense<0.000000e+00> : vector<16x32xf32>
    %164 = tpu.matmul %161, %163, %cst_81 {dimension_numbers = #tpu.dot_dimension_numbers<[1], [0], [0], [1], [0, 0, 1, 1], [], []>} : vector<16x16xf32>, vector<16x32xf32>, vector<16x32xf32> -> vector<16x32xf32>
    %165 = arith.addf %144, %164 : vector<16x32xf32>
    %166 = tpu.concatenate %117, %165 in 0 : vector<16x32xf32>, vector<16x32xf32> -> vector<32x32xf32>
    %c0_82 = arith.constant 0 : index
    %c0_83 = arith.constant 0 : index
    %c0_84 = arith.constant 0 : index
    %167 = vector.load %arg18[%c0_82, %c0_83, %c0_84] : memref<2x32x32xf32, #tpu.memory_space<vmem>>, vector<1x32x32xf32>
    %168 = vector.shape_cast %167 : vector<1x32x32xf32> to vector<32x32xf32>
    %cst_85 = arith.constant dense<0.000000e+00> : vector<32x32xf32>
    %169 = tpu.matmul %166, %168, %cst_85 {dimension_numbers = #tpu.dot_dimension_numbers<[1], [0], [0], [1], [0, 0, 1, 1], [], []>} : vector<32x32xf32>, vector<32x32xf32>, vector<32x32xf32> -> vector<32x32xf32>
    %c0_86 = arith.constant 0 : index
    %c0_87 = arith.constant 0 : index
    %c0_88 = arith.constant 0 : index
    %170 = vector.load %arg19[%c0_86, %c0_87, %c0_88] : memref<2x1x32xf32, #tpu.memory_space<vmem>>, vector<1x1x32xf32>
    %171 = vector.shape_cast %170 : vector<1x1x32xf32> to vector<1x32xf32>
    %172 = vector.broadcast %171 : vector<1x32xf32> to vector<32x32xf32>
    %173 = arith.addf %169, %172 : vector<32x32xf32>
    %174 = arith.addf %31, %173 : vector<32x32xf32>
    %c0_89 = arith.constant 0 : index
    %c0_90 = arith.constant 0 : index
    %c0_91 = arith.constant 0 : index
    %175 = vector.load %arg20[%c0_89, %c0_90, %c0_91] : memref<2x1x32xf32, #tpu.memory_space<vmem>>, vector<1x1x32xf32>
    %176 = vector.shape_cast %175 : vector<1x1x32xf32> to vector<1x32xf32>
    %c0_92 = arith.constant 0 : index
    %c0_93 = arith.constant 0 : index
    %c0_94 = arith.constant 0 : index
    %177 = vector.load %arg21[%c0_92, %c0_93, %c0_94] : memref<2x1x32xf32, #tpu.memory_space<vmem>>, vector<1x1x32xf32>
    %178 = vector.shape_cast %177 : vector<1x1x32xf32> to vector<1x32xf32>
    %cst_95 = arith.constant dense<0.000000e+00> : vector<32xf32>
    %179 = vector.multi_reduction <add>, %174, %cst_95 [1] : vector<32x32xf32> to vector<32xf32>
    %180 = vector.shape_cast %179 : vector<32xf32> to vector<32x1xf32>
    %cst_96 = arith.constant 3.200000e+01 : f32
    %181 = vector.broadcast %cst_96 : f32 to vector<32x1xf32>
    %182 = arith.divf %180, %181 : vector<32x1xf32>
    %183 = vector.broadcast %182 : vector<32x1xf32> to vector<32x32xf32>
    %184 = arith.subf %174, %183 : vector<32x32xf32>
    %185 = arith.mulf %184, %184 : vector<32x32xf32>
    %cst_97 = arith.constant dense<0.000000e+00> : vector<32xf32>
    %186 = vector.multi_reduction <add>, %185, %cst_97 [1] : vector<32x32xf32> to vector<32xf32>
    %187 = vector.shape_cast %186 : vector<32xf32> to vector<32x1xf32>
    %cst_98 = arith.constant 3.200000e+01 : f32
    %188 = vector.broadcast %cst_98 : f32 to vector<32x1xf32>
    %189 = arith.divf %187, %188 : vector<32x1xf32>
    %190 = vector.broadcast %182 : vector<32x1xf32> to vector<32x32xf32>
    %191 = arith.subf %174, %190 : vector<32x32xf32>
    %cst_99 = arith.constant 9.99999974E-6 : f32
    %192 = vector.broadcast %cst_99 : f32 to vector<32x1xf32>
    %193 = arith.addf %189, %192 : vector<32x1xf32>
    %194 = math.rsqrt %193 : vector<32x1xf32>
    %195 = vector.broadcast %194 : vector<32x1xf32> to vector<32x32xf32>
    %196 = arith.mulf %191, %195 : vector<32x32xf32>
    %197 = vector.broadcast %176 : vector<1x32xf32> to vector<32x32xf32>
    %198 = arith.mulf %196, %197 : vector<32x32xf32>
    %199 = vector.broadcast %178 : vector<1x32xf32> to vector<32x32xf32>
    %200 = arith.addf %198, %199 : vector<32x32xf32>
    %201 = arith.truncf %200 : vector<32x32xf32> to vector<32x32xbf16>
    %c0_100 = arith.constant 0 : index
    %c0_101 = arith.constant 0 : index
    %c0_102 = arith.constant 0 : index
    %202 = vector.load %arg22[%c0_100, %c0_101, %c0_102] : memref<2x32x2048xbf16, #tpu.memory_space<vmem>>, vector<1x32x2048xbf16>
    %203 = vector.shape_cast %202 : vector<1x32x2048xbf16> to vector<32x2048xbf16>
    %cst_103 = arith.constant dense<0.000000e+00> : vector<32x2048xf32>
    %204 = tpu.matmul %201, %203, %cst_103 {dimension_numbers = #tpu.dot_dimension_numbers<[1], [0], [0], [1], [0, 0, 1, 1], [], []>} : vector<32x32xbf16>, vector<32x2048xbf16>, vector<32x2048xf32> -> vector<32x2048xf32>
    %c0_104 = arith.constant 0 : index
    %c0_105 = arith.constant 0 : index
    %c0_106 = arith.constant 0 : index
    %205 = vector.load %arg23[%c0_104, %c0_105, %c0_106] : memref<2x1x2048xf32, #tpu.memory_space<vmem>>, vector<1x1x2048xf32>
    %206 = vector.shape_cast %205 : vector<1x1x2048xf32> to vector<1x2048xf32>
    %207 = vector.broadcast %206 : vector<1x2048xf32> to vector<32x2048xf32>
    %208 = arith.addf %204, %207 : vector<32x2048xf32>
    %cst_107 = arith.constant 0.000000e+00 : f32
    %209 = vector.broadcast %cst_107 : f32 to vector<32x2048xf32>
    %210 = arith.maximumf %208, %209 : vector<32x2048xf32>
    %211 = arith.truncf %210 : vector<32x2048xf32> to vector<32x2048xbf16>
    %c0_108 = arith.constant 0 : index
    %c0_109 = arith.constant 0 : index
    %c0_110 = arith.constant 0 : index
    %212 = vector.load %arg24[%c0_108, %c0_109, %c0_110] : memref<2x2048x32xbf16, #tpu.memory_space<vmem>>, vector<1x2048x32xbf16>
    %213 = vector.shape_cast %212 : vector<1x2048x32xbf16> to vector<2048x32xbf16>
    %cst_111 = arith.constant dense<0.000000e+00> : vector<32x32xf32>
    %214 = tpu.matmul %211, %213, %cst_111 {dimension_numbers = #tpu.dot_dimension_numbers<[1], [0], [0], [1], [0, 0, 1, 1], [], []>} : vector<32x2048xbf16>, vector<2048x32xbf16>, vector<32x32xf32> -> vector<32x32xf32>
    %c0_112 = arith.constant 0 : index
    %c0_113 = arith.constant 0 : index
    %c0_114 = arith.constant 0 : index
    %215 = vector.load %arg25[%c0_112, %c0_113, %c0_114] : memref<2x1x32xf32, #tpu.memory_space<vmem>>, vector<1x1x32xf32>
    %216 = vector.shape_cast %215 : vector<1x1x32xf32> to vector<1x32xf32>
    %217 = vector.broadcast %216 : vector<1x32xf32> to vector<32x32xf32>
    %218 = arith.addf %214, %217 : vector<32x32xf32>
    %219 = arith.addf %200, %218 : vector<32x32xf32>
    %c0_115 = arith.constant 0 : index
    %c0_116 = arith.constant 0 : index
    %c0_117 = arith.constant 0 : index
    %220 = vector.load %arg26[%c0_115, %c0_116, %c0_117] : memref<2x1x32xf32, #tpu.memory_space<vmem>>, vector<1x1x32xf32>
    %221 = vector.shape_cast %220 : vector<1x1x32xf32> to vector<1x32xf32>
    %c0_118 = arith.constant 0 : index
    %c0_119 = arith.constant 0 : index
    %c0_120 = arith.constant 0 : index
    %222 = vector.load %arg27[%c0_118, %c0_119, %c0_120] : memref<2x1x32xf32, #tpu.memory_space<vmem>>, vector<1x1x32xf32>
    %223 = vector.shape_cast %222 : vector<1x1x32xf32> to vector<1x32xf32>
    %cst_121 = arith.constant dense<0.000000e+00> : vector<32xf32>
    %224 = vector.multi_reduction <add>, %219, %cst_121 [1] : vector<32x32xf32> to vector<32xf32>
    %225 = vector.shape_cast %224 : vector<32xf32> to vector<32x1xf32>
    %cst_122 = arith.constant 3.200000e+01 : f32
    %226 = vector.broadcast %cst_122 : f32 to vector<32x1xf32>
    %227 = arith.divf %225, %226 : vector<32x1xf32>
    %228 = vector.broadcast %227 : vector<32x1xf32> to vector<32x32xf32>
    %229 = arith.subf %219, %228 : vector<32x32xf32>
    %230 = arith.mulf %229, %229 : vector<32x32xf32>
    %cst_123 = arith.constant dense<0.000000e+00> : vector<32xf32>
    %231 = vector.multi_reduction <add>, %230, %cst_123 [1] : vector<32x32xf32> to vector<32xf32>
    %232 = vector.shape_cast %231 : vector<32xf32> to vector<32x1xf32>
    %cst_124 = arith.constant 3.200000e+01 : f32
    %233 = vector.broadcast %cst_124 : f32 to vector<32x1xf32>
    %234 = arith.divf %232, %233 : vector<32x1xf32>
    %235 = vector.broadcast %227 : vector<32x1xf32> to vector<32x32xf32>
    %236 = arith.subf %219, %235 : vector<32x32xf32>
    %cst_125 = arith.constant 9.99999974E-6 : f32
    %237 = vector.broadcast %cst_125 : f32 to vector<32x1xf32>
    %238 = arith.addf %234, %237 : vector<32x1xf32>
    %239 = math.rsqrt %238 : vector<32x1xf32>
    %240 = vector.broadcast %239 : vector<32x1xf32> to vector<32x32xf32>
    %241 = arith.mulf %236, %240 : vector<32x32xf32>
    %242 = vector.broadcast %221 : vector<1x32xf32> to vector<32x32xf32>
    %243 = arith.mulf %241, %242 : vector<32x32xf32>
    %244 = vector.broadcast %223 : vector<1x32xf32> to vector<32x32xf32>
    %245 = arith.addf %243, %244 : vector<32x32xf32>
    %c1_126 = arith.constant 1 : index
    %c0_127 = arith.constant 0 : index
    %c0_128 = arith.constant 0 : index
    %246 = vector.load %arg12[%c1_126, %c0_127, %c0_128] : memref<2x32x32xf32, #tpu.memory_space<vmem>>, vector<1x32x32xf32>
    %247 = vector.shape_cast %246 : vector<1x32x32xf32> to vector<32x32xf32>
    %cst_129 = arith.constant dense<0.000000e+00> : vector<32x32xf32>
    %248 = tpu.matmul %245, %247, %cst_129 {dimension_numbers = #tpu.dot_dimension_numbers<[1], [0], [0], [1], [0, 0, 1, 1], [], []>} : vector<32x32xf32>, vector<32x32xf32>, vector<32x32xf32> -> vector<32x32xf32>
    %c1_130 = arith.constant 1 : index
    %c0_131 = arith.constant 0 : index
    %c0_132 = arith.constant 0 : index
    %249 = vector.load %arg15[%c1_130, %c0_131, %c0_132] : memref<2x1x32xf32, #tpu.memory_space<vmem>>, vector<1x1x32xf32>
    %250 = vector.shape_cast %249 : vector<1x1x32xf32> to vector<1x32xf32>
    %251 = vector.broadcast %250 : vector<1x32xf32> to vector<32x32xf32>
    %252 = arith.addf %248, %251 : vector<32x32xf32>
    %c1_133 = arith.constant 1 : index
    %c0_134 = arith.constant 0 : index
    %c0_135 = arith.constant 0 : index
    %253 = vector.load %arg13[%c1_133, %c0_134, %c0_135] : memref<2x32x32xf32, #tpu.memory_space<vmem>>, vector<1x32x32xf32>
    %254 = vector.shape_cast %253 : vector<1x32x32xf32> to vector<32x32xf32>
    %cst_136 = arith.constant dense<0.000000e+00> : vector<32x32xf32>
    %255 = tpu.matmul %245, %254, %cst_136 {dimension_numbers = #tpu.dot_dimension_numbers<[1], [0], [0], [1], [0, 0, 1, 1], [], []>} : vector<32x32xf32>, vector<32x32xf32>, vector<32x32xf32> -> vector<32x32xf32>
    %c1_137 = arith.constant 1 : index
    %c0_138 = arith.constant 0 : index
    %c0_139 = arith.constant 0 : index
    %256 = vector.load %arg16[%c1_137, %c0_138, %c0_139] : memref<2x1x32xf32, #tpu.memory_space<vmem>>, vector<1x1x32xf32>
    %257 = vector.shape_cast %256 : vector<1x1x32xf32> to vector<1x32xf32>
    %258 = vector.broadcast %257 : vector<1x32xf32> to vector<32x32xf32>
    %259 = arith.addf %255, %258 : vector<32x32xf32>
    %c1_140 = arith.constant 1 : index
    %c0_141 = arith.constant 0 : index
    %c0_142 = arith.constant 0 : index
    %260 = vector.load %arg14[%c1_140, %c0_141, %c0_142] : memref<2x32x32xf32, #tpu.memory_space<vmem>>, vector<1x32x32xf32>
    %261 = vector.shape_cast %260 : vector<1x32x32xf32> to vector<32x32xf32>
    %cst_143 = arith.constant dense<0.000000e+00> : vector<32x32xf32>
    %262 = tpu.matmul %245, %261, %cst_143 {dimension_numbers = #tpu.dot_dimension_numbers<[1], [0], [0], [1], [0, 0, 1, 1], [], []>} : vector<32x32xf32>, vector<32x32xf32>, vector<32x32xf32> -> vector<32x32xf32>
    %c1_144 = arith.constant 1 : index
    %c0_145 = arith.constant 0 : index
    %c0_146 = arith.constant 0 : index
    %263 = vector.load %arg17[%c1_144, %c0_145, %c0_146] : memref<2x1x32xf32, #tpu.memory_space<vmem>>, vector<1x1x32xf32>
    %264 = vector.shape_cast %263 : vector<1x1x32xf32> to vector<1x32xf32>
    %265 = vector.broadcast %264 : vector<1x32xf32> to vector<32x32xf32>
    %266 = arith.addf %262, %265 : vector<32x32xf32>
    %267 = vector.extract_strided_slice %252 {offsets = [0, 0], sizes = [16, 32], strides = [1, 1]} : vector<32x32xf32> to vector<16x32xf32>
    %268 = vector.extract_strided_slice %259 {offsets = [0, 0], sizes = [16, 32], strides = [1, 1]} : vector<32x32xf32> to vector<16x32xf32>
    %269 = vector.extract_strided_slice %266 {offsets = [0, 0], sizes = [16, 32], strides = [1, 1]} : vector<32x32xf32> to vector<16x32xf32>
    %c0_147 = arith.constant 0 : index
    %c0_148 = arith.constant 0 : index
    %c0_149 = arith.constant 0 : index
    %270 = vector.load %arg11[%c0_147, %c0_148, %c0_149] : memref<2x1x16xf32, #tpu.memory_space<vmem>>, vector<1x1x16xf32>
    %271 = vector.shape_cast %270 : vector<1x1x16xf32> to vector<1x16xf32>
    %cst_150 = arith.constant 0.000000e+00 : f32
    %272 = vector.broadcast %cst_150 : f32 to vector<16x32xf32>
    %273 = vector.broadcast %40 : vector<1x32xf32> to vector<16x32xf32>
    %274 = arith.mulf %267, %273 : vector<16x32xf32>
    "tpu.trace_start"() <{level = 10 : i32, message = "qd,kd->qk"}> : () -> ()
    %cst_151 = arith.constant dense<0.000000e+00> : vector<16x16xf32>
    %275 = tpu.matmul %274, %268, %cst_151 {dimension_numbers = #tpu.dot_dimension_numbers<[1], [1], [0], [0], [0, 0, 1, 0], [], []>} : vector<16x32xf32>, vector<16x32xf32>, vector<16x16xf32> -> vector<16x16xf32>
    "tpu.trace_stop"() : () -> ()
    %cst_152 = arith.constant 2.500000e-01 : f32
    %276 = vector.broadcast %cst_152 : f32 to vector<16x16xf32>
    %277 = arith.mulf %275, %276 : vector<16x16xf32>
    %278 = vector.broadcast %271 : vector<1x16xf32> to vector<16x16xf32>
    %279 = arith.addf %277, %278 : vector<16x16xf32>
    %cst_153 = arith.constant dense<0xFF800000> : vector<16xf32>
    %280 = vector.multi_reduction <maximumf>, %279, %cst_153 [1] : vector<16x16xf32> to vector<16xf32>
    %281 = vector.shape_cast %280 : vector<16xf32> to vector<16x1xf32>
    %282 = vector.broadcast %281 : vector<16x1xf32> to vector<16x16xf32>
    %283 = arith.subf %279, %282 : vector<16x16xf32>
    %284 = math.exp %283 : vector<16x16xf32>
    %cst_154 = arith.constant dense<0.000000e+00> : vector<16xf32>
    %285 = vector.multi_reduction <add>, %284, %cst_154 [1] : vector<16x16xf32> to vector<16xf32>
    %286 = vector.shape_cast %285 : vector<16xf32> to vector<16x1xf32>
    %287 = tpu.reciprocal %286 {approx = true} : vector<16x1xf32> -> vector<16x1xf32>
    %288 = vector.broadcast %287 : vector<16x1xf32> to vector<16x16xf32>
    %289 = arith.mulf %284, %288 : vector<16x16xf32>
    %290 = vector.broadcast %40 : vector<1x32xf32> to vector<16x32xf32>
    %291 = arith.mulf %269, %290 : vector<16x32xf32>
    %cst_155 = arith.constant dense<0.000000e+00> : vector<16x32xf32>
    %292 = tpu.matmul %289, %291, %cst_155 {dimension_numbers = #tpu.dot_dimension_numbers<[1], [0], [0], [1], [0, 0, 1, 1], [], []>} : vector<16x16xf32>, vector<16x32xf32>, vector<16x32xf32> -> vector<16x32xf32>
    %293 = arith.addf %272, %292 : vector<16x32xf32>
    %294 = vector.broadcast %48 : vector<1x32xf32> to vector<16x32xf32>
    %295 = arith.mulf %267, %294 : vector<16x32xf32>
    "tpu.trace_start"() <{level = 10 : i32, message = "qd,kd->qk"}> : () -> ()
    %cst_156 = arith.constant dense<0.000000e+00> : vector<16x16xf32>
    %296 = tpu.matmul %295, %268, %cst_156 {dimension_numbers = #tpu.dot_dimension_numbers<[1], [1], [0], [0], [0, 0, 1, 0], [], []>} : vector<16x32xf32>, vector<16x32xf32>, vector<16x16xf32> -> vector<16x16xf32>
    "tpu.trace_stop"() : () -> ()
    %cst_157 = arith.constant 2.500000e-01 : f32
    %297 = vector.broadcast %cst_157 : f32 to vector<16x16xf32>
    %298 = arith.mulf %296, %297 : vector<16x16xf32>
    %299 = vector.broadcast %271 : vector<1x16xf32> to vector<16x16xf32>
    %300 = arith.addf %298, %299 : vector<16x16xf32>
    %cst_158 = arith.constant dense<0xFF800000> : vector<16xf32>
    %301 = vector.multi_reduction <maximumf>, %300, %cst_158 [1] : vector<16x16xf32> to vector<16xf32>
    %302 = vector.shape_cast %301 : vector<16xf32> to vector<16x1xf32>
    %303 = vector.broadcast %302 : vector<16x1xf32> to vector<16x16xf32>
    %304 = arith.subf %300, %303 : vector<16x16xf32>
    %305 = math.exp %304 : vector<16x16xf32>
    %cst_159 = arith.constant dense<0.000000e+00> : vector<16xf32>
    %306 = vector.multi_reduction <add>, %305, %cst_159 [1] : vector<16x16xf32> to vector<16xf32>
    %307 = vector.shape_cast %306 : vector<16xf32> to vector<16x1xf32>
    %308 = tpu.reciprocal %307 {approx = true} : vector<16x1xf32> -> vector<16x1xf32>
    %309 = vector.broadcast %308 : vector<16x1xf32> to vector<16x16xf32>
    %310 = arith.mulf %305, %309 : vector<16x16xf32>
    %311 = vector.broadcast %48 : vector<1x32xf32> to vector<16x32xf32>
    %312 = arith.mulf %269, %311 : vector<16x32xf32>
    %cst_160 = arith.constant dense<0.000000e+00> : vector<16x32xf32>
    %313 = tpu.matmul %310, %312, %cst_160 {dimension_numbers = #tpu.dot_dimension_numbers<[1], [0], [0], [1], [0, 0, 1, 1], [], []>} : vector<16x16xf32>, vector<16x32xf32>, vector<16x32xf32> -> vector<16x32xf32>
    %314 = arith.addf %293, %313 : vector<16x32xf32>
    %315 = vector.extract_strided_slice %252 {offsets = [16, 0], sizes = [16, 32], strides = [1, 1]} : vector<32x32xf32> to vector<16x32xf32>
    %316 = vector.extract_strided_slice %259 {offsets = [16, 0], sizes = [16, 32], strides = [1, 1]} : vector<32x32xf32> to vector<16x32xf32>
    %317 = vector.extract_strided_slice %266 {offsets = [16, 0], sizes = [16, 32], strides = [1, 1]} : vector<32x32xf32> to vector<16x32xf32>
    %c1_161 = arith.constant 1 : index
    %c0_162 = arith.constant 0 : index
    %c0_163 = arith.constant 0 : index
    %318 = vector.load %arg11[%c1_161, %c0_162, %c0_163] : memref<2x1x16xf32, #tpu.memory_space<vmem>>, vector<1x1x16xf32>
    %319 = vector.shape_cast %318 : vector<1x1x16xf32> to vector<1x16xf32>
    %cst_164 = arith.constant 0.000000e+00 : f32
    %320 = vector.broadcast %cst_164 : f32 to vector<16x32xf32>
    %321 = vector.broadcast %40 : vector<1x32xf32> to vector<16x32xf32>
    %322 = arith.mulf %315, %321 : vector<16x32xf32>
    "tpu.trace_start"() <{level = 10 : i32, message = "qd,kd->qk"}> : () -> ()
    %cst_165 = arith.constant dense<0.000000e+00> : vector<16x16xf32>
    %323 = tpu.matmul %322, %316, %cst_165 {dimension_numbers = #tpu.dot_dimension_numbers<[1], [1], [0], [0], [0, 0, 1, 0], [], []>} : vector<16x32xf32>, vector<16x32xf32>, vector<16x16xf32> -> vector<16x16xf32>
    "tpu.trace_stop"() : () -> ()
    %cst_166 = arith.constant 2.500000e-01 : f32
    %324 = vector.broadcast %cst_166 : f32 to vector<16x16xf32>
    %325 = arith.mulf %323, %324 : vector<16x16xf32>
    %326 = vector.broadcast %319 : vector<1x16xf32> to vector<16x16xf32>
    %327 = arith.addf %325, %326 : vector<16x16xf32>
    %cst_167 = arith.constant dense<0xFF800000> : vector<16xf32>
    %328 = vector.multi_reduction <maximumf>, %327, %cst_167 [1] : vector<16x16xf32> to vector<16xf32>
    %329 = vector.shape_cast %328 : vector<16xf32> to vector<16x1xf32>
    %330 = vector.broadcast %329 : vector<16x1xf32> to vector<16x16xf32>
    %331 = arith.subf %327, %330 : vector<16x16xf32>
    %332 = math.exp %331 : vector<16x16xf32>
    %cst_168 = arith.constant dense<0.000000e+00> : vector<16xf32>
    %333 = vector.multi_reduction <add>, %332, %cst_168 [1] : vector<16x16xf32> to vector<16xf32>
    %334 = vector.shape_cast %333 : vector<16xf32> to vector<16x1xf32>
    %335 = tpu.reciprocal %334 {approx = true} : vector<16x1xf32> -> vector<16x1xf32>
    %336 = vector.broadcast %335 : vector<16x1xf32> to vector<16x16xf32>
    %337 = arith.mulf %332, %336 : vector<16x16xf32>
    %338 = vector.broadcast %40 : vector<1x32xf32> to vector<16x32xf32>
    %339 = arith.mulf %317, %338 : vector<16x32xf32>
    %cst_169 = arith.constant dense<0.000000e+00> : vector<16x32xf32>
    %340 = tpu.matmul %337, %339, %cst_169 {dimension_numbers = #tpu.dot_dimension_numbers<[1], [0], [0], [1], [0, 0, 1, 1], [], []>} : vector<16x16xf32>, vector<16x32xf32>, vector<16x32xf32> -> vector<16x32xf32>
    %341 = arith.addf %320, %340 : vector<16x32xf32>
    %342 = vector.broadcast %48 : vector<1x32xf32> to vector<16x32xf32>
    %343 = arith.mulf %315, %342 : vector<16x32xf32>
    "tpu.trace_start"() <{level = 10 : i32, message = "qd,kd->qk"}> : () -> ()
    %cst_170 = arith.constant dense<0.000000e+00> : vector<16x16xf32>
    %344 = tpu.matmul %343, %316, %cst_170 {dimension_numbers = #tpu.dot_dimension_numbers<[1], [1], [0], [0], [0, 0, 1, 0], [], []>} : vector<16x32xf32>, vector<16x32xf32>, vector<16x16xf32> -> vector<16x16xf32>
    "tpu.trace_stop"() : () -> ()
    %cst_171 = arith.constant 2.500000e-01 : f32
    %345 = vector.broadcast %cst_171 : f32 to vector<16x16xf32>
    %346 = arith.mulf %344, %345 : vector<16x16xf32>
    %347 = vector.broadcast %319 : vector<1x16xf32> to vector<16x16xf32>
    %348 = arith.addf %346, %347 : vector<16x16xf32>
    %cst_172 = arith.constant dense<0xFF800000> : vector<16xf32>
    %349 = vector.multi_reduction <maximumf>, %348, %cst_172 [1] : vector<16x16xf32> to vector<16xf32>
    %350 = vector.shape_cast %349 : vector<16xf32> to vector<16x1xf32>
    %351 = vector.broadcast %350 : vector<16x1xf32> to vector<16x16xf32>
    %352 = arith.subf %348, %351 : vector<16x16xf32>
    %353 = math.exp %352 : vector<16x16xf32>
    %cst_173 = arith.constant dense<0.000000e+00> : vector<16xf32>
    %354 = vector.multi_reduction <add>, %353, %cst_173 [1] : vector<16x16xf32> to vector<16xf32>
    %355 = vector.shape_cast %354 : vector<16xf32> to vector<16x1xf32>
    %356 = tpu.reciprocal %355 {approx = true} : vector<16x1xf32> -> vector<16x1xf32>
    %357 = vector.broadcast %356 : vector<16x1xf32> to vector<16x16xf32>
    %358 = arith.mulf %353, %357 : vector<16x16xf32>
    %359 = vector.broadcast %48 : vector<1x32xf32> to vector<16x32xf32>
    %360 = arith.mulf %317, %359 : vector<16x32xf32>
    %cst_174 = arith.constant dense<0.000000e+00> : vector<16x32xf32>
    %361 = tpu.matmul %358, %360, %cst_174 {dimension_numbers = #tpu.dot_dimension_numbers<[1], [0], [0], [1], [0, 0, 1, 1], [], []>} : vector<16x16xf32>, vector<16x32xf32>, vector<16x32xf32> -> vector<16x32xf32>
    %362 = arith.addf %341, %361 : vector<16x32xf32>
    %363 = tpu.concatenate %314, %362 in 0 : vector<16x32xf32>, vector<16x32xf32> -> vector<32x32xf32>
    %c1_175 = arith.constant 1 : index
    %c0_176 = arith.constant 0 : index
    %c0_177 = arith.constant 0 : index
    %364 = vector.load %arg18[%c1_175, %c0_176, %c0_177] : memref<2x32x32xf32, #tpu.memory_space<vmem>>, vector<1x32x32xf32>
    %365 = vector.shape_cast %364 : vector<1x32x32xf32> to vector<32x32xf32>
    %cst_178 = arith.constant dense<0.000000e+00> : vector<32x32xf32>
    %366 = tpu.matmul %363, %365, %cst_178 {dimension_numbers = #tpu.dot_dimension_numbers<[1], [0], [0], [1], [0, 0, 1, 1], [], []>} : vector<32x32xf32>, vector<32x32xf32>, vector<32x32xf32> -> vector<32x32xf32>
    %c1_179 = arith.constant 1 : index
    %c0_180 = arith.constant 0 : index
    %c0_181 = arith.constant 0 : index
    %367 = vector.load %arg19[%c1_179, %c0_180, %c0_181] : memref<2x1x32xf32, #tpu.memory_space<vmem>>, vector<1x1x32xf32>
    %368 = vector.shape_cast %367 : vector<1x1x32xf32> to vector<1x32xf32>
    %369 = vector.broadcast %368 : vector<1x32xf32> to vector<32x32xf32>
    %370 = arith.addf %366, %369 : vector<32x32xf32>
    %371 = arith.addf %245, %370 : vector<32x32xf32>
    %c1_182 = arith.constant 1 : index
    %c0_183 = arith.constant 0 : index
    %c0_184 = arith.constant 0 : index
    %372 = vector.load %arg20[%c1_182, %c0_183, %c0_184] : memref<2x1x32xf32, #tpu.memory_space<vmem>>, vector<1x1x32xf32>
    %373 = vector.shape_cast %372 : vector<1x1x32xf32> to vector<1x32xf32>
    %c1_185 = arith.constant 1 : index
    %c0_186 = arith.constant 0 : index
    %c0_187 = arith.constant 0 : index
    %374 = vector.load %arg21[%c1_185, %c0_186, %c0_187] : memref<2x1x32xf32, #tpu.memory_space<vmem>>, vector<1x1x32xf32>
    %375 = vector.shape_cast %374 : vector<1x1x32xf32> to vector<1x32xf32>
    %cst_188 = arith.constant dense<0.000000e+00> : vector<32xf32>
    %376 = vector.multi_reduction <add>, %371, %cst_188 [1] : vector<32x32xf32> to vector<32xf32>
    %377 = vector.shape_cast %376 : vector<32xf32> to vector<32x1xf32>
    %cst_189 = arith.constant 3.200000e+01 : f32
    %378 = vector.broadcast %cst_189 : f32 to vector<32x1xf32>
    %379 = arith.divf %377, %378 : vector<32x1xf32>
    %380 = vector.broadcast %379 : vector<32x1xf32> to vector<32x32xf32>
    %381 = arith.subf %371, %380 : vector<32x32xf32>
    %382 = arith.mulf %381, %381 : vector<32x32xf32>
    %cst_190 = arith.constant dense<0.000000e+00> : vector<32xf32>
    %383 = vector.multi_reduction <add>, %382, %cst_190 [1] : vector<32x32xf32> to vector<32xf32>
    %384 = vector.shape_cast %383 : vector<32xf32> to vector<32x1xf32>
    %cst_191 = arith.constant 3.200000e+01 : f32
    %385 = vector.broadcast %cst_191 : f32 to vector<32x1xf32>
    %386 = arith.divf %384, %385 : vector<32x1xf32>
    %387 = vector.broadcast %379 : vector<32x1xf32> to vector<32x32xf32>
    %388 = arith.subf %371, %387 : vector<32x32xf32>
    %cst_192 = arith.constant 9.99999974E-6 : f32
    %389 = vector.broadcast %cst_192 : f32 to vector<32x1xf32>
    %390 = arith.addf %386, %389 : vector<32x1xf32>
    %391 = math.rsqrt %390 : vector<32x1xf32>
    %392 = vector.broadcast %391 : vector<32x1xf32> to vector<32x32xf32>
    %393 = arith.mulf %388, %392 : vector<32x32xf32>
    %394 = vector.broadcast %373 : vector<1x32xf32> to vector<32x32xf32>
    %395 = arith.mulf %393, %394 : vector<32x32xf32>
    %396 = vector.broadcast %375 : vector<1x32xf32> to vector<32x32xf32>
    %397 = arith.addf %395, %396 : vector<32x32xf32>
    %398 = arith.truncf %397 : vector<32x32xf32> to vector<32x32xbf16>
    %c1_193 = arith.constant 1 : index
    %c0_194 = arith.constant 0 : index
    %c0_195 = arith.constant 0 : index
    %399 = vector.load %arg22[%c1_193, %c0_194, %c0_195] : memref<2x32x2048xbf16, #tpu.memory_space<vmem>>, vector<1x32x2048xbf16>
    %400 = vector.shape_cast %399 : vector<1x32x2048xbf16> to vector<32x2048xbf16>
    %cst_196 = arith.constant dense<0.000000e+00> : vector<32x2048xf32>
    %401 = tpu.matmul %398, %400, %cst_196 {dimension_numbers = #tpu.dot_dimension_numbers<[1], [0], [0], [1], [0, 0, 1, 1], [], []>} : vector<32x32xbf16>, vector<32x2048xbf16>, vector<32x2048xf32> -> vector<32x2048xf32>
    %c1_197 = arith.constant 1 : index
    %c0_198 = arith.constant 0 : index
    %c0_199 = arith.constant 0 : index
    %402 = vector.load %arg23[%c1_197, %c0_198, %c0_199] : memref<2x1x2048xf32, #tpu.memory_space<vmem>>, vector<1x1x2048xf32>
    %403 = vector.shape_cast %402 : vector<1x1x2048xf32> to vector<1x2048xf32>
    %404 = vector.broadcast %403 : vector<1x2048xf32> to vector<32x2048xf32>
    %405 = arith.addf %401, %404 : vector<32x2048xf32>
    %cst_200 = arith.constant 0.000000e+00 : f32
    %406 = vector.broadcast %cst_200 : f32 to vector<32x2048xf32>
    %407 = arith.maximumf %405, %406 : vector<32x2048xf32>
    %408 = arith.truncf %407 : vector<32x2048xf32> to vector<32x2048xbf16>
    %c1_201 = arith.constant 1 : index
    %c0_202 = arith.constant 0 : index
    %c0_203 = arith.constant 0 : index
    %409 = vector.load %arg24[%c1_201, %c0_202, %c0_203] : memref<2x2048x32xbf16, #tpu.memory_space<vmem>>, vector<1x2048x32xbf16>
    %410 = vector.shape_cast %409 : vector<1x2048x32xbf16> to vector<2048x32xbf16>
    %cst_204 = arith.constant dense<0.000000e+00> : vector<32x32xf32>
    %411 = tpu.matmul %408, %410, %cst_204 {dimension_numbers = #tpu.dot_dimension_numbers<[1], [0], [0], [1], [0, 0, 1, 1], [], []>} : vector<32x2048xbf16>, vector<2048x32xbf16>, vector<32x32xf32> -> vector<32x32xf32>
    %c1_205 = arith.constant 1 : index
    %c0_206 = arith.constant 0 : index
    %c0_207 = arith.constant 0 : index
    %412 = vector.load %arg25[%c1_205, %c0_206, %c0_207] : memref<2x1x32xf32, #tpu.memory_space<vmem>>, vector<1x1x32xf32>
    %413 = vector.shape_cast %412 : vector<1x1x32xf32> to vector<1x32xf32>
    %414 = vector.broadcast %413 : vector<1x32xf32> to vector<32x32xf32>
    %415 = arith.addf %411, %414 : vector<32x32xf32>
    %416 = arith.addf %397, %415 : vector<32x32xf32>
    %c1_208 = arith.constant 1 : index
    %c0_209 = arith.constant 0 : index
    %c0_210 = arith.constant 0 : index
    %417 = vector.load %arg26[%c1_208, %c0_209, %c0_210] : memref<2x1x32xf32, #tpu.memory_space<vmem>>, vector<1x1x32xf32>
    %418 = vector.shape_cast %417 : vector<1x1x32xf32> to vector<1x32xf32>
    %c1_211 = arith.constant 1 : index
    %c0_212 = arith.constant 0 : index
    %c0_213 = arith.constant 0 : index
    %419 = vector.load %arg27[%c1_211, %c0_212, %c0_213] : memref<2x1x32xf32, #tpu.memory_space<vmem>>, vector<1x1x32xf32>
    %420 = vector.shape_cast %419 : vector<1x1x32xf32> to vector<1x32xf32>
    %cst_214 = arith.constant dense<0.000000e+00> : vector<32xf32>
    %421 = vector.multi_reduction <add>, %416, %cst_214 [1] : vector<32x32xf32> to vector<32xf32>
    %422 = vector.shape_cast %421 : vector<32xf32> to vector<32x1xf32>
    %cst_215 = arith.constant 3.200000e+01 : f32
    %423 = vector.broadcast %cst_215 : f32 to vector<32x1xf32>
    %424 = arith.divf %422, %423 : vector<32x1xf32>
    %425 = vector.broadcast %424 : vector<32x1xf32> to vector<32x32xf32>
    %426 = arith.subf %416, %425 : vector<32x32xf32>
    %427 = arith.mulf %426, %426 : vector<32x32xf32>
    %cst_216 = arith.constant dense<0.000000e+00> : vector<32xf32>
    %428 = vector.multi_reduction <add>, %427, %cst_216 [1] : vector<32x32xf32> to vector<32xf32>
    %429 = vector.shape_cast %428 : vector<32xf32> to vector<32x1xf32>
    %cst_217 = arith.constant 3.200000e+01 : f32
    %430 = vector.broadcast %cst_217 : f32 to vector<32x1xf32>
    %431 = arith.divf %429, %430 : vector<32x1xf32>
    %432 = vector.broadcast %424 : vector<32x1xf32> to vector<32x32xf32>
    %433 = arith.subf %416, %432 : vector<32x32xf32>
    %cst_218 = arith.constant 9.99999974E-6 : f32
    %434 = vector.broadcast %cst_218 : f32 to vector<32x1xf32>
    %435 = arith.addf %431, %434 : vector<32x1xf32>
    %436 = math.rsqrt %435 : vector<32x1xf32>
    %437 = vector.broadcast %436 : vector<32x1xf32> to vector<32x32xf32>
    %438 = arith.mulf %433, %437 : vector<32x32xf32>
    %439 = vector.broadcast %418 : vector<1x32xf32> to vector<32x32xf32>
    %440 = arith.mulf %438, %439 : vector<32x32xf32>
    %441 = vector.broadcast %420 : vector<1x32xf32> to vector<32x32xf32>
    %442 = arith.addf %440, %441 : vector<32x32xf32>
    %443 = vector.extract_strided_slice %442 {offsets = [0, 0], sizes = [1, 32], strides = [1, 1]} : vector<32x32xf32> to vector<1x32xf32>
    %444 = vector.extract_strided_slice %442 {offsets = [16, 0], sizes = [1, 32], strides = [1, 1]} : vector<32x32xf32> to vector<1x32xf32>
    %445 = tpu.concatenate %443, %444 in 0 : vector<1x32xf32>, vector<1x32xf32> -> vector<2x32xf32>
    %c0_219 = arith.constant 0 : index
    %c0_220 = arith.constant 0 : index
    %446 = vector.load %arg28[%c0_219, %c0_220] : memref<32x32xf32, #tpu.memory_space<vmem>>, vector<32x32xf32>
    %cst_221 = arith.constant dense<0.000000e+00> : vector<2x32xf32>
    %447 = tpu.matmul %445, %446, %cst_221 {dimension_numbers = #tpu.dot_dimension_numbers<[1], [0], [0], [1], [0, 0, 1, 1], [], []>} : vector<2x32xf32>, vector<32x32xf32>, vector<2x32xf32> -> vector<2x32xf32>
    %c0_222 = arith.constant 0 : index
    %c0_223 = arith.constant 0 : index
    %448 = vector.load %arg29[%c0_222, %c0_223] : memref<1x32xf32, #tpu.memory_space<vmem>>, vector<1x32xf32>
    %449 = vector.broadcast %448 : vector<1x32xf32> to vector<2x32xf32>
    %450 = arith.addf %447, %449 : vector<2x32xf32>
    %cst_224 = arith.constant 0.000000e+00 : f32
    %451 = vector.broadcast %cst_224 : f32 to vector<2x32xf32>
    %452 = arith.maximumf %450, %451 : vector<2x32xf32>
    %c0_225 = arith.constant 0 : index
    %c0_226 = arith.constant 0 : index
    %453 = vector.load %arg30[%c0_225, %c0_226] : memref<32x2xf32, #tpu.memory_space<vmem>>, vector<32x2xf32>
    %cst_227 = arith.constant dense<0.000000e+00> : vector<2x2xf32>
    %454 = tpu.matmul %452, %453, %cst_227 {dimension_numbers = #tpu.dot_dimension_numbers<[1], [0], [0], [1], [0, 0, 1, 1], [], []>} : vector<2x32xf32>, vector<32x2xf32>, vector<2x2xf32> -> vector<2x2xf32>
    %c0_228 = arith.constant 0 : index
    %c0_229 = arith.constant 0 : index
    %455 = vector.load %arg31[%c0_228, %c0_229] : memref<1x2xf32, #tpu.memory_space<vmem>>, vector<1x2xf32>
    %456 = vector.broadcast %455 : vector<1x2xf32> to vector<2x2xf32>
    %457 = arith.addf %454, %456 : vector<2x2xf32>
    %c0_230 = arith.constant 0 : index
    %c0_231 = arith.constant 0 : index
    %458 = vector.load %arg32[%c0_230, %c0_231] : memref<2x2xf32, #tpu.memory_space<vmem>>, vector<2x2xf32>
    tpu.vector_store %arg32[%c0_230, %c0_231], %457 {strides = array<i32>} : memref<2x2xf32, #tpu.memory_space<vmem>>, vector<2x2xf32>,
    return
  }
}

</mosaic_0001>

<llo_original>
// kernel: tpu_custom_call.1
$region0: #{tpu_custom_call.1}
  #allocation0 [shape = 'u32[]', space=smem, size = 0x4, offset = 0x4, fixed_abs, tag = 'smem constant byte address 0x4 - core index']
  #allocation1 [shape = 'u32[144,128]{1,0:T(1,128)}', space=vmem, size = 0x12000, scoped, tag = 'internal scratch']
  %s0 = inlined_call_operand.smem [shape: u32[33], index: -1, kind: input, shape index: {}]
  %s1 = sld [smem:[%s0]]
  %s2 = scalar_lea.smem %s0, 1
  %s3 = sld [smem:[%s2]]
  %s4 = scalar_lea.smem %s0, 2
  %s5 = sld [smem:[%s4]]
  %s6 = scalar_lea.smem %s0, 3
  %s7 = sld [smem:[%s6]]
  %s8 = scalar_lea.smem %s0, 4
  %s9 = sld [smem:[%s8]]
  %s10 = scalar_lea.smem %s0, 5
  %s11 = sld [smem:[%s10]]
  %s12 = scalar_lea.smem %s0, 6
  %s13 = sld [smem:[%s12]]
  %s14 = scalar_lea.smem %s0, 7
  %s15 = sld [smem:[%s14]]
  %s16 = scalar_lea.smem %s0, 8
  %s17 = sld [smem:[%s16]]
  %s18 = scalar_lea.smem %s0, 9
  %s19 = sld [smem:[%s18]]
  %s20 = scalar_lea.smem %s0, 10
  %s21 = sld [smem:[%s20]]
  %s22 = scalar_lea.smem %s0, 11
  %s23 = sld [smem:[%s22]]
  %s24 = scalar_lea.smem %s0, 12
  %s25 = sld [smem:[%s24]]
  %s26 = scalar_lea.smem %s0, 13
  %s27 = sld [smem:[%s26]]
  %s28 = scalar_lea.smem %s0, 14
  %s29 = sld [smem:[%s28]]
  %s30 = scalar_lea.smem %s0, 15
  %s31 = sld [smem:[%s30]]
  %s32 = scalar_lea.smem %s0, 16
  %s33 = sld [smem:[%s32]]
  %s34 = scalar_lea.smem %s0, 17
  %s35 = sld [smem:[%s34]]
  %s36 = scalar_lea.smem %s0, 18
  %s37 = sld [smem:[%s36]]
  %s38 = scalar_lea.smem %s0, 19
  %s39 = sld [smem:[%s38]]
  %s40 = scalar_lea.smem %s0, 20
  %s41 = sld [smem:[%s40]]
  %s42 = scalar_lea.smem %s0, 21
  %s43 = sld [smem:[%s42]]
  %s44 = scalar_lea.smem %s0, 22
  %s45 = sld [smem:[%s44]]
  %s46 = scalar_lea.smem %s0, 23
  %s47 = sld [smem:[%s46]]
  %s48 = scalar_lea.smem %s0, 24
  %s49 = sld [smem:[%s48]]
  %s50 = scalar_lea.smem %s0, 25
  %s51 = sld [smem:[%s50]]
  %s52 = scalar_lea.smem %s0, 26
  %s53 = sld [smem:[%s52]]
  %s54 = scalar_lea.smem %s0, 27
  %s55 = sld [smem:[%s54]]
  %s56 = scalar_lea.smem %s0, 28
  %s57 = sld [smem:[%s56]]
  %s58 = scalar_lea.smem %s0, 29
  %s59 = sld [smem:[%s58]]
  %s60 = scalar_lea.smem %s0, 30
  %s61 = sld [smem:[%s60]]
  %s62 = scalar_lea.smem %s0, 31
  %s63 = sld [smem:[%s62]]
  %s64 = scalar_lea.smem %s0, 32
  %s65 = sld [smem:[%s64]]
  %s66 = sld [smem:[#allocation0]]
  $region138: #{tpu_custom_call.1} parent=0
    _
  %s68 = ssub.s32 1, %s66
  %s69 = scalar_select 0, %s68, %s66
  $region1: #{tpu_custom_call.1} parent=0
    #allocation2 [shape = 'u8[1024]{0}', space=vmem, size = 0x400, scoped, tag = 'output window, operand 0, single buffered']
    #allocation3 [shape = 's32[1]{0}', space=sflag, size = 0x4, scoped, tag = 'scoped memory for tpu_custom_call.1']
    %70 = vsyncpa [#allocation3], 0
    // Predicated region
    $region2: #{tpu_custom_call.1} parent=1 // pred_check
      _
    $region3: #{tpu_custom_call.1} parent=1 // pred_check_branch
      %72 = sbr.rel (0) target = $region5
    $region4: #{tpu_custom_call.1} parent=1 // pred_region
      _
    $region5: #{tpu_custom_call.1} parent=1 // pred_fallthru
      _
    // Predicated region
    $region6: #{tpu_custom_call.1} parent=1 // pred_check
      _
    $region7: #{tpu_custom_call.1} parent=1 // pred_check_branch
      %74 = sbr.rel (0) target = $region9
    $region8: #{tpu_custom_call.1} parent=1 // pred_region
      _
    $region9: #{tpu_custom_call.1} parent=1 // pred_fallthru
      _
    // Predicated region
    $region10: #{tpu_custom_call.1} parent=1 // pred_check
      _
    $region11: #{tpu_custom_call.1} parent=1 // pred_check_branch
      %76 = sbr.rel (0) target = $region13
    $region12: #{tpu_custom_call.1} parent=1 // pred_region
      _
    $region13: #{tpu_custom_call.1} parent=1 // pred_fallthru
      _
    // Predicated region
    $region14: #{tpu_custom_call.1} parent=1 // pred_check
      _
    $region15: #{tpu_custom_call.1} parent=1 // pred_check_branch
      %78 = sbr.rel (0) target = $region17
    $region16: #{tpu_custom_call.1} parent=1 // pred_region
      _
    $region17: #{tpu_custom_call.1} parent=1 // pred_fallthru
      _
    // Predicated region
    $region18: #{tpu_custom_call.1} parent=1 // pred_check
      _
    $region19: #{tpu_custom_call.1} parent=1 // pred_check_branch
      %80 = sbr.rel (0) target = $region21
    $region20: #{tpu_custom_call.1} parent=1 // pred_region
      _
    $region21: #{tpu_custom_call.1} parent=1 // pred_fallthru
      _
    // Predicated region
    $region22: #{tpu_custom_call.1} parent=1 // pred_check
      _
    $region23: #{tpu_custom_call.1} parent=1 // pred_check_branch
      %82 = sbr.rel (0) target = $region25
    $region24: #{tpu_custom_call.1} parent=1 // pred_region
      _
    $region25: #{tpu_custom_call.1} parent=1 // pred_fallthru
      _
    // Predicated region
    $region26: #{tpu_custom_call.1} parent=1 // pred_check
      _
    $region27: #{tpu_custom_call.1} parent=1 // pred_check_branch
      %84 = sbr.rel (0) target = $region29
    $region28: #{tpu_custom_call.1} parent=1 // pred_region
      _
    $region29: #{tpu_custom_call.1} parent=1 // pred_fallthru
      _
    // Predicated region
    $region30: #{tpu_custom_call.1} parent=1 // pred_check
      _
    $region31: #{tpu_custom_call.1} parent=1 // pred_check_branch
      %86 = sbr.rel (0) target = $region33
    $region32: #{tpu_custom_call.1} parent=1 // pred_region
      _
    $region33: #{tpu_custom_call.1} parent=1 // pred_fallthru
      _
    // Predicated region
    $region34: #{tpu_custom_call.1} parent=1 // pred_check
      _
    $region35: #{tpu_custom_call.1} parent=1 // pred_check_branch
      %88 = sbr.rel (0) target = $region37
    $region36: #{tpu_custom_call.1} parent=1 // pred_region
      _
    $region37: #{tpu_custom_call.1} parent=1 // pred_fallthru
      _
    // Predicated region
    $region38: #{tpu_custom_call.1} parent=1 // pred_check
      _
    $region39: #{tpu_custom_call.1} parent=1 // pred_check_branch
      %90 = sbr.rel (0) target = $region41
    $region40: #{tpu_custom_call.1} parent=1 // pred_region
      _
    $region41: #{tpu_custom_call.1} parent=1 // pred_fallthru
      _
    // Predicated region
    $region42: #{tpu_custom_call.1} parent=1 // pred_check
      _
    $region43: #{tpu_custom_call.1} parent=1 // pred_check_branch
      %92 = sbr.rel (0) target = $region45
    $region44: #{tpu_custom_call.1} parent=1 // pred_region
      _
    $region45: #{tpu_custom_call.1} parent=1 // pred_fallthru
      _
    // Predicated region
    $region46: #{tpu_custom_call.1} parent=1 // pred_check
      _
    $region47: #{tpu_custom_call.1} parent=1 // pred_check_branch
      %94 = sbr.rel (0) target = $region49
    $region48: #{tpu_custom_call.1} parent=1 // pred_region
      _
    $region49: #{tpu_custom_call.1} parent=1 // pred_fallthru
      _
    // Predicated region
    $region50: #{tpu_custom_call.1} parent=1 // pred_check
      _
    $region51: #{tpu_custom_call.1} parent=1 // pred_check_branch
      %96 = sbr.rel (0) target = $region53
    $region52: #{tpu_custom_call.1} parent=1 // pred_region
      _
    $region53: #{tpu_custom_call.1} parent=1 // pred_fallthru
      _
    // Predicated region
    $region54: #{tpu_custom_call.1} parent=1 // pred_check
      _
    $region55: #{tpu_custom_call.1} parent=1 // pred_check_branch
      %98 = sbr.rel (0) target = $region57
    $region56: #{tpu_custom_call.1} parent=1 // pred_region
      _
    $region57: #{tpu_custom_call.1} parent=1 // pred_fallthru
      _
    // Predicated region
    $region58: #{tpu_custom_call.1} parent=1 // pred_check
      _
    $region59: #{tpu_custom_call.1} parent=1 // pred_check_branch
      %100 = sbr.rel (0) target = $region61
    $region60: #{tpu_custom_call.1} parent=1 // pred_region
      _
    $region61: #{tpu_custom_call.1} parent=1 // pred_fallthru
      _
    // Predicated region
    $region62: #{tpu_custom_call.1} parent=1 // pred_check
      _
    $region63: #{tpu_custom_call.1} parent=1 // pred_check_branch
      %102 = sbr.rel (0) target = $region65
    $region64: #{tpu_custom_call.1} parent=1 // pred_region
      _
    $region65: #{tpu_custom_call.1} parent=1 // pred_fallthru
      _
    // Predicated region
    $region66: #{tpu_custom_call.1} parent=1 // pred_check
      _
    $region67: #{tpu_custom_call.1} parent=1 // pred_check_branch
      %104 = sbr.rel (0) target = $region69
    $region68: #{tpu_custom_call.1} parent=1 // pred_region
      _
    $region69: #{tpu_custom_call.1} parent=1 // pred_fallthru
      _
    // Predicated region
    $region70: #{tpu_custom_call.1} parent=1 // pred_check
      _
    $region71: #{tpu_custom_call.1} parent=1 // pred_check_branch
      %106 = sbr.rel (0) target = $region73
    $region72: #{tpu_custom_call.1} parent=1 // pred_region
      _
    $region73: #{tpu_custom_call.1} parent=1 // pred_fallthru
      _
    // Predicated region
    $region74: #{tpu_custom_call.1} parent=1 // pred_check
      _
    $region75: #{tpu_custom_call.1} parent=1 // pred_check_branch
      %108 = sbr.rel (0) target = $region77
    $region76: #{tpu_custom_call.1} parent=1 // pred_region
      _
    $region77: #{tpu_custom_call.1} parent=1 // pred_fallthru
      _
    // Predicated region
    $region78: #{tpu_custom_call.1} parent=1 // pred_check
      _
    $region79: #{tpu_custom_call.1} parent=1 // pred_check_branch
      %110 = sbr.rel (0) target = $region81
    $region80: #{tpu_custom_call.1} parent=1 // pred_region
      _
    $region81: #{tpu_custom_call.1} parent=1 // pred_fallthru
      _
    // Predicated region
    $region82: #{tpu_custom_call.1} parent=1 // pred_check
      _
    $region83: #{tpu_custom_call.1} parent=1 // pred_check_branch
      %112 = sbr.rel (0) target = $region85
    $region84: #{tpu_custom_call.1} parent=1 // pred_region
      _
    $region85: #{tpu_custom_call.1} parent=1 // pred_fallthru
      _
    // Predicated region
    $region86: #{tpu_custom_call.1} parent=1 // pred_check
      _
    $region87: #{tpu_custom_call.1} parent=1 // pred_check_branch
      %114 = sbr.rel (0) target = $region89
    $region88: #{tpu_custom_call.1} parent=1 // pred_region
      _
    $region89: #{tpu_custom_call.1} parent=1 // pred_fallthru
      _
    // Predicated region
    $region90: #{tpu_custom_call.1} parent=1 // pred_check
      _
    $region91: #{tpu_custom_call.1} parent=1 // pred_check_branch
      %116 = sbr.rel (0) target = $region93
    $region92: #{tpu_custom_call.1} parent=1 // pred_region
      _
    $region93: #{tpu_custom_call.1} parent=1 // pred_fallthru
      _
    // Predicated region
    $region94: #{tpu_custom_call.1} parent=1 // pred_check
      _
    $region95: #{tpu_custom_call.1} parent=1 // pred_check_branch
      %118 = sbr.rel (0) target = $region97
    $region96: #{tpu_custom_call.1} parent=1 // pred_region
      _
    $region97: #{tpu_custom_call.1} parent=1 // pred_fallthru
      _
    // Predicated region
    $region98: #{tpu_custom_call.1} parent=1 // pred_check
      _
    $region99: #{tpu_custom_call.1} parent=1 // pred_check_branch
      %120 = sbr.rel (0) target = $region101
    $region100: #{tpu_custom_call.1} parent=1 // pred_region
      _
    $region101: #{tpu_custom_call.1} parent=1 // pred_fallthru
      _
    // Predicated region
    $region102: #{tpu_custom_call.1} parent=1 // pred_check
      _
    $region103: #{tpu_custom_call.1} parent=1 // pred_check_branch
      %122 = sbr.rel (0) target = $region105
    $region104: #{tpu_custom_call.1} parent=1 // pred_region
      _
    $region105: #{tpu_custom_call.1} parent=1 // pred_fallthru
      _
    // Predicated region
    $region106: #{tpu_custom_call.1} parent=1 // pred_check
      _
    $region107: #{tpu_custom_call.1} parent=1 // pred_check_branch
      %124 = sbr.rel (0) target = $region109
    $region108: #{tpu_custom_call.1} parent=1 // pred_region
      _
    $region109: #{tpu_custom_call.1} parent=1 // pred_fallthru
      _
    // Predicated region
    $region110: #{tpu_custom_call.1} parent=1 // pred_check
      _
    $region111: #{tpu_custom_call.1} parent=1 // pred_check_branch
      %126 = sbr.rel (0) target = $region113
    $region112: #{tpu_custom_call.1} parent=1 // pred_region
      _
    $region113: #{tpu_custom_call.1} parent=1 // pred_fallthru
      _
    // Predicated region
    $region114: #{tpu_custom_call.1} parent=1 // pred_check
      _
    $region115: #{tpu_custom_call.1} parent=1 // pred_check_branch
      %128 = sbr.rel (0) target = $region117
    $region116: #{tpu_custom_call.1} parent=1 // pred_region
      _
    $region117: #{tpu_custom_call.1} parent=1 // pred_fallthru
      _
    // Predicated region
    $region118: #{tpu_custom_call.1} parent=1 // pred_check
      _
    $region119: #{tpu_custom_call.1} parent=1 // pred_check_branch
      %130 = sbr.rel (0) target = $region121
    $region120: #{tpu_custom_call.1} parent=1 // pred_region
      _
    $region121: #{tpu_custom_call.1} parent=1 // pred_fallthru
      _
    // Predicated region
    $region122: #{tpu_custom_call.1} parent=1 // pred_check
      _
    $region123: #{tpu_custom_call.1} parent=1 // pred_check_branch
      %132 = sbr.rel (0) target = $region125
    $region124: #{tpu_custom_call.1} parent=1 // pred_region
      _
    $region125: #{tpu_custom_call.1} parent=1 // pred_fallthru
      _
    // Predicated region
    $region126: #{tpu_custom_call.1} parent=1 // pred_check
      _
    $region127: #{tpu_custom_call.1} parent=1 // pred_check_branch
      %134 = sbr.rel (0) target = $region129
    $region128: #{tpu_custom_call.1} parent=1 // pred_region
      _
    $region129: #{tpu_custom_call.1} parent=1 // pred_fallthru
      _
    %v136 = vld [vmem:[%s1] sm:$0xff]
    %v137 = vld [vmem:[%s1 + $0x8] sm:$0xff]
    %v138 = vld [vmem:[%s1 + $0x10] sm:$0xff]
    %v139 = vld [vmem:[%s1 + $0x18] sm:$0xff]
    %v140 = vld [vmem:[%s1 + $0x20] sm:$0xff]
    %v141 = vld [vmem:[%s1 + $0x28] sm:$0xff]
    %v142 = vld [vmem:[%s1 + $0x30] sm:$0xff]
    %v143 = vld [vmem:[%s1 + $0x38] sm:$0xff]
    %v144 = vld [vmem:[%s3] sm:$0xff]
    %v145 = vld [vmem:[%s3 + $0x8] sm:$0xff]
    %v146 = vld [vmem:[%s3 + $0x10] sm:$0xff]
    %v147 = vld [vmem:[%s3 + $0x18] sm:$0xff]
    %v148 = vld [vmem:[%s3 + $0x20] sm:$0xff]
    %v149 = vld [vmem:[%s3 + $0x28] sm:$0xff]
    %v150 = vld [vmem:[%s3 + $0x30] sm:$0xff]
    %v151 = vld [vmem:[%s3 + $0x38] sm:$0xff]
    %v152 = vld [vmem:[%s5] sm:$0xff]
    %v153 = vld [vmem:[%s5 + $0x8] sm:$0xff]
    %v154 = vld [vmem:[%s5 + $0x10] sm:$0xff]
    %v155 = vld [vmem:[%s5 + $0x18] sm:$0xff]
    %v156 = vld [vmem:[%s5 + $0x20] sm:$0xff]
    %v157 = vld [vmem:[%s5 + $0x28] sm:$0xff]
    %v158 = vld [vmem:[%s5 + $0x30] sm:$0xff]
    %v159 = vld [vmem:[%s5 + $0x38] sm:$0xff]
    %v160 = vld [vmem:[%s5 + $0x40] sm:$0xff]
    %v161 = vld [vmem:[%s5 + $0x48] sm:$0xff]
    %v162 = vld [vmem:[%s5 + $0x50] sm:$0xff]
    %v163 = vld [vmem:[%s5 + $0x58] sm:$0xff]
    %v164 = vld [vmem:[%s5 + $0x60] sm:$0xff]
    %v165 = vld [vmem:[%s5 + $0x68] sm:$0xff]
    %v166 = vld [vmem:[%s5 + $0x70] sm:$0xff]
    %v167 = vld [vmem:[%s5 + $0x78] sm:$0xff]
    %168 = vmatprep.subr.mxu0 0.0
    %169 = vmatpush1.msra.mxu0 %v167
    %170 = vmatprep.subr.mxu0 0.0
    %171 = vmatpush1.msra.mxu0 %v166
    %172 = vmatprep.subr.mxu0 0.0
    %173 = vmatpush1.msra.mxu0 %v165
    %174 = vmatprep.subr.mxu0 0.0
    %175 = vmatpush1.msra.mxu0 %v164
    %176 = vmatprep.subr.mxu0 0.0
    %177 = vmatpush1.msra.mxu0 %v163
    %178 = vmatprep.subr.mxu0 0.0
    %179 = vmatpush1.msra.mxu0 %v162
    %180 = vmatprep.subr.mxu0 0.0
    %181 = vmatpush1.msra.mxu0 %v161
    %182 = vmatprep.subr.mxu0 0.0
    %183 = vmatpush1.msra.mxu0 %v160
    %184 = vmatprep.subr.mxu0 0.0
    %185 = vmatpush1.msra.mxu0 %v159
    %186 = vmatprep.subr.mxu0 0.0
    %187 = vmatpush1.msra.mxu0 %v158
    %188 = vmatprep.subr.mxu0 0.0
    %189 = vmatpush1.msra.mxu0 %v157
    %190 = vmatprep.subr.mxu0 0.0
    %191 = vmatpush1.msra.mxu0 %v156
    %192 = vmatprep.subr.mxu0 0.0
    %193 = vmatpush1.msra.mxu0 %v155
    %194 = vmatprep.subr.mxu0 0.0
    %195 = vmatpush1.msra.mxu0 %v154
    %196 = vmatprep.subr.mxu0 0.0
    %197 = vmatpush1.msra.mxu0 %v153
    %198 = vmatprep.subr.mxu0 0.0
    %199 = vmatpush1.msra.mxu0 %v152
    %200 = vmatprep.subr.mxu0 0.0
    %201 = vmatpush2.msra.mxu0 0.0
    %202 = vmatprep.subr.mxu0 0.0
    %203 = vmatpush2.msra.mxu0 0.0
    %204 = vmatprep.subr.mxu0 0.0
    %205 = vmatpush2.msra.mxu0 0.0
    %206 = vmatprep.subr.mxu0 0.0
    %207 = vmatpush2.msra.mxu0 0.0
    %208 = vmatprep.subr.mxu0 0.0
    %209 = vmatpush2.msra.mxu0 0.0
    %210 = vmatprep.subr.mxu0 0.0
    %211 = vmatpush2.msra.mxu0 0.0
    %212 = vmatprep.subr.mxu0 0.0
    %213 = vmatpush2.msra.mxu0 0.0
    %214 = vmatprep.subr.mxu0 0.0
    %215 = vmatpush2.msra.mxu0 0.0
    %216 = vmatprep.subr.mxu0 0.0
    %217 = vmatpush2.msra.mxu0 0.0
    %218 = vmatprep.subr.mxu0 0.0
    %219 = vmatpush2.msra.mxu0 0.0
    %220 = vmatprep.subr.mxu0 0.0
    %221 = vmatpush2.msra.mxu0 0.0
    %222 = vmatprep.subr.mxu0 0.0
    %223 = vmatpush2.msra.mxu0 0.0
    %224 = vmatprep.subr.mxu0 0.0
    %225 = vmatpush2.msra.mxu0 0.0
    %226 = vmatprep.subr.mxu0 0.0
    %227 = vmatpush2.msra.mxu0 0.0
    %228 = vmatprep.subr.mxu0 0.0
    %229 = vmatpush2.msra.mxu0 0.0
    %230 = vmatprep.subr.mxu0 0.0
    %231 = vmatpush2.msra.mxu0 0.0
    %232 = vmatprep.mubr.f32.mxu0 0.0
    %233 = vmatmul.mubr.f32.gmra.mxu0 %v144
    %v234 = vpop.f32.mrf.mxu0
    %v235 = vadd.f32 0.0, %v234
    %v236 = vpop.f32.mrf.mxu0
    %237 = vmatprep.mubr.f32.mxu0 0.0
    %238 = vmatmul.mubr.f32.gmra.mxu0 %v145
    %v239 = vpop.f32.mrf.mxu0
    %v240 = vadd.f32 0.0, %v239
    %v241 = vpop.f32.mrf.mxu0
    %242 = vmatprep.mubr.f32.mxu0 0.0
    %243 = vmatmul.mubr.f32.gmra.mxu0 %v146
    %v244 = vpop.f32.mrf.mxu0
    %v245 = vadd.f32 0.0, %v244
    %v246 = vpop.f32.mrf.mxu0
    %247 = vmatprep.mubr.f32.mxu0 0.0
    %248 = vmatmul.mubr.f32.gmra.mxu0 %v147
    %v249 = vpop.f32.mrf.mxu0
    %v250 = vadd.f32 0.0, %v249
    %v251 = vpop.f32.mrf.mxu0
    %252 = vmatprep.mubr.f32.mxu0 0.0
    %253 = vmatmul.mubr.f32.gmra.mxu0 %v148
    %v254 = vpop.f32.mrf.mxu0
    %v255 = vadd.f32 0.0, %v254
    %v256 = vpop.f32.mrf.mxu0
    %257 = vmatprep.mubr.f32.mxu0 0.0
    %258 = vmatmul.mubr.f32.gmra.mxu0 %v149
    %v259 = vpop.f32.mrf.mxu0
    %v260 = vadd.f32 0.0, %v259
    %v261 = vpop.f32.mrf.mxu0
    %262 = vmatprep.mubr.f32.mxu0 0.0
    %263 = vmatmul.mubr.f32.gmra.mxu0 %v150
    %v264 = vpop.f32.mrf.mxu0
    %v265 = vadd.f32 0.0, %v264
    %v266 = vpop.f32.mrf.mxu0
    %267 = vmatprep.mubr.f32.mxu0 0.0
    %268 = vmatmul.mubr.f32.gmra.mxu0 %v151
    %v269 = vpop.f32.mrf.mxu0
    %v270 = vadd.f32 0.0, %v269
    %v271 = vpop.f32.mrf.mxu0
    %272 = vdwg.mxu0
    %v273 = vld [vmem:[%s7] sm:$0x1]
    %v275 = vlaneseq
    %v276 = vshrl.u32 %v275, 7
    %v277 = vsub.s32 0, %v276
    %v278 = vrot.slane %v273, %v277
    %vm280 = vcmask 523264
    %v282 = vsel %vm280, %v136, 0
    %v285 = vsel %vm280, %v137, 0
    %v288 = vsel %vm280, %v138, 0
    %v291 = vsel %vm280, %v139, 0
    %v294 = vsel %vm280, %v140, 0
    %v297 = vsel %vm280, %v141, 0
    %v300 = vsel %vm280, %v142, 0
    %v303 = vsel %vm280, %v143, 0
    %305 = vmatprep.subr.mxu0 0.0
    %306 = vmatpush1.msra.mxu0 0.0
    %307 = vmatprep.subr.mxu0 0.0
    %308 = vmatpush1.msra.mxu0 0.0
    %309 = vmatprep.subr.mxu0 0.0
    %310 = vmatpush1.msra.mxu0 0.0
    %311 = vmatprep.subr.mxu0 0.0
    %312 = vmatpush1.msra.mxu0 0.0
    %313 = vmatprep.subr.mxu0 0.0
    %314 = vmatpush1.msra.mxu0 0.0
    %315 = vmatprep.subr.mxu0 0.0
    %316 = vmatpush1.msra.mxu0 0.0
    %317 = vmatprep.subr.mxu0 0.0
    %318 = vmatpush1.msra.mxu0 0.0
    %319 = vmatprep.subr.mxu0 0.0
    %320 = vmatpush1.msra.mxu0 0.0
    %321 = vmatprep.subr.mxu0 0.0
    %322 = vmatpush1.msra.mxu0 %v270
    %323 = vmatprep.subr.mxu0 0.0
    %324 = vmatpush1.msra.mxu0 %v265
    %325 = vmatprep.subr.mxu0 0.0
    %326 = vmatpush1.msra.mxu0 %v260
    %327 = vmatprep.subr.mxu0 0.0
    %328 = vmatpush1.msra.mxu0 %v255
    %329 = vmatprep.subr.mxu0 0.0
    %330 = vmatpush1.msra.mxu0 %v250
    %331 = vmatprep.subr.mxu0 0.0
    %332 = vmatpush1.msra.mxu0 %v245
    %333 = vmatprep.subr.mxu0 0.0
    %334 = vmatpush1.msra.mxu0 %v240
    %335 = vmatprep.subr.mxu0 0.0
    %336 = vmatpush1.msra.mxu0 %v235
    %337 = vmatprep.subr.mxu0 0.0
    %338 = vmatpush2.msra.mxu0 0.0
    %339 = vmatprep.subr.mxu0 0.0
    %340 = vmatpush2.msra.mxu0 0.0
    %341 = vmatprep.subr.mxu0 0.0
    %342 = vmatpush2.msra.mxu0 0.0
    %343 = vmatprep.subr.mxu0 0.0
    %344 = vmatpush2.msra.mxu0 0.0
    %345 = vmatprep.subr.mxu0 0.0
    %346 = vmatpush2.msra.mxu0 0.0
    %347 = vmatprep.subr.mxu0 0.0
    %348 = vmatpush2.msra.mxu0 0.0
    %349 = vmatprep.subr.mxu0 0.0
    %350 = vmatpush2.msra.mxu0 0.0
    %351 = vmatprep.subr.mxu0 0.0
    %352 = vmatpush2.msra.mxu0 0.0
    %353 = vmatprep.subr.mxu0 0.0
    %354 = vmatpush2.msra.mxu0 0.0
    %355 = vmatprep.subr.mxu0 0.0
    %356 = vmatpush2.msra.mxu0 0.0
    %357 = vmatprep.subr.mxu0 0.0
    %358 = vmatpush2.msra.mxu0 0.0
    %359 = vmatprep.subr.mxu0 0.0
    %360 = vmatpush2.msra.mxu0 0.0
    %361 = vmatprep.subr.mxu0 0.0
    %362 = vmatpush2.msra.mxu0 0.0
    %363 = vmatprep.subr.mxu0 0.0
    %364 = vmatpush2.msra.mxu0 0.0
    %365 = vmatprep.subr.mxu0 0.0
    %366 = vmatpush2.msra.mxu0 0.0
    %367 = vmatprep.subr.mxu0 0.0
    %368 = vmatpush2.msra.mxu0 0.0
    %369 = vmatprep.mubr.f32.mxu0 0.0
    %370 = vmatmul.mubr.f32.gmra.mxu0 %v282
    %v371 = vpop.f32.mrf.mxu0
    %v372 = vadd.f32 %v278, %v371
    %v373 = vpop.f32.mrf.mxu0
    %374 = vmatprep.mubr.f32.mxu0 0.0
    %375 = vmatmul.mubr.f32.gmra.mxu0 %v285
    %v376 = vpop.f32.mrf.mxu0
    %v377 = vadd.f32 %v278, %v376
    %v378 = vpop.f32.mrf.mxu0
    %379 = vmatprep.mubr.f32.mxu0 0.0
    %380 = vmatmul.mubr.f32.gmra.mxu0 %v288
    %v381 = vpop.f32.mrf.mxu0
    %v382 = vadd.f32 %v278, %v381
    %v383 = vpop.f32.mrf.mxu0
    %384 = vmatprep.mubr.f32.mxu0 0.0
    %385 = vmatmul.mubr.f32.gmra.mxu0 %v291
    %v386 = vpop.f32.mrf.mxu0
    %v387 = vadd.f32 %v278, %v386
    %v388 = vpop.f32.mrf.mxu0
    %389 = vmatprep.mubr.f32.mxu0 0.0
    %390 = vmatmul.mubr.f32.gmra.mxu0 %v294
    %v391 = vpop.f32.mrf.mxu0
    %v392 = vadd.f32 %v278, %v391
    %v393 = vpop.f32.mrf.mxu0
    %394 = vmatprep.mubr.f32.mxu0 0.0
    %395 = vmatmul.mubr.f32.gmra.mxu0 %v297
    %v396 = vpop.f32.mrf.mxu0
    %v397 = vadd.f32 %v278, %v396
    %v398 = vpop.f32.mrf.mxu0
    %399 = vmatprep.mubr.f32.mxu0 0.0
    %400 = vmatmul.mubr.f32.gmra.mxu0 %v300
    %v401 = vpop.f32.mrf.mxu0
    %v402 = vadd.f32 %v278, %v401
    %v403 = vpop.f32.mrf.mxu0
    %404 = vmatprep.mubr.f32.mxu0 0.0
    %405 = vmatmul.mubr.f32.gmra.mxu0 %v303
    %v406 = vpop.f32.mrf.mxu0
    %v407 = vadd.f32 %v278, %v406
    %v408 = vpop.f32.mrf.mxu0
    %409 = vdwg.mxu0
    %v410 = vmax.f32 %v372, 0.0
    %v411 = vmax.f32 %v377, 0.0
    %v412 = vmax.f32 %v382, 0.0
    %v413 = vmax.f32 %v387, 0.0
    %v414 = vmax.f32 %v392, 0.0
    %v415 = vmax.f32 %v397, 0.0
    %v416 = vmax.f32 %v402, 0.0
    %v417 = vmax.f32 %v407, 0.0
    %v418 = vld [vmem:[%s9] sm:$0xff]
    %v419 = vld [vmem:[%s9 + $0x8] sm:$0xff]
    %v420 = vld [vmem:[%s9 + $0x10] sm:$0xff]
    %v421 = vld [vmem:[%s9 + $0x18] sm:$0xff]
    %vm422 = vcmask 261120
    %v424 = vsel %vm422, %v410, 0
    %v427 = vsel %vm422, %v411, 0
    %v430 = vsel %vm422, %v412, 0
    %v433 = vsel %vm422, %v413, 0
    %v436 = vsel %vm422, %v414, 0
    %v439 = vsel %vm422, %v415, 0
    %v442 = vsel %vm422, %v416, 0
    %v445 = vsel %vm422, %v417, 0
    %447 = vmatprep.subr.mxu0 0.0
    %448 = vmatpush1.msra.mxu0 0.0
    %449 = vmatprep.subr.mxu0 0.0
    %450 = vmatpush1.msra.mxu0 0.0
    %451 = vmatprep.subr.mxu0 0.0
    %452 = vmatpush1.msra.mxu0 0.0
    %453 = vmatprep.subr.mxu0 0.0
    %454 = vmatpush1.msra.mxu0 0.0
    %455 = vmatprep.subr.mxu0 0.0
    %456 = vmatpush1.msra.mxu0 0.0
    %457 = vmatprep.subr.mxu0 0.0
    %458 = vmatpush1.msra.mxu0 0.0
    %459 = vmatprep.subr.mxu0 0.0
    %460 = vmatpush1.msra.mxu0 0.0
    %461 = vmatprep.subr.mxu0 0.0
    %462 = vmatpush1.msra.mxu0 0.0
    %463 = vmatprep.subr.mxu0 0.0
    %464 = vmatpush1.msra.mxu0 0.0
    %465 = vmatprep.subr.mxu0 0.0
    %466 = vmatpush1.msra.mxu0 0.0
    %467 = vmatprep.subr.mxu0 0.0
    %468 = vmatpush1.msra.mxu0 0.0
    %469 = vmatprep.subr.mxu0 0.0
    %470 = vmatpush1.msra.mxu0 0.0
    %471 = vmatprep.subr.mxu0 0.0
    %472 = vmatpush1.msra.mxu0 %v421
    %473 = vmatprep.subr.mxu0 0.0
    %474 = vmatpush1.msra.mxu0 %v420
    %475 = vmatprep.subr.mxu0 0.0
    %476 = vmatpush1.msra.mxu0 %v419
    %477 = vmatprep.subr.mxu0 0.0
    %478 = vmatpush1.msra.mxu0 %v418
    %479 = vmatprep.subr.mxu0 0.0
    %480 = vmatpush2.msra.mxu0 0.0
    %481 = vmatprep.subr.mxu0 0.0
    %482 = vmatpush2.msra.mxu0 0.0
    %483 = vmatprep.subr.mxu0 0.0
    %484 = vmatpush2.msra.mxu0 0.0
    %485 = vmatprep.subr.mxu0 0.0
    %486 = vmatpush2.msra.mxu0 0.0
    %487 = vmatprep.subr.mxu0 0.0
    %488 = vmatpush2.msra.mxu0 0.0
    %489 = vmatprep.subr.mxu0 0.0
    %490 = vmatpush2.msra.mxu0 0.0
    %491 = vmatprep.subr.mxu0 0.0
    %492 = vmatpush2.msra.mxu0 0.0
    %493 = vmatprep.subr.mxu0 0.0
    %494 = vmatpush2.msra.mxu0 0.0
    %495 = vmatprep.subr.mxu0 0.0
    %496 = vmatpush2.msra.mxu0 0.0
    %497 = vmatprep.subr.mxu0 0.0
    %498 = vmatpush2.msra.mxu0 0.0
    %499 = vmatprep.subr.mxu0 0.0
    %500 = vmatpush2.msra.mxu0 0.0
    %501 = vmatprep.subr.mxu0 0.0
    %502 = vmatpush2.msra.mxu0 0.0
    %503 = vmatprep.subr.mxu0 0.0
    %504 = vmatpush2.msra.mxu0 0.0
    %505 = vmatprep.subr.mxu0 0.0
    %506 = vmatpush2.msra.mxu0 0.0
    %507 = vmatprep.subr.mxu0 0.0
    %508 = vmatpush2.msra.mxu0 0.0
    %509 = vmatprep.subr.mxu0 0.0
    %510 = vmatpush2.msra.mxu0 0.0
    %511 = vmatprep.mubr.f32.mxu0 0.0
    %512 = vmatmul.mubr.f32.gmra.mxu0 %v424
    %v513 = vpop.f32.mrf.mxu0
    %v514 = vadd.f32 0.0, %v513
    %v515 = vpop.f32.mrf.mxu0
    %516 = vmatprep.mubr.f32.mxu0 0.0
    %517 = vmatmul.mubr.f32.gmra.mxu0 %v427
    %v518 = vpop.f32.mrf.mxu0
    %v519 = vadd.f32 0.0, %v518
    %v520 = vpop.f32.mrf.mxu0
    %521 = vmatprep.mubr.f32.mxu0 0.0
    %522 = vmatmul.mubr.f32.gmra.mxu0 %v430
    %v523 = vpop.f32.mrf.mxu0
    %v524 = vadd.f32 0.0, %v523
    %v525 = vpop.f32.mrf.mxu0
    %526 = vmatprep.mubr.f32.mxu0 0.0
    %527 = vmatmul.mubr.f32.gmra.mxu0 %v433
    %v528 = vpop.f32.mrf.mxu0
    %v529 = vadd.f32 0.0, %v528
    %v530 = vpop.f32.mrf.mxu0
    %531 = vmatprep.mubr.f32.mxu0 0.0
    %532 = vmatmul.mubr.f32.gmra.mxu0 %v436
    %v533 = vpop.f32.mrf.mxu0
    %v534 = vadd.f32 0.0, %v533
    %v535 = vpop.f32.mrf.mxu0
    %536 = vmatprep.mubr.f32.mxu0 0.0
    %537 = vmatmul.mubr.f32.gmra.mxu0 %v439
    %v538 = vpop.f32.mrf.mxu0
    %v539 = vadd.f32 0.0, %v538
    %v540 = vpop.f32.mrf.mxu0
    %541 = vmatprep.mubr.f32.mxu0 0.0
    %542 = vmatmul.mubr.f32.gmra.mxu0 %v442
    %v543 = vpop.f32.mrf.mxu0
    %v544 = vadd.f32 0.0, %v543
    %v545 = vpop.f32.mrf.mxu0
    %546 = vmatprep.mubr.f32.mxu0 0.0
    %547 = vmatmul.mubr.f32.gmra.mxu0 %v445
    %v548 = vpop.f32.mrf.mxu0
    %v549 = vadd.f32 0.0, %v548
    %v550 = vpop.f32.mrf.mxu0
    %551 = vdwg.mxu0
    %v552 = vld [vmem:[%s11] sm:$0x1]
    %v554 = vlaneseq
    %v555 = vshrl.u32 %v554, 7
    %v556 = vsub.s32 0, %v555
    %v557 = vrot.slane %v552, %v556
    %559 = vmatprep.subr.mxu0 0.0
    %560 = vmatpush1.msra.mxu0 0.0
    %561 = vmatprep.subr.mxu0 0.0
    %562 = vmatpush1.msra.mxu0 0.0
    %563 = vmatprep.subr.mxu0 0.0
    %564 = vmatpush1.msra.mxu0 0.0
    %565 = vmatprep.subr.mxu0 0.0
    %566 = vmatpush1.msra.mxu0 0.0
    %567 = vmatprep.subr.mxu0 0.0
    %568 = vmatpush1.msra.mxu0 0.0
    %569 = vmatprep.subr.mxu0 0.0
    %570 = vmatpush1.msra.mxu0 0.0
    %571 = vmatprep.subr.mxu0 0.0
    %572 = vmatpush1.msra.mxu0 0.0
    %573 = vmatprep.subr.mxu0 0.0
    %574 = vmatpush1.msra.mxu0 0.0
    %575 = vmatprep.subr.mxu0 0.0
    %576 = vmatpush1.msra.mxu0 %v549
    %577 = vmatprep.subr.mxu0 0.0
    %578 = vmatpush1.msra.mxu0 %v544
    %579 = vmatprep.subr.mxu0 0.0
    %580 = vmatpush1.msra.mxu0 %v539
    %581 = vmatprep.subr.mxu0 0.0
    %582 = vmatpush1.msra.mxu0 %v534
    %583 = vmatprep.subr.mxu0 0.0
    %584 = vmatpush1.msra.mxu0 %v529
    %585 = vmatprep.subr.mxu0 0.0
    %586 = vmatpush1.msra.mxu0 %v524
    %587 = vmatprep.subr.mxu0 0.0
    %588 = vmatpush1.msra.mxu0 %v519
    %589 = vmatprep.subr.mxu0 0.0
    %590 = vmatpush1.msra.mxu0 %v514
    %591 = vmatprep.subr.mxu0 0.0
    %592 = vmatpush2.msra.mxu0 0.0
    %593 = vmatprep.subr.mxu0 0.0
    %594 = vmatpush2.msra.mxu0 0.0
    %595 = vmatprep.subr.mxu0 0.0
    %596 = vmatpush2.msra.mxu0 0.0
    %597 = vmatprep.subr.mxu0 0.0
    %598 = vmatpush2.msra.mxu0 0.0
    %599 = vmatprep.subr.mxu0 0.0
    %600 = vmatpush2.msra.mxu0 0.0
    %601 = vmatprep.subr.mxu0 0.0
    %602 = vmatpush2.msra.mxu0 0.0
    %603 = vmatprep.subr.mxu0 0.0
    %604 = vmatpush2.msra.mxu0 0.0
    %605 = vmatprep.subr.mxu0 0.0
    %606 = vmatpush2.msra.mxu0 0.0
    %607 = vmatprep.subr.mxu0 0.0
    %608 = vmatpush2.msra.mxu0 0.0
    %609 = vmatprep.subr.mxu0 0.0
    %610 = vmatpush2.msra.mxu0 0.0
    %611 = vmatprep.subr.mxu0 0.0
    %612 = vmatpush2.msra.mxu0 0.0
    %613 = vmatprep.subr.mxu0 0.0
    %614 = vmatpush2.msra.mxu0 0.0
    %615 = vmatprep.subr.mxu0 0.0
    %616 = vmatpush2.msra.mxu0 0.0
    %617 = vmatprep.subr.mxu0 0.0
    %618 = vmatpush2.msra.mxu0 0.0
    %619 = vmatprep.subr.mxu0 0.0
    %620 = vmatpush2.msra.mxu0 0.0
    %621 = vmatprep.subr.mxu0 0.0
    %622 = vmatpush2.msra.mxu0 0.0
    %623 = vmatprep.mubr.f32.mxu0 0.0
    %624 = vmatmul.mubr.f32.gmra.mxu0 %v282
    %v625 = vpop.f32.mrf.mxu0
    %v626 = vadd.f32 %v557, %v625
    %v627 = vpop.f32.mrf.mxu0
    %628 = vmatprep.mubr.f32.mxu0 0.0
    %629 = vmatmul.mubr.f32.gmra.mxu0 %v285
    %v630 = vpop.f32.mrf.mxu0
    %v631 = vadd.f32 %v557, %v630
    %v632 = vpop.f32.mrf.mxu0
    %633 = vmatprep.mubr.f32.mxu0 0.0
    %634 = vmatmul.mubr.f32.gmra.mxu0 %v288
    %v635 = vpop.f32.mrf.mxu0
    %v636 = vadd.f32 %v557, %v635
    %v637 = vpop.f32.mrf.mxu0
    %638 = vmatprep.mubr.f32.mxu0 0.0
    %639 = vmatmul.mubr.f32.gmra.mxu0 %v291
    %v640 = vpop.f32.mrf.mxu0
    %v641 = vadd.f32 %v557, %v640
    %v642 = vpop.f32.mrf.mxu0
    %643 = vmatprep.mubr.f32.mxu0 0.0
    %644 = vmatmul.mubr.f32.gmra.mxu0 %v294
    %v645 = vpop.f32.mrf.mxu0
    %v646 = vadd.f32 %v557, %v645
    %v647 = vpop.f32.mrf.mxu0
    %648 = vmatprep.mubr.f32.mxu0 0.0
    %649 = vmatmul.mubr.f32.gmra.mxu0 %v297
    %v650 = vpop.f32.mrf.mxu0
    %v651 = vadd.f32 %v557, %v650
    %v652 = vpop.f32.mrf.mxu0
    %653 = vmatprep.mubr.f32.mxu0 0.0
    %654 = vmatmul.mubr.f32.gmra.mxu0 %v300
    %v655 = vpop.f32.mrf.mxu0
    %v656 = vadd.f32 %v557, %v655
    %v657 = vpop.f32.mrf.mxu0
    %658 = vmatprep.mubr.f32.mxu0 0.0
    %659 = vmatmul.mubr.f32.gmra.mxu0 %v303
    %v660 = vpop.f32.mrf.mxu0
    %v661 = vadd.f32 %v557, %v660
    %v662 = vpop.f32.mrf.mxu0
    %663 = vdwg.mxu0
    %v664 = vmax.f32 %v626, 0.0
    %v665 = vmax.f32 %v631, 0.0
    %v666 = vmax.f32 %v636, 0.0
    %v667 = vmax.f32 %v641, 0.0
    %v668 = vmax.f32 %v646, 0.0
    %v669 = vmax.f32 %v651, 0.0
    %v670 = vmax.f32 %v656, 0.0
    %v671 = vmax.f32 %v661, 0.0
    %v672 = vld [vmem:[%s13] sm:$0xff]
    %v673 = vld [vmem:[%s13 + $0x8] sm:$0xff]
    %v674 = vld [vmem:[%s13 + $0x10] sm:$0xff]
    %v675 = vld [vmem:[%s13 + $0x18] sm:$0xff]
    %v677 = vsel %vm422, %v664, 0
    %v680 = vsel %vm422, %v665, 0
    %v683 = vsel %vm422, %v666, 0
    %v686 = vsel %vm422, %v667, 0
    %v689 = vsel %vm422, %v668, 0
    %v692 = vsel %vm422, %v669, 0
    %v695 = vsel %vm422, %v670, 0
    %v698 = vsel %vm422, %v671, 0
    %700 = vmatprep.subr.mxu0 0.0
    %701 = vmatpush1.msra.mxu0 0.0
    %702 = vmatprep.subr.mxu0 0.0
    %703 = vmatpush1.msra.mxu0 0.0
    %704 = vmatprep.subr.mxu0 0.0
    %705 = vmatpush1.msra.mxu0 0.0
    %706 = vmatprep.subr.mxu0 0.0
    %707 = vmatpush1.msra.mxu0 0.0
    %708 = vmatprep.subr.mxu0 0.0
    %709 = vmatpush1.msra.mxu0 0.0
    %710 = vmatprep.subr.mxu0 0.0
    %711 = vmatpush1.msra.mxu0 0.0
    %712 = vmatprep.subr.mxu0 0.0
    %713 = vmatpush1.msra.mxu0 0.0
    %714 = vmatprep.subr.mxu0 0.0
    %715 = vmatpush1.msra.mxu0 0.0
    %716 = vmatprep.subr.mxu0 0.0
    %717 = vmatpush1.msra.mxu0 0.0
    %718 = vmatprep.subr.mxu0 0.0
    %719 = vmatpush1.msra.mxu0 0.0
    %720 = vmatprep.subr.mxu0 0.0
    %721 = vmatpush1.msra.mxu0 0.0
    %722 = vmatprep.subr.mxu0 0.0
    %723 = vmatpush1.msra.mxu0 0.0
    %724 = vmatprep.subr.mxu0 0.0
    %725 = vmatpush1.msra.mxu0 %v675
    %726 = vmatprep.subr.mxu0 0.0
    %727 = vmatpush1.msra.mxu0 %v674
    %728 = vmatprep.subr.mxu0 0.0
    %729 = vmatpush1.msra.mxu0 %v673
    %730 = vmatprep.subr.mxu0 0.0
    %731 = vmatpush1.msra.mxu0 %v672
    %732 = vmatprep.subr.mxu0 0.0
    %733 = vmatpush2.msra.mxu0 0.0
    %734 = vmatprep.subr.mxu0 0.0
    %735 = vmatpush2.msra.mxu0 0.0
    %736 = vmatprep.subr.mxu0 0.0
    %737 = vmatpush2.msra.mxu0 0.0
    %738 = vmatprep.subr.mxu0 0.0
    %739 = vmatpush2.msra.mxu0 0.0
    %740 = vmatprep.subr.mxu0 0.0
    %741 = vmatpush2.msra.mxu0 0.0
    %742 = vmatprep.subr.mxu0 0.0
    %743 = vmatpush2.msra.mxu0 0.0
    %744 = vmatprep.subr.mxu0 0.0
    %745 = vmatpush2.msra.mxu0 0.0
    %746 = vmatprep.subr.mxu0 0.0
    %747 = vmatpush2.msra.mxu0 0.0
    %748 = vmatprep.subr.mxu0 0.0
    %749 = vmatpush2.msra.mxu0 0.0
    %750 = vmatprep.subr.mxu0 0.0
    %751 = vmatpush2.msra.mxu0 0.0
    %752 = vmatprep.subr.mxu0 0.0
    %753 = vmatpush2.msra.mxu0 0.0
    %754 = vmatprep.subr.mxu0 0.0
    %755 = vmatpush2.msra.mxu0 0.0
    %756 = vmatprep.subr.mxu0 0.0
    %757 = vmatpush2.msra.mxu0 0.0
    %758 = vmatprep.subr.mxu0 0.0
    %759 = vmatpush2.msra.mxu0 0.0
    %760 = vmatprep.subr.mxu0 0.0
    %761 = vmatpush2.msra.mxu0 0.0
    %762 = vmatprep.subr.mxu0 0.0
    %763 = vmatpush2.msra.mxu0 0.0
    %764 = vmatprep.mubr.f32.mxu0 0.0
    %765 = vmatmul.mubr.f32.gmra.mxu0 %v677
    %v766 = vpop.f32.mrf.mxu0
    %v767 = vadd.f32 0.0, %v766
    %v768 = vpop.f32.mrf.mxu0
    %769 = vmatprep.mubr.f32.mxu0 0.0
    %770 = vmatmul.mubr.f32.gmra.mxu0 %v680
    %v771 = vpop.f32.mrf.mxu0
    %v772 = vadd.f32 0.0, %v771
    %v773 = vpop.f32.mrf.mxu0
    %774 = vmatprep.mubr.f32.mxu0 0.0
    %775 = vmatmul.mubr.f32.gmra.mxu0 %v683
    %v776 = vpop.f32.mrf.mxu0
    %v777 = vadd.f32 0.0, %v776
    %v778 = vpop.f32.mrf.mxu0
    %779 = vmatprep.mubr.f32.mxu0 0.0
    %780 = vmatmul.mubr.f32.gmra.mxu0 %v686
    %v781 = vpop.f32.mrf.mxu0
    %v782 = vadd.f32 0.0, %v781
    %v783 = vpop.f32.mrf.mxu0
    %784 = vmatprep.mubr.f32.mxu0 0.0
    %785 = vmatmul.mubr.f32.gmra.mxu0 %v689
    %v786 = vpop.f32.mrf.mxu0
    %v787 = vadd.f32 0.0, %v786
    %v788 = vpop.f32.mrf.mxu0
    %789 = vmatprep.mubr.f32.mxu0 0.0
    %790 = vmatmul.mubr.f32.gmra.mxu0 %v692
    %v791 = vpop.f32.mrf.mxu0
    %v792 = vadd.f32 0.0, %v791
    %v793 = vpop.f32.mrf.mxu0
    %794 = vmatprep.mubr.f32.mxu0 0.0
    %795 = vmatmul.mubr.f32.gmra.mxu0 %v695
    %v796 = vpop.f32.mrf.mxu0
    %v797 = vadd.f32 0.0, %v796
    %v798 = vpop.f32.mrf.mxu0
    %799 = vmatprep.mubr.f32.mxu0 0.0
    %800 = vmatmul.mubr.f32.gmra.mxu0 %v698
    %v801 = vpop.f32.mrf.mxu0
    %v802 = vadd.f32 0.0, %v801
    %v803 = vpop.f32.mrf.mxu0
    %804 = vdwg.mxu0
    %v805 = vld [vmem:[%s15] sm:$0x1]
    %v807 = vlaneseq
    %v808 = vshrl.u32 %v807, 7
    %v809 = vsub.s32 0, %v808
    %v810 = vrot.slane %v805, %v809
    %812 = vmatprep.subr.mxu0 0.0
    %813 = vmatpush1.msra.mxu0 0.0
    %814 = vmatprep.subr.mxu0 0.0
    %815 = vmatpush1.msra.mxu0 0.0
    %816 = vmatprep.subr.mxu0 0.0
    %817 = vmatpush1.msra.mxu0 0.0
    %818 = vmatprep.subr.mxu0 0.0
    %819 = vmatpush1.msra.mxu0 0.0
    %820 = vmatprep.subr.mxu0 0.0
    %821 = vmatpush1.msra.mxu0 0.0
    %822 = vmatprep.subr.mxu0 0.0
    %823 = vmatpush1.msra.mxu0 0.0
    %824 = vmatprep.subr.mxu0 0.0
    %825 = vmatpush1.msra.mxu0 0.0
    %826 = vmatprep.subr.mxu0 0.0
    %827 = vmatpush1.msra.mxu0 0.0
    %828 = vmatprep.subr.mxu0 0.0
    %829 = vmatpush1.msra.mxu0 %v802
    %830 = vmatprep.subr.mxu0 0.0
    %831 = vmatpush1.msra.mxu0 %v797
    %832 = vmatprep.subr.mxu0 0.0
    %833 = vmatpush1.msra.mxu0 %v792
    %834 = vmatprep.subr.mxu0 0.0
    %835 = vmatpush1.msra.mxu0 %v787
    %836 = vmatprep.subr.mxu0 0.0
    %837 = vmatpush1.msra.mxu0 %v782
    %838 = vmatprep.subr.mxu0 0.0
    %839 = vmatpush1.msra.mxu0 %v777
    %840 = vmatprep.subr.mxu0 0.0
    %841 = vmatpush1.msra.mxu0 %v772
    %842 = vmatprep.subr.mxu0 0.0
    %843 = vmatpush1.msra.mxu0 %v767
    %844 = vmatprep.subr.mxu0 0.0
    %845 = vmatpush2.msra.mxu0 0.0
    %846 = vmatprep.subr.mxu0 0.0
    %847 = vmatpush2.msra.mxu0 0.0
    %848 = vmatprep.subr.mxu0 0.0
    %849 = vmatpush2.msra.mxu0 0.0
    %850 = vmatprep.subr.mxu0 0.0
    %851 = vmatpush2.msra.mxu0 0.0
    %852 = vmatprep.subr.mxu0 0.0
    %853 = vmatpush2.msra.mxu0 0.0
    %854 = vmatprep.subr.mxu0 0.0
    %855 = vmatpush2.msra.mxu0 0.0
    %856 = vmatprep.subr.mxu0 0.0
    %857 = vmatpush2.msra.mxu0 0.0
    %858 = vmatprep.subr.mxu0 0.0
    %859 = vmatpush2.msra.mxu0 0.0
    %860 = vmatprep.subr.mxu0 0.0
    %861 = vmatpush2.msra.mxu0 0.0
    %862 = vmatprep.subr.mxu0 0.0
    %863 = vmatpush2.msra.mxu0 0.0
    %864 = vmatprep.subr.mxu0 0.0
    %865 = vmatpush2.msra.mxu0 0.0
    %866 = vmatprep.subr.mxu0 0.0
    %867 = vmatpush2.msra.mxu0 0.0
    %868 = vmatprep.subr.mxu0 0.0
    %869 = vmatpush2.msra.mxu0 0.0
    %870 = vmatprep.subr.mxu0 0.0
    %871 = vmatpush2.msra.mxu0 0.0
    %872 = vmatprep.subr.mxu0 0.0
    %873 = vmatpush2.msra.mxu0 0.0
    %874 = vmatprep.subr.mxu0 0.0
    %875 = vmatpush2.msra.mxu0 0.0
    %876 = vmatprep.mubr.f32.mxu0 0.0
    %877 = vmatmul.mubr.f32.gmra.mxu0 %v282
    %v878 = vpop.f32.mrf.mxu0
    %v879 = vadd.f32 %v810, %v878
    %v880 = vpop.f32.mrf.mxu0
    %881 = vmatprep.mubr.f32.mxu0 0.0
    %882 = vmatmul.mubr.f32.gmra.mxu0 %v285
    %v883 = vpop.f32.mrf.mxu0
    %v884 = vadd.f32 %v810, %v883
    %v885 = vpop.f32.mrf.mxu0
    %886 = vmatprep.mubr.f32.mxu0 0.0
    %887 = vmatmul.mubr.f32.gmra.mxu0 %v288
    %v888 = vpop.f32.mrf.mxu0
    %v889 = vadd.f32 %v810, %v888
    %v890 = vpop.f32.mrf.mxu0
    %891 = vmatprep.mubr.f32.mxu0 0.0
    %892 = vmatmul.mubr.f32.gmra.mxu0 %v291
    %v893 = vpop.f32.mrf.mxu0
    %v894 = vadd.f32 %v810, %v893
    %v895 = vpop.f32.mrf.mxu0
    %896 = vmatprep.mubr.f32.mxu0 0.0
    %897 = vmatmul.mubr.f32.gmra.mxu0 %v294
    %v898 = vpop.f32.mrf.mxu0
    %v899 = vadd.f32 %v810, %v898
    %v900 = vpop.f32.mrf.mxu0
    %901 = vmatprep.mubr.f32.mxu0 0.0
    %902 = vmatmul.mubr.f32.gmra.mxu0 %v297
    %v903 = vpop.f32.mrf.mxu0
    %v904 = vadd.f32 %v810, %v903
    %v905 = vpop.f32.mrf.mxu0
    %906 = vmatprep.mubr.f32.mxu0 0.0
    %907 = vmatmul.mubr.f32.gmra.mxu0 %v300
    %v908 = vpop.f32.mrf.mxu0
    %v909 = vadd.f32 %v810, %v908
    %v910 = vpop.f32.mrf.mxu0
    %911 = vmatprep.mubr.f32.mxu0 0.0
    %912 = vmatmul.mubr.f32.gmra.mxu0 %v303
    %v913 = vpop.f32.mrf.mxu0
    %v914 = vadd.f32 %v810, %v913
    %v915 = vpop.f32.mrf.mxu0
    %916 = vdwg.mxu0
    %v917 = vld [vmem:[%s17] sm:$0xff]
    %v918 = vld [vmem:[%s17 + $0x8] sm:$0xff]
    %v919 = vld [vmem:[%s17 + $0x10] sm:$0xff]
    %v920 = vld [vmem:[%s17 + $0x18] sm:$0xff]
    %v921 = vld [vmem:[%s19] sm:$0xff]
    %v922 = vld [vmem:[%s19 + $0x8] sm:$0xff]
    %v923 = vld [vmem:[%s19 + $0x10] sm:$0xff]
    %v924 = vld [vmem:[%s19 + $0x18] sm:$0xff]
    %v925 = vld [vmem:[%s21] sm:$0x1]
    %927 = vset.pattern.permute.xlu0 0
    %928 = vperm.xlu0 %927, %v921
    %v929 = vpop.permute.xlu0 %928
    %932 = vset.pattern.permute.xlu0 0
    %933 = vperm.xlu0 %932, %v922
    %v934 = vpop.permute.xlu0 %933
    %937 = vset.pattern.permute.xlu0 0
    %938 = vperm.xlu0 %937, %v923
    %v939 = vpop.permute.xlu0 %938
    %942 = vset.pattern.permute.xlu0 0
    %943 = vperm.xlu0 %942, %v924
    %v944 = vpop.permute.xlu0 %943
    %v947 = vlaneseq
    %v948 = vshrl.u32 %v947, 7
    %v949 = vsub.s32 0, %v948
    %v950 = vrot.slane %v925, %v949
    %v952 = vmul.f32 %v929, %v950
    %v953 = vmul.f32 %v934, %v950
    %v954 = vmul.f32 %v939, %v950
    %v955 = vmul.f32 %v944, %v950
    %v957 = vsel %vm280, %v917, 0
    %v960 = vsel %vm280, %v918, 0
    %v963 = vsel %vm280, %v919, 0
    %v966 = vsel %vm280, %v920, 0
    %968 = vmatprep.subr.mxu0 0.0
    %969 = vmatpush1.msra.mxu0 0.0
    %970 = vmatprep.subr.mxu0 0.0
    %971 = vmatpush1.msra.mxu0 0.0
    %972 = vmatprep.subr.mxu0 0.0
    %973 = vmatpush1.msra.mxu0 0.0
    %974 = vmatprep.subr.mxu0 0.0
    %975 = vmatpush1.msra.mxu0 0.0
    %976 = vmatprep.subr.mxu0 0.0
    %977 = vmatpush1.msra.mxu0 0.0
    %978 = vmatprep.subr.mxu0 0.0
    %979 = vmatpush1.msra.mxu0 0.0
    %980 = vmatprep.subr.mxu0 0.0
    %981 = vmatpush1.msra.mxu0 0.0
    %982 = vmatprep.subr.mxu0 0.0
    %983 = vmatpush1.msra.mxu0 0.0
    %984 = vmatprep.subr.mxu0 0.0
    %985 = vmatpush1.msra.mxu0 %v914
    %986 = vmatprep.subr.mxu0 0.0
    %987 = vmatpush1.msra.mxu0 %v909
    %988 = vmatprep.subr.mxu0 0.0
    %989 = vmatpush1.msra.mxu0 %v904
    %990 = vmatprep.subr.mxu0 0.0
    %991 = vmatpush1.msra.mxu0 %v899
    %992 = vmatprep.subr.mxu0 0.0
    %993 = vmatpush1.msra.mxu0 %v894
    %994 = vmatprep.subr.mxu0 0.0
    %995 = vmatpush1.msra.mxu0 %v889
    %996 = vmatprep.subr.mxu0 0.0
    %997 = vmatpush1.msra.mxu0 %v884
    %998 = vmatprep.subr.mxu0 0.0
    %999 = vmatpush1.msra.mxu0 %v879
    %1000 = vmatprep.subr.mxu0 0.0
    %1001 = vmatpush2.msra.mxu0 0.0
    %1002 = vmatprep.subr.mxu0 0.0
    %1003 = vmatpush2.msra.mxu0 0.0
    %1004 = vmatprep.subr.mxu0 0.0
    %1005 = vmatpush2.msra.mxu0 0.0
    %1006 = vmatprep.subr.mxu0 0.0
    %1007 = vmatpush2.msra.mxu0 0.0
    %1008 = vmatprep.subr.mxu0 0.0
    %1009 = vmatpush2.msra.mxu0 0.0
    %1010 = vmatprep.subr.mxu0 0.0
    %1011 = vmatpush2.msra.mxu0 0.0
    %1012 = vmatprep.subr.mxu0 0.0
    %1013 = vmatpush2.msra.mxu0 0.0
    %1014 = vmatprep.subr.mxu0 0.0
    %1015 = vmatpush2.msra.mxu0 0.0
    %1016 = vmatprep.subr.mxu0 0.0
    %1017 = vmatpush2.msra.mxu0 0.0
    %1018 = vmatprep.subr.mxu0 0.0
    %1019 = vmatpush2.msra.mxu0 0.0
    %1020 = vmatprep.subr.mxu0 0.0
    %1021 = vmatpush2.msra.mxu0 0.0
    %1022 = vmatprep.subr.mxu0 0.0
    %1023 = vmatpush2.msra.mxu0 0.0
    %1024 = vmatprep.subr.mxu0 0.0
    %1025 = vmatpush2.msra.mxu0 0.0
    %1026 = vmatprep.subr.mxu0 0.0
    %1027 = vmatpush2.msra.mxu0 0.0
    %1028 = vmatprep.subr.mxu0 0.0
    %1029 = vmatpush2.msra.mxu0 0.0
    %1030 = vmatprep.subr.mxu0 0.0
    %1031 = vmatpush2.msra.mxu0 0.0
    %1032 = vmatprep.mubr.f32.mxu0 0.0
    %1033 = vmatmul.mubr.f32.gmra.mxu0 %v957
    %v1034 = vpop.f32.mrf.mxu0
    %v1035 = vadd.f32 %v952, %v1034
    %v1036 = vpop.f32.mrf.mxu0
    %1037 = vmatprep.mubr.f32.mxu0 0.0
    %1038 = vmatmul.mubr.f32.gmra.mxu0 %v960
    %v1039 = vpop.f32.mrf.mxu0
    %v1040 = vadd.f32 %v953, %v1039
    %v1041 = vpop.f32.mrf.mxu0
    %1042 = vmatprep.mubr.f32.mxu0 0.0
    %1043 = vmatmul.mubr.f32.gmra.mxu0 %v963
    %v1044 = vpop.f32.mrf.mxu0
    %v1045 = vadd.f32 %v954, %v1044
    %v1046 = vpop.f32.mrf.mxu0
    %1047 = vmatprep.mubr.f32.mxu0 0.0
    %1048 = vmatmul.mubr.f32.gmra.mxu0 %v966
    %v1049 = vpop.f32.mrf.mxu0
    %v1050 = vadd.f32 %v955, %v1049
    %v1051 = vpop.f32.mrf.mxu0
    %1052 = vdwg.mxu0
    %v1053 = vlaneseq
    %v1054 = vand.u32 %v1053, 127
    %vm1055 = vcmp.ge.s32.totalorder %v1054, 0
    %vm1056 = vcmp.lt.s32.totalorder %v1054, 16
    %vm1057 = vmand %vm1055, %vm1056
    %v1058 = vsel %vm1057, 1.0, 0.0
    %vm1059 = vcmp.ge.s32.totalorder %v1054, 16
    %vm1060 = vcmp.lt.s32.totalorder %v1054, 32
    %vm1061 = vmand %vm1059, %vm1060
    %v1062 = vsel %vm1061, 1.0, 0.0
    %v1063 = vld [vmem:[%s25] sm:$0xff]
    %v1064 = vld [vmem:[%s25 + $0x8] sm:$0xff]
    %v1065 = vld [vmem:[%s25 + $0x10] sm:$0xff]
    %v1066 = vld [vmem:[%s25 + $0x18] sm:$0xff]
    %v1067 = vld [vmem:[%s31] sm:$0x1]
    %v1069 = vlaneseq
    %v1070 = vshrl.u32 %v1069, 7
    %v1071 = vsub.s32 0, %v1070
    %v1072 = vrot.slane %v1067, %v1071
    %v1075 = vsel %vm422, %v1035, 0
    %v1078 = vsel %vm422, %v1040, 0
    %v1081 = vsel %vm422, %v1045, 0
    %v1084 = vsel %vm422, %v1050, 0
    %1086 = vmatprep.subr.mxu0 0.0
    %1087 = vmatpush1.msra.mxu0 0.0
    %1088 = vmatprep.subr.mxu0 0.0
    %1089 = vmatpush1.msra.mxu0 0.0
    %1090 = vmatprep.subr.mxu0 0.0
    %1091 = vmatpush1.msra.mxu0 0.0
    %1092 = vmatprep.subr.mxu0 0.0
    %1093 = vmatpush1.msra.mxu0 0.0
    %1094 = vmatprep.subr.mxu0 0.0
    %1095 = vmatpush1.msra.mxu0 0.0
    %1096 = vmatprep.subr.mxu0 0.0
    %1097 = vmatpush1.msra.mxu0 0.0
    %1098 = vmatprep.subr.mxu0 0.0
    %1099 = vmatpush1.msra.mxu0 0.0
    %1100 = vmatprep.subr.mxu0 0.0
    %1101 = vmatpush1.msra.mxu0 0.0
    %1102 = vmatprep.subr.mxu0 0.0
    %1103 = vmatpush1.msra.mxu0 0.0
    %1104 = vmatprep.subr.mxu0 0.0
    %1105 = vmatpush1.msra.mxu0 0.0
    %1106 = vmatprep.subr.mxu0 0.0
    %1107 = vmatpush1.msra.mxu0 0.0
    %1108 = vmatprep.subr.mxu0 0.0
    %1109 = vmatpush1.msra.mxu0 0.0
    %1110 = vmatprep.subr.mxu0 0.0
    %1111 = vmatpush1.msra.mxu0 %v1066
    %1112 = vmatprep.subr.mxu0 0.0
    %1113 = vmatpush1.msra.mxu0 %v1065
    %1114 = vmatprep.subr.mxu0 0.0
    %1115 = vmatpush1.msra.mxu0 %v1064
    %1116 = vmatprep.subr.mxu0 0.0
    %1117 = vmatpush1.msra.mxu0 %v1063
    %1118 = vmatprep.subr.mxu0 0.0
    %1119 = vmatpush2.msra.mxu0 0.0
    %1120 = vmatprep.subr.mxu0 0.0
    %1121 = vmatpush2.msra.mxu0 0.0
    %1122 = vmatprep.subr.mxu0 0.0
    %1123 = vmatpush2.msra.mxu0 0.0
    %1124 = vmatprep.subr.mxu0 0.0
    %1125 = vmatpush2.msra.mxu0 0.0
    %1126 = vmatprep.subr.mxu0 0.0
    %1127 = vmatpush2.msra.mxu0 0.0
    %1128 = vmatprep.subr.mxu0 0.0
    %1129 = vmatpush2.msra.mxu0 0.0
    %1130 = vmatprep.subr.mxu0 0.0
    %1131 = vmatpush2.msra.mxu0 0.0
    %1132 = vmatprep.subr.mxu0 0.0
    %1133 = vmatpush2.msra.mxu0 0.0
    %1134 = vmatprep.subr.mxu0 0.0
    %1135 = vmatpush2.msra.mxu0 0.0
    %1136 = vmatprep.subr.mxu0 0.0
    %1137 = vmatpush2.msra.mxu0 0.0
    %1138 = vmatprep.subr.mxu0 0.0
    %1139 = vmatpush2.msra.mxu0 0.0
    %1140 = vmatprep.subr.mxu0 0.0
    %1141 = vmatpush2.msra.mxu0 0.0
    %1142 = vmatprep.subr.mxu0 0.0
    %1143 = vmatpush2.msra.mxu0 0.0
    %1144 = vmatprep.subr.mxu0 0.0
    %1145 = vmatpush2.msra.mxu0 0.0
    %1146 = vmatprep.subr.mxu0 0.0
    %1147 = vmatpush2.msra.mxu0 0.0
    %1148 = vmatprep.subr.mxu0 0.0
    %1149 = vmatpush2.msra.mxu0 0.0
    %1150 = vmatprep.mubr.f32.mxu0 0.0
    %1151 = vmatmul.mubr.f32.gmra.mxu0 %v1075
    %v1152 = vpop.f32.mrf.mxu0
    %v1153 = vadd.f32 %v1072, %v1152
    %v1154 = vpop.f32.mrf.mxu0
    %1155 = vmatprep.mubr.f32.mxu0 0.0
    %1156 = vmatmul.mubr.f32.gmra.mxu0 %v1078
    %v1157 = vpop.f32.mrf.mxu0
    %v1158 = vadd.f32 %v1072, %v1157
    %v1159 = vpop.f32.mrf.mxu0
    %1160 = vmatprep.mubr.f32.mxu0 0.0
    %1161 = vmatmul.mubr.f32.gmra.mxu0 %v1081
    %v1162 = vpop.f32.mrf.mxu0
    %v1163 = vadd.f32 %v1072, %v1162
    %v1164 = vpop.f32.mrf.mxu0
    %1165 = vmatprep.mubr.f32.mxu0 0.0
    %1166 = vmatmul.mubr.f32.gmra.mxu0 %v1084
    %v1167 = vpop.f32.mrf.mxu0
    %v1168 = vadd.f32 %v1072, %v1167
    %v1169 = vpop.f32.mrf.mxu0
    %1170 = vdwg.mxu0
    %v1171 = vld [vmem:[%s27] sm:$0xff]
    %v1172 = vld [vmem:[%s27 + $0x8] sm:$0xff]
    %v1173 = vld [vmem:[%s27 + $0x10] sm:$0xff]
    %v1174 = vld [vmem:[%s27 + $0x18] sm:$0xff]
    %v1175 = vld [vmem:[%s33] sm:$0x1]
    %v1177 = vlaneseq
    %v1178 = vshrl.u32 %v1177, 7
    %v1179 = vsub.s32 0, %v1178
    %v1180 = vrot.slane %v1175, %v1179
    %1182 = vmatprep.subr.mxu0 0.0
    %1183 = vmatpush1.msra.mxu0 0.0
    %1184 = vmatprep.subr.mxu0 0.0
    %1185 = vmatpush1.msra.mxu0 0.0
    %1186 = vmatprep.subr.mxu0 0.0
    %1187 = vmatpush1.msra.mxu0 0.0
    %1188 = vmatprep.subr.mxu0 0.0
    %1189 = vmatpush1.msra.mxu0 0.0
    %1190 = vmatprep.subr.mxu0 0.0
    %1191 = vmatpush1.msra.mxu0 0.0
    %1192 = vmatprep.subr.mxu0 0.0
    %1193 = vmatpush1.msra.mxu0 0.0
    %1194 = vmatprep.subr.mxu0 0.0
    %1195 = vmatpush1.msra.mxu0 0.0
    %1196 = vmatprep.subr.mxu0 0.0
    %1197 = vmatpush1.msra.mxu0 0.0
    %1198 = vmatprep.subr.mxu0 0.0
    %1199 = vmatpush1.msra.mxu0 0.0
    %1200 = vmatprep.subr.mxu0 0.0
    %1201 = vmatpush1.msra.mxu0 0.0
    %1202 = vmatprep.subr.mxu0 0.0
    %1203 = vmatpush1.msra.mxu0 0.0
    %1204 = vmatprep.subr.mxu0 0.0
    %1205 = vmatpush1.msra.mxu0 0.0
    %1206 = vmatprep.subr.mxu0 0.0
    %1207 = vmatpush1.msra.mxu0 %v1174
    %1208 = vmatprep.subr.mxu0 0.0
    %1209 = vmatpush1.msra.mxu0 %v1173
    %1210 = vmatprep.subr.mxu0 0.0
    %1211 = vmatpush1.msra.mxu0 %v1172
    %1212 = vmatprep.subr.mxu0 0.0
    %1213 = vmatpush1.msra.mxu0 %v1171
    %1214 = vmatprep.subr.mxu0 0.0
    %1215 = vmatpush2.msra.mxu0 0.0
    %1216 = vmatprep.subr.mxu0 0.0
    %1217 = vmatpush2.msra.mxu0 0.0
    %1218 = vmatprep.subr.mxu0 0.0
    %1219 = vmatpush2.msra.mxu0 0.0
    %1220 = vmatprep.subr.mxu0 0.0
    %1221 = vmatpush2.msra.mxu0 0.0
    %1222 = vmatprep.subr.mxu0 0.0
    %1223 = vmatpush2.msra.mxu0 0.0
    %1224 = vmatprep.subr.mxu0 0.0
    %1225 = vmatpush2.msra.mxu0 0.0
    %1226 = vmatprep.subr.mxu0 0.0
    %1227 = vmatpush2.msra.mxu0 0.0
    %1228 = vmatprep.subr.mxu0 0.0
    %1229 = vmatpush2.msra.mxu0 0.0
    %1230 = vmatprep.subr.mxu0 0.0
    %1231 = vmatpush2.msra.mxu0 0.0
    %1232 = vmatprep.subr.mxu0 0.0
    %1233 = vmatpush2.msra.mxu0 0.0
    %1234 = vmatprep.subr.mxu0 0.0
    %1235 = vmatpush2.msra.mxu0 0.0
    %1236 = vmatprep.subr.mxu0 0.0
    %1237 = vmatpush2.msra.mxu0 0.0
    %1238 = vmatprep.subr.mxu0 0.0
    %1239 = vmatpush2.msra.mxu0 0.0
    %1240 = vmatprep.subr.mxu0 0.0
    %1241 = vmatpush2.msra.mxu0 0.0
    %1242 = vmatprep.subr.mxu0 0.0
    %1243 = vmatpush2.msra.mxu0 0.0
    %1244 = vmatprep.subr.mxu0 0.0
    %1245 = vmatpush2.msra.mxu0 0.0
    %1246 = vmatprep.mubr.f32.mxu0 0.0
    %1247 = vmatmul.mubr.f32.gmra.mxu0 %v1075
    %v1248 = vpop.f32.mrf.mxu0
    %v1249 = vadd.f32 %v1180, %v1248
    %v1250 = vpop.f32.mrf.mxu0
    %1251 = vmatprep.mubr.f32.mxu0 0.0
    %1252 = vmatmul.mubr.f32.gmra.mxu0 %v1078
    %v1253 = vpop.f32.mrf.mxu0
    %v1254 = vadd.f32 %v1180, %v1253
    %v1255 = vpop.f32.mrf.mxu0
    %1256 = vmatprep.mubr.f32.mxu0 0.0
    %1257 = vmatmul.mubr.f32.gmra.mxu0 %v1081
    %v1258 = vpop.f32.mrf.mxu0
    %v1259 = vadd.f32 %v1180, %v1258
    %v1260 = vpop.f32.mrf.mxu0
    %1261 = vmatprep.mubr.f32.mxu0 0.0
    %1262 = vmatmul.mubr.f32.gmra.mxu0 %v1084
    %v1263 = vpop.f32.mrf.mxu0
    %v1264 = vadd.f32 %v1180, %v1263
    %v1265 = vpop.f32.mrf.mxu0
    %1266 = vdwg.mxu0
    %v1267 = vld [vmem:[%s29] sm:$0xff]
    %v1268 = vld [vmem:[%s29 + $0x8] sm:$0xff]
    %v1269 = vld [vmem:[%s29 + $0x10] sm:$0xff]
    %v1270 = vld [vmem:[%s29 + $0x18] sm:$0xff]
    %v1271 = vld [vmem:[%s35] sm:$0x1]
    %v1273 = vlaneseq
    %v1274 = vshrl.u32 %v1273, 7
    %v1275 = vsub.s32 0, %v1274
    %v1276 = vrot.slane %v1271, %v1275
    %1278 = vmatprep.subr.mxu0 0.0
    %1279 = vmatpush1.msra.mxu0 0.0
    %1280 = vmatprep.subr.mxu0 0.0
    %1281 = vmatpush1.msra.mxu0 0.0
    %1282 = vmatprep.subr.mxu0 0.0
    %1283 = vmatpush1.msra.mxu0 0.0
    %1284 = vmatprep.subr.mxu0 0.0
    %1285 = vmatpush1.msra.mxu0 0.0
    %1286 = vmatprep.subr.mxu0 0.0
    %1287 = vmatpush1.msra.mxu0 0.0
    %1288 = vmatprep.subr.mxu0 0.0
    %1289 = vmatpush1.msra.mxu0 0.0
    %1290 = vmatprep.subr.mxu0 0.0
    %1291 = vmatpush1.msra.mxu0 0.0
    %1292 = vmatprep.subr.mxu0 0.0
    %1293 = vmatpush1.msra.mxu0 0.0
    %1294 = vmatprep.subr.mxu0 0.0
    %1295 = vmatpush1.msra.mxu0 0.0
    %1296 = vmatprep.subr.mxu0 0.0
    %1297 = vmatpush1.msra.mxu0 0.0
    %1298 = vmatprep.subr.mxu0 0.0
    %1299 = vmatpush1.msra.mxu0 0.0
    %1300 = vmatprep.subr.mxu0 0.0
    %1301 = vmatpush1.msra.mxu0 0.0
    %1302 = vmatprep.subr.mxu0 0.0
    %1303 = vmatpush1.msra.mxu0 %v1270
    %1304 = vmatprep.subr.mxu0 0.0
    %1305 = vmatpush1.msra.mxu0 %v1269
    %1306 = vmatprep.subr.mxu0 0.0
    %1307 = vmatpush1.msra.mxu0 %v1268
    %1308 = vmatprep.subr.mxu0 0.0
    %1309 = vmatpush1.msra.mxu0 %v1267
    %1310 = vmatprep.subr.mxu0 0.0
    %1311 = vmatpush2.msra.mxu0 0.0
    %1312 = vmatprep.subr.mxu0 0.0
    %1313 = vmatpush2.msra.mxu0 0.0
    %1314 = vmatprep.subr.mxu0 0.0
    %1315 = vmatpush2.msra.mxu0 0.0
    %1316 = vmatprep.subr.mxu0 0.0
    %1317 = vmatpush2.msra.mxu0 0.0
    %1318 = vmatprep.subr.mxu0 0.0
    %1319 = vmatpush2.msra.mxu0 0.0
    %1320 = vmatprep.subr.mxu0 0.0
    %1321 = vmatpush2.msra.mxu0 0.0
    %1322 = vmatprep.subr.mxu0 0.0
    %1323 = vmatpush2.msra.mxu0 0.0
    %1324 = vmatprep.subr.mxu0 0.0
    %1325 = vmatpush2.msra.mxu0 0.0
    %1326 = vmatprep.subr.mxu0 0.0
    %1327 = vmatpush2.msra.mxu0 0.0
    %1328 = vmatprep.subr.mxu0 0.0
    %1329 = vmatpush2.msra.mxu0 0.0
    %1330 = vmatprep.subr.mxu0 0.0
    %1331 = vmatpush2.msra.mxu0 0.0
    %1332 = vmatprep.subr.mxu0 0.0
    %1333 = vmatpush2.msra.mxu0 0.0
    %1334 = vmatprep.subr.mxu0 0.0
    %1335 = vmatpush2.msra.mxu0 0.0
    %1336 = vmatprep.subr.mxu0 0.0
    %1337 = vmatpush2.msra.mxu0 0.0
    %1338 = vmatprep.subr.mxu0 0.0
    %1339 = vmatpush2.msra.mxu0 0.0
    %1340 = vmatprep.subr.mxu0 0.0
    %1341 = vmatpush2.msra.mxu0 0.0
    %1342 = vmatprep.mubr.f32.mxu0 0.0
    %1343 = vmatmul.mubr.f32.gmra.mxu0 %v1075
    %v1344 = vpop.f32.mrf.mxu0
    %v1345 = vadd.f32 %v1276, %v1344
    %v1346 = vpop.f32.mrf.mxu0
    %1347 = vmatprep.mubr.f32.mxu0 0.0
    %1348 = vmatmul.mubr.f32.gmra.mxu0 %v1078
    %v1349 = vpop.f32.mrf.mxu0
    %v1350 = vadd.f32 %v1276, %v1349
    %v1351 = vpop.f32.mrf.mxu0
    %1352 = vmatprep.mubr.f32.mxu0 0.0
    %1353 = vmatmul.mubr.f32.gmra.mxu0 %v1081
    %v1354 = vpop.f32.mrf.mxu0
    %v1355 = vadd.f32 %v1276, %v1354
    %v1356 = vpop.f32.mrf.mxu0
    %1357 = vmatprep.mubr.f32.mxu0 0.0
    %1358 = vmatmul.mubr.f32.gmra.mxu0 %v1084
    %v1359 = vpop.f32.mrf.mxu0
    %v1360 = vadd.f32 %v1276, %v1359
    %v1361 = vpop.f32.mrf.mxu0
    %1362 = vdwg.mxu0
    %v1363 = vld [vmem:[%s23] sm:$0x1]
    %v1364 = vmul.f32 %v1153, %v1058
    %v1365 = vmul.f32 %v1158, %v1058
    %v1367 = vsel %vm422, %v1364, 0
    %v1370 = vsel %vm422, %v1365, 0
    %v1373 = vsel %vm422, %v1249, 0
    %v1376 = vsel %vm422, %v1254, 0
    %1378 = vmatprep.subr.mxu0 0.0
    %1379 = vmatpush1.xpose.msra.mxu0 0.0
    %1380 = vmatprep.subr.mxu0 0.0
    %1381 = vmatpush1.xpose.msra.mxu0 0.0
    %1382 = vmatprep.subr.mxu0 0.0
    %1383 = vmatpush1.xpose.msra.mxu0 0.0
    %1384 = vmatprep.subr.mxu0 0.0
    %1385 = vmatpush1.xpose.msra.mxu0 0.0
    %1386 = vmatprep.subr.mxu0 0.0
    %1387 = vmatpush1.xpose.msra.mxu0 0.0
    %1388 = vmatprep.subr.mxu0 0.0
    %1389 = vmatpush1.xpose.msra.mxu0 0.0
    %1390 = vmatprep.subr.mxu0 0.0
    %1391 = vmatpush1.xpose.msra.mxu0 0.0
    %1392 = vmatprep.subr.mxu0 0.0
    %1393 = vmatpush1.xpose.msra.mxu0 0.0
    %1394 = vmatprep.subr.mxu0 0.0
    %1395 = vmatpush1.xpose.msra.mxu0 0.0
    %1396 = vmatprep.subr.mxu0 0.0
    %1397 = vmatpush1.xpose.msra.mxu0 0.0
    %1398 = vmatprep.subr.mxu0 0.0
    %1399 = vmatpush1.xpose.msra.mxu0 0.0
    %1400 = vmatprep.subr.mxu0 0.0
    %1401 = vmatpush1.xpose.msra.mxu0 0.0
    %1402 = vmatprep.subr.mxu0 0.0
    %1403 = vmatpush1.xpose.msra.mxu0 0.0
    %1404 = vmatprep.subr.mxu0 0.0
    %1405 = vmatpush1.xpose.msra.mxu0 0.0
    %1406 = vmatprep.subr.mxu0 0.0
    %1407 = vmatpush1.xpose.msra.mxu0 %v1376
    %1408 = vmatprep.subr.mxu0 0.0
    %1409 = vmatpush1.xpose.msra.mxu0 %v1373
    %1410 = vmatprep.subr.mxu0 0.0
    %1411 = vmatpush2.xpose.msra.mxu0 0.0
    %1412 = vmatprep.subr.mxu0 0.0
    %1413 = vmatpush2.xpose.msra.mxu0 0.0
    %1414 = vmatprep.subr.mxu0 0.0
    %1415 = vmatpush2.xpose.msra.mxu0 0.0
    %1416 = vmatprep.subr.mxu0 0.0
    %1417 = vmatpush2.xpose.msra.mxu0 0.0
    %1418 = vmatprep.subr.mxu0 0.0
    %1419 = vmatpush2.xpose.msra.mxu0 0.0
    %1420 = vmatprep.subr.mxu0 0.0
    %1421 = vmatpush2.xpose.msra.mxu0 0.0
    %1422 = vmatprep.subr.mxu0 0.0
    %1423 = vmatpush2.xpose.msra.mxu0 0.0
    %1424 = vmatprep.subr.mxu0 0.0
    %1425 = vmatpush2.xpose.msra.mxu0 0.0
    %1426 = vmatprep.subr.mxu0 0.0
    %1427 = vmatpush2.xpose.msra.mxu0 0.0
    %1428 = vmatprep.subr.mxu0 0.0
    %1429 = vmatpush2.xpose.msra.mxu0 0.0
    %1430 = vmatprep.subr.mxu0 0.0
    %1431 = vmatpush2.xpose.msra.mxu0 0.0
    %1432 = vmatprep.subr.mxu0 0.0
    %1433 = vmatpush2.xpose.msra.mxu0 0.0
    %1434 = vmatprep.subr.mxu0 0.0
    %1435 = vmatpush2.xpose.msra.mxu0 0.0
    %1436 = vmatprep.subr.mxu0 0.0
    %1437 = vmatpush2.xpose.msra.mxu0 0.0
    %1438 = vmatprep.subr.mxu0 0.0
    %1439 = vmatpush2.xpose.msra.mxu0 0.0
    %1440 = vmatprep.subr.mxu0 0.0
    %1441 = vmatpush2.xpose.msra.mxu0 0.0
    %1442 = vmatprep.mubr.f32.mxu0 0.0
    %1443 = vmatmul.mubr.f32.gmra.mxu0 %v1367
    %v1444 = vpop.f32.mrf.mxu0
    %v1445 = vadd.f32 0.0, %v1444
    %v1446 = vpop.f32.mrf.mxu0
    %1447 = vmatprep.mubr.f32.mxu0 0.0
    %1448 = vmatmul.mubr.f32.gmra.mxu0 %v1370
    %v1449 = vpop.f32.mrf.mxu0
    %v1450 = vadd.f32 0.0, %v1449
    %v1451 = vpop.f32.mrf.mxu0
    %1452 = vdwg.mxu0
    %v1453 = vmul.f32 %v1445, 0.25
    %v1454 = vmul.f32 %v1450, 0.25
    %v1456 = vlaneseq
    %v1457 = vshrl.u32 %v1456, 7
    %v1458 = vsub.s32 0, %v1457
    %v1459 = vrot.slane %v1363, %v1458
    %v1461 = vadd.f32 %v1453, %v1459
    %v1462 = vadd.f32 %v1454, %v1459
    %vm1463 = vcmask 130048
    %v1464 = vsel %vm1463, %v1461, -inf
    %1465 = vmax.xlane.f32.xlu0 %v1464
    %v1466 = vpop.xlane.xlu0 %1465
    %v1467 = vsel %vm1463, %v1462, -inf
    %1468 = vmax.xlane.f32.xlu0 %v1467
    %v1469 = vpop.xlane.xlu0 %1468
    %v1470 = vsub.f32 %v1461, %v1466
    %v1471 = vsub.f32 %v1462, %v1469
    %v1472 = vmul.f32 %v1470, 1.442695
    %v1473 = vpow.pop %v1472
    %v1474 = vmul.f32 %v1471, 1.442695
    %v1475 = vpow.pop %v1474
    %v1476 = vsel %vm1463, %v1473, 0.0
    %1477 = vadd.xlane.f32.xlu0 %v1476
    %v1478 = vpop.xlane.xlu0 %1477
    %v1479 = vsel %vm1463, %v1475, 0.0
    %1480 = vadd.xlane.f32.xlu0 %v1479
    %v1481 = vpop.xlane.xlu0 %1480
    %v1482 = vrcp.pop %v1478
    %v1483 = vrcp.pop %v1481
    %v1484 = vmul.f32 %v1473, %v1482
    %v1485 = vmul.f32 %v1475, %v1483
    %v1486 = vmul.f32 %v1345, %v1058
    %v1487 = vmul.f32 %v1350, %v1058
    %v1488 = vmul.f32 %v1153, %v1062
    %v1489 = vmul.f32 %v1158, %v1062
    %v1491 = vsel %vm422, %v1488, 0
    %v1494 = vsel %vm422, %v1489, 0
    %1496 = vmatprep.subr.mxu0 0.0
    %1497 = vmatpush1.xpose.msra.mxu0 0.0
    %1498 = vmatprep.subr.mxu0 0.0
    %1499 = vmatpush1.xpose.msra.mxu0 0.0
    %1500 = vmatprep.subr.mxu0 0.0
    %1501 = vmatpush1.xpose.msra.mxu0 0.0
    %1502 = vmatprep.subr.mxu0 0.0
    %1503 = vmatpush1.xpose.msra.mxu0 0.0
    %1504 = vmatprep.subr.mxu0 0.0
    %1505 = vmatpush1.xpose.msra.mxu0 0.0
    %1506 = vmatprep.subr.mxu0 0.0
    %1507 = vmatpush1.xpose.msra.mxu0 0.0
    %1508 = vmatprep.subr.mxu0 0.0
    %1509 = vmatpush1.xpose.msra.mxu0 0.0
    %1510 = vmatprep.subr.mxu0 0.0
    %1511 = vmatpush1.xpose.msra.mxu0 0.0
    %1512 = vmatprep.subr.mxu0 0.0
    %1513 = vmatpush1.xpose.msra.mxu0 0.0
    %1514 = vmatprep.subr.mxu0 0.0
    %1515 = vmatpush1.xpose.msra.mxu0 0.0
    %1516 = vmatprep.subr.mxu0 0.0
    %1517 = vmatpush1.xpose.msra.mxu0 0.0
    %1518 = vmatprep.subr.mxu0 0.0
    %1519 = vmatpush1.xpose.msra.mxu0 0.0
    %1520 = vmatprep.subr.mxu0 0.0
    %1521 = vmatpush1.xpose.msra.mxu0 0.0
    %1522 = vmatprep.subr.mxu0 0.0
    %1523 = vmatpush1.xpose.msra.mxu0 0.0
    %1524 = vmatprep.subr.mxu0 0.0
    %1525 = vmatpush1.xpose.msra.mxu0 %v1376
    %1526 = vmatprep.subr.mxu0 0.0
    %1527 = vmatpush1.xpose.msra.mxu0 %v1373
    %1528 = vmatprep.subr.mxu0 0.0
    %1529 = vmatpush2.xpose.msra.mxu0 0.0
    %1530 = vmatprep.subr.mxu0 0.0
    %1531 = vmatpush2.xpose.msra.mxu0 0.0
    %1532 = vmatprep.subr.mxu0 0.0
    %1533 = vmatpush2.xpose.msra.mxu0 0.0
    %1534 = vmatprep.subr.mxu0 0.0
    %1535 = vmatpush2.xpose.msra.mxu0 0.0
    %1536 = vmatprep.subr.mxu0 0.0
    %1537 = vmatpush2.xpose.msra.mxu0 0.0
    %1538 = vmatprep.subr.mxu0 0.0
    %1539 = vmatpush2.xpose.msra.mxu0 0.0
    %1540 = vmatprep.subr.mxu0 0.0
    %1541 = vmatpush2.xpose.msra.mxu0 0.0
    %1542 = vmatprep.subr.mxu0 0.0
    %1543 = vmatpush2.xpose.msra.mxu0 0.0
    %1544 = vmatprep.subr.mxu0 0.0
    %1545 = vmatpush2.xpose.msra.mxu0 0.0
    %1546 = vmatprep.subr.mxu0 0.0
    %1547 = vmatpush2.xpose.msra.mxu0 0.0
    %1548 = vmatprep.subr.mxu0 0.0
    %1549 = vmatpush2.xpose.msra.mxu0 0.0
    %1550 = vmatprep.subr.mxu0 0.0
    %1551 = vmatpush2.xpose.msra.mxu0 0.0
    %1552 = vmatprep.subr.mxu0 0.0
    %1553 = vmatpush2.xpose.msra.mxu0 0.0
    %1554 = vmatprep.subr.mxu0 0.0
    %1555 = vmatpush2.xpose.msra.mxu0 0.0
    %1556 = vmatprep.subr.mxu0 0.0
    %1557 = vmatpush2.xpose.msra.mxu0 0.0
    %1558 = vmatprep.subr.mxu0 0.0
    %1559 = vmatpush2.xpose.msra.mxu0 0.0
    %1560 = vmatprep.mubr.f32.mxu0 0.0
    %1561 = vmatmul.mubr.f32.gmra.mxu0 %v1491
    %v1562 = vpop.f32.mrf.mxu0
    %v1563 = vadd.f32 0.0, %v1562
    %v1564 = vpop.f32.mrf.mxu0
    %1565 = vmatprep.mubr.f32.mxu0 0.0
    %1566 = vmatmul.mubr.f32.gmra.mxu0 %v1494
    %v1567 = vpop.f32.mrf.mxu0
    %v1568 = vadd.f32 0.0, %v1567
    %v1569 = vpop.f32.mrf.mxu0
    %1570 = vdwg.mxu0
    %v1571 = vmul.f32 %v1563, 0.25
    %v1572 = vmul.f32 %v1568, 0.25
    %v1573 = vadd.f32 %v1571, %v1459
    %v1574 = vadd.f32 %v1572, %v1459
    %v1575 = vsel %vm1463, %v1573, -inf
    %1576 = vmax.xlane.f32.xlu0 %v1575
    %v1577 = vpop.xlane.xlu0 %1576
    %v1578 = vsel %vm1463, %v1574, -inf
    %1579 = vmax.xlane.f32.xlu0 %v1578
    %v1580 = vpop.xlane.xlu0 %1579
    %v1581 = vsub.f32 %v1573, %v1577
    %v1582 = vsub.f32 %v1574, %v1580
    %v1583 = vmul.f32 %v1581, 1.442695
    %v1584 = vpow.pop %v1583
    %v1585 = vmul.f32 %v1582, 1.442695
    %v1586 = vpow.pop %v1585
    %v1587 = vsel %vm1463, %v1584, 0.0
    %1588 = vadd.xlane.f32.xlu0 %v1587
    %v1589 = vpop.xlane.xlu0 %1588
    %v1590 = vsel %vm1463, %v1586, 0.0
    %1591 = vadd.xlane.f32.xlu0 %v1590
    %v1592 = vpop.xlane.xlu0 %1591
    %v1593 = vrcp.pop %v1589
    %v1594 = vrcp.pop %v1592
    %v1595 = vmul.f32 %v1584, %v1593
    %v1596 = vmul.f32 %v1586, %v1594
    %v1597 = vmul.f32 %v1345, %v1062
    %v1598 = vmul.f32 %v1350, %v1062
    %v1600 = vsel %vm1463, %v1595, 0
    %v1603 = vsel %vm1463, %v1596, 0
    %1605 = vmatprep.subr.mxu0 0.0
    %1606 = vmatpush1.msra.mxu0 0.0
    %1607 = vmatprep.subr.mxu0 0.0
    %1608 = vmatpush1.msra.mxu0 0.0
    %1609 = vmatprep.subr.mxu0 0.0
    %1610 = vmatpush1.msra.mxu0 0.0
    %1611 = vmatprep.subr.mxu0 0.0
    %1612 = vmatpush1.msra.mxu0 0.0
    %1613 = vmatprep.subr.mxu0 0.0
    %1614 = vmatpush1.msra.mxu0 0.0
    %1615 = vmatprep.subr.mxu0 0.0
    %1616 = vmatpush1.msra.mxu0 0.0
    %1617 = vmatprep.subr.mxu0 0.0
    %1618 = vmatpush1.msra.mxu0 0.0
    %1619 = vmatprep.subr.mxu0 0.0
    %1620 = vmatpush1.msra.mxu0 0.0
    %1621 = vmatprep.subr.mxu0 0.0
    %1622 = vmatpush1.msra.mxu0 0.0
    %1623 = vmatprep.subr.mxu0 0.0
    %1624 = vmatpush1.msra.mxu0 0.0
    %1625 = vmatprep.subr.mxu0 0.0
    %1626 = vmatpush1.msra.mxu0 0.0
    %1627 = vmatprep.subr.mxu0 0.0
    %1628 = vmatpush1.msra.mxu0 0.0
    %1629 = vmatprep.subr.mxu0 0.0
    %1630 = vmatpush1.msra.mxu0 0.0
    %1631 = vmatprep.subr.mxu0 0.0
    %1632 = vmatpush1.msra.mxu0 0.0
    %1633 = vmatprep.subr.mxu0 0.0
    %1634 = vmatpush1.msra.mxu0 %v1598
    %1635 = vmatprep.subr.mxu0 0.0
    %1636 = vmatpush1.msra.mxu0 %v1597
    %1637 = vmatprep.subr.mxu0 0.0
    %1638 = vmatpush2.msra.mxu0 0.0
    %1639 = vmatprep.subr.mxu0 0.0
    %1640 = vmatpush2.msra.mxu0 0.0
    %1641 = vmatprep.subr.mxu0 0.0
    %1642 = vmatpush2.msra.mxu0 0.0
    %1643 = vmatprep.subr.mxu0 0.0
    %1644 = vmatpush2.msra.mxu0 0.0
    %1645 = vmatprep.subr.mxu0 0.0
    %1646 = vmatpush2.msra.mxu0 0.0
    %1647 = vmatprep.subr.mxu0 0.0
    %1648 = vmatpush2.msra.mxu0 0.0
    %1649 = vmatprep.subr.mxu0 0.0
    %1650 = vmatpush2.msra.mxu0 0.0
    %1651 = vmatprep.subr.mxu0 0.0
    %1652 = vmatpush2.msra.mxu0 0.0
    %1653 = vmatprep.subr.mxu0 0.0
    %1654 = vmatpush2.msra.mxu0 0.0
    %1655 = vmatprep.subr.mxu0 0.0
    %1656 = vmatpush2.msra.mxu0 0.0
    %1657 = vmatprep.subr.mxu0 0.0
    %1658 = vmatpush2.msra.mxu0 0.0
    %1659 = vmatprep.subr.mxu0 0.0
    %1660 = vmatpush2.msra.mxu0 0.0
    %1661 = vmatprep.subr.mxu0 0.0
    %1662 = vmatpush2.msra.mxu0 0.0
    %1663 = vmatprep.subr.mxu0 0.0
    %1664 = vmatpush2.msra.mxu0 0.0
    %1665 = vmatprep.subr.mxu0 0.0
    %1666 = vmatpush2.msra.mxu0 0.0
    %1667 = vmatprep.subr.mxu0 0.0
    %1668 = vmatpush2.msra.mxu0 0.0
    %1669 = vmatprep.mubr.f32.mxu0 0.0
    %1670 = vmatmul.mubr.f32.gmra.mxu0 %v1600
    %v1671 = vpop.f32.mrf.mxu0
    %v1672 = vadd.f32 0.0, %v1671
    %v1673 = vpop.f32.mrf.mxu0
    %1674 = vmatprep.mubr.f32.mxu0 0.0
    %1675 = vmatmul.mubr.f32.gmra.mxu0 %v1603
    %v1676 = vpop.f32.mrf.mxu0
    %v1677 = vadd.f32 0.0, %v1676
    %v1678 = vpop.f32.mrf.mxu0
    %1679 = vdwg.mxu0
    %v1681 = vsel %vm1463, %v1484, 0
    %v1684 = vsel %vm1463, %v1485, 0
    %1686 = vmatprep.subr.mxu0 0.0
    %1687 = vmatpush1.msra.mxu0 0.0
    %1688 = vmatprep.subr.mxu0 0.0
    %1689 = vmatpush1.msra.mxu0 0.0
    %1690 = vmatprep.subr.mxu0 0.0
    %1691 = vmatpush1.msra.mxu0 0.0
    %1692 = vmatprep.subr.mxu0 0.0
    %1693 = vmatpush1.msra.mxu0 0.0
    %1694 = vmatprep.subr.mxu0 0.0
    %1695 = vmatpush1.msra.mxu0 0.0
    %1696 = vmatprep.subr.mxu0 0.0
    %1697 = vmatpush1.msra.mxu0 0.0
    %1698 = vmatprep.subr.mxu0 0.0
    %1699 = vmatpush1.msra.mxu0 0.0
    %1700 = vmatprep.subr.mxu0 0.0
    %1701 = vmatpush1.msra.mxu0 0.0
    %1702 = vmatprep.subr.mxu0 0.0
    %1703 = vmatpush1.msra.mxu0 0.0
    %1704 = vmatprep.subr.mxu0 0.0
    %1705 = vmatpush1.msra.mxu0 0.0
    %1706 = vmatprep.subr.mxu0 0.0
    %1707 = vmatpush1.msra.mxu0 0.0
    %1708 = vmatprep.subr.mxu0 0.0
    %1709 = vmatpush1.msra.mxu0 0.0
    %1710 = vmatprep.subr.mxu0 0.0
    %1711 = vmatpush1.msra.mxu0 0.0
    %1712 = vmatprep.subr.mxu0 0.0
    %1713 = vmatpush1.msra.mxu0 0.0
    %1714 = vmatprep.subr.mxu0 0.0
    %1715 = vmatpush1.msra.mxu0 %v1487
    %1716 = vmatprep.subr.mxu0 0.0
    %1717 = vmatpush1.msra.mxu0 %v1486
    %1718 = vmatprep.subr.mxu0 0.0
    %1719 = vmatpush2.msra.mxu0 0.0
    %1720 = vmatprep.subr.mxu0 0.0
    %1721 = vmatpush2.msra.mxu0 0.0
    %1722 = vmatprep.subr.mxu0 0.0
    %1723 = vmatpush2.msra.mxu0 0.0
    %1724 = vmatprep.subr.mxu0 0.0
    %1725 = vmatpush2.msra.mxu0 0.0
    %1726 = vmatprep.subr.mxu0 0.0
    %1727 = vmatpush2.msra.mxu0 0.0
    %1728 = vmatprep.subr.mxu0 0.0
    %1729 = vmatpush2.msra.mxu0 0.0
    %1730 = vmatprep.subr.mxu0 0.0
    %1731 = vmatpush2.msra.mxu0 0.0
    %1732 = vmatprep.subr.mxu0 0.0
    %1733 = vmatpush2.msra.mxu0 0.0
    %1734 = vmatprep.subr.mxu0 0.0
    %1735 = vmatpush2.msra.mxu0 0.0
    %1736 = vmatprep.subr.mxu0 0.0
    %1737 = vmatpush2.msra.mxu0 0.0
    %1738 = vmatprep.subr.mxu0 0.0
    %1739 = vmatpush2.msra.mxu0 0.0
    %1740 = vmatprep.subr.mxu0 0.0
    %1741 = vmatpush2.msra.mxu0 0.0
    %1742 = vmatprep.subr.mxu0 0.0
    %1743 = vmatpush2.msra.mxu0 0.0
    %1744 = vmatprep.subr.mxu0 0.0
    %1745 = vmatpush2.msra.mxu0 0.0
    %1746 = vmatprep.subr.mxu0 0.0
    %1747 = vmatpush2.msra.mxu0 0.0
    %1748 = vmatprep.subr.mxu0 0.0
    %1749 = vmatpush2.msra.mxu0 0.0
    %1750 = vmatprep.mubr.f32.mxu0 0.0
    %1751 = vmatmul.mubr.f32.gmra.mxu0 %v1681
    %v1752 = vpop.f32.mrf.mxu0
    %v1753 = vadd.f32 %v1672, %v1752
    %v1754 = vpop.f32.mrf.mxu0
    %1755 = vmatprep.mubr.f32.mxu0 0.0
    %1756 = vmatmul.mubr.f32.gmra.mxu0 %v1684
    %v1757 = vpop.f32.mrf.mxu0
    %v1758 = vadd.f32 %v1677, %v1757
    %v1759 = vpop.f32.mrf.mxu0
    %1760 = vdwg.mxu0
    %s1761 = scalar_lea.vmem %s23, 1
    %v1762 = vld [vmem:[%s1761] sm:$0x1]
    %v1763 = vmul.f32 %v1163, %v1058
    %v1764 = vmul.f32 %v1168, %v1058
    %v1766 = vsel %vm422, %v1763, 0
    %v1769 = vsel %vm422, %v1764, 0
    %v1772 = vsel %vm422, %v1259, 0
    %v1775 = vsel %vm422, %v1264, 0
    %1777 = vmatprep.subr.mxu0 0.0
    %1778 = vmatpush1.xpose.msra.mxu0 0.0
    %1779 = vmatprep.subr.mxu0 0.0
    %1780 = vmatpush1.xpose.msra.mxu0 0.0
    %1781 = vmatprep.subr.mxu0 0.0
    %1782 = vmatpush1.xpose.msra.mxu0 0.0
    %1783 = vmatprep.subr.mxu0 0.0
    %1784 = vmatpush1.xpose.msra.mxu0 0.0
    %1785 = vmatprep.subr.mxu0 0.0
    %1786 = vmatpush1.xpose.msra.mxu0 0.0
    %1787 = vmatprep.subr.mxu0 0.0
    %1788 = vmatpush1.xpose.msra.mxu0 0.0
    %1789 = vmatprep.subr.mxu0 0.0
    %1790 = vmatpush1.xpose.msra.mxu0 0.0
    %1791 = vmatprep.subr.mxu0 0.0
    %1792 = vmatpush1.xpose.msra.mxu0 0.0
    %1793 = vmatprep.subr.mxu0 0.0
    %1794 = vmatpush1.xpose.msra.mxu0 0.0
    %1795 = vmatprep.subr.mxu0 0.0
    %1796 = vmatpush1.xpose.msra.mxu0 0.0
    %1797 = vmatprep.subr.mxu0 0.0
    %1798 = vmatpush1.xpose.msra.mxu0 0.0
    %1799 = vmatprep.subr.mxu0 0.0
    %1800 = vmatpush1.xpose.msra.mxu0 0.0
    %1801 = vmatprep.subr.mxu0 0.0
    %1802 = vmatpush1.xpose.msra.mxu0 0.0
    %1803 = vmatprep.subr.mxu0 0.0
    %1804 = vmatpush1.xpose.msra.mxu0 0.0
    %1805 = vmatprep.subr.mxu0 0.0
    %1806 = vmatpush1.xpose.msra.mxu0 %v1775
    %1807 = vmatprep.subr.mxu0 0.0
    %1808 = vmatpush1.xpose.msra.mxu0 %v1772
    %1809 = vmatprep.subr.mxu0 0.0
    %1810 = vmatpush2.xpose.msra.mxu0 0.0
    %1811 = vmatprep.subr.mxu0 0.0
    %1812 = vmatpush2.xpose.msra.mxu0 0.0
    %1813 = vmatprep.subr.mxu0 0.0
    %1814 = vmatpush2.xpose.msra.mxu0 0.0
    %1815 = vmatprep.subr.mxu0 0.0
    %1816 = vmatpush2.xpose.msra.mxu0 0.0
    %1817 = vmatprep.subr.mxu0 0.0
    %1818 = vmatpush2.xpose.msra.mxu0 0.0
    %1819 = vmatprep.subr.mxu0 0.0
    %1820 = vmatpush2.xpose.msra.mxu0 0.0
    %1821 = vmatprep.subr.mxu0 0.0
    %1822 = vmatpush2.xpose.msra.mxu0 0.0
    %1823 = vmatprep.subr.mxu0 0.0
    %1824 = vmatpush2.xpose.msra.mxu0 0.0
    %1825 = vmatprep.subr.mxu0 0.0
    %1826 = vmatpush2.xpose.msra.mxu0 0.0
    %1827 = vmatprep.subr.mxu0 0.0
    %1828 = vmatpush2.xpose.msra.mxu0 0.0
    %1829 = vmatprep.subr.mxu0 0.0
    %1830 = vmatpush2.xpose.msra.mxu0 0.0
    %1831 = vmatprep.subr.mxu0 0.0
    %1832 = vmatpush2.xpose.msra.mxu0 0.0
    %1833 = vmatprep.subr.mxu0 0.0
    %1834 = vmatpush2.xpose.msra.mxu0 0.0
    %1835 = vmatprep.subr.mxu0 0.0
    %1836 = vmatpush2.xpose.msra.mxu0 0.0
    %1837 = vmatprep.subr.mxu0 0.0
    %1838 = vmatpush2.xpose.msra.mxu0 0.0
    %1839 = vmatprep.subr.mxu0 0.0
    %1840 = vmatpush2.xpose.msra.mxu0 0.0
    %1841 = vmatprep.mubr.f32.mxu0 0.0
    %1842 = vmatmul.mubr.f32.gmra.mxu0 %v1766
    %v1843 = vpop.f32.mrf.mxu0
    %v1844 = vadd.f32 0.0, %v1843
    %v1845 = vpop.f32.mrf.mxu0
    %1846 = vmatprep.mubr.f32.mxu0 0.0
    %1847 = vmatmul.mubr.f32.gmra.mxu0 %v1769
    %v1848 = vpop.f32.mrf.mxu0
    %v1849 = vadd.f32 0.0, %v1848
    %v1850 = vpop.f32.mrf.mxu0
    %1851 = vdwg.mxu0
    %v1852 = vmul.f32 %v1844, 0.25
    %v1853 = vmul.f32 %v1849, 0.25
    %v1855 = vlaneseq
    %v1856 = vshrl.u32 %v1855, 7
    %v1857 = vsub.s32 0, %v1856
    %v1858 = vrot.slane %v1762, %v1857
    %v1860 = vadd.f32 %v1852, %v1858
    %v1861 = vadd.f32 %v1853, %v1858
    %v1862 = vsel %vm1463, %v1860, -inf
    %1863 = vmax.xlane.f32.xlu0 %v1862
    %v1864 = vpop.xlane.xlu0 %1863
    %v1865 = vsel %vm1463, %v1861, -inf
    %1866 = vmax.xlane.f32.xlu0 %v1865
    %v1867 = vpop.xlane.xlu0 %1866
    %v1868 = vsub.f32 %v1860, %v1864
    %v1869 = vsub.f32 %v1861, %v1867
    %v1870 = vmul.f32 %v1868, 1.442695
    %v1871 = vpow.pop %v1870
    %v1872 = vmul.f32 %v1869, 1.442695
    %v1873 = vpow.pop %v1872
    %v1874 = vsel %vm1463, %v1871, 0.0
    %1875 = vadd.xlane.f32.xlu0 %v1874
    %v1876 = vpop.xlane.xlu0 %1875
    %v1877 = vsel %vm1463, %v1873, 0.0
    %1878 = vadd.xlane.f32.xlu0 %v1877
    %v1879 = vpop.xlane.xlu0 %1878
    %v1880 = vrcp.pop %v1876
    %v1881 = vrcp.pop %v1879
    %v1882 = vmul.f32 %v1871, %v1880
    %v1883 = vmul.f32 %v1873, %v1881
    %v1884 = vmul.f32 %v1355, %v1058
    %v1885 = vmul.f32 %v1360, %v1058
    %v1886 = vmul.f32 %v1163, %v1062
    %v1887 = vmul.f32 %v1168, %v1062
    %v1889 = vsel %vm422, %v1886, 0
    %v1892 = vsel %vm422, %v1887, 0
    %1894 = vmatprep.subr.mxu0 0.0
    %1895 = vmatpush1.xpose.msra.mxu0 0.0
    %1896 = vmatprep.subr.mxu0 0.0
    %1897 = vmatpush1.xpose.msra.mxu0 0.0
    %1898 = vmatprep.subr.mxu0 0.0
    %1899 = vmatpush1.xpose.msra.mxu0 0.0
    %1900 = vmatprep.subr.mxu0 0.0
    %1901 = vmatpush1.xpose.msra.mxu0 0.0
    %1902 = vmatprep.subr.mxu0 0.0
    %1903 = vmatpush1.xpose.msra.mxu0 0.0
    %1904 = vmatprep.subr.mxu0 0.0
    %1905 = vmatpush1.xpose.msra.mxu0 0.0
    %1906 = vmatprep.subr.mxu0 0.0
    %1907 = vmatpush1.xpose.msra.mxu0 0.0
    %1908 = vmatprep.subr.mxu0 0.0
    %1909 = vmatpush1.xpose.msra.mxu0 0.0
    %1910 = vmatprep.subr.mxu0 0.0
    %1911 = vmatpush1.xpose.msra.mxu0 0.0
    %1912 = vmatprep.subr.mxu0 0.0
    %1913 = vmatpush1.xpose.msra.mxu0 0.0
    %1914 = vmatprep.subr.mxu0 0.0
    %1915 = vmatpush1.xpose.msra.mxu0 0.0
    %1916 = vmatprep.subr.mxu0 0.0
    %1917 = vmatpush1.xpose.msra.mxu0 0.0
    %1918 = vmatprep.subr.mxu0 0.0
    %1919 = vmatpush1.xpose.msra.mxu0 0.0
    %1920 = vmatprep.subr.mxu0 0.0
    %1921 = vmatpush1.xpose.msra.mxu0 0.0
    %1922 = vmatprep.subr.mxu0 0.0
    %1923 = vmatpush1.xpose.msra.mxu0 %v1775
    %1924 = vmatprep.subr.mxu0 0.0
    %1925 = vmatpush1.xpose.msra.mxu0 %v1772
    %1926 = vmatprep.subr.mxu0 0.0
    %1927 = vmatpush2.xpose.msra.mxu0 0.0
    %1928 = vmatprep.subr.mxu0 0.0
    %1929 = vmatpush2.xpose.msra.mxu0 0.0
    %1930 = vmatprep.subr.mxu0 0.0
    %1931 = vmatpush2.xpose.msra.mxu0 0.0
    %1932 = vmatprep.subr.mxu0 0.0
    %1933 = vmatpush2.xpose.msra.mxu0 0.0
    %1934 = vmatprep.subr.mxu0 0.0
    %1935 = vmatpush2.xpose.msra.mxu0 0.0
    %1936 = vmatprep.subr.mxu0 0.0
    %1937 = vmatpush2.xpose.msra.mxu0 0.0
    %1938 = vmatprep.subr.mxu0 0.0
    %1939 = vmatpush2.xpose.msra.mxu0 0.0
    %1940 = vmatprep.subr.mxu0 0.0
    %1941 = vmatpush2.xpose.msra.mxu0 0.0
    %1942 = vmatprep.subr.mxu0 0.0
    %1943 = vmatpush2.xpose.msra.mxu0 0.0
    %1944 = vmatprep.subr.mxu0 0.0
    %1945 = vmatpush2.xpose.msra.mxu0 0.0
    %1946 = vmatprep.subr.mxu0 0.0
    %1947 = vmatpush2.xpose.msra.mxu0 0.0
    %1948 = vmatprep.subr.mxu0 0.0
    %1949 = vmatpush2.xpose.msra.mxu0 0.0
    %1950 = vmatprep.subr.mxu0 0.0
    %1951 = vmatpush2.xpose.msra.mxu0 0.0
    %1952 = vmatprep.subr.mxu0 0.0
    %1953 = vmatpush2.xpose.msra.mxu0 0.0
    %1954 = vmatprep.subr.mxu0 0.0
    %1955 = vmatpush2.xpose.msra.mxu0 0.0
    %1956 = vmatprep.subr.mxu0 0.0
    %1957 = vmatpush2.xpose.msra.mxu0 0.0
    %1958 = vmatprep.mubr.f32.mxu0 0.0
    %1959 = vmatmul.mubr.f32.gmra.mxu0 %v1889
    %v1960 = vpop.f32.mrf.mxu0
    %v1961 = vadd.f32 0.0, %v1960
    %v1962 = vpop.f32.mrf.mxu0
    %1963 = vmatprep.mubr.f32.mxu0 0.0
    %1964 = vmatmul.mubr.f32.gmra.mxu0 %v1892
    %v1965 = vpop.f32.mrf.mxu0
    %v1966 = vadd.f32 0.0, %v1965
    %v1967 = vpop.f32.mrf.mxu0
    %1968 = vdwg.mxu0
    %v1969 = vmul.f32 %v1961, 0.25
    %v1970 = vmul.f32 %v1966, 0.25
    %v1971 = vadd.f32 %v1969, %v1858
    %v1972 = vadd.f32 %v1970, %v1858
    %v1973 = vsel %vm1463, %v1971, -inf
    %1974 = vmax.xlane.f32.xlu0 %v1973
    %v1975 = vpop.xlane.xlu0 %1974
    %v1976 = vsel %vm1463, %v1972, -inf
    %1977 = vmax.xlane.f32.xlu0 %v1976
    %v1978 = vpop.xlane.xlu0 %1977
    %v1979 = vsub.f32 %v1971, %v1975
    %v1980 = vsub.f32 %v1972, %v1978
    %v1981 = vmul.f32 %v1979, 1.442695
    %v1982 = vpow.pop %v1981
    %v1983 = vmul.f32 %v1980, 1.442695
    %v1984 = vpow.pop %v1983
    %v1985 = vsel %vm1463, %v1982, 0.0
    %1986 = vadd.xlane.f32.xlu0 %v1985
    %v1987 = vpop.xlane.xlu0 %1986
    %v1988 = vsel %vm1463, %v1984, 0.0
    %1989 = vadd.xlane.f32.xlu0 %v1988
    %v1990 = vpop.xlane.xlu0 %1989
    %v1991 = vrcp.pop %v1987
    %v1992 = vrcp.pop %v1990
    %v1993 = vmul.f32 %v1982, %v1991
    %v1994 = vmul.f32 %v1984, %v1992
    %v1995 = vmul.f32 %v1355, %v1062
    %v1996 = vmul.f32 %v1360, %v1062
    %v1998 = vsel %vm1463, %v1993, 0
    %v2001 = vsel %vm1463, %v1994, 0
    %2003 = vmatprep.subr.mxu0 0.0
    %2004 = vmatpush1.msra.mxu0 0.0
    %2005 = vmatprep.subr.mxu0 0.0
    %2006 = vmatpush1.msra.mxu0 0.0
    %2007 = vmatprep.subr.mxu0 0.0
    %2008 = vmatpush1.msra.mxu0 0.0
    %2009 = vmatprep.subr.mxu0 0.0
    %2010 = vmatpush1.msra.mxu0 0.0
    %2011 = vmatprep.subr.mxu0 0.0
    %2012 = vmatpush1.msra.mxu0 0.0
    %2013 = vmatprep.subr.mxu0 0.0
    %2014 = vmatpush1.msra.mxu0 0.0
    %2015 = vmatprep.subr.mxu0 0.0
    %2016 = vmatpush1.msra.mxu0 0.0
    %2017 = vmatprep.subr.mxu0 0.0
    %2018 = vmatpush1.msra.mxu0 0.0
    %2019 = vmatprep.subr.mxu0 0.0
    %2020 = vmatpush1.msra.mxu0 0.0
    %2021 = vmatprep.subr.mxu0 0.0
    %2022 = vmatpush1.msra.mxu0 0.0
    %2023 = vmatprep.subr.mxu0 0.0
    %2024 = vmatpush1.msra.mxu0 0.0
    %2025 = vmatprep.subr.mxu0 0.0
    %2026 = vmatpush1.msra.mxu0 0.0
    %2027 = vmatprep.subr.mxu0 0.0
    %2028 = vmatpush1.msra.mxu0 0.0
    %2029 = vmatprep.subr.mxu0 0.0
    %2030 = vmatpush1.msra.mxu0 0.0
    %2031 = vmatprep.subr.mxu0 0.0
    %2032 = vmatpush1.msra.mxu0 %v1996
    %2033 = vmatprep.subr.mxu0 0.0
    %2034 = vmatpush1.msra.mxu0 %v1995
    %2035 = vmatprep.subr.mxu0 0.0
    %2036 = vmatpush2.msra.mxu0 0.0
    %2037 = vmatprep.subr.mxu0 0.0
    %2038 = vmatpush2.msra.mxu0 0.0
    %2039 = vmatprep.subr.mxu0 0.0
    %2040 = vmatpush2.msra.mxu0 0.0
    %2041 = vmatprep.subr.mxu0 0.0
    %2042 = vmatpush2.msra.mxu0 0.0
    %2043 = vmatprep.subr.mxu0 0.0
    %2044 = vmatpush2.msra.mxu0 0.0
    %2045 = vmatprep.subr.mxu0 0.0
    %2046 = vmatpush2.msra.mxu0 0.0
    %2047 = vmatprep.subr.mxu0 0.0
    %2048 = vmatpush2.msra.mxu0 0.0
    %2049 = vmatprep.subr.mxu0 0.0
    %2050 = vmatpush2.msra.mxu0 0.0
    %2051 = vmatprep.subr.mxu0 0.0
    %2052 = vmatpush2.msra.mxu0 0.0
    %2053 = vmatprep.subr.mxu0 0.0
    %2054 = vmatpush2.msra.mxu0 0.0
    %2055 = vmatprep.subr.mxu0 0.0
    %2056 = vmatpush2.msra.mxu0 0.0
    %2057 = vmatprep.subr.mxu0 0.0
    %2058 = vmatpush2.msra.mxu0 0.0
    %2059 = vmatprep.subr.mxu0 0.0
    %2060 = vmatpush2.msra.mxu0 0.0
    %2061 = vmatprep.subr.mxu0 0.0
    %2062 = vmatpush2.msra.mxu0 0.0
    %2063 = vmatprep.subr.mxu0 0.0
    %2064 = vmatpush2.msra.mxu0 0.0
    %2065 = vmatprep.subr.mxu0 0.0
    %2066 = vmatpush2.msra.mxu0 0.0
    %2067 = vmatprep.mubr.f32.mxu0 0.0
    %2068 = vmatmul.mubr.f32.gmra.mxu0 %v1998
    %v2069 = vpop.f32.mrf.mxu0
    %v2070 = vadd.f32 0.0, %v2069
    %v2071 = vpop.f32.mrf.mxu0
    %2072 = vmatprep.mubr.f32.mxu0 0.0
    %2073 = vmatmul.mubr.f32.gmra.mxu0 %v2001
    %v2074 = vpop.f32.mrf.mxu0
    %v2075 = vadd.f32 0.0, %v2074
    %v2076 = vpop.f32.mrf.mxu0
    %2077 = vdwg.mxu0
    %v2079 = vsel %vm1463, %v1882, 0
    %v2082 = vsel %vm1463, %v1883, 0
    %2084 = vmatprep.subr.mxu0 0.0
    %2085 = vmatpush1.msra.mxu0 0.0
    %2086 = vmatprep.subr.mxu0 0.0
    %2087 = vmatpush1.msra.mxu0 0.0
    %2088 = vmatprep.subr.mxu0 0.0
    %2089 = vmatpush1.msra.mxu0 0.0
    %2090 = vmatprep.subr.mxu0 0.0
    %2091 = vmatpush1.msra.mxu0 0.0
    %2092 = vmatprep.subr.mxu0 0.0
    %2093 = vmatpush1.msra.mxu0 0.0
    %2094 = vmatprep.subr.mxu0 0.0
    %2095 = vmatpush1.msra.mxu0 0.0
    %2096 = vmatprep.subr.mxu0 0.0
    %2097 = vmatpush1.msra.mxu0 0.0
    %2098 = vmatprep.subr.mxu0 0.0
    %2099 = vmatpush1.msra.mxu0 0.0
    %2100 = vmatprep.subr.mxu0 0.0
    %2101 = vmatpush1.msra.mxu0 0.0
    %2102 = vmatprep.subr.mxu0 0.0
    %2103 = vmatpush1.msra.mxu0 0.0
    %2104 = vmatprep.subr.mxu0 0.0
    %2105 = vmatpush1.msra.mxu0 0.0
    %2106 = vmatprep.subr.mxu0 0.0
    %2107 = vmatpush1.msra.mxu0 0.0
    %2108 = vmatprep.subr.mxu0 0.0
    %2109 = vmatpush1.msra.mxu0 0.0
    %2110 = vmatprep.subr.mxu0 0.0
    %2111 = vmatpush1.msra.mxu0 0.0
    %2112 = vmatprep.subr.mxu0 0.0
    %2113 = vmatpush1.msra.mxu0 %v1885
    %2114 = vmatprep.subr.mxu0 0.0
    %2115 = vmatpush1.msra.mxu0 %v1884
    %2116 = vmatprep.subr.mxu0 0.0
    %2117 = vmatpush2.msra.mxu0 0.0
    %2118 = vmatprep.subr.mxu0 0.0
    %2119 = vmatpush2.msra.mxu0 0.0
    %2120 = vmatprep.subr.mxu0 0.0
    %2121 = vmatpush2.msra.mxu0 0.0
    %2122 = vmatprep.subr.mxu0 0.0
    %2123 = vmatpush2.msra.mxu0 0.0
    %2124 = vmatprep.subr.mxu0 0.0
    %2125 = vmatpush2.msra.mxu0 0.0
    %2126 = vmatprep.subr.mxu0 0.0
    %2127 = vmatpush2.msra.mxu0 0.0
    %2128 = vmatprep.subr.mxu0 0.0
    %2129 = vmatpush2.msra.mxu0 0.0
    %2130 = vmatprep.subr.mxu0 0.0
    %2131 = vmatpush2.msra.mxu0 0.0
    %2132 = vmatprep.subr.mxu0 0.0
    %2133 = vmatpush2.msra.mxu0 0.0
    %2134 = vmatprep.subr.mxu0 0.0
    %2135 = vmatpush2.msra.mxu0 0.0
    %2136 = vmatprep.subr.mxu0 0.0
    %2137 = vmatpush2.msra.mxu0 0.0
    %2138 = vmatprep.subr.mxu0 0.0
    %2139 = vmatpush2.msra.mxu0 0.0
    %2140 = vmatprep.subr.mxu0 0.0
    %2141 = vmatpush2.msra.mxu0 0.0
    %2142 = vmatprep.subr.mxu0 0.0
    %2143 = vmatpush2.msra.mxu0 0.0
    %2144 = vmatprep.subr.mxu0 0.0
    %2145 = vmatpush2.msra.mxu0 0.0
    %2146 = vmatprep.subr.mxu0 0.0
    %2147 = vmatpush2.msra.mxu0 0.0
    %2148 = vmatprep.mubr.f32.mxu0 0.0
    %2149 = vmatmul.mubr.f32.gmra.mxu0 %v2079
    %v2150 = vpop.f32.mrf.mxu0
    %v2151 = vadd.f32 %v2070, %v2150
    %v2152 = vpop.f32.mrf.mxu0
    %2153 = vmatprep.mubr.f32.mxu0 0.0
    %2154 = vmatmul.mubr.f32.gmra.mxu0 %v2082
    %v2155 = vpop.f32.mrf.mxu0
    %v2156 = vadd.f32 %v2075, %v2155
    %v2157 = vpop.f32.mrf.mxu0
    %2158 = vdwg.mxu0
    %v2159 = vld [vmem:[%s37] sm:$0xff]
    %v2160 = vld [vmem:[%s37 + $0x8] sm:$0xff]
    %v2161 = vld [vmem:[%s37 + $0x10] sm:$0xff]
    %v2162 = vld [vmem:[%s37 + $0x18] sm:$0xff]
    %v2163 = vld [vmem:[%s39] sm:$0x1]
    %v2165 = vlaneseq
    %v2166 = vshrl.u32 %v2165, 7
    %v2167 = vsub.s32 0, %v2166
    %v2168 = vrot.slane %v2163, %v2167
    %v2171 = vsel %vm422, %v1753, 0
    %v2174 = vsel %vm422, %v1758, 0
    %v2177 = vsel %vm422, %v2151, 0
    %v2180 = vsel %vm422, %v2156, 0
    %2182 = vmatprep.subr.mxu0 0.0
    %2183 = vmatpush1.msra.mxu0 0.0
    %2184 = vmatprep.subr.mxu0 0.0
    %2185 = vmatpush1.msra.mxu0 0.0
    %2186 = vmatprep.subr.mxu0 0.0
    %2187 = vmatpush1.msra.mxu0 0.0
    %2188 = vmatprep.subr.mxu0 0.0
    %2189 = vmatpush1.msra.mxu0 0.0
    %2190 = vmatprep.subr.mxu0 0.0
    %2191 = vmatpush1.msra.mxu0 0.0
    %2192 = vmatprep.subr.mxu0 0.0
    %2193 = vmatpush1.msra.mxu0 0.0
    %2194 = vmatprep.subr.mxu0 0.0
    %2195 = vmatpush1.msra.mxu0 0.0
    %2196 = vmatprep.subr.mxu0 0.0
    %2197 = vmatpush1.msra.mxu0 0.0
    %2198 = vmatprep.subr.mxu0 0.0
    %2199 = vmatpush1.msra.mxu0 0.0
    %2200 = vmatprep.subr.mxu0 0.0
    %2201 = vmatpush1.msra.mxu0 0.0
    %2202 = vmatprep.subr.mxu0 0.0
    %2203 = vmatpush1.msra.mxu0 0.0
    %2204 = vmatprep.subr.mxu0 0.0
    %2205 = vmatpush1.msra.mxu0 0.0
    %2206 = vmatprep.subr.mxu0 0.0
    %2207 = vmatpush1.msra.mxu0 %v2162
    %2208 = vmatprep.subr.mxu0 0.0
    %2209 = vmatpush1.msra.mxu0 %v2161
    %2210 = vmatprep.subr.mxu0 0.0
    %2211 = vmatpush1.msra.mxu0 %v2160
    %2212 = vmatprep.subr.mxu0 0.0
    %2213 = vmatpush1.msra.mxu0 %v2159
    %2214 = vmatprep.subr.mxu0 0.0
    %2215 = vmatpush2.msra.mxu0 0.0
    %2216 = vmatprep.subr.mxu0 0.0
    %2217 = vmatpush2.msra.mxu0 0.0
    %2218 = vmatprep.subr.mxu0 0.0
    %2219 = vmatpush2.msra.mxu0 0.0
    %2220 = vmatprep.subr.mxu0 0.0
    %2221 = vmatpush2.msra.mxu0 0.0
    %2222 = vmatprep.subr.mxu0 0.0
    %2223 = vmatpush2.msra.mxu0 0.0
    %2224 = vmatprep.subr.mxu0 0.0
    %2225 = vmatpush2.msra.mxu0 0.0
    %2226 = vmatprep.subr.mxu0 0.0
    %2227 = vmatpush2.msra.mxu0 0.0
    %2228 = vmatprep.subr.mxu0 0.0
    %2229 = vmatpush2.msra.mxu0 0.0
    %2230 = vmatprep.subr.mxu0 0.0
    %2231 = vmatpush2.msra.mxu0 0.0
    %2232 = vmatprep.subr.mxu0 0.0
    %2233 = vmatpush2.msra.mxu0 0.0
    %2234 = vmatprep.subr.mxu0 0.0
    %2235 = vmatpush2.msra.mxu0 0.0
    %2236 = vmatprep.subr.mxu0 0.0
    %2237 = vmatpush2.msra.mxu0 0.0
    %2238 = vmatprep.subr.mxu0 0.0
    %2239 = vmatpush2.msra.mxu0 0.0
    %2240 = vmatprep.subr.mxu0 0.0
    %2241 = vmatpush2.msra.mxu0 0.0
    %2242 = vmatprep.subr.mxu0 0.0
    %2243 = vmatpush2.msra.mxu0 0.0
    %2244 = vmatprep.subr.mxu0 0.0
    %2245 = vmatpush2.msra.mxu0 0.0
    %2246 = vmatprep.mubr.f32.mxu0 0.0
    %2247 = vmatmul.mubr.f32.gmra.mxu0 %v2171
    %v2248 = vpop.f32.mrf.mxu0
    %v2249 = vadd.f32 %v2168, %v2248
    %v2250 = vpop.f32.mrf.mxu0
    %2251 = vmatprep.mubr.f32.mxu0 0.0
    %2252 = vmatmul.mubr.f32.gmra.mxu0 %v2174
    %v2253 = vpop.f32.mrf.mxu0
    %v2254 = vadd.f32 %v2168, %v2253
    %v2255 = vpop.f32.mrf.mxu0
    %2256 = vmatprep.mubr.f32.mxu0 0.0
    %2257 = vmatmul.mubr.f32.gmra.mxu0 %v2177
    %v2258 = vpop.f32.mrf.mxu0
    %v2259 = vadd.f32 %v2168, %v2258
    %v2260 = vpop.f32.mrf.mxu0
    %2261 = vmatprep.mubr.f32.mxu0 0.0
    %2262 = vmatmul.mubr.f32.gmra.mxu0 %v2180
    %v2263 = vpop.f32.mrf.mxu0
    %v2264 = vadd.f32 %v2168, %v2263
    %v2265 = vpop.f32.mrf.mxu0
    %2266 = vdwg.mxu0
    %v2267 = vadd.f32 %v1035, %v2249
    %v2268 = vadd.f32 %v1040, %v2254
    %v2269 = vadd.f32 %v1045, %v2259
    %v2270 = vadd.f32 %v1050, %v2264
    %v2271 = vld [vmem:[%s41] sm:$0x1]
    %v2272 = vld [vmem:[%s43] sm:$0x1]
    %v2273 = vsel %vm422, %v2267, 0.0
    %2274 = vadd.xlane.f32.xlu0 %v2273
    %v2275 = vpop.xlane.xlu0 %2274
    %v2276 = vsel %vm422, %v2268, 0.0
    %2277 = vadd.xlane.f32.xlu0 %v2276
    %v2278 = vpop.xlane.xlu0 %2277
    %v2279 = vsel %vm422, %v2269, 0.0
    %2280 = vadd.xlane.f32.xlu0 %v2279
    %v2281 = vpop.xlane.xlu0 %2280
    %v2282 = vsel %vm422, %v2270, 0.0
    %2283 = vadd.xlane.f32.xlu0 %v2282
    %v2284 = vpop.xlane.xlu0 %2283
    %v2285 = vrcp.pop 32.0
    %v2286 = vmul.f32 %v2275, %v2285
    %v2287 = vmul.f32 %v2278, %v2285
    %v2288 = vmul.f32 %v2281, %v2285
    %v2289 = vmul.f32 %v2284, %v2285
    %v2290 = vsub.f32 %v2267, %v2286
    %v2291 = vsub.f32 %v2268, %v2287
    %v2292 = vsub.f32 %v2269, %v2288
    %v2293 = vsub.f32 %v2270, %v2289
    %v2294 = vmul.f32 %v2290, %v2290
    %v2295 = vmul.f32 %v2291, %v2291
    %v2296 = vmul.f32 %v2292, %v2292
    %v2297 = vmul.f32 %v2293, %v2293
    %v2298 = vsel %vm422, %v2294, 0.0
    %2299 = vadd.xlane.f32.xlu0 %v2298
    %v2300 = vpop.xlane.xlu0 %2299
    %v2301 = vsel %vm422, %v2295, 0.0
    %2302 = vadd.xlane.f32.xlu0 %v2301
    %v2303 = vpop.xlane.xlu0 %2302
    %v2304 = vsel %vm422, %v2296, 0.0
    %2305 = vadd.xlane.f32.xlu0 %v2304
    %v2306 = vpop.xlane.xlu0 %2305
    %v2307 = vsel %vm422, %v2297, 0.0
    %2308 = vadd.xlane.f32.xlu0 %v2307
    %v2309 = vpop.xlane.xlu0 %2308
    %v2310 = vmul.f32 %v2300, %v2285
    %v2311 = vmul.f32 %v2303, %v2285
    %v2312 = vmul.f32 %v2306, %v2285
    %v2313 = vmul.f32 %v2309, %v2285
    %v2314 = vadd.f32 %v2310, 1e-05
    %v2315 = vadd.f32 %v2311, 1e-05
    %v2316 = vadd.f32 %v2312, 1e-05
    %v2317 = vadd.f32 %v2313, 1e-05
    %v2318 = vrsqrt.pop %v2314
    %v2319 = vrsqrt.pop %v2315
    %v2320 = vrsqrt.pop %v2316
    %v2321 = vrsqrt.pop %v2317
    %v2322 = vmul.f32 %v2290, %v2318
    %v2323 = vmul.f32 %v2291, %v2319
    %v2324 = vmul.f32 %v2292, %v2320
    %v2325 = vmul.f32 %v2293, %v2321
    %v2327 = vlaneseq
    %v2328 = vshrl.u32 %v2327, 7
    %v2329 = vsub.s32 0, %v2328
    %v2330 = vrot.slane %v2271, %v2329
    %v2332 = vmul.f32 %v2322, %v2330
    %v2333 = vmul.f32 %v2323, %v2330
    %v2334 = vmul.f32 %v2324, %v2330
    %v2335 = vmul.f32 %v2325, %v2330
    %v2337 = vlaneseq
    %v2338 = vshrl.u32 %v2337, 7
    %v2339 = vsub.s32 0, %v2338
    %v2340 = vrot.slane %v2272, %v2339
    %v2342 = vadd.f32 %v2332, %v2340
    %v2343 = vadd.f32 %v2333, %v2340
    %v2344 = vadd.f32 %v2334, %v2340
    %v2345 = vadd.f32 %v2335, %v2340
    %v2346 = vpack.c.bf16 %v2343, %v2342
    %v2347 = vpack.c.bf16 %v2345, %v2344
    %v2348 = vld [vmem:[%s45] sm:$0xff]
    %v2349 = vld [vmem:[%s45 + $0x8] sm:$0xff]
    %v2350 = vld [vmem:[%s45 + $0x10] sm:$0xff]
    %v2351 = vld [vmem:[%s45 + $0x18] sm:$0xff]
    %v2352 = vld [vmem:[%s45 + $0x20] sm:$0xff]
    %v2353 = vld [vmem:[%s45 + $0x28] sm:$0xff]
    %v2354 = vld [vmem:[%s45 + $0x30] sm:$0xff]
    %v2355 = vld [vmem:[%s45 + $0x38] sm:$0xff]
    %v2356 = vld [vmem:[%s45 + $0x40] sm:$0xff]
    %v2357 = vld [vmem:[%s45 + $0x48] sm:$0xff]
    %v2358 = vld [vmem:[%s45 + $0x50] sm:$0xff]
    %v2359 = vld [vmem:[%s45 + $0x58] sm:$0xff]
    %v2360 = vld [vmem:[%s45 + $0x60] sm:$0xff]
    %v2361 = vld [vmem:[%s45 + $0x68] sm:$0xff]
    %v2362 = vld [vmem:[%s45 + $0x70] sm:$0xff]
    %v2363 = vld [vmem:[%s45 + $0x78] sm:$0xff]
    %v2364 = vld [vmem:[%s45 + $0x80] sm:$0xff]
    %v2365 = vld [vmem:[%s45 + $0x88] sm:$0xff]
    %v2366 = vld [vmem:[%s45 + $0x90] sm:$0xff]
    %v2367 = vld [vmem:[%s45 + $0x98] sm:$0xff]
    %v2368 = vld [vmem:[%s45 + $0xa0] sm:$0xff]
    %v2369 = vld [vmem:[%s45 + $0xa8] sm:$0xff]
    %v2370 = vld [vmem:[%s45 + $0xb0] sm:$0xff]
    %v2371 = vld [vmem:[%s45 + $0xb8] sm:$0xff]
    %v2372 = vld [vmem:[%s45 + $0xc0] sm:$0xff]
    %v2373 = vld [vmem:[%s45 + $0xc8] sm:$0xff]
    %v2374 = vld [vmem:[%s45 + $0xd0] sm:$0xff]
    %v2375 = vld [vmem:[%s45 + $0xd8] sm:$0xff]
    %v2376 = vld [vmem:[%s45 + $0xe0] sm:$0xff]
    %v2377 = vld [vmem:[%s45 + $0xe8] sm:$0xff]
    %v2378 = vld [vmem:[%s45 + $0xf0] sm:$0xff]
    %v2379 = vld [vmem:[%s45 + $0xf8] sm:$0xff]
    %v2380 = vld [vmem:[%s47] sm:$0xff]
    %v2381 = vld [vmem:[%s47 + $0x8] sm:$0xff]
    %v2384 = vlaneseq
    %v2385 = vshrl.u32 %v2384, 7
    %v2386 = vsub.s32 0, %v2385
    %v2387 = vrot.slane %v2380, %v2386
    %v2388 = vlaneseq
    %v2389 = vshrl.u32 %v2388, 7
    %v2390 = vsub.s32 1, %v2389
    %v2391 = vrot.slane %v2380, %v2390
    %v2392 = vlaneseq
    %v2393 = vshrl.u32 %v2392, 7
    %v2394 = vsub.s32 2, %v2393
    %v2395 = vrot.slane %v2380, %v2394
    %v2396 = vlaneseq
    %v2397 = vshrl.u32 %v2396, 7
    %v2398 = vsub.s32 3, %v2397
    %v2399 = vrot.slane %v2380, %v2398
    %v2400 = vlaneseq
    %v2401 = vshrl.u32 %v2400, 7
    %v2402 = vsub.s32 4, %v2401
    %v2403 = vrot.slane %v2380, %v2402
    %v2404 = vlaneseq
    %v2405 = vshrl.u32 %v2404, 7
    %v2406 = vsub.s32 5, %v2405
    %v2407 = vrot.slane %v2380, %v2406
    %v2408 = vlaneseq
    %v2409 = vshrl.u32 %v2408, 7
    %v2410 = vsub.s32 6, %v2409
    %v2411 = vrot.slane %v2380, %v2410
    %v2412 = vlaneseq
    %v2413 = vshrl.u32 %v2412, 7
    %v2414 = vsub.s32 7, %v2413
    %v2415 = vrot.slane %v2380, %v2414
    %v2416 = vlaneseq
    %v2417 = vshrl.u32 %v2416, 7
    %v2418 = vsub.s32 0, %v2417
    %v2419 = vrot.slane %v2381, %v2418
    %v2420 = vlaneseq
    %v2421 = vshrl.u32 %v2420, 7
    %v2422 = vsub.s32 1, %v2421
    %v2423 = vrot.slane %v2381, %v2422
    %v2424 = vlaneseq
    %v2425 = vshrl.u32 %v2424, 7
    %v2426 = vsub.s32 2, %v2425
    %v2427 = vrot.slane %v2381, %v2426
    %v2428 = vlaneseq
    %v2429 = vshrl.u32 %v2428, 7
    %v2430 = vsub.s32 3, %v2429
    %v2431 = vrot.slane %v2381, %v2430
    %v2432 = vlaneseq
    %v2433 = vshrl.u32 %v2432, 7
    %v2434 = vsub.s32 4, %v2433
    %v2435 = vrot.slane %v2381, %v2434
    %v2436 = vlaneseq
    %v2437 = vshrl.u32 %v2436, 7
    %v2438 = vsub.s32 5, %v2437
    %v2439 = vrot.slane %v2381, %v2438
    %v2440 = vlaneseq
    %v2441 = vshrl.u32 %v2440, 7
    %v2442 = vsub.s32 6, %v2441
    %v2443 = vrot.slane %v2381, %v2442
    %v2444 = vlaneseq
    %v2445 = vshrl.u32 %v2444, 7
    %v2446 = vsub.s32 7, %v2445
    %v2447 = vrot.slane %v2381, %v2446
    %v2496 = vunpack.c.l.b16 %v2348
    %v2497 = vunpack.c.h.b16 %v2348
    %v2498 = vunpack.c.l.b16 %v2349
    %v2499 = vunpack.c.h.b16 %v2349
    %v2500 = vunpack.c.l.b16 %v2350
    %v2501 = vunpack.c.h.b16 %v2350
    %v2502 = vunpack.c.l.b16 %v2351
    %v2503 = vunpack.c.h.b16 %v2351
    %v2504 = vunpack.c.l.b16 %v2352
    %v2505 = vunpack.c.h.b16 %v2352
    %v2506 = vunpack.c.l.b16 %v2353
    %v2507 = vunpack.c.h.b16 %v2353
    %v2508 = vunpack.c.l.b16 %v2354
    %v2509 = vunpack.c.h.b16 %v2354
    %v2510 = vunpack.c.l.b16 %v2355
    %v2511 = vunpack.c.h.b16 %v2355
    %v2512 = vunpack.c.l.b16 %v2356
    %v2513 = vunpack.c.h.b16 %v2356
    %v2514 = vunpack.c.l.b16 %v2357
    %v2515 = vunpack.c.h.b16 %v2357
    %v2516 = vunpack.c.l.b16 %v2358
    %v2517 = vunpack.c.h.b16 %v2358
    %v2518 = vunpack.c.l.b16 %v2359
    %v2519 = vunpack.c.h.b16 %v2359
    %v2520 = vunpack.c.l.b16 %v2360
    %v2521 = vunpack.c.h.b16 %v2360
    %v2522 = vunpack.c.l.b16 %v2361
    %v2523 = vunpack.c.h.b16 %v2361
    %v2524 = vunpack.c.l.b16 %v2362
    %v2525 = vunpack.c.h.b16 %v2362
    %v2526 = vunpack.c.l.b16 %v2363
    %v2527 = vunpack.c.h.b16 %v2363
    %v2528 = vunpack.c.l.b16 %v2364
    %v2529 = vunpack.c.h.b16 %v2364
    %v2530 = vunpack.c.l.b16 %v2365
    %v2531 = vunpack.c.h.b16 %v2365
    %v2532 = vunpack.c.l.b16 %v2366
    %v2533 = vunpack.c.h.b16 %v2366
    %v2534 = vunpack.c.l.b16 %v2367
    %v2535 = vunpack.c.h.b16 %v2367
    %v2536 = vunpack.c.l.b16 %v2368
    %v2537 = vunpack.c.h.b16 %v2368
    %v2538 = vunpack.c.l.b16 %v2369
    %v2539 = vunpack.c.h.b16 %v2369
    %v2540 = vunpack.c.l.b16 %v2370
    %v2541 = vunpack.c.h.b16 %v2370
    %v2542 = vunpack.c.l.b16 %v2371
    %v2543 = vunpack.c.h.b16 %v2371
    %v2544 = vunpack.c.l.b16 %v2372
    %v2545 = vunpack.c.h.b16 %v2372
    %v2546 = vunpack.c.l.b16 %v2373
    %v2547 = vunpack.c.h.b16 %v2373
    %v2548 = vunpack.c.l.b16 %v2374
    %v2549 = vunpack.c.h.b16 %v2374
    %v2550 = vunpack.c.l.b16 %v2375
    %v2551 = vunpack.c.h.b16 %v2375
    %v2552 = vunpack.c.l.b16 %v2376
    %v2553 = vunpack.c.h.b16 %v2376
    %v2554 = vunpack.c.l.b16 %v2377
    %v2555 = vunpack.c.h.b16 %v2377
    %v2556 = vunpack.c.l.b16 %v2378
    %v2557 = vunpack.c.h.b16 %v2378
    %v2558 = vunpack.c.l.b16 %v2379
    %v2559 = vunpack.c.h.b16 %v2379
    %v2560 = vpack.c.b16 %v2512, %v2496
    %v2561 = vpack.c.b16 %v2513, %v2497
    %v2562 = vpack.c.b16 %v2514, %v2498
    %v2563 = vpack.c.b16 %v2515, %v2499
    %v2564 = vpack.c.b16 %v2516, %v2500
    %v2565 = vpack.c.b16 %v2517, %v2501
    %v2566 = vpack.c.b16 %v2518, %v2502
    %v2567 = vpack.c.b16 %v2519, %v2503
    %v2568 = vpack.c.b16 %v2520, %v2504
    %v2569 = vpack.c.b16 %v2521, %v2505
    %v2570 = vpack.c.b16 %v2522, %v2506
    %v2571 = vpack.c.b16 %v2523, %v2507
    %v2572 = vpack.c.b16 %v2524, %v2508
    %v2573 = vpack.c.b16 %v2525, %v2509
    %v2574 = vpack.c.b16 %v2526, %v2510
    %v2575 = vpack.c.b16 %v2527, %v2511
    %v2576 = vpack.c.b16 %v2544, %v2528
    %v2577 = vpack.c.b16 %v2545, %v2529
    %v2578 = vpack.c.b16 %v2546, %v2530
    %v2579 = vpack.c.b16 %v2547, %v2531
    %v2580 = vpack.c.b16 %v2548, %v2532
    %v2581 = vpack.c.b16 %v2549, %v2533
    %v2582 = vpack.c.b16 %v2550, %v2534
    %v2583 = vpack.c.b16 %v2551, %v2535
    %v2584 = vpack.c.b16 %v2552, %v2536
    %v2585 = vpack.c.b16 %v2553, %v2537
    %v2586 = vpack.c.b16 %v2554, %v2538
    %v2587 = vpack.c.b16 %v2555, %v2539
    %v2588 = vpack.c.b16 %v2556, %v2540
    %v2589 = vpack.c.b16 %v2557, %v2541
    %v2590 = vpack.c.b16 %v2558, %v2542
    %v2591 = vpack.c.b16 %v2559, %v2543
    %v2625 = vsel %vm422, %v2346, 0
    %v2628 = vsel %vm422, %v2347, 0
    %2630 = vmatprep.subr.bf16.mxu0 0
    %2631 = vmatpush1.bf16.msra.mxu0 0
    %2632 = vmatprep.subr.bf16.mxu0 0
    %2633 = vmatpush1.bf16.msra.mxu0 0
    %2634 = vmatprep.subr.bf16.mxu0 0
    %2635 = vmatpush1.bf16.msra.mxu0 0
    %2636 = vmatprep.subr.bf16.mxu0 0
    %2637 = vmatpush1.bf16.msra.mxu0 0
    %2638 = vmatprep.subr.bf16.mxu0 0
    %2639 = vmatpush1.bf16.msra.mxu0 0
    %2640 = vmatprep.subr.bf16.mxu0 0
    %2641 = vmatpush1.bf16.msra.mxu0 0
    %2642 = vmatprep.subr.bf16.mxu0 %v2577
    %2643 = vmatpush1.bf16.msra.mxu0 %v2576
    %2644 = vmatprep.subr.bf16.mxu0 %v2561
    %2645 = vmatpush1.bf16.msra.mxu0 %v2560
    %2646 = vmatprep.subr.bf16.mxu0 0
    %2647 = vmatpush2.bf16.msra.mxu0 0
    %2648 = vmatprep.subr.bf16.mxu0 0
    %2649 = vmatpush2.bf16.msra.mxu0 0
    %2650 = vmatprep.subr.bf16.mxu0 0
    %2651 = vmatpush2.bf16.msra.mxu0 0
    %2652 = vmatprep.subr.bf16.mxu0 0
    %2653 = vmatpush2.bf16.msra.mxu0 0
    %2654 = vmatprep.subr.bf16.mxu0 0
    %2655 = vmatpush2.bf16.msra.mxu0 0
    %2656 = vmatprep.subr.bf16.mxu0 0
    %2657 = vmatpush2.bf16.msra.mxu0 0
    %2658 = vmatprep.subr.bf16.mxu0 0
    %2659 = vmatpush2.bf16.msra.mxu0 0
    %2660 = vmatprep.subr.bf16.mxu0 0
    %2661 = vmatpush2.bf16.msra.mxu0 0
    %2662 = vmatprep.mubr.bf16.mxu0 0
    %2663 = vmatmul.mubr.bf16.gmra.mxu0 %v2625
    %v2664 = vpop.f32.mrf.mxu0
    %v2665 = vadd.f32 %v2387, %v2664
    %v2666 = vpop.f32.mrf.mxu0
    %v2667 = vadd.f32 %v2391, %v2666
    %v2668 = vpop.f32.mrf.mxu0
    %v2669 = vadd.f32 %v2387, %v2668
    %v2670 = vpop.f32.mrf.mxu0
    %v2671 = vadd.f32 %v2391, %v2670
    %2672 = vmatprep.mubr.bf16.mxu0 0
    %2673 = vmatmul.mubr.bf16.gmra.mxu0 %v2628
    %v2674 = vpop.f32.mrf.mxu0
    %v2675 = vadd.f32 %v2387, %v2674
    %v2676 = vpop.f32.mrf.mxu0
    %v2677 = vadd.f32 %v2391, %v2676
    %v2678 = vpop.f32.mrf.mxu0
    %v2679 = vadd.f32 %v2387, %v2678
    %v2680 = vpop.f32.mrf.mxu0
    %v2681 = vadd.f32 %v2391, %v2680
    %2682 = vdwg.mxu0
    %2683 = vmatprep.subr.bf16.mxu0 0
    %2684 = vmatpush1.bf16.msra.mxu0 0
    %2685 = vmatprep.subr.bf16.mxu0 0
    %2686 = vmatpush1.bf16.msra.mxu0 0
    %2687 = vmatprep.subr.bf16.mxu0 0
    %2688 = vmatpush1.bf16.msra.mxu0 0
    %2689 = vmatprep.subr.bf16.mxu0 0
    %2690 = vmatpush1.bf16.msra.mxu0 0
    %2691 = vmatprep.subr.bf16.mxu0 0
    %2692 = vmatpush1.bf16.msra.mxu0 0
    %2693 = vmatprep.subr.bf16.mxu0 0
    %2694 = vmatpush1.bf16.msra.mxu0 0
    %2695 = vmatprep.subr.bf16.mxu0 %v2579
    %2696 = vmatpush1.bf16.msra.mxu0 %v2578
    %2697 = vmatprep.subr.bf16.mxu0 %v2563
    %2698 = vmatpush1.bf16.msra.mxu0 %v2562
    %2699 = vmatprep.subr.bf16.mxu0 0
    %2700 = vmatpush2.bf16.msra.mxu0 0
    %2701 = vmatprep.subr.bf16.mxu0 0
    %2702 = vmatpush2.bf16.msra.mxu0 0
    %2703 = vmatprep.subr.bf16.mxu0 0
    %2704 = vmatpush2.bf16.msra.mxu0 0
    %2705 = vmatprep.subr.bf16.mxu0 0
    %2706 = vmatpush2.bf16.msra.mxu0 0
    %2707 = vmatprep.subr.bf16.mxu0 0
    %2708 = vmatpush2.bf16.msra.mxu0 0
    %2709 = vmatprep.subr.bf16.mxu0 0
    %2710 = vmatpush2.bf16.msra.mxu0 0
    %2711 = vmatprep.subr.bf16.mxu0 0
    %2712 = vmatpush2.bf16.msra.mxu0 0
    %2713 = vmatprep.subr.bf16.mxu0 0
    %2714 = vmatpush2.bf16.msra.mxu0 0
    %2715 = vmatprep.mubr.bf16.mxu0 0
    %2716 = vmatmul.mubr.bf16.gmra.mxu0 %v2625
    %v2717 = vpop.f32.mrf.mxu0
    %v2718 = vadd.f32 %v2395, %v2717
    %v2719 = vpop.f32.mrf.mxu0
    %v2720 = vadd.f32 %v2399, %v2719
    %v2721 = vpop.f32.mrf.mxu0
    %v2722 = vadd.f32 %v2395, %v2721
    %v2723 = vpop.f32.mrf.mxu0
    %v2724 = vadd.f32 %v2399, %v2723
    %2725 = vmatprep.mubr.bf16.mxu0 0
    %2726 = vmatmul.mubr.bf16.gmra.mxu0 %v2628
    %v2727 = vpop.f32.mrf.mxu0
    %v2728 = vadd.f32 %v2395, %v2727
    %v2729 = vpop.f32.mrf.mxu0
    %v2730 = vadd.f32 %v2399, %v2729
    %v2731 = vpop.f32.mrf.mxu0
    %v2732 = vadd.f32 %v2395, %v2731
    %v2733 = vpop.f32.mrf.mxu0
    %v2734 = vadd.f32 %v2399, %v2733
    %2735 = vdwg.mxu0
    %2736 = vmatprep.subr.bf16.mxu0 0
    %2737 = vmatpush1.bf16.msra.mxu0 0
    %2738 = vmatprep.subr.bf16.mxu0 0
    %2739 = vmatpush1.bf16.msra.mxu0 0
    %2740 = vmatprep.subr.bf16.mxu0 0
    %2741 = vmatpush1.bf16.msra.mxu0 0
    %2742 = vmatprep.subr.bf16.mxu0 0
    %2743 = vmatpush1.bf16.msra.mxu0 0
    %2744 = vmatprep.subr.bf16.mxu0 0
    %2745 = vmatpush1.bf16.msra.mxu0 0
    %2746 = vmatprep.subr.bf16.mxu0 0
    %2747 = vmatpush1.bf16.msra.mxu0 0
    %2748 = vmatprep.subr.bf16.mxu0 %v2581
    %2749 = vmatpush1.bf16.msra.mxu0 %v2580
    %2750 = vmatprep.subr.bf16.mxu0 %v2565
    %2751 = vmatpush1.bf16.msra.mxu0 %v2564
    %2752 = vmatprep.subr.bf16.mxu0 0
    %2753 = vmatpush2.bf16.msra.mxu0 0
    %2754 = vmatprep.subr.bf16.mxu0 0
    %2755 = vmatpush2.bf16.msra.mxu0 0
    %2756 = vmatprep.subr.bf16.mxu0 0
    %2757 = vmatpush2.bf16.msra.mxu0 0
    %2758 = vmatprep.subr.bf16.mxu0 0
    %2759 = vmatpush2.bf16.msra.mxu0 0
    %2760 = vmatprep.subr.bf16.mxu0 0
    %2761 = vmatpush2.bf16.msra.mxu0 0
    %2762 = vmatprep.subr.bf16.mxu0 0
    %2763 = vmatpush2.bf16.msra.mxu0 0
    %2764 = vmatprep.subr.bf16.mxu0 0
    %2765 = vmatpush2.bf16.msra.mxu0 0
    %2766 = vmatprep.subr.bf16.mxu0 0
    %2767 = vmatpush2.bf16.msra.mxu0 0
    %2768 = vmatprep.mubr.bf16.mxu0 0
    %2769 = vmatmul.mubr.bf16.gmra.mxu0 %v2625
    %v2770 = vpop.f32.mrf.mxu0
    %v2771 = vadd.f32 %v2403, %v2770
    %v2772 = vpop.f32.mrf.mxu0
    %v2773 = vadd.f32 %v2407, %v2772
    %v2774 = vpop.f32.mrf.mxu0
    %v2775 = vadd.f32 %v2403, %v2774
    %v2776 = vpop.f32.mrf.mxu0
    %v2777 = vadd.f32 %v2407, %v2776
    %2778 = vmatprep.mubr.bf16.mxu0 0
    %2779 = vmatmul.mubr.bf16.gmra.mxu0 %v2628
    %v2780 = vpop.f32.mrf.mxu0
    %v2781 = vadd.f32 %v2403, %v2780
    %v2782 = vpop.f32.mrf.mxu0
    %v2783 = vadd.f32 %v2407, %v2782
    %v2784 = vpop.f32.mrf.mxu0
    %v2785 = vadd.f32 %v2403, %v2784
    %v2786 = vpop.f32.mrf.mxu0
    %v2787 = vadd.f32 %v2407, %v2786
    %2788 = vdwg.mxu0
    %2789 = vmatprep.subr.bf16.mxu0 0
    %2790 = vmatpush1.bf16.msra.mxu0 0
    %2791 = vmatprep.subr.bf16.mxu0 0
    %2792 = vmatpush1.bf16.msra.mxu0 0
    %2793 = vmatprep.subr.bf16.mxu0 0
    %2794 = vmatpush1.bf16.msra.mxu0 0
    %2795 = vmatprep.subr.bf16.mxu0 0
    %2796 = vmatpush1.bf16.msra.mxu0 0
    %2797 = vmatprep.subr.bf16.mxu0 0
    %2798 = vmatpush1.bf16.msra.mxu0 0
    %2799 = vmatprep.subr.bf16.mxu0 0
    %2800 = vmatpush1.bf16.msra.mxu0 0
    %2801 = vmatprep.subr.bf16.mxu0 %v2583
    %2802 = vmatpush1.bf16.msra.mxu0 %v2582
    %2803 = vmatprep.subr.bf16.mxu0 %v2567
    %2804 = vmatpush1.bf16.msra.mxu0 %v2566
    %2805 = vmatprep.subr.bf16.mxu0 0
    %2806 = vmatpush2.bf16.msra.mxu0 0
    %2807 = vmatprep.subr.bf16.mxu0 0
    %2808 = vmatpush2.bf16.msra.mxu0 0
    %2809 = vmatprep.subr.bf16.mxu0 0
    %2810 = vmatpush2.bf16.msra.mxu0 0
    %2811 = vmatprep.subr.bf16.mxu0 0
    %2812 = vmatpush2.bf16.msra.mxu0 0
    %2813 = vmatprep.subr.bf16.mxu0 0
    %2814 = vmatpush2.bf16.msra.mxu0 0
    %2815 = vmatprep.subr.bf16.mxu0 0
    %2816 = vmatpush2.bf16.msra.mxu0 0
    %2817 = vmatprep.subr.bf16.mxu0 0
    %2818 = vmatpush2.bf16.msra.mxu0 0
    %2819 = vmatprep.subr.bf16.mxu0 0
    %2820 = vmatpush2.bf16.msra.mxu0 0
    %2821 = vmatprep.mubr.bf16.mxu0 0
    %2822 = vmatmul.mubr.bf16.gmra.mxu0 %v2625
    %v2823 = vpop.f32.mrf.mxu0
    %v2824 = vadd.f32 %v2411, %v2823
    %v2825 = vpop.f32.mrf.mxu0
    %v2826 = vadd.f32 %v2415, %v2825
    %v2827 = vpop.f32.mrf.mxu0
    %v2828 = vadd.f32 %v2411, %v2827
    %v2829 = vpop.f32.mrf.mxu0
    %v2830 = vadd.f32 %v2415, %v2829
    %2831 = vmatprep.mubr.bf16.mxu0 0
    %2832 = vmatmul.mubr.bf16.gmra.mxu0 %v2628
    %v2833 = vpop.f32.mrf.mxu0
    %v2834 = vadd.f32 %v2411, %v2833
    %v2835 = vpop.f32.mrf.mxu0
    %v2836 = vadd.f32 %v2415, %v2835
    %v2837 = vpop.f32.mrf.mxu0
    %v2838 = vadd.f32 %v2411, %v2837
    %v2839 = vpop.f32.mrf.mxu0
    %v2840 = vadd.f32 %v2415, %v2839
    %2841 = vdwg.mxu0
    %2842 = vmatprep.subr.bf16.mxu0 0
    %2843 = vmatpush1.bf16.msra.mxu0 0
    %2844 = vmatprep.subr.bf16.mxu0 0
    %2845 = vmatpush1.bf16.msra.mxu0 0
    %2846 = vmatprep.subr.bf16.mxu0 0
    %2847 = vmatpush1.bf16.msra.mxu0 0
    %2848 = vmatprep.subr.bf16.mxu0 0
    %2849 = vmatpush1.bf16.msra.mxu0 0
    %2850 = vmatprep.subr.bf16.mxu0 0
    %2851 = vmatpush1.bf16.msra.mxu0 0
    %2852 = vmatprep.subr.bf16.mxu0 0
    %2853 = vmatpush1.bf16.msra.mxu0 0
    %2854 = vmatprep.subr.bf16.mxu0 %v2585
    %2855 = vmatpush1.bf16.msra.mxu0 %v2584
    %2856 = vmatprep.subr.bf16.mxu0 %v2569
    %2857 = vmatpush1.bf16.msra.mxu0 %v2568
    %2858 = vmatprep.subr.bf16.mxu0 0
    %2859 = vmatpush2.bf16.msra.mxu0 0
    %2860 = vmatprep.subr.bf16.mxu0 0
    %2861 = vmatpush2.bf16.msra.mxu0 0
    %2862 = vmatprep.subr.bf16.mxu0 0
    %2863 = vmatpush2.bf16.msra.mxu0 0
    %2864 = vmatprep.subr.bf16.mxu0 0
    %2865 = vmatpush2.bf16.msra.mxu0 0
    %2866 = vmatprep.subr.bf16.mxu0 0
    %2867 = vmatpush2.bf16.msra.mxu0 0
    %2868 = vmatprep.subr.bf16.mxu0 0
    %2869 = vmatpush2.bf16.msra.mxu0 0
    %2870 = vmatprep.subr.bf16.mxu0 0
    %2871 = vmatpush2.bf16.msra.mxu0 0
    %2872 = vmatprep.subr.bf16.mxu0 0
    %2873 = vmatpush2.bf16.msra.mxu0 0
    %2874 = vmatprep.mubr.bf16.mxu0 0
    %2875 = vmatmul.mubr.bf16.gmra.mxu0 %v2625
    %v2876 = vpop.f32.mrf.mxu0
    %v2877 = vadd.f32 %v2419, %v2876
    %v2878 = vpop.f32.mrf.mxu0
    %v2879 = vadd.f32 %v2423, %v2878
    %v2880 = vpop.f32.mrf.mxu0
    %v2881 = vadd.f32 %v2419, %v2880
    %v2882 = vpop.f32.mrf.mxu0
    %v2883 = vadd.f32 %v2423, %v2882
    %2884 = vmatprep.mubr.bf16.mxu0 0
    %2885 = vmatmul.mubr.bf16.gmra.mxu0 %v2628
    %v2886 = vpop.f32.mrf.mxu0
    %v2887 = vadd.f32 %v2419, %v2886
    %v2888 = vpop.f32.mrf.mxu0
    %v2889 = vadd.f32 %v2423, %v2888
    %v2890 = vpop.f32.mrf.mxu0
    %v2891 = vadd.f32 %v2419, %v2890
    %v2892 = vpop.f32.mrf.mxu0
    %v2893 = vadd.f32 %v2423, %v2892
    %2894 = vdwg.mxu0
    %2895 = vmatprep.subr.bf16.mxu0 0
    %2896 = vmatpush1.bf16.msra.mxu0 0
    %2897 = vmatprep.subr.bf16.mxu0 0
    %2898 = vmatpush1.bf16.msra.mxu0 0
    %2899 = vmatprep.subr.bf16.mxu0 0
    %2900 = vmatpush1.bf16.msra.mxu0 0
    %2901 = vmatprep.subr.bf16.mxu0 0
    %2902 = vmatpush1.bf16.msra.mxu0 0
    %2903 = vmatprep.subr.bf16.mxu0 0
    %2904 = vmatpush1.bf16.msra.mxu0 0
    %2905 = vmatprep.subr.bf16.mxu0 0
    %2906 = vmatpush1.bf16.msra.mxu0 0
    %2907 = vmatprep.subr.bf16.mxu0 %v2587
    %2908 = vmatpush1.bf16.msra.mxu0 %v2586
    %2909 = vmatprep.subr.bf16.mxu0 %v2571
    %2910 = vmatpush1.bf16.msra.mxu0 %v2570
    %2911 = vmatprep.subr.bf16.mxu0 0
    %2912 = vmatpush2.bf16.msra.mxu0 0
    %2913 = vmatprep.subr.bf16.mxu0 0
    %2914 = vmatpush2.bf16.msra.mxu0 0
    %2915 = vmatprep.subr.bf16.mxu0 0
    %2916 = vmatpush2.bf16.msra.mxu0 0
    %2917 = vmatprep.subr.bf16.mxu0 0
    %2918 = vmatpush2.bf16.msra.mxu0 0
    %2919 = vmatprep.subr.bf16.mxu0 0
    %2920 = vmatpush2.bf16.msra.mxu0 0
    %2921 = vmatprep.subr.bf16.mxu0 0
    %2922 = vmatpush2.bf16.msra.mxu0 0
    %2923 = vmatprep.subr.bf16.mxu0 0
    %2924 = vmatpush2.bf16.msra.mxu0 0
    %2925 = vmatprep.subr.bf16.mxu0 0
    %2926 = vmatpush2.bf16.msra.mxu0 0
    %2927 = vmatprep.mubr.bf16.mxu0 0
    %2928 = vmatmul.mubr.bf16.gmra.mxu0 %v2625
    %v2929 = vpop.f32.mrf.mxu0
    %v2930 = vadd.f32 %v2427, %v2929
    %v2931 = vpop.f32.mrf.mxu0
    %v2932 = vadd.f32 %v2431, %v2931
    %v2933 = vpop.f32.mrf.mxu0
    %v2934 = vadd.f32 %v2427, %v2933
    %v2935 = vpop.f32.mrf.mxu0
    %v2936 = vadd.f32 %v2431, %v2935
    %2937 = vmatprep.mubr.bf16.mxu0 0
    %2938 = vmatmul.mubr.bf16.gmra.mxu0 %v2628
    %v2939 = vpop.f32.mrf.mxu0
    %v2940 = vadd.f32 %v2427, %v2939
    %v2941 = vpop.f32.mrf.mxu0
    %v2942 = vadd.f32 %v2431, %v2941
    %v2943 = vpop.f32.mrf.mxu0
    %v2944 = vadd.f32 %v2427, %v2943
    %v2945 = vpop.f32.mrf.mxu0
    %v2946 = vadd.f32 %v2431, %v2945
    %2947 = vdwg.mxu0
    %2948 = vmatprep.subr.bf16.mxu0 0
    %2949 = vmatpush1.bf16.msra.mxu0 0
    %2950 = vmatprep.subr.bf16.mxu0 0
    %2951 = vmatpush1.bf16.msra.mxu0 0
    %2952 = vmatprep.subr.bf16.mxu0 0
    %2953 = vmatpush1.bf16.msra.mxu0 0
    %2954 = vmatprep.subr.bf16.mxu0 0
    %2955 = vmatpush1.bf16.msra.mxu0 0
    %2956 = vmatprep.subr.bf16.mxu0 0
    %2957 = vmatpush1.bf16.msra.mxu0 0
    %2958 = vmatprep.subr.bf16.mxu0 0
    %2959 = vmatpush1.bf16.msra.mxu0 0
    %2960 = vmatprep.subr.bf16.mxu0 %v2589
    %2961 = vmatpush1.bf16.msra.mxu0 %v2588
    %2962 = vmatprep.subr.bf16.mxu0 %v2573
    %2963 = vmatpush1.bf16.msra.mxu0 %v2572
    %2964 = vmatprep.subr.bf16.mxu0 0
    %2965 = vmatpush2.bf16.msra.mxu0 0
    %2966 = vmatprep.subr.bf16.mxu0 0
    %2967 = vmatpush2.bf16.msra.mxu0 0
    %2968 = vmatprep.subr.bf16.mxu0 0
    %2969 = vmatpush2.bf16.msra.mxu0 0
    %2970 = vmatprep.subr.bf16.mxu0 0
    %2971 = vmatpush2.bf16.msra.mxu0 0
    %2972 = vmatprep.subr.bf16.mxu0 0
    %2973 = vmatpush2.bf16.msra.mxu0 0
    %2974 = vmatprep.subr.bf16.mxu0 0
    %2975 = vmatpush2.bf16.msra.mxu0 0
    %2976 = vmatprep.subr.bf16.mxu0 0
    %2977 = vmatpush2.bf16.msra.mxu0 0
    %2978 = vmatprep.subr.bf16.mxu0 0
    %2979 = vmatpush2.bf16.msra.mxu0 0
    %2980 = vmatprep.mubr.bf16.mxu0 0
    %2981 = vmatmul.mubr.bf16.gmra.mxu0 %v2625
    %v2982 = vpop.f32.mrf.mxu0
    %v2983 = vadd.f32 %v2435, %v2982
    %v2984 = vpop.f32.mrf.mxu0
    %v2985 = vadd.f32 %v2439, %v2984
    %v2986 = vpop.f32.mrf.mxu0
    %v2987 = vadd.f32 %v2435, %v2986
    %v2988 = vpop.f32.mrf.mxu0
    %v2989 = vadd.f32 %v2439, %v2988
    %2990 = vmatprep.mubr.bf16.mxu0 0
    %2991 = vmatmul.mubr.bf16.gmra.mxu0 %v2628
    %v2992 = vpop.f32.mrf.mxu0
    %v2993 = vadd.f32 %v2435, %v2992
    %v2994 = vpop.f32.mrf.mxu0
    %v2995 = vadd.f32 %v2439, %v2994
    %v2996 = vpop.f32.mrf.mxu0
    %v2997 = vadd.f32 %v2435, %v2996
    %v2998 = vpop.f32.mrf.mxu0
    %v2999 = vadd.f32 %v2439, %v2998
    %3000 = vdwg.mxu0
    %3001 = vmatprep.subr.bf16.mxu0 0
    %3002 = vmatpush1.bf16.msra.mxu0 0
    %3003 = vmatprep.subr.bf16.mxu0 0
    %3004 = vmatpush1.bf16.msra.mxu0 0
    %3005 = vmatprep.subr.bf16.mxu0 0
    %3006 = vmatpush1.bf16.msra.mxu0 0
    %3007 = vmatprep.subr.bf16.mxu0 0
    %3008 = vmatpush1.bf16.msra.mxu0 0
    %3009 = vmatprep.subr.bf16.mxu0 0
    %3010 = vmatpush1.bf16.msra.mxu0 0
    %3011 = vmatprep.subr.bf16.mxu0 0
    %3012 = vmatpush1.bf16.msra.mxu0 0
    %3013 = vmatprep.subr.bf16.mxu0 %v2591
    %3014 = vmatpush1.bf16.msra.mxu0 %v2590
    %3015 = vmatprep.subr.bf16.mxu0 %v2575
    %3016 = vmatpush1.bf16.msra.mxu0 %v2574
    %3017 = vmatprep.subr.bf16.mxu0 0
    %3018 = vmatpush2.bf16.msra.mxu0 0
    %3019 = vmatprep.subr.bf16.mxu0 0
    %3020 = vmatpush2.bf16.msra.mxu0 0
    %3021 = vmatprep.subr.bf16.mxu0 0
    %3022 = vmatpush2.bf16.msra.mxu0 0
    %3023 = vmatprep.subr.bf16.mxu0 0
    %3024 = vmatpush2.bf16.msra.mxu0 0
    %3025 = vmatprep.subr.bf16.mxu0 0
    %3026 = vmatpush2.bf16.msra.mxu0 0
    %3027 = vmatprep.subr.bf16.mxu0 0
    %3028 = vmatpush2.bf16.msra.mxu0 0
    %3029 = vmatprep.subr.bf16.mxu0 0
    %3030 = vmatpush2.bf16.msra.mxu0 0
    %3031 = vmatprep.subr.bf16.mxu0 0
    %3032 = vmatpush2.bf16.msra.mxu0 0
    %3033 = vmatprep.mubr.bf16.mxu0 0
    %3034 = vmatmul.mubr.bf16.gmra.mxu0 %v2625
    %v3035 = vpop.f32.mrf.mxu0
    %v3036 = vadd.f32 %v2443, %v3035
    %v3037 = vpop.f32.mrf.mxu0
    %v3038 = vadd.f32 %v2447, %v3037
    %v3039 = vpop.f32.mrf.mxu0
    %v3040 = vadd.f32 %v2443, %v3039
    %v3041 = vpop.f32.mrf.mxu0
    %v3042 = vadd.f32 %v2447, %v3041
    %3043 = vmatprep.mubr.bf16.mxu0 0
    %3044 = vmatmul.mubr.bf16.gmra.mxu0 %v2628
    %v3045 = vpop.f32.mrf.mxu0
    %v3046 = vadd.f32 %v2443, %v3045
    %v3047 = vpop.f32.mrf.mxu0
    %v3048 = vadd.f32 %v2447, %v3047
    %v3049 = vpop.f32.mrf.mxu0
    %v3050 = vadd.f32 %v2443, %v3049
    %v3051 = vpop.f32.mrf.mxu0
    %v3052 = vadd.f32 %v2447, %v3051
    %3053 = vdwg.mxu0
    %v3054 = vmax.f32 %v2665, 0.0
    %v3055 = vmax.f32 %v2667, 0.0
    %v3056 = vmax.f32 %v2718, 0.0
    %v3057 = vmax.f32 %v2720, 0.0
    %v3058 = vmax.f32 %v2771, 0.0
    %v3059 = vmax.f32 %v2773, 0.0
    %v3060 = vmax.f32 %v2824, 0.0
    %v3061 = vmax.f32 %v2826, 0.0
    %v3062 = vmax.f32 %v2877, 0.0
    %v3063 = vmax.f32 %v2879, 0.0
    %v3064 = vmax.f32 %v2930, 0.0
    %v3065 = vmax.f32 %v2932, 0.0
    %v3066 = vmax.f32 %v2983, 0.0
    %v3067 = vmax.f32 %v2985, 0.0
    %v3068 = vmax.f32 %v3036, 0.0
    %v3069 = vmax.f32 %v3038, 0.0
    %v3070 = vmax.f32 %v2669, 0.0
    %v3071 = vmax.f32 %v2671, 0.0
    %v3072 = vmax.f32 %v2722, 0.0
    %v3073 = vmax.f32 %v2724, 0.0
    %v3074 = vmax.f32 %v2775, 0.0
    %v3075 = vmax.f32 %v2777, 0.0
    %v3076 = vmax.f32 %v2828, 0.0
    %v3077 = vmax.f32 %v2830, 0.0
    %v3078 = vmax.f32 %v2881, 0.0
    %v3079 = vmax.f32 %v2883, 0.0
    %v3080 = vmax.f32 %v2934, 0.0
    %v3081 = vmax.f32 %v2936, 0.0
    %v3082 = vmax.f32 %v2987, 0.0
    %v3083 = vmax.f32 %v2989, 0.0
    %v3084 = vmax.f32 %v3040, 0.0
    %v3085 = vmax.f32 %v3042, 0.0
    %v3086 = vmax.f32 %v2675, 0.0
    %v3087 = vmax.f32 %v2677, 0.0
    %v3088 = vmax.f32 %v2728, 0.0
    %v3089 = vmax.f32 %v2730, 0.0
    %v3090 = vmax.f32 %v2781, 0.0
    %v3091 = vmax.f32 %v2783, 0.0
    %v3092 = vmax.f32 %v2834, 0.0
    %v3093 = vmax.f32 %v2836, 0.0
    %v3094 = vmax.f32 %v2887, 0.0
    %v3095 = vmax.f32 %v2889, 0.0
    %v3096 = vmax.f32 %v2940, 0.0
    %v3097 = vmax.f32 %v2942, 0.0
    %v3098 = vmax.f32 %v2993, 0.0
    %v3099 = vmax.f32 %v2995, 0.0
    %v3100 = vmax.f32 %v3046, 0.0
    %v3101 = vmax.f32 %v3048, 0.0
    %v3102 = vmax.f32 %v2679, 0.0
    %v3103 = vmax.f32 %v2681, 0.0
    %v3104 = vmax.f32 %v2732, 0.0
    %v3105 = vmax.f32 %v2734, 0.0
    %v3106 = vmax.f32 %v2785, 0.0
    %v3107 = vmax.f32 %v2787, 0.0
    %v3108 = vmax.f32 %v2838, 0.0
    %v3109 = vmax.f32 %v2840, 0.0
    %v3110 = vmax.f32 %v2891, 0.0
    %v3111 = vmax.f32 %v2893, 0.0
    %v3112 = vmax.f32 %v2944, 0.0
    %v3113 = vmax.f32 %v2946, 0.0
    %v3114 = vmax.f32 %v2997, 0.0
    %v3115 = vmax.f32 %v2999, 0.0
    %v3116 = vmax.f32 %v3050, 0.0
    %v3117 = vmax.f32 %v3052, 0.0
    %v3118 = vpack.c.bf16 %v3070, %v3054
    %v3119 = vpack.c.bf16 %v3071, %v3055
    %v3120 = vpack.c.bf16 %v3072, %v3056
    %v3121 = vpack.c.bf16 %v3073, %v3057
    %v3122 = vpack.c.bf16 %v3074, %v3058
    %v3123 = vpack.c.bf16 %v3075, %v3059
    %v3124 = vpack.c.bf16 %v3076, %v3060
    %v3125 = vpack.c.bf16 %v3077, %v3061
    %v3126 = vpack.c.bf16 %v3078, %v3062
    %v3127 = vpack.c.bf16 %v3079, %v3063
    %v3128 = vpack.c.bf16 %v3080, %v3064
    %v3129 = vpack.c.bf16 %v3081, %v3065
    %v3130 = vpack.c.bf16 %v3082, %v3066
    %v3131 = vpack.c.bf16 %v3083, %v3067
    %v3132 = vpack.c.bf16 %v3084, %v3068
    %v3133 = vpack.c.bf16 %v3085, %v3069
    %v3134 = vpack.c.bf16 %v3102, %v3086
    %v3135 = vpack.c.bf16 %v3103, %v3087
    %v3136 = vpack.c.bf16 %v3104, %v3088
    %v3137 = vpack.c.bf16 %v3105, %v3089
    %v3138 = vpack.c.bf16 %v3106, %v3090
    %v3139 = vpack.c.bf16 %v3107, %v3091
    %v3140 = vpack.c.bf16 %v3108, %v3092
    %v3141 = vpack.c.bf16 %v3109, %v3093
    %v3142 = vpack.c.bf16 %v3110, %v3094
    %v3143 = vpack.c.bf16 %v3111, %v3095
    %v3144 = vpack.c.bf16 %v3112, %v3096
    %v3145 = vpack.c.bf16 %v3113, %v3097
    %v3146 = vpack.c.bf16 %v3114, %v3098
    %v3147 = vpack.c.bf16 %v3115, %v3099
    %v3148 = vpack.c.bf16 %v3116, %v3100
    %v3149 = vpack.c.bf16 %v3117, %v3101
    %v3150 = vld [vmem:[%s49] sm:$0xf]
    %v3151 = vld [vmem:[%s49 + $0x4] sm:$0xf]
    %v3152 = vld [vmem:[%s49 + $0x8] sm:$0xf]
    %v3153 = vld [vmem:[%s49 + $0xc] sm:$0xf]
    %v3154 = vld [vmem:[%s49 + $0x10] sm:$0xf]
    %v3155 = vld [vmem:[%s49 + $0x14] sm:$0xf]
    %v3156 = vld [vmem:[%s49 + $0x18] sm:$0xf]
    %v3157 = vld [vmem:[%s49 + $0x1c] sm:$0xf]
    %v3158 = vld [vmem:[%s49 + $0x20] sm:$0xf]
    %v3159 = vld [vmem:[%s49 + $0x24] sm:$0xf]
    %v3160 = vld [vmem:[%s49 + $0x28] sm:$0xf]
    %v3161 = vld [vmem:[%s49 + $0x2c] sm:$0xf]
    %v3162 = vld [vmem:[%s49 + $0x30] sm:$0xf]
    %v3163 = vld [vmem:[%s49 + $0x34] sm:$0xf]
    %v3164 = vld [vmem:[%s49 + $0x38] sm:$0xf]
    %v3165 = vld [vmem:[%s49 + $0x3c] sm:$0xf]
    %v3166 = vld [vmem:[%s49 + $0x40] sm:$0xf]
    %v3167 = vld [vmem:[%s49 + $0x44] sm:$0xf]
    %v3168 = vld [vmem:[%s49 + $0x48] sm:$0xf]
    %v3169 = vld [vmem:[%s49 + $0x4c] sm:$0xf]
    %v3170 = vld [vmem:[%s49 + $0x50] sm:$0xf]
    %v3171 = vld [vmem:[%s49 + $0x54] sm:$0xf]
    %v3172 = vld [vmem:[%s49 + $0x58] sm:$0xf]
    %v3173 = vld [vmem:[%s49 + $0x5c] sm:$0xf]
    %v3174 = vld [vmem:[%s49 + $0x60] sm:$0xf]
    %v3175 = vld [vmem:[%s49 + $0x64] sm:$0xf]
    %v3176 = vld [vmem:[%s49 + $0x68] sm:$0xf]
    %v3177 = vld [vmem:[%s49 + $0x6c] sm:$0xf]
    %v3178 = vld [vmem:[%s49 + $0x70] sm:$0xf]
    %v3179 = vld [vmem:[%s49 + $0x74] sm:$0xf]
    %v3180 = vld [vmem:[%s49 + $0x78] sm:$0xf]
    %v3181 = vld [vmem:[%s49 + $0x7c] sm:$0xf]
    %v3182 = vld [vmem:[%s49 + $0x80] sm:$0xf]
    %v3183 = vld [vmem:[%s49 + $0x84] sm:$0xf]
    %v3184 = vld [vmem:[%s49 + $0x88] sm:$0xf]
    %v3185 = vld [vmem:[%s49 + $0x8c] sm:$0xf]
    %v3186 = vld [vmem:[%s49 + $0x90] sm:$0xf]
    %v3187 = vld [vmem:[%s49 + $0x94] sm:$0xf]
    %v3188 = vld [vmem:[%s49 + $0x98] sm:$0xf]
    %v3189 = vld [vmem:[%s49 + $0x9c] sm:$0xf]
    %v3190 = vld [vmem:[%s49 + $0xa0] sm:$0xf]
    %v3191 = vld [vmem:[%s49 + $0xa4] sm:$0xf]
    %v3192 = vld [vmem:[%s49 + $0xa8] sm:$0xf]
    %v3193 = vld [vmem:[%s49 + $0xac] sm:$0xf]
    %v3194 = vld [vmem:[%s49 + $0xb0] sm:$0xf]
    %v3195 = vld [vmem:[%s49 + $0xb4] sm:$0xf]
    %v3196 = vld [vmem:[%s49 + $0xb8] sm:$0xf]
    %v3197 = vld [vmem:[%s49 + $0xbc] sm:$0xf]
    %v3198 = vld [vmem:[%s49 + $0xc0] sm:$0xf]
    %v3199 = vld [vmem:[%s49 + $0xc4] sm:$0xf]
    %v3200 = vld [vmem:[%s49 + $0xc8] sm:$0xf]
    %v3201 = vld [vmem:[%s49 + $0xcc] sm:$0xf]
    %v3202 = vld [vmem:[%s49 + $0xd0] sm:$0xf]
    %v3203 = vld [vmem:[%s49 + $0xd4] sm:$0xf]
    %v3204 = vld [vmem:[%s49 + $0xd8] sm:$0xf]
    %v3205 = vld [vmem:[%s49 + $0xdc] sm:$0xf]
    %v3206 = vld [vmem:[%s49 + $0xe0] sm:$0xf]
    %v3207 = vld [vmem:[%s49 + $0xe4] sm:$0xf]
    %v3208 = vld [vmem:[%s49 + $0xe8] sm:$0xf]
    %v3209 = vld [vmem:[%s49 + $0xec] sm:$0xf]
    %v3210 = vld [vmem:[%s49 + $0xf0] sm:$0xf]
    %v3211 = vld [vmem:[%s49 + $0xf4] sm:$0xf]
    %v3212 = vld [vmem:[%s49 + $0xf8] sm:$0xf]
    %v3213 = vld [vmem:[%s49 + $0xfc] sm:$0xf]
    %v3214 = vld [vmem:[%s49 + $0x100] sm:$0xf]
    %v3215 = vld [vmem:[%s49 + $0x104] sm:$0xf]
    %v3216 = vld [vmem:[%s49 + $0x108] sm:$0xf]
    %v3217 = vld [vmem:[%s49 + $0x10c] sm:$0xf]
    %v3218 = vld [vmem:[%s49 + $0x110] sm:$0xf]
    %v3219 = vld [vmem:[%s49 + $0x114] sm:$0xf]
    %v3220 = vld [vmem:[%s49 + $0x118] sm:$0xf]
    %v3221 = vld [vmem:[%s49 + $0x11c] sm:$0xf]
    %v3222 = vld [vmem:[%s49 + $0x120] sm:$0xf]
    %v3223 = vld [vmem:[%s49 + $0x124] sm:$0xf]
    %v3224 = vld [vmem:[%s49 + $0x128] sm:$0xf]
    %v3225 = vld [vmem:[%s49 + $0x12c] sm:$0xf]
    %v3226 = vld [vmem:[%s49 + $0x130] sm:$0xf]
    %v3227 = vld [vmem:[%s49 + $0x134] sm:$0xf]
    %v3228 = vld [vmem:[%s49 + $0x138] sm:$0xf]
    %v3229 = vld [vmem:[%s49 + $0x13c] sm:$0xf]
    %v3230 = vld [vmem:[%s49 + $0x140] sm:$0xf]
    %v3231 = vld [vmem:[%s49 + $0x144] sm:$0xf]
    %v3232 = vld [vmem:[%s49 + $0x148] sm:$0xf]
    %v3233 = vld [vmem:[%s49 + $0x14c] sm:$0xf]
    %v3234 = vld [vmem:[%s49 + $0x150] sm:$0xf]
    %v3235 = vld [vmem:[%s49 + $0x154] sm:$0xf]
    %v3236 = vld [vmem:[%s49 + $0x158] sm:$0xf]
    %v3237 = vld [vmem:[%s49 + $0x15c] sm:$0xf]
    %v3238 = vld [vmem:[%s49 + $0x160] sm:$0xf]
    %v3239 = vld [vmem:[%s49 + $0x164] sm:$0xf]
    %v3240 = vld [vmem:[%s49 + $0x168] sm:$0xf]
    %v3241 = vld [vmem:[%s49 + $0x16c] sm:$0xf]
    %v3242 = vld [vmem:[%s49 + $0x170] sm:$0xf]
    %v3243 = vld [vmem:[%s49 + $0x174] sm:$0xf]
    %v3244 = vld [vmem:[%s49 + $0x178] sm:$0xf]
    %v3245 = vld [vmem:[%s49 + $0x17c] sm:$0xf]
    %v3246 = vld [vmem:[%s49 + $0x180] sm:$0xf]
    %v3247 = vld [vmem:[%s49 + $0x184] sm:$0xf]
    %v3248 = vld [vmem:[%s49 + $0x188] sm:$0xf]
    %v3249 = vld [vmem:[%s49 + $0x18c] sm:$0xf]
    %v3250 = vld [vmem:[%s49 + $0x190] sm:$0xf]
    %v3251 = vld [vmem:[%s49 + $0x194] sm:$0xf]
    %v3252 = vld [vmem:[%s49 + $0x198] sm:$0xf]
    %v3253 = vld [vmem:[%s49 + $0x19c] sm:$0xf]
    %v3254 = vld [vmem:[%s49 + $0x1a0] sm:$0xf]
    %v3255 = vld [vmem:[%s49 + $0x1a4] sm:$0xf]
    %v3256 = vld [vmem:[%s49 + $0x1a8] sm:$0xf]
    %v3257 = vld [vmem:[%s49 + $0x1ac] sm:$0xf]
    %v3258 = vld [vmem:[%s49 + $0x1b0] sm:$0xf]
    %v3259 = vld [vmem:[%s49 + $0x1b4] sm:$0xf]
    %v3260 = vld [vmem:[%s49 + $0x1b8] sm:$0xf]
    %v3261 = vld [vmem:[%s49 + $0x1bc] sm:$0xf]
    %v3262 = vld [vmem:[%s49 + $0x1c0] sm:$0xf]
    %v3263 = vld [vmem:[%s49 + $0x1c4] sm:$0xf]
    %v3264 = vld [vmem:[%s49 + $0x1c8] sm:$0xf]
    %v3265 = vld [vmem:[%s49 + $0x1cc] sm:$0xf]
    %v3266 = vld [vmem:[%s49 + $0x1d0] sm:$0xf]
    %v3267 = vld [vmem:[%s49 + $0x1d4] sm:$0xf]
    %v3268 = vld [vmem:[%s49 + $0x1d8] sm:$0xf]
    %v3269 = vld [vmem:[%s49 + $0x1dc] sm:$0xf]
    %v3270 = vld [vmem:[%s49 + $0x1e0] sm:$0xf]
    %v3271 = vld [vmem:[%s49 + $0x1e4] sm:$0xf]
    %v3272 = vld [vmem:[%s49 + $0x1e8] sm:$0xf]
    %v3273 = vld [vmem:[%s49 + $0x1ec] sm:$0xf]
    %v3274 = vld [vmem:[%s49 + $0x1f0] sm:$0xf]
    %v3275 = vld [vmem:[%s49 + $0x1f4] sm:$0xf]
    %v3276 = vld [vmem:[%s49 + $0x1f8] sm:$0xf]
    %v3277 = vld [vmem:[%s49 + $0x1fc] sm:$0xf]
    %v3278 = vld [vmem:[%s49 + $0x200] sm:$0xf]
    %v3279 = vld [vmem:[%s49 + $0x204] sm:$0xf]
    %v3280 = vld [vmem:[%s49 + $0x208] sm:$0xf]
    %v3281 = vld [vmem:[%s49 + $0x20c] sm:$0xf]
    %v3282 = vld [vmem:[%s49 + $0x210] sm:$0xf]
    %v3283 = vld [vmem:[%s49 + $0x214] sm:$0xf]
    %v3284 = vld [vmem:[%s49 + $0x218] sm:$0xf]
    %v3285 = vld [vmem:[%s49 + $0x21c] sm:$0xf]
    %v3286 = vld [vmem:[%s49 + $0x220] sm:$0xf]
    %v3287 = vld [vmem:[%s49 + $0x224] sm:$0xf]
    %v3288 = vld [vmem:[%s49 + $0x228] sm:$0xf]
    %v3289 = vld [vmem:[%s49 + $0x22c] sm:$0xf]
    %v3290 = vld [vmem:[%s49 + $0x230] sm:$0xf]
    %v3291 = vld [vmem:[%s49 + $0x234] sm:$0xf]
    %v3292 = vld [vmem:[%s49 + $0x238] sm:$0xf]
    %v3293 = vld [vmem:[%s49 + $0x23c] sm:$0xf]
    %v3294 = vld [vmem:[%s49 + $0x240] sm:$0xf]
    %v3295 = vld [vmem:[%s49 + $0x244] sm:$0xf]
    %v3296 = vld [vmem:[%s49 + $0x248] sm:$0xf]
    %v3297 = vld [vmem:[%s49 + $0x24c] sm:$0xf]
    %v3298 = vld [vmem:[%s49 + $0x250] sm:$0xf]
    %v3299 = vld [vmem:[%s49 + $0x254] sm:$0xf]
    %v3300 = vld [vmem:[%s49 + $0x258] sm:$0xf]
    %v3301 = vld [vmem:[%s49 + $0x25c] sm:$0xf]
    %v3302 = vld [vmem:[%s49 + $0x260] sm:$0xf]
    %v3303 = vld [vmem:[%s49 + $0x264] sm:$0xf]
    %v3304 = vld [vmem:[%s49 + $0x268] sm:$0xf]
    %v3305 = vld [vmem:[%s49 + $0x26c] sm:$0xf]
    %v3306 = vld [vmem:[%s49 + $0x270] sm:$0xf]
    %v3307 = vld [vmem:[%s49 + $0x274] sm:$0xf]
    %v3308 = vld [vmem:[%s49 + $0x278] sm:$0xf]
    %v3309 = vld [vmem:[%s49 + $0x27c] sm:$0xf]
    %v3310 = vld [vmem:[%s49 + $0x280] sm:$0xf]
    %v3311 = vld [vmem:[%s49 + $0x284] sm:$0xf]
    %v3312 = vld [vmem:[%s49 + $0x288] sm:$0xf]
    %v3313 = vld [vmem:[%s49 + $0x28c] sm:$0xf]
    %v3314 = vld [vmem:[%s49 + $0x290] sm:$0xf]
    %v3315 = vld [vmem:[%s49 + $0x294] sm:$0xf]
    %v3316 = vld [vmem:[%s49 + $0x298] sm:$0xf]
    %v3317 = vld [vmem:[%s49 + $0x29c] sm:$0xf]
    %v3318 = vld [vmem:[%s49 + $0x2a0] sm:$0xf]
    %v3319 = vld [vmem:[%s49 + $0x2a4] sm:$0xf]
    %v3320 = vld [vmem:[%s49 + $0x2a8] sm:$0xf]
    %v3321 = vld [vmem:[%s49 + $0x2ac] sm:$0xf]
    %v3322 = vld [vmem:[%s49 + $0x2b0] sm:$0xf]
    %v3323 = vld [vmem:[%s49 + $0x2b4] sm:$0xf]
    %v3324 = vld [vmem:[%s49 + $0x2b8] sm:$0xf]
    %v3325 = vld [vmem:[%s49 + $0x2bc] sm:$0xf]
    %v3326 = vld [vmem:[%s49 + $0x2c0] sm:$0xf]
    %v3327 = vld [vmem:[%s49 + $0x2c4] sm:$0xf]
    %v3328 = vld [vmem:[%s49 + $0x2c8] sm:$0xf]
    %v3329 = vld [vmem:[%s49 + $0x2cc] sm:$0xf]
    %v3330 = vld [vmem:[%s49 + $0x2d0] sm:$0xf]
    %v3331 = vld [vmem:[%s49 + $0x2d4] sm:$0xf]
    %v3332 = vld [vmem:[%s49 + $0x2d8] sm:$0xf]
    %v3333 = vld [vmem:[%s49 + $0x2dc] sm:$0xf]
    %v3334 = vld [vmem:[%s49 + $0x2e0] sm:$0xf]
    %v3335 = vld [vmem:[%s49 + $0x2e4] sm:$0xf]
    %v3336 = vld [vmem:[%s49 + $0x2e8] sm:$0xf]
    %v3337 = vld [vmem:[%s49 + $0x2ec] sm:$0xf]
    %v3338 = vld [vmem:[%s49 + $0x2f0] sm:$0xf]
    %v3339 = vld [vmem:[%s49 + $0x2f4] sm:$0xf]
    %v3340 = vld [vmem:[%s49 + $0x2f8] sm:$0xf]
    %v3341 = vld [vmem:[%s49 + $0x2fc] sm:$0xf]
    %v3342 = vld [vmem:[%s49 + $0x300] sm:$0xf]
    %v3343 = vld [vmem:[%s49 + $0x304] sm:$0xf]
    %v3344 = vld [vmem:[%s49 + $0x308] sm:$0xf]
    %v3345 = vld [vmem:[%s49 + $0x30c] sm:$0xf]
    %v3346 = vld [vmem:[%s49 + $0x310] sm:$0xf]
    %v3347 = vld [vmem:[%s49 + $0x314] sm:$0xf]
    %v3348 = vld [vmem:[%s49 + $0x318] sm:$0xf]
    %v3349 = vld [vmem:[%s49 + $0x31c] sm:$0xf]
    %v3350 = vld [vmem:[%s49 + $0x320] sm:$0xf]
    %v3351 = vld [vmem:[%s49 + $0x324] sm:$0xf]
    %v3352 = vld [vmem:[%s49 + $0x328] sm:$0xf]
    %v3353 = vld [vmem:[%s49 + $0x32c] sm:$0xf]
    %v3354 = vld [vmem:[%s49 + $0x330] sm:$0xf]
    %v3355 = vld [vmem:[%s49 + $0x334] sm:$0xf]
    %v3356 = vld [vmem:[%s49 + $0x338] sm:$0xf]
    %v3357 = vld [vmem:[%s49 + $0x33c] sm:$0xf]
    %v3358 = vld [vmem:[%s49 + $0x340] sm:$0xf]
    %v3359 = vld [vmem:[%s49 + $0x344] sm:$0xf]
    %v3360 = vld [vmem:[%s49 + $0x348] sm:$0xf]
    %v3361 = vld [vmem:[%s49 + $0x34c] sm:$0xf]
    %v3362 = vld [vmem:[%s49 + $0x350] sm:$0xf]
    %v3363 = vld [vmem:[%s49 + $0x354] sm:$0xf]
    %v3364 = vld [vmem:[%s49 + $0x358] sm:$0xf]
    %v3365 = vld [vmem:[%s49 + $0x35c] sm:$0xf]
    %v3366 = vld [vmem:[%s49 + $0x360] sm:$0xf]
    %v3367 = vld [vmem:[%s49 + $0x364] sm:$0xf]
    %v3368 = vld [vmem:[%s49 + $0x368] sm:$0xf]
    %v3369 = vld [vmem:[%s49 + $0x36c] sm:$0xf]
    %v3370 = vld [vmem:[%s49 + $0x370] sm:$0xf]
    %v3371 = vld [vmem:[%s49 + $0x374] sm:$0xf]
    %v3372 = vld [vmem:[%s49 + $0x378] sm:$0xf]
    %v3373 = vld [vmem:[%s49 + $0x37c] sm:$0xf]
    %v3374 = vld [vmem:[%s49 + $0x380] sm:$0xf]
    %v3375 = vld [vmem:[%s49 + $0x384] sm:$0xf]
    %v3376 = vld [vmem:[%s49 + $0x388] sm:$0xf]
    %v3377 = vld [vmem:[%s49 + $0x38c] sm:$0xf]
    %v3378 = vld [vmem:[%s49 + $0x390] sm:$0xf]
    %v3379 = vld [vmem:[%s49 + $0x394] sm:$0xf]
    %v3380 = vld [vmem:[%s49 + $0x398] sm:$0xf]
    %v3381 = vld [vmem:[%s49 + $0x39c] sm:$0xf]
    %v3382 = vld [vmem:[%s49 + $0x3a0] sm:$0xf]
    %v3383 = vld [vmem:[%s49 + $0x3a4] sm:$0xf]
    %v3384 = vld [vmem:[%s49 + $0x3a8] sm:$0xf]
    %v3385 = vld [vmem:[%s49 + $0x3ac] sm:$0xf]
    %v3386 = vld [vmem:[%s49 + $0x3b0] sm:$0xf]
    %v3387 = vld [vmem:[%s49 + $0x3b4] sm:$0xf]
    %v3388 = vld [vmem:[%s49 + $0x3b8] sm:$0xf]
    %v3389 = vld [vmem:[%s49 + $0x3bc] sm:$0xf]
    %v3390 = vld [vmem:[%s49 + $0x3c0] sm:$0xf]
    %v3391 = vld [vmem:[%s49 + $0x3c4] sm:$0xf]
    %v3392 = vld [vmem:[%s49 + $0x3c8] sm:$0xf]
    %v3393 = vld [vmem:[%s49 + $0x3cc] sm:$0xf]
    %v3394 = vld [vmem:[%s49 + $0x3d0] sm:$0xf]
    %v3395 = vld [vmem:[%s49 + $0x3d4] sm:$0xf]
    %v3396 = vld [vmem:[%s49 + $0x3d8] sm:$0xf]
    %v3397 = vld [vmem:[%s49 + $0x3dc] sm:$0xf]
    %v3398 = vld [vmem:[%s49 + $0x3e0] sm:$0xf]
    %v3399 = vld [vmem:[%s49 + $0x3e4] sm:$0xf]
    %v3400 = vld [vmem:[%s49 + $0x3e8] sm:$0xf]
    %v3401 = vld [vmem:[%s49 + $0x3ec] sm:$0xf]
    %v3402 = vld [vmem:[%s49 + $0x3f0] sm:$0xf]
    %v3403 = vld [vmem:[%s49 + $0x3f4] sm:$0xf]
    %v3404 = vld [vmem:[%s49 + $0x3f8] sm:$0xf]
    %v3405 = vld [vmem:[%s49 + $0x3fc] sm:$0xf]
    %v3406 = vld [vmem:[%s51] sm:$0x1]
    %v3408 = vlaneseq
    %v3409 = vshrl.u32 %v3408, 7
    %v3410 = vsub.s32 0, %v3409
    %v3411 = vrot.slane %v3406, %v3410
    %v3669 = vunpack.c.l.b16 %v3150
    %v3670 = vunpack.c.l.b16 %v3151
    %v3671 = vunpack.c.l.b16 %v3152
    %v3672 = vunpack.c.l.b16 %v3153
    %v3673 = vunpack.c.l.b16 %v3154
    %v3674 = vunpack.c.l.b16 %v3155
    %v3675 = vunpack.c.l.b16 %v3156
    %v3676 = vunpack.c.l.b16 %v3157
    %v3677 = vunpack.c.l.b16 %v3158
    %v3678 = vunpack.c.l.b16 %v3159
    %v3679 = vunpack.c.l.b16 %v3160
    %v3680 = vunpack.c.l.b16 %v3161
    %v3681 = vunpack.c.l.b16 %v3162
    %v3682 = vunpack.c.l.b16 %v3163
    %v3683 = vunpack.c.l.b16 %v3164
    %v3684 = vunpack.c.l.b16 %v3165
    %v3685 = vunpack.c.l.b16 %v3166
    %v3686 = vunpack.c.l.b16 %v3167
    %v3687 = vunpack.c.l.b16 %v3168
    %v3688 = vunpack.c.l.b16 %v3169
    %v3689 = vunpack.c.l.b16 %v3170
    %v3690 = vunpack.c.l.b16 %v3171
    %v3691 = vunpack.c.l.b16 %v3172
    %v3692 = vunpack.c.l.b16 %v3173
    %v3693 = vunpack.c.l.b16 %v3174
    %v3694 = vunpack.c.l.b16 %v3175
    %v3695 = vunpack.c.l.b16 %v3176
    %v3696 = vunpack.c.l.b16 %v3177
    %v3697 = vunpack.c.l.b16 %v3178
    %v3698 = vunpack.c.l.b16 %v3179
    %v3699 = vunpack.c.l.b16 %v3180
    %v3700 = vunpack.c.l.b16 %v3181
    %v3701 = vunpack.c.l.b16 %v3182
    %v3702 = vunpack.c.l.b16 %v3183
    %v3703 = vunpack.c.l.b16 %v3184
    %v3704 = vunpack.c.l.b16 %v3185
    %v3705 = vunpack.c.l.b16 %v3186
    %v3706 = vunpack.c.l.b16 %v3187
    %v3707 = vunpack.c.l.b16 %v3188
    %v3708 = vunpack.c.l.b16 %v3189
    %v3709 = vunpack.c.l.b16 %v3190
    %v3710 = vunpack.c.l.b16 %v3191
    %v3711 = vunpack.c.l.b16 %v3192
    %v3712 = vunpack.c.l.b16 %v3193
    %v3713 = vunpack.c.l.b16 %v3194
    %v3714 = vunpack.c.l.b16 %v3195
    %v3715 = vunpack.c.l.b16 %v3196
    %v3716 = vunpack.c.l.b16 %v3197
    %v3717 = vunpack.c.l.b16 %v3198
    %v3718 = vunpack.c.l.b16 %v3199
    %v3719 = vunpack.c.l.b16 %v3200
    %v3720 = vunpack.c.l.b16 %v3201
    %v3721 = vunpack.c.l.b16 %v3202
    %v3722 = vunpack.c.l.b16 %v3203
    %v3723 = vunpack.c.l.b16 %v3204
    %v3724 = vunpack.c.l.b16 %v3205
    %v3725 = vunpack.c.l.b16 %v3206
    %v3726 = vunpack.c.l.b16 %v3207
    %v3727 = vunpack.c.l.b16 %v3208
    %v3728 = vunpack.c.l.b16 %v3209
    %v3729 = vunpack.c.l.b16 %v3210
    %v3730 = vunpack.c.l.b16 %v3211
    %v3731 = vunpack.c.l.b16 %v3212
    %v3732 = vunpack.c.l.b16 %v3213
    %v3733 = vunpack.c.l.b16 %v3214
    %v3734 = vunpack.c.l.b16 %v3215
    %v3735 = vunpack.c.l.b16 %v3216
    %v3736 = vunpack.c.l.b16 %v3217
    %v3737 = vunpack.c.l.b16 %v3218
    %v3738 = vunpack.c.l.b16 %v3219
    %v3739 = vunpack.c.l.b16 %v3220
    %v3740 = vunpack.c.l.b16 %v3221
    %v3741 = vunpack.c.l.b16 %v3222
    %v3742 = vunpack.c.l.b16 %v3223
    %v3743 = vunpack.c.l.b16 %v3224
    %v3744 = vunpack.c.l.b16 %v3225
    %v3745 = vunpack.c.l.b16 %v3226
    %v3746 = vunpack.c.l.b16 %v3227
    %v3747 = vunpack.c.l.b16 %v3228
    %v3748 = vunpack.c.l.b16 %v3229
    %v3749 = vunpack.c.l.b16 %v3230
    %v3750 = vunpack.c.l.b16 %v3231
    %v3751 = vunpack.c.l.b16 %v3232
    %v3752 = vunpack.c.l.b16 %v3233
    %v3753 = vunpack.c.l.b16 %v3234
    %v3754 = vunpack.c.l.b16 %v3235
    %v3755 = vunpack.c.l.b16 %v3236
    %v3756 = vunpack.c.l.b16 %v3237
    %v3757 = vunpack.c.l.b16 %v3238
    %v3758 = vunpack.c.l.b16 %v3239
    %v3759 = vunpack.c.l.b16 %v3240
    %v3760 = vunpack.c.l.b16 %v3241
    %v3761 = vunpack.c.l.b16 %v3242
    %v3762 = vunpack.c.l.b16 %v3243
    %v3763 = vunpack.c.l.b16 %v3244
    %v3764 = vunpack.c.l.b16 %v3245
    %v3765 = vunpack.c.l.b16 %v3246
    %v3766 = vunpack.c.l.b16 %v3247
    %v3767 = vunpack.c.l.b16 %v3248
    %v3768 = vunpack.c.l.b16 %v3249
    %v3769 = vunpack.c.l.b16 %v3250
    %v3770 = vunpack.c.l.b16 %v3251
    %v3771 = vunpack.c.l.b16 %v3252
    %v3772 = vunpack.c.l.b16 %v3253
    %v3773 = vunpack.c.l.b16 %v3254
    %v3774 = vunpack.c.l.b16 %v3255
    %v3775 = vunpack.c.l.b16 %v3256
    %v3776 = vunpack.c.l.b16 %v3257
    %v3777 = vunpack.c.l.b16 %v3258
    %v3778 = vunpack.c.l.b16 %v3259
    %v3779 = vunpack.c.l.b16 %v3260
    %v3780 = vunpack.c.l.b16 %v3261
    %v3781 = vunpack.c.l.b16 %v3262
    %v3782 = vunpack.c.l.b16 %v3263
    %v3783 = vunpack.c.l.b16 %v3264
    %v3784 = vunpack.c.l.b16 %v3265
    %v3785 = vunpack.c.l.b16 %v3266
    %v3786 = vunpack.c.l.b16 %v3267
    %v3787 = vunpack.c.l.b16 %v3268
    %v3788 = vunpack.c.l.b16 %v3269
    %v3789 = vunpack.c.l.b16 %v3270
    %v3790 = vunpack.c.l.b16 %v3271
    %v3791 = vunpack.c.l.b16 %v3272
    %v3792 = vunpack.c.l.b16 %v3273
    %v3793 = vunpack.c.l.b16 %v3274
    %v3794 = vunpack.c.l.b16 %v3275
    %v3795 = vunpack.c.l.b16 %v3276
    %v3796 = vunpack.c.l.b16 %v3277
    %v3797 = vunpack.c.l.b16 %v3278
    %v3798 = vunpack.c.l.b16 %v3279
    %v3799 = vunpack.c.l.b16 %v3280
    %v3800 = vunpack.c.l.b16 %v3281
    %v3801 = vunpack.c.l.b16 %v3282
    %v3802 = vunpack.c.l.b16 %v3283
    %v3803 = vunpack.c.l.b16 %v3284
    %v3804 = vunpack.c.l.b16 %v3285
    %v3805 = vunpack.c.l.b16 %v3286
    %v3806 = vunpack.c.l.b16 %v3287
    %v3807 = vunpack.c.l.b16 %v3288
    %v3808 = vunpack.c.l.b16 %v3289
    %v3809 = vunpack.c.l.b16 %v3290
    %v3810 = vunpack.c.l.b16 %v3291
    %v3811 = vunpack.c.l.b16 %v3292
    %v3812 = vunpack.c.l.b16 %v3293
    %v3813 = vunpack.c.l.b16 %v3294
    %v3814 = vunpack.c.l.b16 %v3295
    %v3815 = vunpack.c.l.b16 %v3296
    %v3816 = vunpack.c.l.b16 %v3297
    %v3817 = vunpack.c.l.b16 %v3298
    %v3818 = vunpack.c.l.b16 %v3299
    %v3819 = vunpack.c.l.b16 %v3300
    %v3820 = vunpack.c.l.b16 %v3301
    %v3821 = vunpack.c.l.b16 %v3302
    %v3822 = vunpack.c.l.b16 %v3303
    %v3823 = vunpack.c.l.b16 %v3304
    %v3824 = vunpack.c.l.b16 %v3305
    %v3825 = vunpack.c.l.b16 %v3306
    %v3826 = vunpack.c.l.b16 %v3307
    %v3827 = vunpack.c.l.b16 %v3308
    %v3828 = vunpack.c.l.b16 %v3309
    %v3829 = vunpack.c.l.b16 %v3310
    %v3830 = vunpack.c.l.b16 %v3311
    %v3831 = vunpack.c.l.b16 %v3312
    %v3832 = vunpack.c.l.b16 %v3313
    %v3833 = vunpack.c.l.b16 %v3314
    %v3834 = vunpack.c.l.b16 %v3315
    %v3835 = vunpack.c.l.b16 %v3316
    %v3836 = vunpack.c.l.b16 %v3317
    %v3837 = vunpack.c.l.b16 %v3318
    %v3838 = vunpack.c.l.b16 %v3319
    %v3839 = vunpack.c.l.b16 %v3320
    %v3840 = vunpack.c.l.b16 %v3321
    %v3841 = vunpack.c.l.b16 %v3322
    %v3842 = vunpack.c.l.b16 %v3323
    %v3843 = vunpack.c.l.b16 %v3324
    %v3844 = vunpack.c.l.b16 %v3325
    %v3845 = vunpack.c.l.b16 %v3326
    %v3846 = vunpack.c.l.b16 %v3327
    %v3847 = vunpack.c.l.b16 %v3328
    %v3848 = vunpack.c.l.b16 %v3329
    %v3849 = vunpack.c.l.b16 %v3330
    %v3850 = vunpack.c.l.b16 %v3331
    %v3851 = vunpack.c.l.b16 %v3332
    %v3852 = vunpack.c.l.b16 %v3333
    %v3853 = vunpack.c.l.b16 %v3334
    %v3854 = vunpack.c.l.b16 %v3335
    %v3855 = vunpack.c.l.b16 %v3336
    %v3856 = vunpack.c.l.b16 %v3337
    %v3857 = vunpack.c.l.b16 %v3338
    %v3858 = vunpack.c.l.b16 %v3339
    %v3859 = vunpack.c.l.b16 %v3340
    %v3860 = vunpack.c.l.b16 %v3341
    %v3861 = vunpack.c.l.b16 %v3342
    %v3862 = vunpack.c.l.b16 %v3343
    %v3863 = vunpack.c.l.b16 %v3344
    %v3864 = vunpack.c.l.b16 %v3345
    %v3865 = vunpack.c.l.b16 %v3346
    %v3866 = vunpack.c.l.b16 %v3347
    %v3867 = vunpack.c.l.b16 %v3348
    %v3868 = vunpack.c.l.b16 %v3349
    %v3869 = vunpack.c.l.b16 %v3350
    %v3870 = vunpack.c.l.b16 %v3351
    %v3871 = vunpack.c.l.b16 %v3352
    %v3872 = vunpack.c.l.b16 %v3353
    %v3873 = vunpack.c.l.b16 %v3354
    %v3874 = vunpack.c.l.b16 %v3355
    %v3875 = vunpack.c.l.b16 %v3356
    %v3876 = vunpack.c.l.b16 %v3357
    %v3877 = vunpack.c.l.b16 %v3358
    %v3878 = vunpack.c.l.b16 %v3359
    %v3879 = vunpack.c.l.b16 %v3360
    %v3880 = vunpack.c.l.b16 %v3361
    %v3881 = vunpack.c.l.b16 %v3362
    %v3882 = vunpack.c.l.b16 %v3363
    %v3883 = vunpack.c.l.b16 %v3364
    %v3884 = vunpack.c.l.b16 %v3365
    %v3885 = vunpack.c.l.b16 %v3366
    %v3886 = vunpack.c.l.b16 %v3367
    %v3887 = vunpack.c.l.b16 %v3368
    %v3888 = vunpack.c.l.b16 %v3369
    %v3889 = vunpack.c.l.b16 %v3370
    %v3890 = vunpack.c.l.b16 %v3371
    %v3891 = vunpack.c.l.b16 %v3372
    %v3892 = vunpack.c.l.b16 %v3373
    %v3893 = vunpack.c.l.b16 %v3374
    %v3894 = vunpack.c.l.b16 %v3375
    %v3895 = vunpack.c.l.b16 %v3376
    %v3896 = vunpack.c.l.b16 %v3377
    %v3897 = vunpack.c.l.b16 %v3378
    %v3898 = vunpack.c.l.b16 %v3379
    %v3899 = vunpack.c.l.b16 %v3380
    %v3900 = vunpack.c.l.b16 %v3381
    %v3901 = vunpack.c.l.b16 %v3382
    %v3902 = vunpack.c.l.b16 %v3383
    %v3903 = vunpack.c.l.b16 %v3384
    %v3904 = vunpack.c.l.b16 %v3385
    %v3905 = vunpack.c.l.b16 %v3386
    %v3906 = vunpack.c.l.b16 %v3387
    %v3907 = vunpack.c.l.b16 %v3388
    %v3908 = vunpack.c.l.b16 %v3389
    %v3909 = vunpack.c.l.b16 %v3390
    %v3910 = vunpack.c.l.b16 %v3391
    %v3911 = vunpack.c.l.b16 %v3392
    %v3912 = vunpack.c.l.b16 %v3393
    %v3913 = vunpack.c.l.b16 %v3394
    %v3914 = vunpack.c.l.b16 %v3395
    %v3915 = vunpack.c.l.b16 %v3396
    %v3916 = vunpack.c.l.b16 %v3397
    %v3917 = vunpack.c.l.b16 %v3398
    %v3918 = vunpack.c.l.b16 %v3399
    %v3919 = vunpack.c.l.b16 %v3400
    %v3920 = vunpack.c.l.b16 %v3401
    %v3921 = vunpack.c.l.b16 %v3402
    %v3922 = vunpack.c.l.b16 %v3403
    %v3923 = vunpack.c.l.b16 %v3404
    %v3924 = vunpack.c.l.b16 %v3405
    %v3925 = vpack.c.b16 %v3670, %v3669
    %v3926 = vpack.c.b16 %v3672, %v3671
    %v3927 = vpack.c.b16 %v3674, %v3673
    %v3928 = vpack.c.b16 %v3676, %v3675
    %v3929 = vpack.c.b16 %v3678, %v3677
    %v3930 = vpack.c.b16 %v3680, %v3679
    %v3931 = vpack.c.b16 %v3682, %v3681
    %v3932 = vpack.c.b16 %v3684, %v3683
    %v3933 = vpack.c.b16 %v3686, %v3685
    %v3934 = vpack.c.b16 %v3688, %v3687
    %v3935 = vpack.c.b16 %v3690, %v3689
    %v3936 = vpack.c.b16 %v3692, %v3691
    %v3937 = vpack.c.b16 %v3694, %v3693
    %v3938 = vpack.c.b16 %v3696, %v3695
    %v3939 = vpack.c.b16 %v3698, %v3697
    %v3940 = vpack.c.b16 %v3700, %v3699
    %v3941 = vpack.c.b16 %v3702, %v3701
    %v3942 = vpack.c.b16 %v3704, %v3703
    %v3943 = vpack.c.b16 %v3706, %v3705
    %v3944 = vpack.c.b16 %v3708, %v3707
    %v3945 = vpack.c.b16 %v3710, %v3709
    %v3946 = vpack.c.b16 %v3712, %v3711
    %v3947 = vpack.c.b16 %v3714, %v3713
    %v3948 = vpack.c.b16 %v3716, %v3715
    %v3949 = vpack.c.b16 %v3718, %v3717
    %v3950 = vpack.c.b16 %v3720, %v3719
    %v3951 = vpack.c.b16 %v3722, %v3721
    %v3952 = vpack.c.b16 %v3724, %v3723
    %v3953 = vpack.c.b16 %v3726, %v3725
    %v3954 = vpack.c.b16 %v3728, %v3727
    %v3955 = vpack.c.b16 %v3730, %v3729
    %v3956 = vpack.c.b16 %v3732, %v3731
    %v3957 = vpack.c.b16 %v3734, %v3733
    %v3958 = vpack.c.b16 %v3736, %v3735
    %v3959 = vpack.c.b16 %v3738, %v3737
    %v3960 = vpack.c.b16 %v3740, %v3739
    %v3961 = vpack.c.b16 %v3742, %v3741
    %v3962 = vpack.c.b16 %v3744, %v3743
    %v3963 = vpack.c.b16 %v3746, %v3745
    %v3964 = vpack.c.b16 %v3748, %v3747
    %v3965 = vpack.c.b16 %v3750, %v3749
    %v3966 = vpack.c.b16 %v3752, %v3751
    %v3967 = vpack.c.b16 %v3754, %v3753
    %v3968 = vpack.c.b16 %v3756, %v3755
    %v3969 = vpack.c.b16 %v3758, %v3757
    %v3970 = vpack.c.b16 %v3760, %v3759
    %v3971 = vpack.c.b16 %v3762, %v3761
    %v3972 = vpack.c.b16 %v3764, %v3763
    %v3973 = vpack.c.b16 %v3766, %v3765
    %v3974 = vpack.c.b16 %v3768, %v3767
    %v3975 = vpack.c.b16 %v3770, %v3769
    %v3976 = vpack.c.b16 %v3772, %v3771
    %v3977 = vpack.c.b16 %v3774, %v3773
    %v3978 = vpack.c.b16 %v3776, %v3775
    %v3979 = vpack.c.b16 %v3778, %v3777
    %v3980 = vpack.c.b16 %v3780, %v3779
    %v3981 = vpack.c.b16 %v3782, %v3781
    %v3982 = vpack.c.b16 %v3784, %v3783
    %v3983 = vpack.c.b16 %v3786, %v3785
    %v3984 = vpack.c.b16 %v3788, %v3787
    %v3985 = vpack.c.b16 %v3790, %v3789
    %v3986 = vpack.c.b16 %v3792, %v3791
    %v3987 = vpack.c.b16 %v3794, %v3793
    %v3988 = vpack.c.b16 %v3796, %v3795
    %v3989 = vpack.c.b16 %v3798, %v3797
    %v3990 = vpack.c.b16 %v3800, %v3799
    %v3991 = vpack.c.b16 %v3802, %v3801
    %v3992 = vpack.c.b16 %v3804, %v3803
    %v3993 = vpack.c.b16 %v3806, %v3805
    %v3994 = vpack.c.b16 %v3808, %v3807
    %v3995 = vpack.c.b16 %v3810, %v3809
    %v3996 = vpack.c.b16 %v3812, %v3811
    %v3997 = vpack.c.b16 %v3814, %v3813
    %v3998 = vpack.c.b16 %v3816, %v3815
    %v3999 = vpack.c.b16 %v3818, %v3817
    %v4000 = vpack.c.b16 %v3820, %v3819
    %v4001 = vpack.c.b16 %v3822, %v3821
    %v4002 = vpack.c.b16 %v3824, %v3823
    %v4003 = vpack.c.b16 %v3826, %v3825
    %v4004 = vpack.c.b16 %v3828, %v3827
    %v4005 = vpack.c.b16 %v3830, %v3829
    %v4006 = vpack.c.b16 %v3832, %v3831
    %v4007 = vpack.c.b16 %v3834, %v3833
    %v4008 = vpack.c.b16 %v3836, %v3835
    %v4009 = vpack.c.b16 %v3838, %v3837
    %v4010 = vpack.c.b16 %v3840, %v3839
    %v4011 = vpack.c.b16 %v3842, %v3841
    %v4012 = vpack.c.b16 %v3844, %v3843
    %v4013 = vpack.c.b16 %v3846, %v3845
    %v4014 = vpack.c.b16 %v3848, %v3847
    %v4015 = vpack.c.b16 %v3850, %v3849
    %v4016 = vpack.c.b16 %v3852, %v3851
    %v4017 = vpack.c.b16 %v3854, %v3853
    %v4018 = vpack.c.b16 %v3856, %v3855
    %v4019 = vpack.c.b16 %v3858, %v3857
    %v4020 = vpack.c.b16 %v3860, %v3859
    %v4021 = vpack.c.b16 %v3862, %v3861
    %v4022 = vpack.c.b16 %v3864, %v3863
    %v4023 = vpack.c.b16 %v3866, %v3865
    %v4024 = vpack.c.b16 %v3868, %v3867
    %v4025 = vpack.c.b16 %v3870, %v3869
    %v4026 = vpack.c.b16 %v3872, %v3871
    %v4027 = vpack.c.b16 %v3874, %v3873
    %v4028 = vpack.c.b16 %v3876, %v3875
    %v4029 = vpack.c.b16 %v3878, %v3877
    %v4030 = vpack.c.b16 %v3880, %v3879
    %v4031 = vpack.c.b16 %v3882, %v3881
    %v4032 = vpack.c.b16 %v3884, %v3883
    %v4033 = vpack.c.b16 %v3886, %v3885
    %v4034 = vpack.c.b16 %v3888, %v3887
    %v4035 = vpack.c.b16 %v3890, %v3889
    %v4036 = vpack.c.b16 %v3892, %v3891
    %v4037 = vpack.c.b16 %v3894, %v3893
    %v4038 = vpack.c.b16 %v3896, %v3895
    %v4039 = vpack.c.b16 %v3898, %v3897
    %v4040 = vpack.c.b16 %v3900, %v3899
    %v4041 = vpack.c.b16 %v3902, %v3901
    %v4042 = vpack.c.b16 %v3904, %v3903
    %v4043 = vpack.c.b16 %v3906, %v3905
    %v4044 = vpack.c.b16 %v3908, %v3907
    %v4045 = vpack.c.b16 %v3910, %v3909
    %v4046 = vpack.c.b16 %v3912, %v3911
    %v4047 = vpack.c.b16 %v3914, %v3913
    %v4048 = vpack.c.b16 %v3916, %v3915
    %v4049 = vpack.c.b16 %v3918, %v3917
    %v4050 = vpack.c.b16 %v3920, %v3919
    %v4051 = vpack.c.b16 %v3922, %v3921
    %v4052 = vpack.c.b16 %v3924, %v3923
    %4181 = vmatprep.subr.bf16.mxu0 0
    %4182 = vmatpush1.bf16.msra.mxu0 %v3932
    %4183 = vmatprep.subr.bf16.mxu0 0
    %4184 = vmatpush1.bf16.msra.mxu0 %v3931
    %4185 = vmatprep.subr.bf16.mxu0 0
    %4186 = vmatpush1.bf16.msra.mxu0 %v3930
    %4187 = vmatprep.subr.bf16.mxu0 0
    %4188 = vmatpush1.bf16.msra.mxu0 %v3929
    %4189 = vmatprep.subr.bf16.mxu0 0
    %4190 = vmatpush1.bf16.msra.mxu0 %v3928
    %4191 = vmatprep.subr.bf16.mxu0 0
    %4192 = vmatpush1.bf16.msra.mxu0 %v3927
    %4193 = vmatprep.subr.bf16.mxu0 0
    %4194 = vmatpush1.bf16.msra.mxu0 %v3926
    %4195 = vmatprep.subr.bf16.mxu0 0
    %4196 = vmatpush1.bf16.msra.mxu0 %v3925
    %4197 = vmatprep.subr.bf16.mxu0 0
    %4198 = vmatpush2.bf16.msra.mxu0 %v3940
    %4199 = vmatprep.subr.bf16.mxu0 0
    %4200 = vmatpush2.bf16.msra.mxu0 %v3939
    %4201 = vmatprep.subr.bf16.mxu0 0
    %4202 = vmatpush2.bf16.msra.mxu0 %v3938
    %4203 = vmatprep.subr.bf16.mxu0 0
    %4204 = vmatpush2.bf16.msra.mxu0 %v3937
    %4205 = vmatprep.subr.bf16.mxu0 0
    %4206 = vmatpush2.bf16.msra.mxu0 %v3936
    %4207 = vmatprep.subr.bf16.mxu0 0
    %4208 = vmatpush2.bf16.msra.mxu0 %v3935
    %4209 = vmatprep.subr.bf16.mxu0 0
    %4210 = vmatpush2.bf16.msra.mxu0 %v3934
    %4211 = vmatprep.subr.bf16.mxu0 0
    %4212 = vmatpush2.bf16.msra.mxu0 %v3933
    %4213 = vmatprep.mubr.bf16.mxu0 %v3119
    %4214 = vmatmul.mubr.bf16.gmra.mxu0 %v3118
    %v4215 = vpop.f32.mrf.mxu0
    %v4216 = vadd.f32 %v3411, %v4215
    %v4217 = vpop.f32.mrf.mxu0
    %v4218 = vpop.f32.mrf.mxu0
    %v4219 = vadd.f32 %v3411, %v4218
    %v4220 = vpop.f32.mrf.mxu0
    %4221 = vmatprep.mubr.bf16.mxu0 %v3135
    %4222 = vmatmul.mubr.bf16.gmra.mxu0 %v3134
    %v4223 = vpop.f32.mrf.mxu0
    %v4224 = vadd.f32 %v3411, %v4223
    %v4225 = vpop.f32.mrf.mxu0
    %v4226 = vpop.f32.mrf.mxu0
    %v4227 = vadd.f32 %v3411, %v4226
    %v4228 = vpop.f32.mrf.mxu0
    %4229 = vdwg.mxu0
    %4230 = vmatprep.subr.bf16.mxu0 0
    %4231 = vmatpush1.bf16.msra.mxu0 %v3948
    %4232 = vmatprep.subr.bf16.mxu0 0
    %4233 = vmatpush1.bf16.msra.mxu0 %v3947
    %4234 = vmatprep.subr.bf16.mxu0 0
    %4235 = vmatpush1.bf16.msra.mxu0 %v3946
    %4236 = vmatprep.subr.bf16.mxu0 0
    %4237 = vmatpush1.bf16.msra.mxu0 %v3945
    %4238 = vmatprep.subr.bf16.mxu0 0
    %4239 = vmatpush1.bf16.msra.mxu0 %v3944
    %4240 = vmatprep.subr.bf16.mxu0 0
    %4241 = vmatpush1.bf16.msra.mxu0 %v3943
    %4242 = vmatprep.subr.bf16.mxu0 0
    %4243 = vmatpush1.bf16.msra.mxu0 %v3942
    %4244 = vmatprep.subr.bf16.mxu0 0
    %4245 = vmatpush1.bf16.msra.mxu0 %v3941
    %4246 = vmatprep.subr.bf16.mxu0 0
    %4247 = vmatpush2.bf16.msra.mxu0 %v3956
    %4248 = vmatprep.subr.bf16.mxu0 0
    %4249 = vmatpush2.bf16.msra.mxu0 %v3955
    %4250 = vmatprep.subr.bf16.mxu0 0
    %4251 = vmatpush2.bf16.msra.mxu0 %v3954
    %4252 = vmatprep.subr.bf16.mxu0 0
    %4253 = vmatpush2.bf16.msra.mxu0 %v3953
    %4254 = vmatprep.subr.bf16.mxu0 0
    %4255 = vmatpush2.bf16.msra.mxu0 %v3952
    %4256 = vmatprep.subr.bf16.mxu0 0
    %4257 = vmatpush2.bf16.msra.mxu0 %v3951
    %4258 = vmatprep.subr.bf16.mxu0 0
    %4259 = vmatpush2.bf16.msra.mxu0 %v3950
    %4260 = vmatprep.subr.bf16.mxu0 0
    %4261 = vmatpush2.bf16.msra.mxu0 %v3949
    %4262 = vmatprep.mubr.bf16.mxu0 %v3121
    %4263 = vmatmul.mubr.bf16.gmra.mxu0 %v3120
    %v4264 = vpop.f32.mrf.mxu0
    %v4265 = vadd.f32 %v4216, %v4264
    %v4266 = vpop.f32.mrf.mxu0
    %v4267 = vpop.f32.mrf.mxu0
    %v4268 = vadd.f32 %v4219, %v4267
    %v4269 = vpop.f32.mrf.mxu0
    %4270 = vmatprep.mubr.bf16.mxu0 %v3137
    %4271 = vmatmul.mubr.bf16.gmra.mxu0 %v3136
    %v4272 = vpop.f32.mrf.mxu0
    %v4273 = vadd.f32 %v4224, %v4272
    %v4274 = vpop.f32.mrf.mxu0
    %v4275 = vpop.f32.mrf.mxu0
    %v4276 = vadd.f32 %v4227, %v4275
    %v4277 = vpop.f32.mrf.mxu0
    %4278 = vdwg.mxu0
    %4279 = vmatprep.subr.bf16.mxu0 0
    %4280 = vmatpush1.bf16.msra.mxu0 %v3964
    %4281 = vmatprep.subr.bf16.mxu0 0
    %4282 = vmatpush1.bf16.msra.mxu0 %v3963
    %4283 = vmatprep.subr.bf16.mxu0 0
    %4284 = vmatpush1.bf16.msra.mxu0 %v3962
    %4285 = vmatprep.subr.bf16.mxu0 0
    %4286 = vmatpush1.bf16.msra.mxu0 %v3961
    %4287 = vmatprep.subr.bf16.mxu0 0
    %4288 = vmatpush1.bf16.msra.mxu0 %v3960
    %4289 = vmatprep.subr.bf16.mxu0 0
    %4290 = vmatpush1.bf16.msra.mxu0 %v3959
    %4291 = vmatprep.subr.bf16.mxu0 0
    %4292 = vmatpush1.bf16.msra.mxu0 %v3958
    %4293 = vmatprep.subr.bf16.mxu0 0
    %4294 = vmatpush1.bf16.msra.mxu0 %v3957
    %4295 = vmatprep.subr.bf16.mxu0 0
    %4296 = vmatpush2.bf16.msra.mxu0 %v3972
    %4297 = vmatprep.subr.bf16.mxu0 0
    %4298 = vmatpush2.bf16.msra.mxu0 %v3971
    %4299 = vmatprep.subr.bf16.mxu0 0
    %4300 = vmatpush2.bf16.msra.mxu0 %v3970
    %4301 = vmatprep.subr.bf16.mxu0 0
    %4302 = vmatpush2.bf16.msra.mxu0 %v3969
    %4303 = vmatprep.subr.bf16.mxu0 0
    %4304 = vmatpush2.bf16.msra.mxu0 %v3968
    %4305 = vmatprep.subr.bf16.mxu0 0
    %4306 = vmatpush2.bf16.msra.mxu0 %v3967
    %4307 = vmatprep.subr.bf16.mxu0 0
    %4308 = vmatpush2.bf16.msra.mxu0 %v3966
    %4309 = vmatprep.subr.bf16.mxu0 0
    %4310 = vmatpush2.bf16.msra.mxu0 %v3965
    %4311 = vmatprep.mubr.bf16.mxu0 %v3123
    %4312 = vmatmul.mubr.bf16.gmra.mxu0 %v3122
    %v4313 = vpop.f32.mrf.mxu0
    %v4314 = vadd.f32 %v4265, %v4313
    %v4315 = vpop.f32.mrf.mxu0
    %v4316 = vpop.f32.mrf.mxu0
    %v4317 = vadd.f32 %v4268, %v4316
    %v4318 = vpop.f32.mrf.mxu0
    %4319 = vmatprep.mubr.bf16.mxu0 %v3139
    %4320 = vmatmul.mubr.bf16.gmra.mxu0 %v3138
    %v4321 = vpop.f32.mrf.mxu0
    %v4322 = vadd.f32 %v4273, %v4321
    %v4323 = vpop.f32.mrf.mxu0
    %v4324 = vpop.f32.mrf.mxu0
    %v4325 = vadd.f32 %v4276, %v4324
    %v4326 = vpop.f32.mrf.mxu0
    %4327 = vdwg.mxu0
    %4328 = vmatprep.subr.bf16.mxu0 0
    %4329 = vmatpush1.bf16.msra.mxu0 %v3980
    %4330 = vmatprep.subr.bf16.mxu0 0
    %4331 = vmatpush1.bf16.msra.mxu0 %v3979
    %4332 = vmatprep.subr.bf16.mxu0 0
    %4333 = vmatpush1.bf16.msra.mxu0 %v3978
    %4334 = vmatprep.subr.bf16.mxu0 0
    %4335 = vmatpush1.bf16.msra.mxu0 %v3977
    %4336 = vmatprep.subr.bf16.mxu0 0
    %4337 = vmatpush1.bf16.msra.mxu0 %v3976
    %4338 = vmatprep.subr.bf16.mxu0 0
    %4339 = vmatpush1.bf16.msra.mxu0 %v3975
    %4340 = vmatprep.subr.bf16.mxu0 0
    %4341 = vmatpush1.bf16.msra.mxu0 %v3974
    %4342 = vmatprep.subr.bf16.mxu0 0
    %4343 = vmatpush1.bf16.msra.mxu0 %v3973
    %4344 = vmatprep.subr.bf16.mxu0 0
    %4345 = vmatpush2.bf16.msra.mxu0 %v3988
    %4346 = vmatprep.subr.bf16.mxu0 0
    %4347 = vmatpush2.bf16.msra.mxu0 %v3987
    %4348 = vmatprep.subr.bf16.mxu0 0
    %4349 = vmatpush2.bf16.msra.mxu0 %v3986
    %4350 = vmatprep.subr.bf16.mxu0 0
    %4351 = vmatpush2.bf16.msra.mxu0 %v3985
    %4352 = vmatprep.subr.bf16.mxu0 0
    %4353 = vmatpush2.bf16.msra.mxu0 %v3984
    %4354 = vmatprep.subr.bf16.mxu0 0
    %4355 = vmatpush2.bf16.msra.mxu0 %v3983
    %4356 = vmatprep.subr.bf16.mxu0 0
    %4357 = vmatpush2.bf16.msra.mxu0 %v3982
    %4358 = vmatprep.subr.bf16.mxu0 0
    %4359 = vmatpush2.bf16.msra.mxu0 %v3981
    %4360 = vmatprep.mubr.bf16.mxu0 %v3125
    %4361 = vmatmul.mubr.bf16.gmra.mxu0 %v3124
    %v4362 = vpop.f32.mrf.mxu0
    %v4363 = vadd.f32 %v4314, %v4362
    %v4364 = vpop.f32.mrf.mxu0
    %v4365 = vpop.f32.mrf.mxu0
    %v4366 = vadd.f32 %v4317, %v4365
    %v4367 = vpop.f32.mrf.mxu0
    %4368 = vmatprep.mubr.bf16.mxu0 %v3141
    %4369 = vmatmul.mubr.bf16.gmra.mxu0 %v3140
    %v4370 = vpop.f32.mrf.mxu0
    %v4371 = vadd.f32 %v4322, %v4370
    %v4372 = vpop.f32.mrf.mxu0
    %v4373 = vpop.f32.mrf.mxu0
    %v4374 = vadd.f32 %v4325, %v4373
    %v4375 = vpop.f32.mrf.mxu0
    %4376 = vdwg.mxu0
    %4377 = vmatprep.subr.bf16.mxu0 0
    %4378 = vmatpush1.bf16.msra.mxu0 %v3996
    %4379 = vmatprep.subr.bf16.mxu0 0
    %4380 = vmatpush1.bf16.msra.mxu0 %v3995
    %4381 = vmatprep.subr.bf16.mxu0 0
    %4382 = vmatpush1.bf16.msra.mxu0 %v3994
    %4383 = vmatprep.subr.bf16.mxu0 0
    %4384 = vmatpush1.bf16.msra.mxu0 %v3993
    %4385 = vmatprep.subr.bf16.mxu0 0
    %4386 = vmatpush1.bf16.msra.mxu0 %v3992
    %4387 = vmatprep.subr.bf16.mxu0 0
    %4388 = vmatpush1.bf16.msra.mxu0 %v3991
    %4389 = vmatprep.subr.bf16.mxu0 0
    %4390 = vmatpush1.bf16.msra.mxu0 %v3990
    %4391 = vmatprep.subr.bf16.mxu0 0
    %4392 = vmatpush1.bf16.msra.mxu0 %v3989
    %4393 = vmatprep.subr.bf16.mxu0 0
    %4394 = vmatpush2.bf16.msra.mxu0 %v4004
    %4395 = vmatprep.subr.bf16.mxu0 0
    %4396 = vmatpush2.bf16.msra.mxu0 %v4003
    %4397 = vmatprep.subr.bf16.mxu0 0
    %4398 = vmatpush2.bf16.msra.mxu0 %v4002
    %4399 = vmatprep.subr.bf16.mxu0 0
    %4400 = vmatpush2.bf16.msra.mxu0 %v4001
    %4401 = vmatprep.subr.bf16.mxu0 0
    %4402 = vmatpush2.bf16.msra.mxu0 %v4000
    %4403 = vmatprep.subr.bf16.mxu0 0
    %4404 = vmatpush2.bf16.msra.mxu0 %v3999
    %4405 = vmatprep.subr.bf16.mxu0 0
    %4406 = vmatpush2.bf16.msra.mxu0 %v3998
    %4407 = vmatprep.subr.bf16.mxu0 0
    %4408 = vmatpush2.bf16.msra.mxu0 %v3997
    %4409 = vmatprep.mubr.bf16.mxu0 %v3127
    %4410 = vmatmul.mubr.bf16.gmra.mxu0 %v3126
    %v4411 = vpop.f32.mrf.mxu0
    %v4412 = vadd.f32 %v4363, %v4411
    %v4413 = vpop.f32.mrf.mxu0
    %v4414 = vpop.f32.mrf.mxu0
    %v4415 = vadd.f32 %v4366, %v4414
    %v4416 = vpop.f32.mrf.mxu0
    %4417 = vmatprep.mubr.bf16.mxu0 %v3143
    %4418 = vmatmul.mubr.bf16.gmra.mxu0 %v3142
    %v4419 = vpop.f32.mrf.mxu0
    %v4420 = vadd.f32 %v4371, %v4419
    %v4421 = vpop.f32.mrf.mxu0
    %v4422 = vpop.f32.mrf.mxu0
    %v4423 = vadd.f32 %v4374, %v4422
    %v4424 = vpop.f32.mrf.mxu0
    %4425 = vdwg.mxu0
    %4426 = vmatprep.subr.bf16.mxu0 0
    %4427 = vmatpush1.bf16.msra.mxu0 %v4012
    %4428 = vmatprep.subr.bf16.mxu0 0
    %4429 = vmatpush1.bf16.msra.mxu0 %v4011
    %4430 = vmatprep.subr.bf16.mxu0 0
    %4431 = vmatpush1.bf16.msra.mxu0 %v4010
    %4432 = vmatprep.subr.bf16.mxu0 0
    %4433 = vmatpush1.bf16.msra.mxu0 %v4009
    %4434 = vmatprep.subr.bf16.mxu0 0
    %4435 = vmatpush1.bf16.msra.mxu0 %v4008
    %4436 = vmatprep.subr.bf16.mxu0 0
    %4437 = vmatpush1.bf16.msra.mxu0 %v4007
    %4438 = vmatprep.subr.bf16.mxu0 0
    %4439 = vmatpush1.bf16.msra.mxu0 %v4006
    %4440 = vmatprep.subr.bf16.mxu0 0
    %4441 = vmatpush1.bf16.msra.mxu0 %v4005
    %4442 = vmatprep.subr.bf16.mxu0 0
    %4443 = vmatpush2.bf16.msra.mxu0 %v4020
    %4444 = vmatprep.subr.bf16.mxu0 0
    %4445 = vmatpush2.bf16.msra.mxu0 %v4019
    %4446 = vmatprep.subr.bf16.mxu0 0
    %4447 = vmatpush2.bf16.msra.mxu0 %v4018
    %4448 = vmatprep.subr.bf16.mxu0 0
    %4449 = vmatpush2.bf16.msra.mxu0 %v4017
    %4450 = vmatprep.subr.bf16.mxu0 0
    %4451 = vmatpush2.bf16.msra.mxu0 %v4016
    %4452 = vmatprep.subr.bf16.mxu0 0
    %4453 = vmatpush2.bf16.msra.mxu0 %v4015
    %4454 = vmatprep.subr.bf16.mxu0 0
    %4455 = vmatpush2.bf16.msra.mxu0 %v4014
    %4456 = vmatprep.subr.bf16.mxu0 0
    %4457 = vmatpush2.bf16.msra.mxu0 %v4013
    %4458 = vmatprep.mubr.bf16.mxu0 %v3129
    %4459 = vmatmul.mubr.bf16.gmra.mxu0 %v3128
    %v4460 = vpop.f32.mrf.mxu0
    %v4461 = vadd.f32 %v4412, %v4460
    %v4462 = vpop.f32.mrf.mxu0
    %v4463 = vpop.f32.mrf.mxu0
    %v4464 = vadd.f32 %v4415, %v4463
    %v4465 = vpop.f32.mrf.mxu0
    %4466 = vmatprep.mubr.bf16.mxu0 %v3145
    %4467 = vmatmul.mubr.bf16.gmra.mxu0 %v3144
    %v4468 = vpop.f32.mrf.mxu0
    %v4469 = vadd.f32 %v4420, %v4468
    %v4470 = vpop.f32.mrf.mxu0
    %v4471 = vpop.f32.mrf.mxu0
    %v4472 = vadd.f32 %v4423, %v4471
    %v4473 = vpop.f32.mrf.mxu0
    %4474 = vdwg.mxu0
    %4475 = vmatprep.subr.bf16.mxu0 0
    %4476 = vmatpush1.bf16.msra.mxu0 %v4028
    %4477 = vmatprep.subr.bf16.mxu0 0
    %4478 = vmatpush1.bf16.msra.mxu0 %v4027
    %4479 = vmatprep.subr.bf16.mxu0 0
    %4480 = vmatpush1.bf16.msra.mxu0 %v4026
    %4481 = vmatprep.subr.bf16.mxu0 0
    %4482 = vmatpush1.bf16.msra.mxu0 %v4025
    %4483 = vmatprep.subr.bf16.mxu0 0
    %4484 = vmatpush1.bf16.msra.mxu0 %v4024
    %4485 = vmatprep.subr.bf16.mxu0 0
    %4486 = vmatpush1.bf16.msra.mxu0 %v4023
    %4487 = vmatprep.subr.bf16.mxu0 0
    %4488 = vmatpush1.bf16.msra.mxu0 %v4022
    %4489 = vmatprep.subr.bf16.mxu0 0
    %4490 = vmatpush1.bf16.msra.mxu0 %v4021
    %4491 = vmatprep.subr.bf16.mxu0 0
    %4492 = vmatpush2.bf16.msra.mxu0 %v4036
    %4493 = vmatprep.subr.bf16.mxu0 0
    %4494 = vmatpush2.bf16.msra.mxu0 %v4035
    %4495 = vmatprep.subr.bf16.mxu0 0
    %4496 = vmatpush2.bf16.msra.mxu0 %v4034
    %4497 = vmatprep.subr.bf16.mxu0 0
    %4498 = vmatpush2.bf16.msra.mxu0 %v4033
    %4499 = vmatprep.subr.bf16.mxu0 0
    %4500 = vmatpush2.bf16.msra.mxu0 %v4032
    %4501 = vmatprep.subr.bf16.mxu0 0
    %4502 = vmatpush2.bf16.msra.mxu0 %v4031
    %4503 = vmatprep.subr.bf16.mxu0 0
    %4504 = vmatpush2.bf16.msra.mxu0 %v4030
    %4505 = vmatprep.subr.bf16.mxu0 0
    %4506 = vmatpush2.bf16.msra.mxu0 %v4029
    %4507 = vmatprep.mubr.bf16.mxu0 %v3131
    %4508 = vmatmul.mubr.bf16.gmra.mxu0 %v3130
    %v4509 = vpop.f32.mrf.mxu0
    %v4510 = vadd.f32 %v4461, %v4509
    %v4511 = vpop.f32.mrf.mxu0
    %v4512 = vpop.f32.mrf.mxu0
    %v4513 = vadd.f32 %v4464, %v4512
    %v4514 = vpop.f32.mrf.mxu0
    %4515 = vmatprep.mubr.bf16.mxu0 %v3147
    %4516 = vmatmul.mubr.bf16.gmra.mxu0 %v3146
    %v4517 = vpop.f32.mrf.mxu0
    %v4518 = vadd.f32 %v4469, %v4517
    %v4519 = vpop.f32.mrf.mxu0
    %v4520 = vpop.f32.mrf.mxu0
    %v4521 = vadd.f32 %v4472, %v4520
    %v4522 = vpop.f32.mrf.mxu0
    %4523 = vdwg.mxu0
    %4524 = vmatprep.subr.bf16.mxu0 0
    %4525 = vmatpush1.bf16.msra.mxu0 %v4044
    %4526 = vmatprep.subr.bf16.mxu0 0
    %4527 = vmatpush1.bf16.msra.mxu0 %v4043
    %4528 = vmatprep.subr.bf16.mxu0 0
    %4529 = vmatpush1.bf16.msra.mxu0 %v4042
    %4530 = vmatprep.subr.bf16.mxu0 0
    %4531 = vmatpush1.bf16.msra.mxu0 %v4041
    %4532 = vmatprep.subr.bf16.mxu0 0
    %4533 = vmatpush1.bf16.msra.mxu0 %v4040
    %4534 = vmatprep.subr.bf16.mxu0 0
    %4535 = vmatpush1.bf16.msra.mxu0 %v4039
    %4536 = vmatprep.subr.bf16.mxu0 0
    %4537 = vmatpush1.bf16.msra.mxu0 %v4038
    %4538 = vmatprep.subr.bf16.mxu0 0
    %4539 = vmatpush1.bf16.msra.mxu0 %v4037
    %4540 = vmatprep.subr.bf16.mxu0 0
    %4541 = vmatpush2.bf16.msra.mxu0 %v4052
    %4542 = vmatprep.subr.bf16.mxu0 0
    %4543 = vmatpush2.bf16.msra.mxu0 %v4051
    %4544 = vmatprep.subr.bf16.mxu0 0
    %4545 = vmatpush2.bf16.msra.mxu0 %v4050
    %4546 = vmatprep.subr.bf16.mxu0 0
    %4547 = vmatpush2.bf16.msra.mxu0 %v4049
    %4548 = vmatprep.subr.bf16.mxu0 0
    %4549 = vmatpush2.bf16.msra.mxu0 %v4048
    %4550 = vmatprep.subr.bf16.mxu0 0
    %4551 = vmatpush2.bf16.msra.mxu0 %v4047
    %4552 = vmatprep.subr.bf16.mxu0 0
    %4553 = vmatpush2.bf16.msra.mxu0 %v4046
    %4554 = vmatprep.subr.bf16.mxu0 0
    %4555 = vmatpush2.bf16.msra.mxu0 %v4045
    %4556 = vmatprep.mubr.bf16.mxu0 %v3133
    %4557 = vmatmul.mubr.bf16.gmra.mxu0 %v3132
    %v4558 = vpop.f32.mrf.mxu0
    %v4559 = vadd.f32 %v4510, %v4558
    %v4560 = vpop.f32.mrf.mxu0
    %v4561 = vpop.f32.mrf.mxu0
    %v4562 = vadd.f32 %v4513, %v4561
    %v4563 = vpop.f32.mrf.mxu0
    %4564 = vmatprep.mubr.bf16.mxu0 %v3149
    %4565 = vmatmul.mubr.bf16.gmra.mxu0 %v3148
    %v4566 = vpop.f32.mrf.mxu0
    %v4567 = vadd.f32 %v4518, %v4566
    %v4568 = vpop.f32.mrf.mxu0
    %v4569 = vpop.f32.mrf.mxu0
    %v4570 = vadd.f32 %v4521, %v4569
    %v4571 = vpop.f32.mrf.mxu0
    %4572 = vdwg.mxu0
    %v4573 = vadd.f32 %v2342, %v4559
    %v4574 = vadd.f32 %v2343, %v4562
    %v4575 = vadd.f32 %v2344, %v4567
    %v4576 = vadd.f32 %v2345, %v4570
    %v4577 = vld [vmem:[%s53] sm:$0x1]
    %v4578 = vld [vmem:[%s55] sm:$0x1]
    %v4579 = vsel %vm422, %v4573, 0.0
    %4580 = vadd.xlane.f32.xlu0 %v4579
    %v4581 = vpop.xlane.xlu0 %4580
    %v4582 = vsel %vm422, %v4574, 0.0
    %4583 = vadd.xlane.f32.xlu0 %v4582
    %v4584 = vpop.xlane.xlu0 %4583
    %v4585 = vsel %vm422, %v4575, 0.0
    %4586 = vadd.xlane.f32.xlu0 %v4585
    %v4587 = vpop.xlane.xlu0 %4586
    %v4588 = vsel %vm422, %v4576, 0.0
    %4589 = vadd.xlane.f32.xlu0 %v4588
    %v4590 = vpop.xlane.xlu0 %4589
    %v4591 = vmul.f32 %v4581, %v2285
    %v4592 = vmul.f32 %v4584, %v2285
    %v4593 = vmul.f32 %v4587, %v2285
    %v4594 = vmul.f32 %v4590, %v2285
    %v4595 = vsub.f32 %v4573, %v4591
    %v4596 = vsub.f32 %v4574, %v4592
    %v4597 = vsub.f32 %v4575, %v4593
    %v4598 = vsub.f32 %v4576, %v4594
    %v4599 = vmul.f32 %v4595, %v4595
    %v4600 = vmul.f32 %v4596, %v4596
    %v4601 = vmul.f32 %v4597, %v4597
    %v4602 = vmul.f32 %v4598, %v4598
    %v4603 = vsel %vm422, %v4599, 0.0
    %4604 = vadd.xlane.f32.xlu0 %v4603
    %v4605 = vpop.xlane.xlu0 %4604
    %v4606 = vsel %vm422, %v4600, 0.0
    %4607 = vadd.xlane.f32.xlu0 %v4606
    %v4608 = vpop.xlane.xlu0 %4607
    %v4609 = vsel %vm422, %v4601, 0.0
    %4610 = vadd.xlane.f32.xlu0 %v4609
    %v4611 = vpop.xlane.xlu0 %4610
    %v4612 = vsel %vm422, %v4602, 0.0
    %4613 = vadd.xlane.f32.xlu0 %v4612
    %v4614 = vpop.xlane.xlu0 %4613
    %v4615 = vmul.f32 %v4605, %v2285
    %v4616 = vmul.f32 %v4608, %v2285
    %v4617 = vmul.f32 %v4611, %v2285
    %v4618 = vmul.f32 %v4614, %v2285
    %v4619 = vadd.f32 %v4615, 1e-05
    %v4620 = vadd.f32 %v4616, 1e-05
    %v4621 = vadd.f32 %v4617, 1e-05
    %v4622 = vadd.f32 %v4618, 1e-05
    %v4623 = vrsqrt.pop %v4619
    %v4624 = vrsqrt.pop %v4620
    %v4625 = vrsqrt.pop %v4621
    %v4626 = vrsqrt.pop %v4622
    %v4627 = vmul.f32 %v4595, %v4623
    %v4628 = vmul.f32 %v4596, %v4624
    %v4629 = vmul.f32 %v4597, %v4625
    %v4630 = vmul.f32 %v4598, %v4626
    %v4632 = vlaneseq
    %v4633 = vshrl.u32 %v4632, 7
    %v4634 = vsub.s32 0, %v4633
    %v4635 = vrot.slane %v4577, %v4634
    %v4637 = vmul.f32 %v4627, %v4635
    %v4638 = vmul.f32 %v4628, %v4635
    %v4639 = vmul.f32 %v4629, %v4635
    %v4640 = vmul.f32 %v4630, %v4635
    %v4642 = vlaneseq
    %v4643 = vshrl.u32 %v4642, 7
    %v4644 = vsub.s32 0, %v4643
    %v4645 = vrot.slane %v4578, %v4644
    %v4647 = vadd.f32 %v4637, %v4645
    %v4648 = vadd.f32 %v4638, %v4645
    %v4649 = vadd.f32 %v4639, %v4645
    %v4650 = vadd.f32 %v4640, %v4645
    %s4651 = scalar_lea.vmem %s25, 32
    %v4652 = vld [vmem:[%s4651] sm:$0xff]
    %v4653 = vld [vmem:[%s4651 + $0x8] sm:$0xff]
    %v4654 = vld [vmem:[%s4651 + $0x10] sm:$0xff]
    %v4655 = vld [vmem:[%s4651 + $0x18] sm:$0xff]
    %s4656 = scalar_lea.vmem %s31, 1
    %v4657 = vld [vmem:[%s4656] sm:$0x1]
    %v4659 = vlaneseq
    %v4660 = vshrl.u32 %v4659, 7
    %v4661 = vsub.s32 0, %v4660
    %v4662 = vrot.slane %v4657, %v4661
    %v4665 = vsel %vm422, %v4647, 0
    %v4668 = vsel %vm422, %v4648, 0
    %v4671 = vsel %vm422, %v4649, 0
    %v4674 = vsel %vm422, %v4650, 0
    %4676 = vmatprep.subr.mxu0 0.0
    %4677 = vmatpush1.msra.mxu0 0.0
    %4678 = vmatprep.subr.mxu0 0.0
    %4679 = vmatpush1.msra.mxu0 0.0
    %4680 = vmatprep.subr.mxu0 0.0
    %4681 = vmatpush1.msra.mxu0 0.0
    %4682 = vmatprep.subr.mxu0 0.0
    %4683 = vmatpush1.msra.mxu0 0.0
    %4684 = vmatprep.subr.mxu0 0.0
    %4685 = vmatpush1.msra.mxu0 0.0
    %4686 = vmatprep.subr.mxu0 0.0
    %4687 = vmatpush1.msra.mxu0 0.0
    %4688 = vmatprep.subr.mxu0 0.0
    %4689 = vmatpush1.msra.mxu0 0.0
    %4690 = vmatprep.subr.mxu0 0.0
    %4691 = vmatpush1.msra.mxu0 0.0
    %4692 = vmatprep.subr.mxu0 0.0
    %4693 = vmatpush1.msra.mxu0 0.0
    %4694 = vmatprep.subr.mxu0 0.0
    %4695 = vmatpush1.msra.mxu0 0.0
    %4696 = vmatprep.subr.mxu0 0.0
    %4697 = vmatpush1.msra.mxu0 0.0
    %4698 = vmatprep.subr.mxu0 0.0
    %4699 = vmatpush1.msra.mxu0 0.0
    %4700 = vmatprep.subr.mxu0 0.0
    %4701 = vmatpush1.msra.mxu0 %v4655
    %4702 = vmatprep.subr.mxu0 0.0
    %4703 = vmatpush1.msra.mxu0 %v4654
    %4704 = vmatprep.subr.mxu0 0.0
    %4705 = vmatpush1.msra.mxu0 %v4653
    %4706 = vmatprep.subr.mxu0 0.0
    %4707 = vmatpush1.msra.mxu0 %v4652
    %4708 = vmatprep.subr.mxu0 0.0
    %4709 = vmatpush2.msra.mxu0 0.0
    %4710 = vmatprep.subr.mxu0 0.0
    %4711 = vmatpush2.msra.mxu0 0.0
    %4712 = vmatprep.subr.mxu0 0.0
    %4713 = vmatpush2.msra.mxu0 0.0
    %4714 = vmatprep.subr.mxu0 0.0
    %4715 = vmatpush2.msra.mxu0 0.0
    %4716 = vmatprep.subr.mxu0 0.0
    %4717 = vmatpush2.msra.mxu0 0.0
    %4718 = vmatprep.subr.mxu0 0.0
    %4719 = vmatpush2.msra.mxu0 0.0
    %4720 = vmatprep.subr.mxu0 0.0
    %4721 = vmatpush2.msra.mxu0 0.0
    %4722 = vmatprep.subr.mxu0 0.0
    %4723 = vmatpush2.msra.mxu0 0.0
    %4724 = vmatprep.subr.mxu0 0.0
    %4725 = vmatpush2.msra.mxu0 0.0
    %4726 = vmatprep.subr.mxu0 0.0
    %4727 = vmatpush2.msra.mxu0 0.0
    %4728 = vmatprep.subr.mxu0 0.0
    %4729 = vmatpush2.msra.mxu0 0.0
    %4730 = vmatprep.subr.mxu0 0.0
    %4731 = vmatpush2.msra.mxu0 0.0
    %4732 = vmatprep.subr.mxu0 0.0
    %4733 = vmatpush2.msra.mxu0 0.0
    %4734 = vmatprep.subr.mxu0 0.0
    %4735 = vmatpush2.msra.mxu0 0.0
    %4736 = vmatprep.subr.mxu0 0.0
    %4737 = vmatpush2.msra.mxu0 0.0
    %4738 = vmatprep.subr.mxu0 0.0
    %4739 = vmatpush2.msra.mxu0 0.0
    %4740 = vmatprep.mubr.f32.mxu0 0.0
    %4741 = vmatmul.mubr.f32.gmra.mxu0 %v4665
    %v4742 = vpop.f32.mrf.mxu0
    %v4743 = vadd.f32 %v4662, %v4742
    %v4744 = vpop.f32.mrf.mxu0
    %4745 = vmatprep.mubr.f32.mxu0 0.0
    %4746 = vmatmul.mubr.f32.gmra.mxu0 %v4668
    %v4747 = vpop.f32.mrf.mxu0
    %v4748 = vadd.f32 %v4662, %v4747
    %v4749 = vpop.f32.mrf.mxu0
    %4750 = vmatprep.mubr.f32.mxu0 0.0
    %4751 = vmatmul.mubr.f32.gmra.mxu0 %v4671
    %v4752 = vpop.f32.mrf.mxu0
    %v4753 = vadd.f32 %v4662, %v4752
    %v4754 = vpop.f32.mrf.mxu0
    %4755 = vmatprep.mubr.f32.mxu0 0.0
    %4756 = vmatmul.mubr.f32.gmra.mxu0 %v4674
    %v4757 = vpop.f32.mrf.mxu0
    %v4758 = vadd.f32 %v4662, %v4757
    %v4759 = vpop.f32.mrf.mxu0
    %4760 = vdwg.mxu0
    %s4761 = scalar_lea.vmem %s27, 32
    %v4762 = vld [vmem:[%s4761] sm:$0xff]
    %v4763 = vld [vmem:[%s4761 + $0x8] sm:$0xff]
    %v4764 = vld [vmem:[%s4761 + $0x10] sm:$0xff]
    %v4765 = vld [vmem:[%s4761 + $0x18] sm:$0xff]
    %s4766 = scalar_lea.vmem %s33, 1
    %v4767 = vld [vmem:[%s4766] sm:$0x1]
    %v4769 = vlaneseq
    %v4770 = vshrl.u32 %v4769, 7
    %v4771 = vsub.s32 0, %v4770
    %v4772 = vrot.slane %v4767, %v4771
    %4774 = vmatprep.subr.mxu0 0.0
    %4775 = vmatpush1.msra.mxu0 0.0
    %4776 = vmatprep.subr.mxu0 0.0
    %4777 = vmatpush1.msra.mxu0 0.0
    %4778 = vmatprep.subr.mxu0 0.0
    %4779 = vmatpush1.msra.mxu0 0.0
    %4780 = vmatprep.subr.mxu0 0.0
    %4781 = vmatpush1.msra.mxu0 0.0
    %4782 = vmatprep.subr.mxu0 0.0
    %4783 = vmatpush1.msra.mxu0 0.0
    %4784 = vmatprep.subr.mxu0 0.0
    %4785 = vmatpush1.msra.mxu0 0.0
    %4786 = vmatprep.subr.mxu0 0.0
    %4787 = vmatpush1.msra.mxu0 0.0
    %4788 = vmatprep.subr.mxu0 0.0
    %4789 = vmatpush1.msra.mxu0 0.0
    %4790 = vmatprep.subr.mxu0 0.0
    %4791 = vmatpush1.msra.mxu0 0.0
    %4792 = vmatprep.subr.mxu0 0.0
    %4793 = vmatpush1.msra.mxu0 0.0
    %4794 = vmatprep.subr.mxu0 0.0
    %4795 = vmatpush1.msra.mxu0 0.0
    %4796 = vmatprep.subr.mxu0 0.0
    %4797 = vmatpush1.msra.mxu0 0.0
    %4798 = vmatprep.subr.mxu0 0.0
    %4799 = vmatpush1.msra.mxu0 %v4765
    %4800 = vmatprep.subr.mxu0 0.0
    %4801 = vmatpush1.msra.mxu0 %v4764
    %4802 = vmatprep.subr.mxu0 0.0
    %4803 = vmatpush1.msra.mxu0 %v4763
    %4804 = vmatprep.subr.mxu0 0.0
    %4805 = vmatpush1.msra.mxu0 %v4762
    %4806 = vmatprep.subr.mxu0 0.0
    %4807 = vmatpush2.msra.mxu0 0.0
    %4808 = vmatprep.subr.mxu0 0.0
    %4809 = vmatpush2.msra.mxu0 0.0
    %4810 = vmatprep.subr.mxu0 0.0
    %4811 = vmatpush2.msra.mxu0 0.0
    %4812 = vmatprep.subr.mxu0 0.0
    %4813 = vmatpush2.msra.mxu0 0.0
    %4814 = vmatprep.subr.mxu0 0.0
    %4815 = vmatpush2.msra.mxu0 0.0
    %4816 = vmatprep.subr.mxu0 0.0
    %4817 = vmatpush2.msra.mxu0 0.0
    %4818 = vmatprep.subr.mxu0 0.0
    %4819 = vmatpush2.msra.mxu0 0.0
    %4820 = vmatprep.subr.mxu0 0.0
    %4821 = vmatpush2.msra.mxu0 0.0
    %4822 = vmatprep.subr.mxu0 0.0
    %4823 = vmatpush2.msra.mxu0 0.0
    %4824 = vmatprep.subr.mxu0 0.0
    %4825 = vmatpush2.msra.mxu0 0.0
    %4826 = vmatprep.subr.mxu0 0.0
    %4827 = vmatpush2.msra.mxu0 0.0
    %4828 = vmatprep.subr.mxu0 0.0
    %4829 = vmatpush2.msra.mxu0 0.0
    %4830 = vmatprep.subr.mxu0 0.0
    %4831 = vmatpush2.msra.mxu0 0.0
    %4832 = vmatprep.subr.mxu0 0.0
    %4833 = vmatpush2.msra.mxu0 0.0
    %4834 = vmatprep.subr.mxu0 0.0
    %4835 = vmatpush2.msra.mxu0 0.0
    %4836 = vmatprep.subr.mxu0 0.0
    %4837 = vmatpush2.msra.mxu0 0.0
    %4838 = vmatprep.mubr.f32.mxu0 0.0
    %4839 = vmatmul.mubr.f32.gmra.mxu0 %v4665
    %v4840 = vpop.f32.mrf.mxu0
    %v4841 = vadd.f32 %v4772, %v4840
    %v4842 = vpop.f32.mrf.mxu0
    %4843 = vmatprep.mubr.f32.mxu0 0.0
    %4844 = vmatmul.mubr.f32.gmra.mxu0 %v4668
    %v4845 = vpop.f32.mrf.mxu0
    %v4846 = vadd.f32 %v4772, %v4845
    %v4847 = vpop.f32.mrf.mxu0
    %4848 = vmatprep.mubr.f32.mxu0 0.0
    %4849 = vmatmul.mubr.f32.gmra.mxu0 %v4671
    %v4850 = vpop.f32.mrf.mxu0
    %v4851 = vadd.f32 %v4772, %v4850
    %v4852 = vpop.f32.mrf.mxu0
    %4853 = vmatprep.mubr.f32.mxu0 0.0
    %4854 = vmatmul.mubr.f32.gmra.mxu0 %v4674
    %v4855 = vpop.f32.mrf.mxu0
    %v4856 = vadd.f32 %v4772, %v4855
    %v4857 = vpop.f32.mrf.mxu0
    %4858 = vdwg.mxu0
    %s4859 = scalar_lea.vmem %s29, 32
    %v4860 = vld [vmem:[%s4859] sm:$0xff]
    %v4861 = vld [vmem:[%s4859 + $0x8] sm:$0xff]
    %v4862 = vld [vmem:[%s4859 + $0x10] sm:$0xff]
    %v4863 = vld [vmem:[%s4859 + $0x18] sm:$0xff]
    %s4864 = scalar_lea.vmem %s35, 1
    %v4865 = vld [vmem:[%s4864] sm:$0x1]
    %v4867 = vlaneseq
    %v4868 = vshrl.u32 %v4867, 7
    %v4869 = vsub.s32 0, %v4868
    %v4870 = vrot.slane %v4865, %v4869
    %4872 = vmatprep.subr.mxu0 0.0
    %4873 = vmatpush1.msra.mxu0 0.0
    %4874 = vmatprep.subr.mxu0 0.0
    %4875 = vmatpush1.msra.mxu0 0.0
    %4876 = vmatprep.subr.mxu0 0.0
    %4877 = vmatpush1.msra.mxu0 0.0
    %4878 = vmatprep.subr.mxu0 0.0
    %4879 = vmatpush1.msra.mxu0 0.0
    %4880 = vmatprep.subr.mxu0 0.0
    %4881 = vmatpush1.msra.mxu0 0.0
    %4882 = vmatprep.subr.mxu0 0.0
    %4883 = vmatpush1.msra.mxu0 0.0
    %4884 = vmatprep.subr.mxu0 0.0
    %4885 = vmatpush1.msra.mxu0 0.0
    %4886 = vmatprep.subr.mxu0 0.0
    %4887 = vmatpush1.msra.mxu0 0.0
    %4888 = vmatprep.subr.mxu0 0.0
    %4889 = vmatpush1.msra.mxu0 0.0
    %4890 = vmatprep.subr.mxu0 0.0
    %4891 = vmatpush1.msra.mxu0 0.0
    %4892 = vmatprep.subr.mxu0 0.0
    %4893 = vmatpush1.msra.mxu0 0.0
    %4894 = vmatprep.subr.mxu0 0.0
    %4895 = vmatpush1.msra.mxu0 0.0
    %4896 = vmatprep.subr.mxu0 0.0
    %4897 = vmatpush1.msra.mxu0 %v4863
    %4898 = vmatprep.subr.mxu0 0.0
    %4899 = vmatpush1.msra.mxu0 %v4862
    %4900 = vmatprep.subr.mxu0 0.0
    %4901 = vmatpush1.msra.mxu0 %v4861
    %4902 = vmatprep.subr.mxu0 0.0
    %4903 = vmatpush1.msra.mxu0 %v4860
    %4904 = vmatprep.subr.mxu0 0.0
    %4905 = vmatpush2.msra.mxu0 0.0
    %4906 = vmatprep.subr.mxu0 0.0
    %4907 = vmatpush2.msra.mxu0 0.0
    %4908 = vmatprep.subr.mxu0 0.0
    %4909 = vmatpush2.msra.mxu0 0.0
    %4910 = vmatprep.subr.mxu0 0.0
    %4911 = vmatpush2.msra.mxu0 0.0
    %4912 = vmatprep.subr.mxu0 0.0
    %4913 = vmatpush2.msra.mxu0 0.0
    %4914 = vmatprep.subr.mxu0 0.0
    %4915 = vmatpush2.msra.mxu0 0.0
    %4916 = vmatprep.subr.mxu0 0.0
    %4917 = vmatpush2.msra.mxu0 0.0
    %4918 = vmatprep.subr.mxu0 0.0
    %4919 = vmatpush2.msra.mxu0 0.0
    %4920 = vmatprep.subr.mxu0 0.0
    %4921 = vmatpush2.msra.mxu0 0.0
    %4922 = vmatprep.subr.mxu0 0.0
    %4923 = vmatpush2.msra.mxu0 0.0
    %4924 = vmatprep.subr.mxu0 0.0
    %4925 = vmatpush2.msra.mxu0 0.0
    %4926 = vmatprep.subr.mxu0 0.0
    %4927 = vmatpush2.msra.mxu0 0.0
    %4928 = vmatprep.subr.mxu0 0.0
    %4929 = vmatpush2.msra.mxu0 0.0
    %4930 = vmatprep.subr.mxu0 0.0
    %4931 = vmatpush2.msra.mxu0 0.0
    %4932 = vmatprep.subr.mxu0 0.0
    %4933 = vmatpush2.msra.mxu0 0.0
    %4934 = vmatprep.subr.mxu0 0.0
    %4935 = vmatpush2.msra.mxu0 0.0
    %4936 = vmatprep.mubr.f32.mxu0 0.0
    %4937 = vmatmul.mubr.f32.gmra.mxu0 %v4665
    %v4938 = vpop.f32.mrf.mxu0
    %v4939 = vadd.f32 %v4870, %v4938
    %v4940 = vpop.f32.mrf.mxu0
    %4941 = vmatprep.mubr.f32.mxu0 0.0
    %4942 = vmatmul.mubr.f32.gmra.mxu0 %v4668
    %v4943 = vpop.f32.mrf.mxu0
    %v4944 = vadd.f32 %v4870, %v4943
    %v4945 = vpop.f32.mrf.mxu0
    %4946 = vmatprep.mubr.f32.mxu0 0.0
    %4947 = vmatmul.mubr.f32.gmra.mxu0 %v4671
    %v4948 = vpop.f32.mrf.mxu0
    %v4949 = vadd.f32 %v4870, %v4948
    %v4950 = vpop.f32.mrf.mxu0
    %4951 = vmatprep.mubr.f32.mxu0 0.0
    %4952 = vmatmul.mubr.f32.gmra.mxu0 %v4674
    %v4953 = vpop.f32.mrf.mxu0
    %v4954 = vadd.f32 %v4870, %v4953
    %v4955 = vpop.f32.mrf.mxu0
    %4956 = vdwg.mxu0
    %v4957 = vld [vmem:[%s23] sm:$0x1]
    %v4958 = vmul.f32 %v4743, %v1058
    %v4959 = vmul.f32 %v4748, %v1058
    %v4961 = vsel %vm422, %v4958, 0
    %v4964 = vsel %vm422, %v4959, 0
    %v4967 = vsel %vm422, %v4841, 0
    %v4970 = vsel %vm422, %v4846, 0
    %4972 = vmatprep.subr.mxu0 0.0
    %4973 = vmatpush1.xpose.msra.mxu0 0.0
    %4974 = vmatprep.subr.mxu0 0.0
    %4975 = vmatpush1.xpose.msra.mxu0 0.0
    %4976 = vmatprep.subr.mxu0 0.0
    %4977 = vmatpush1.xpose.msra.mxu0 0.0
    %4978 = vmatprep.subr.mxu0 0.0
    %4979 = vmatpush1.xpose.msra.mxu0 0.0
    %4980 = vmatprep.subr.mxu0 0.0
    %4981 = vmatpush1.xpose.msra.mxu0 0.0
    %4982 = vmatprep.subr.mxu0 0.0
    %4983 = vmatpush1.xpose.msra.mxu0 0.0
    %4984 = vmatprep.subr.mxu0 0.0
    %4985 = vmatpush1.xpose.msra.mxu0 0.0
    %4986 = vmatprep.subr.mxu0 0.0
    %4987 = vmatpush1.xpose.msra.mxu0 0.0
    %4988 = vmatprep.subr.mxu0 0.0
    %4989 = vmatpush1.xpose.msra.mxu0 0.0
    %4990 = vmatprep.subr.mxu0 0.0
    %4991 = vmatpush1.xpose.msra.mxu0 0.0
    %4992 = vmatprep.subr.mxu0 0.0
    %4993 = vmatpush1.xpose.msra.mxu0 0.0
    %4994 = vmatprep.subr.mxu0 0.0
    %4995 = vmatpush1.xpose.msra.mxu0 0.0
    %4996 = vmatprep.subr.mxu0 0.0
    %4997 = vmatpush1.xpose.msra.mxu0 0.0
    %4998 = vmatprep.subr.mxu0 0.0
    %4999 = vmatpush1.xpose.msra.mxu0 0.0
    %5000 = vmatprep.subr.mxu0 0.0
    %5001 = vmatpush1.xpose.msra.mxu0 %v4970
    %5002 = vmatprep.subr.mxu0 0.0
    %5003 = vmatpush1.xpose.msra.mxu0 %v4967
    %5004 = vmatprep.subr.mxu0 0.0
    %5005 = vmatpush2.xpose.msra.mxu0 0.0
    %5006 = vmatprep.subr.mxu0 0.0
    %5007 = vmatpush2.xpose.msra.mxu0 0.0
    %5008 = vmatprep.subr.mxu0 0.0
    %5009 = vmatpush2.xpose.msra.mxu0 0.0
    %5010 = vmatprep.subr.mxu0 0.0
    %5011 = vmatpush2.xpose.msra.mxu0 0.0
    %5012 = vmatprep.subr.mxu0 0.0
    %5013 = vmatpush2.xpose.msra.mxu0 0.0
    %5014 = vmatprep.subr.mxu0 0.0
    %5015 = vmatpush2.xpose.msra.mxu0 0.0
    %5016 = vmatprep.subr.mxu0 0.0
    %5017 = vmatpush2.xpose.msra.mxu0 0.0
    %5018 = vmatprep.subr.mxu0 0.0
    %5019 = vmatpush2.xpose.msra.mxu0 0.0
    %5020 = vmatprep.subr.mxu0 0.0
    %5021 = vmatpush2.xpose.msra.mxu0 0.0
    %5022 = vmatprep.subr.mxu0 0.0
    %5023 = vmatpush2.xpose.msra.mxu0 0.0
    %5024 = vmatprep.subr.mxu0 0.0
    %5025 = vmatpush2.xpose.msra.mxu0 0.0
    %5026 = vmatprep.subr.mxu0 0.0
    %5027 = vmatpush2.xpose.msra.mxu0 0.0
    %5028 = vmatprep.subr.mxu0 0.0
    %5029 = vmatpush2.xpose.msra.mxu0 0.0
    %5030 = vmatprep.subr.mxu0 0.0
    %5031 = vmatpush2.xpose.msra.mxu0 0.0
    %5032 = vmatprep.subr.mxu0 0.0
    %5033 = vmatpush2.xpose.msra.mxu0 0.0
    %5034 = vmatprep.subr.mxu0 0.0
    %5035 = vmatpush2.xpose.msra.mxu0 0.0
    %5036 = vmatprep.mubr.f32.mxu0 0.0
    %5037 = vmatmul.mubr.f32.gmra.mxu0 %v4961
    %v5038 = vpop.f32.mrf.mxu0
    %v5039 = vadd.f32 0.0, %v5038
    %v5040 = vpop.f32.mrf.mxu0
    %5041 = vmatprep.mubr.f32.mxu0 0.0
    %5042 = vmatmul.mubr.f32.gmra.mxu0 %v4964
    %v5043 = vpop.f32.mrf.mxu0
    %v5044 = vadd.f32 0.0, %v5043
    %v5045 = vpop.f32.mrf.mxu0
    %5046 = vdwg.mxu0
    %v5047 = vmul.f32 %v5039, 0.25
    %v5048 = vmul.f32 %v5044, 0.25
    %v5050 = vlaneseq
    %v5051 = vshrl.u32 %v5050, 7
    %v5052 = vsub.s32 0, %v5051
    %v5053 = vrot.slane %v4957, %v5052
    %v5055 = vadd.f32 %v5047, %v5053
    %v5056 = vadd.f32 %v5048, %v5053
    %v5057 = vsel %vm1463, %v5055, -inf
    %5058 = vmax.xlane.f32.xlu0 %v5057
    %v5059 = vpop.xlane.xlu0 %5058
    %v5060 = vsel %vm1463, %v5056, -inf
    %5061 = vmax.xlane.f32.xlu0 %v5060
    %v5062 = vpop.xlane.xlu0 %5061
    %v5063 = vsub.f32 %v5055, %v5059
    %v5064 = vsub.f32 %v5056, %v5062
    %v5065 = vmul.f32 %v5063, 1.442695
    %v5066 = vpow.pop %v5065
    %v5067 = vmul.f32 %v5064, 1.442695
    %v5068 = vpow.pop %v5067
    %v5069 = vsel %vm1463, %v5066, 0.0
    %5070 = vadd.xlane.f32.xlu0 %v5069
    %v5071 = vpop.xlane.xlu0 %5070
    %v5072 = vsel %vm1463, %v5068, 0.0
    %5073 = vadd.xlane.f32.xlu0 %v5072
    %v5074 = vpop.xlane.xlu0 %5073
    %v5075 = vrcp.pop %v5071
    %v5076 = vrcp.pop %v5074
    %v5077 = vmul.f32 %v5066, %v5075
    %v5078 = vmul.f32 %v5068, %v5076
    %v5079 = vmul.f32 %v4939, %v1058
    %v5080 = vmul.f32 %v4944, %v1058
    %v5081 = vmul.f32 %v4743, %v1062
    %v5082 = vmul.f32 %v4748, %v1062
    %v5084 = vsel %vm422, %v5081, 0
    %v5087 = vsel %vm422, %v5082, 0
    %5089 = vmatprep.subr.mxu0 0.0
    %5090 = vmatpush1.xpose.msra.mxu0 0.0
    %5091 = vmatprep.subr.mxu0 0.0
    %5092 = vmatpush1.xpose.msra.mxu0 0.0
    %5093 = vmatprep.subr.mxu0 0.0
    %5094 = vmatpush1.xpose.msra.mxu0 0.0
    %5095 = vmatprep.subr.mxu0 0.0
    %5096 = vmatpush1.xpose.msra.mxu0 0.0
    %5097 = vmatprep.subr.mxu0 0.0
    %5098 = vmatpush1.xpose.msra.mxu0 0.0
    %5099 = vmatprep.subr.mxu0 0.0
    %5100 = vmatpush1.xpose.msra.mxu0 0.0
    %5101 = vmatprep.subr.mxu0 0.0
    %5102 = vmatpush1.xpose.msra.mxu0 0.0
    %5103 = vmatprep.subr.mxu0 0.0
    %5104 = vmatpush1.xpose.msra.mxu0 0.0
    %5105 = vmatprep.subr.mxu0 0.0
    %5106 = vmatpush1.xpose.msra.mxu0 0.0
    %5107 = vmatprep.subr.mxu0 0.0
    %5108 = vmatpush1.xpose.msra.mxu0 0.0
    %5109 = vmatprep.subr.mxu0 0.0
    %5110 = vmatpush1.xpose.msra.mxu0 0.0
    %5111 = vmatprep.subr.mxu0 0.0
    %5112 = vmatpush1.xpose.msra.mxu0 0.0
    %5113 = vmatprep.subr.mxu0 0.0
    %5114 = vmatpush1.xpose.msra.mxu0 0.0
    %5115 = vmatprep.subr.mxu0 0.0
    %5116 = vmatpush1.xpose.msra.mxu0 0.0
    %5117 = vmatprep.subr.mxu0 0.0
    %5118 = vmatpush1.xpose.msra.mxu0 %v4970
    %5119 = vmatprep.subr.mxu0 0.0
    %5120 = vmatpush1.xpose.msra.mxu0 %v4967
    %5121 = vmatprep.subr.mxu0 0.0
    %5122 = vmatpush2.xpose.msra.mxu0 0.0
    %5123 = vmatprep.subr.mxu0 0.0
    %5124 = vmatpush2.xpose.msra.mxu0 0.0
    %5125 = vmatprep.subr.mxu0 0.0
    %5126 = vmatpush2.xpose.msra.mxu0 0.0
    %5127 = vmatprep.subr.mxu0 0.0
    %5128 = vmatpush2.xpose.msra.mxu0 0.0
    %5129 = vmatprep.subr.mxu0 0.0
    %5130 = vmatpush2.xpose.msra.mxu0 0.0
    %5131 = vmatprep.subr.mxu0 0.0
    %5132 = vmatpush2.xpose.msra.mxu0 0.0
    %5133 = vmatprep.subr.mxu0 0.0
    %5134 = vmatpush2.xpose.msra.mxu0 0.0
    %5135 = vmatprep.subr.mxu0 0.0
    %5136 = vmatpush2.xpose.msra.mxu0 0.0
    %5137 = vmatprep.subr.mxu0 0.0
    %5138 = vmatpush2.xpose.msra.mxu0 0.0
    %5139 = vmatprep.subr.mxu0 0.0
    %5140 = vmatpush2.xpose.msra.mxu0 0.0
    %5141 = vmatprep.subr.mxu0 0.0
    %5142 = vmatpush2.xpose.msra.mxu0 0.0
    %5143 = vmatprep.subr.mxu0 0.0
    %5144 = vmatpush2.xpose.msra.mxu0 0.0
    %5145 = vmatprep.subr.mxu0 0.0
    %5146 = vmatpush2.xpose.msra.mxu0 0.0
    %5147 = vmatprep.subr.mxu0 0.0
    %5148 = vmatpush2.xpose.msra.mxu0 0.0
    %5149 = vmatprep.subr.mxu0 0.0
    %5150 = vmatpush2.xpose.msra.mxu0 0.0
    %5151 = vmatprep.subr.mxu0 0.0
    %5152 = vmatpush2.xpose.msra.mxu0 0.0
    %5153 = vmatprep.mubr.f32.mxu0 0.0
    %5154 = vmatmul.mubr.f32.gmra.mxu0 %v5084
    %v5155 = vpop.f32.mrf.mxu0
    %v5156 = vadd.f32 0.0, %v5155
    %v5157 = vpop.f32.mrf.mxu0
    %5158 = vmatprep.mubr.f32.mxu0 0.0
    %5159 = vmatmul.mubr.f32.gmra.mxu0 %v5087
    %v5160 = vpop.f32.mrf.mxu0
    %v5161 = vadd.f32 0.0, %v5160
    %v5162 = vpop.f32.mrf.mxu0
    %5163 = vdwg.mxu0
    %v5164 = vmul.f32 %v5156, 0.25
    %v5165 = vmul.f32 %v5161, 0.25
    %v5166 = vadd.f32 %v5164, %v5053
    %v5167 = vadd.f32 %v5165, %v5053
    %v5168 = vsel %vm1463, %v5166, -inf
    %5169 = vmax.xlane.f32.xlu0 %v5168
    %v5170 = vpop.xlane.xlu0 %5169
    %v5171 = vsel %vm1463, %v5167, -inf
    %5172 = vmax.xlane.f32.xlu0 %v5171
    %v5173 = vpop.xlane.xlu0 %5172
    %v5174 = vsub.f32 %v5166, %v5170
    %v5175 = vsub.f32 %v5167, %v5173
    %v5176 = vmul.f32 %v5174, 1.442695
    %v5177 = vpow.pop %v5176
    %v5178 = vmul.f32 %v5175, 1.442695
    %v5179 = vpow.pop %v5178
    %v5180 = vsel %vm1463, %v5177, 0.0
    %5181 = vadd.xlane.f32.xlu0 %v5180
    %v5182 = vpop.xlane.xlu0 %5181
    %v5183 = vsel %vm1463, %v5179, 0.0
    %5184 = vadd.xlane.f32.xlu0 %v5183
    %v5185 = vpop.xlane.xlu0 %5184
    %v5186 = vrcp.pop %v5182
    %v5187 = vrcp.pop %v5185
    %v5188 = vmul.f32 %v5177, %v5186
    %v5189 = vmul.f32 %v5179, %v5187
    %v5190 = vmul.f32 %v4939, %v1062
    %v5191 = vmul.f32 %v4944, %v1062
    %v5193 = vsel %vm1463, %v5188, 0
    %v5196 = vsel %vm1463, %v5189, 0
    %5198 = vmatprep.subr.mxu0 0.0
    %5199 = vmatpush1.msra.mxu0 0.0
    %5200 = vmatprep.subr.mxu0 0.0
    %5201 = vmatpush1.msra.mxu0 0.0
    %5202 = vmatprep.subr.mxu0 0.0
    %5203 = vmatpush1.msra.mxu0 0.0
    %5204 = vmatprep.subr.mxu0 0.0
    %5205 = vmatpush1.msra.mxu0 0.0
    %5206 = vmatprep.subr.mxu0 0.0
    %5207 = vmatpush1.msra.mxu0 0.0
    %5208 = vmatprep.subr.mxu0 0.0
    %5209 = vmatpush1.msra.mxu0 0.0
    %5210 = vmatprep.subr.mxu0 0.0
    %5211 = vmatpush1.msra.mxu0 0.0
    %5212 = vmatprep.subr.mxu0 0.0
    %5213 = vmatpush1.msra.mxu0 0.0
    %5214 = vmatprep.subr.mxu0 0.0
    %5215 = vmatpush1.msra.mxu0 0.0
    %5216 = vmatprep.subr.mxu0 0.0
    %5217 = vmatpush1.msra.mxu0 0.0
    %5218 = vmatprep.subr.mxu0 0.0
    %5219 = vmatpush1.msra.mxu0 0.0
    %5220 = vmatprep.subr.mxu0 0.0
    %5221 = vmatpush1.msra.mxu0 0.0
    %5222 = vmatprep.subr.mxu0 0.0
    %5223 = vmatpush1.msra.mxu0 0.0
    %5224 = vmatprep.subr.mxu0 0.0
    %5225 = vmatpush1.msra.mxu0 0.0
    %5226 = vmatprep.subr.mxu0 0.0
    %5227 = vmatpush1.msra.mxu0 %v5191
    %5228 = vmatprep.subr.mxu0 0.0
    %5229 = vmatpush1.msra.mxu0 %v5190
    %5230 = vmatprep.subr.mxu0 0.0
    %5231 = vmatpush2.msra.mxu0 0.0
    %5232 = vmatprep.subr.mxu0 0.0
    %5233 = vmatpush2.msra.mxu0 0.0
    %5234 = vmatprep.subr.mxu0 0.0
    %5235 = vmatpush2.msra.mxu0 0.0
    %5236 = vmatprep.subr.mxu0 0.0
    %5237 = vmatpush2.msra.mxu0 0.0
    %5238 = vmatprep.subr.mxu0 0.0
    %5239 = vmatpush2.msra.mxu0 0.0
    %5240 = vmatprep.subr.mxu0 0.0
    %5241 = vmatpush2.msra.mxu0 0.0
    %5242 = vmatprep.subr.mxu0 0.0
    %5243 = vmatpush2.msra.mxu0 0.0
    %5244 = vmatprep.subr.mxu0 0.0
    %5245 = vmatpush2.msra.mxu0 0.0
    %5246 = vmatprep.subr.mxu0 0.0
    %5247 = vmatpush2.msra.mxu0 0.0
    %5248 = vmatprep.subr.mxu0 0.0
    %5249 = vmatpush2.msra.mxu0 0.0
    %5250 = vmatprep.subr.mxu0 0.0
    %5251 = vmatpush2.msra.mxu0 0.0
    %5252 = vmatprep.subr.mxu0 0.0
    %5253 = vmatpush2.msra.mxu0 0.0
    %5254 = vmatprep.subr.mxu0 0.0
    %5255 = vmatpush2.msra.mxu0 0.0
    %5256 = vmatprep.subr.mxu0 0.0
    %5257 = vmatpush2.msra.mxu0 0.0
    %5258 = vmatprep.subr.mxu0 0.0
    %5259 = vmatpush2.msra.mxu0 0.0
    %5260 = vmatprep.subr.mxu0 0.0
    %5261 = vmatpush2.msra.mxu0 0.0
    %5262 = vmatprep.mubr.f32.mxu0 0.0
    %5263 = vmatmul.mubr.f32.gmra.mxu0 %v5193
    %v5264 = vpop.f32.mrf.mxu0
    %v5265 = vadd.f32 0.0, %v5264
    %v5266 = vpop.f32.mrf.mxu0
    %5267 = vmatprep.mubr.f32.mxu0 0.0
    %5268 = vmatmul.mubr.f32.gmra.mxu0 %v5196
    %v5269 = vpop.f32.mrf.mxu0
    %v5270 = vadd.f32 0.0, %v5269
    %v5271 = vpop.f32.mrf.mxu0
    %5272 = vdwg.mxu0
    %v5274 = vsel %vm1463, %v5077, 0
    %v5277 = vsel %vm1463, %v5078, 0
    %5279 = vmatprep.subr.mxu0 0.0
    %5280 = vmatpush1.msra.mxu0 0.0
    %5281 = vmatprep.subr.mxu0 0.0
    %5282 = vmatpush1.msra.mxu0 0.0
    %5283 = vmatprep.subr.mxu0 0.0
    %5284 = vmatpush1.msra.mxu0 0.0
    %5285 = vmatprep.subr.mxu0 0.0
    %5286 = vmatpush1.msra.mxu0 0.0
    %5287 = vmatprep.subr.mxu0 0.0
    %5288 = vmatpush1.msra.mxu0 0.0
    %5289 = vmatprep.subr.mxu0 0.0
    %5290 = vmatpush1.msra.mxu0 0.0
    %5291 = vmatprep.subr.mxu0 0.0
    %5292 = vmatpush1.msra.mxu0 0.0
    %5293 = vmatprep.subr.mxu0 0.0
    %5294 = vmatpush1.msra.mxu0 0.0
    %5295 = vmatprep.subr.mxu0 0.0
    %5296 = vmatpush1.msra.mxu0 0.0
    %5297 = vmatprep.subr.mxu0 0.0
    %5298 = vmatpush1.msra.mxu0 0.0
    %5299 = vmatprep.subr.mxu0 0.0
    %5300 = vmatpush1.msra.mxu0 0.0
    %5301 = vmatprep.subr.mxu0 0.0
    %5302 = vmatpush1.msra.mxu0 0.0
    %5303 = vmatprep.subr.mxu0 0.0
    %5304 = vmatpush1.msra.mxu0 0.0
    %5305 = vmatprep.subr.mxu0 0.0
    %5306 = vmatpush1.msra.mxu0 0.0
    %5307 = vmatprep.subr.mxu0 0.0
    %5308 = vmatpush1.msra.mxu0 %v5080
    %5309 = vmatprep.subr.mxu0 0.0
    %5310 = vmatpush1.msra.mxu0 %v5079
    %5311 = vmatprep.subr.mxu0 0.0
    %5312 = vmatpush2.msra.mxu0 0.0
    %5313 = vmatprep.subr.mxu0 0.0
    %5314 = vmatpush2.msra.mxu0 0.0
    %5315 = vmatprep.subr.mxu0 0.0
    %5316 = vmatpush2.msra.mxu0 0.0
    %5317 = vmatprep.subr.mxu0 0.0
    %5318 = vmatpush2.msra.mxu0 0.0
    %5319 = vmatprep.subr.mxu0 0.0
    %5320 = vmatpush2.msra.mxu0 0.0
    %5321 = vmatprep.subr.mxu0 0.0
    %5322 = vmatpush2.msra.mxu0 0.0
    %5323 = vmatprep.subr.mxu0 0.0
    %5324 = vmatpush2.msra.mxu0 0.0
    %5325 = vmatprep.subr.mxu0 0.0
    %5326 = vmatpush2.msra.mxu0 0.0
    %5327 = vmatprep.subr.mxu0 0.0
    %5328 = vmatpush2.msra.mxu0 0.0
    %5329 = vmatprep.subr.mxu0 0.0
    %5330 = vmatpush2.msra.mxu0 0.0
    %5331 = vmatprep.subr.mxu0 0.0
    %5332 = vmatpush2.msra.mxu0 0.0
    %5333 = vmatprep.subr.mxu0 0.0
    %5334 = vmatpush2.msra.mxu0 0.0
    %5335 = vmatprep.subr.mxu0 0.0
    %5336 = vmatpush2.msra.mxu0 0.0
    %5337 = vmatprep.subr.mxu0 0.0
    %5338 = vmatpush2.msra.mxu0 0.0
    %5339 = vmatprep.subr.mxu0 0.0
    %5340 = vmatpush2.msra.mxu0 0.0
    %5341 = vmatprep.subr.mxu0 0.0
    %5342 = vmatpush2.msra.mxu0 0.0
    %5343 = vmatprep.mubr.f32.mxu0 0.0
    %5344 = vmatmul.mubr.f32.gmra.mxu0 %v5274
    %v5345 = vpop.f32.mrf.mxu0
    %v5346 = vadd.f32 %v5265, %v5345
    %v5347 = vpop.f32.mrf.mxu0
    %5348 = vmatprep.mubr.f32.mxu0 0.0
    %5349 = vmatmul.mubr.f32.gmra.mxu0 %v5277
    %v5350 = vpop.f32.mrf.mxu0
    %v5351 = vadd.f32 %v5270, %v5350
    %v5352 = vpop.f32.mrf.mxu0
    %5353 = vdwg.mxu0
    %v5354 = vld [vmem:[%s1761] sm:$0x1]
    %v5355 = vmul.f32 %v4753, %v1058
    %v5356 = vmul.f32 %v4758, %v1058
    %v5358 = vsel %vm422, %v5355, 0
    %v5361 = vsel %vm422, %v5356, 0
    %v5364 = vsel %vm422, %v4851, 0
    %v5367 = vsel %vm422, %v4856, 0
    %5369 = vmatprep.subr.mxu0 0.0
    %5370 = vmatpush1.xpose.msra.mxu0 0.0
    %5371 = vmatprep.subr.mxu0 0.0
    %5372 = vmatpush1.xpose.msra.mxu0 0.0
    %5373 = vmatprep.subr.mxu0 0.0
    %5374 = vmatpush1.xpose.msra.mxu0 0.0
    %5375 = vmatprep.subr.mxu0 0.0
    %5376 = vmatpush1.xpose.msra.mxu0 0.0
    %5377 = vmatprep.subr.mxu0 0.0
    %5378 = vmatpush1.xpose.msra.mxu0 0.0
    %5379 = vmatprep.subr.mxu0 0.0
    %5380 = vmatpush1.xpose.msra.mxu0 0.0
    %5381 = vmatprep.subr.mxu0 0.0
    %5382 = vmatpush1.xpose.msra.mxu0 0.0
    %5383 = vmatprep.subr.mxu0 0.0
    %5384 = vmatpush1.xpose.msra.mxu0 0.0
    %5385 = vmatprep.subr.mxu0 0.0
    %5386 = vmatpush1.xpose.msra.mxu0 0.0
    %5387 = vmatprep.subr.mxu0 0.0
    %5388 = vmatpush1.xpose.msra.mxu0 0.0
    %5389 = vmatprep.subr.mxu0 0.0
    %5390 = vmatpush1.xpose.msra.mxu0 0.0
    %5391 = vmatprep.subr.mxu0 0.0
    %5392 = vmatpush1.xpose.msra.mxu0 0.0
    %5393 = vmatprep.subr.mxu0 0.0
    %5394 = vmatpush1.xpose.msra.mxu0 0.0
    %5395 = vmatprep.subr.mxu0 0.0
    %5396 = vmatpush1.xpose.msra.mxu0 0.0
    %5397 = vmatprep.subr.mxu0 0.0
    %5398 = vmatpush1.xpose.msra.mxu0 %v5367
    %5399 = vmatprep.subr.mxu0 0.0
    %5400 = vmatpush1.xpose.msra.mxu0 %v5364
    %5401 = vmatprep.subr.mxu0 0.0
    %5402 = vmatpush2.xpose.msra.mxu0 0.0
    %5403 = vmatprep.subr.mxu0 0.0
    %5404 = vmatpush2.xpose.msra.mxu0 0.0
    %5405 = vmatprep.subr.mxu0 0.0
    %5406 = vmatpush2.xpose.msra.mxu0 0.0
    %5407 = vmatprep.subr.mxu0 0.0
    %5408 = vmatpush2.xpose.msra.mxu0 0.0
    %5409 = vmatprep.subr.mxu0 0.0
    %5410 = vmatpush2.xpose.msra.mxu0 0.0
    %5411 = vmatprep.subr.mxu0 0.0
    %5412 = vmatpush2.xpose.msra.mxu0 0.0
    %5413 = vmatprep.subr.mxu0 0.0
    %5414 = vmatpush2.xpose.msra.mxu0 0.0
    %5415 = vmatprep.subr.mxu0 0.0
    %5416 = vmatpush2.xpose.msra.mxu0 0.0
    %5417 = vmatprep.subr.mxu0 0.0
    %5418 = vmatpush2.xpose.msra.mxu0 0.0
    %5419 = vmatprep.subr.mxu0 0.0
    %5420 = vmatpush2.xpose.msra.mxu0 0.0
    %5421 = vmatprep.subr.mxu0 0.0
    %5422 = vmatpush2.xpose.msra.mxu0 0.0
    %5423 = vmatprep.subr.mxu0 0.0
    %5424 = vmatpush2.xpose.msra.mxu0 0.0
    %5425 = vmatprep.subr.mxu0 0.0
    %5426 = vmatpush2.xpose.msra.mxu0 0.0
    %5427 = vmatprep.subr.mxu0 0.0
    %5428 = vmatpush2.xpose.msra.mxu0 0.0
    %5429 = vmatprep.subr.mxu0 0.0
    %5430 = vmatpush2.xpose.msra.mxu0 0.0
    %5431 = vmatprep.subr.mxu0 0.0
    %5432 = vmatpush2.xpose.msra.mxu0 0.0
    %5433 = vmatprep.mubr.f32.mxu0 0.0
    %5434 = vmatmul.mubr.f32.gmra.mxu0 %v5358
    %v5435 = vpop.f32.mrf.mxu0
    %v5436 = vadd.f32 0.0, %v5435
    %v5437 = vpop.f32.mrf.mxu0
    %5438 = vmatprep.mubr.f32.mxu0 0.0
    %5439 = vmatmul.mubr.f32.gmra.mxu0 %v5361
    %v5440 = vpop.f32.mrf.mxu0
    %v5441 = vadd.f32 0.0, %v5440
    %v5442 = vpop.f32.mrf.mxu0
    %5443 = vdwg.mxu0
    %v5444 = vmul.f32 %v5436, 0.25
    %v5445 = vmul.f32 %v5441, 0.25
    %v5447 = vlaneseq
    %v5448 = vshrl.u32 %v5447, 7
    %v5449 = vsub.s32 0, %v5448
    %v5450 = vrot.slane %v5354, %v5449
    %v5452 = vadd.f32 %v5444, %v5450
    %v5453 = vadd.f32 %v5445, %v5450
    %v5454 = vsel %vm1463, %v5452, -inf
    %5455 = vmax.xlane.f32.xlu0 %v5454
    %v5456 = vpop.xlane.xlu0 %5455
    %v5457 = vsel %vm1463, %v5453, -inf
    %5458 = vmax.xlane.f32.xlu0 %v5457
    %v5459 = vpop.xlane.xlu0 %5458
    %v5460 = vsub.f32 %v5452, %v5456
    %v5461 = vsub.f32 %v5453, %v5459
    %v5462 = vmul.f32 %v5460, 1.442695
    %v5463 = vpow.pop %v5462
    %v5464 = vmul.f32 %v5461, 1.442695
    %v5465 = vpow.pop %v5464
    %v5466 = vsel %vm1463, %v5463, 0.0
    %5467 = vadd.xlane.f32.xlu0 %v5466
    %v5468 = vpop.xlane.xlu0 %5467
    %v5469 = vsel %vm1463, %v5465, 0.0
    %5470 = vadd.xlane.f32.xlu0 %v5469
    %v5471 = vpop.xlane.xlu0 %5470
    %v5472 = vrcp.pop %v5468
    %v5473 = vrcp.pop %v5471
    %v5474 = vmul.f32 %v5463, %v5472
    %v5475 = vmul.f32 %v5465, %v5473
    %v5476 = vmul.f32 %v4949, %v1058
    %v5477 = vmul.f32 %v4954, %v1058
    %v5478 = vmul.f32 %v4753, %v1062
    %v5479 = vmul.f32 %v4758, %v1062
    %v5481 = vsel %vm422, %v5478, 0
    %v5484 = vsel %vm422, %v5479, 0
    %5486 = vmatprep.subr.mxu0 0.0
    %5487 = vmatpush1.xpose.msra.mxu0 0.0
    %5488 = vmatprep.subr.mxu0 0.0
    %5489 = vmatpush1.xpose.msra.mxu0 0.0
    %5490 = vmatprep.subr.mxu0 0.0
    %5491 = vmatpush1.xpose.msra.mxu0 0.0
    %5492 = vmatprep.subr.mxu0 0.0
    %5493 = vmatpush1.xpose.msra.mxu0 0.0
    %5494 = vmatprep.subr.mxu0 0.0
    %5495 = vmatpush1.xpose.msra.mxu0 0.0
    %5496 = vmatprep.subr.mxu0 0.0
    %5497 = vmatpush1.xpose.msra.mxu0 0.0
    %5498 = vmatprep.subr.mxu0 0.0
    %5499 = vmatpush1.xpose.msra.mxu0 0.0
    %5500 = vmatprep.subr.mxu0 0.0
    %5501 = vmatpush1.xpose.msra.mxu0 0.0
    %5502 = vmatprep.subr.mxu0 0.0
    %5503 = vmatpush1.xpose.msra.mxu0 0.0
    %5504 = vmatprep.subr.mxu0 0.0
    %5505 = vmatpush1.xpose.msra.mxu0 0.0
    %5506 = vmatprep.subr.mxu0 0.0
    %5507 = vmatpush1.xpose.msra.mxu0 0.0
    %5508 = vmatprep.subr.mxu0 0.0
    %5509 = vmatpush1.xpose.msra.mxu0 0.0
    %5510 = vmatprep.subr.mxu0 0.0
    %5511 = vmatpush1.xpose.msra.mxu0 0.0
    %5512 = vmatprep.subr.mxu0 0.0
    %5513 = vmatpush1.xpose.msra.mxu0 0.0
    %5514 = vmatprep.subr.mxu0 0.0
    %5515 = vmatpush1.xpose.msra.mxu0 %v5367
    %5516 = vmatprep.subr.mxu0 0.0
    %5517 = vmatpush1.xpose.msra.mxu0 %v5364
    %5518 = vmatprep.subr.mxu0 0.0
    %5519 = vmatpush2.xpose.msra.mxu0 0.0
    %5520 = vmatprep.subr.mxu0 0.0
    %5521 = vmatpush2.xpose.msra.mxu0 0.0
    %5522 = vmatprep.subr.mxu0 0.0
    %5523 = vmatpush2.xpose.msra.mxu0 0.0
    %5524 = vmatprep.subr.mxu0 0.0
    %5525 = vmatpush2.xpose.msra.mxu0 0.0
    %5526 = vmatprep.subr.mxu0 0.0
    %5527 = vmatpush2.xpose.msra.mxu0 0.0
    %5528 = vmatprep.subr.mxu0 0.0
    %5529 = vmatpush2.xpose.msra.mxu0 0.0
    %5530 = vmatprep.subr.mxu0 0.0
    %5531 = vmatpush2.xpose.msra.mxu0 0.0
    %5532 = vmatprep.subr.mxu0 0.0
    %5533 = vmatpush2.xpose.msra.mxu0 0.0
    %5534 = vmatprep.subr.mxu0 0.0
    %5535 = vmatpush2.xpose.msra.mxu0 0.0
    %5536 = vmatprep.subr.mxu0 0.0
    %5537 = vmatpush2.xpose.msra.mxu0 0.0
    %5538 = vmatprep.subr.mxu0 0.0
    %5539 = vmatpush2.xpose.msra.mxu0 0.0
    %5540 = vmatprep.subr.mxu0 0.0
    %5541 = vmatpush2.xpose.msra.mxu0 0.0
    %5542 = vmatprep.subr.mxu0 0.0
    %5543 = vmatpush2.xpose.msra.mxu0 0.0
    %5544 = vmatprep.subr.mxu0 0.0
    %5545 = vmatpush2.xpose.msra.mxu0 0.0
    %5546 = vmatprep.subr.mxu0 0.0
    %5547 = vmatpush2.xpose.msra.mxu0 0.0
    %5548 = vmatprep.subr.mxu0 0.0
    %5549 = vmatpush2.xpose.msra.mxu0 0.0
    %5550 = vmatprep.mubr.f32.mxu0 0.0
    %5551 = vmatmul.mubr.f32.gmra.mxu0 %v5481
    %v5552 = vpop.f32.mrf.mxu0
    %v5553 = vadd.f32 0.0, %v5552
    %v5554 = vpop.f32.mrf.mxu0
    %5555 = vmatprep.mubr.f32.mxu0 0.0
    %5556 = vmatmul.mubr.f32.gmra.mxu0 %v5484
    %v5557 = vpop.f32.mrf.mxu0
    %v5558 = vadd.f32 0.0, %v5557
    %v5559 = vpop.f32.mrf.mxu0
    %5560 = vdwg.mxu0
    %v5561 = vmul.f32 %v5553, 0.25
    %v5562 = vmul.f32 %v5558, 0.25
    %v5563 = vadd.f32 %v5561, %v5450
    %v5564 = vadd.f32 %v5562, %v5450
    %v5565 = vsel %vm1463, %v5563, -inf
    %5566 = vmax.xlane.f32.xlu0 %v5565
    %v5567 = vpop.xlane.xlu0 %5566
    %v5568 = vsel %vm1463, %v5564, -inf
    %5569 = vmax.xlane.f32.xlu0 %v5568
    %v5570 = vpop.xlane.xlu0 %5569
    %v5571 = vsub.f32 %v5563, %v5567
    %v5572 = vsub.f32 %v5564, %v5570
    %v5573 = vmul.f32 %v5571, 1.442695
    %v5574 = vpow.pop %v5573
    %v5575 = vmul.f32 %v5572, 1.442695
    %v5576 = vpow.pop %v5575
    %v5577 = vsel %vm1463, %v5574, 0.0
    %5578 = vadd.xlane.f32.xlu0 %v5577
    %v5579 = vpop.xlane.xlu0 %5578
    %v5580 = vsel %vm1463, %v5576, 0.0
    %5581 = vadd.xlane.f32.xlu0 %v5580
    %v5582 = vpop.xlane.xlu0 %5581
    %v5583 = vrcp.pop %v5579
    %v5584 = vrcp.pop %v5582
    %v5585 = vmul.f32 %v5574, %v5583
    %v5586 = vmul.f32 %v5576, %v5584
    %v5587 = vmul.f32 %v4949, %v1062
    %v5588 = vmul.f32 %v4954, %v1062
    %v5590 = vsel %vm1463, %v5585, 0
    %v5593 = vsel %vm1463, %v5586, 0
    %5595 = vmatprep.subr.mxu0 0.0
    %5596 = vmatpush1.msra.mxu0 0.0
    %5597 = vmatprep.subr.mxu0 0.0
    %5598 = vmatpush1.msra.mxu0 0.0
    %5599 = vmatprep.subr.mxu0 0.0
    %5600 = vmatpush1.msra.mxu0 0.0
    %5601 = vmatprep.subr.mxu0 0.0
    %5602 = vmatpush1.msra.mxu0 0.0
    %5603 = vmatprep.subr.mxu0 0.0
    %5604 = vmatpush1.msra.mxu0 0.0
    %5605 = vmatprep.subr.mxu0 0.0
    %5606 = vmatpush1.msra.mxu0 0.0
    %5607 = vmatprep.subr.mxu0 0.0
    %5608 = vmatpush1.msra.mxu0 0.0
    %5609 = vmatprep.subr.mxu0 0.0
    %5610 = vmatpush1.msra.mxu0 0.0
    %5611 = vmatprep.subr.mxu0 0.0
    %5612 = vmatpush1.msra.mxu0 0.0
    %5613 = vmatprep.subr.mxu0 0.0
    %5614 = vmatpush1.msra.mxu0 0.0
    %5615 = vmatprep.subr.mxu0 0.0
    %5616 = vmatpush1.msra.mxu0 0.0
    %5617 = vmatprep.subr.mxu0 0.0
    %5618 = vmatpush1.msra.mxu0 0.0
    %5619 = vmatprep.subr.mxu0 0.0
    %5620 = vmatpush1.msra.mxu0 0.0
    %5621 = vmatprep.subr.mxu0 0.0
    %5622 = vmatpush1.msra.mxu0 0.0
    %5623 = vmatprep.subr.mxu0 0.0
    %5624 = vmatpush1.msra.mxu0 %v5588
    %5625 = vmatprep.subr.mxu0 0.0
    %5626 = vmatpush1.msra.mxu0 %v5587
    %5627 = vmatprep.subr.mxu0 0.0
    %5628 = vmatpush2.msra.mxu0 0.0
    %5629 = vmatprep.subr.mxu0 0.0
    %5630 = vmatpush2.msra.mxu0 0.0
    %5631 = vmatprep.subr.mxu0 0.0
    %5632 = vmatpush2.msra.mxu0 0.0
    %5633 = vmatprep.subr.mxu0 0.0
    %5634 = vmatpush2.msra.mxu0 0.0
    %5635 = vmatprep.subr.mxu0 0.0
    %5636 = vmatpush2.msra.mxu0 0.0
    %5637 = vmatprep.subr.mxu0 0.0
    %5638 = vmatpush2.msra.mxu0 0.0
    %5639 = vmatprep.subr.mxu0 0.0
    %5640 = vmatpush2.msra.mxu0 0.0
    %5641 = vmatprep.subr.mxu0 0.0
    %5642 = vmatpush2.msra.mxu0 0.0
    %5643 = vmatprep.subr.mxu0 0.0
    %5644 = vmatpush2.msra.mxu0 0.0
    %5645 = vmatprep.subr.mxu0 0.0
    %5646 = vmatpush2.msra.mxu0 0.0
    %5647 = vmatprep.subr.mxu0 0.0
    %5648 = vmatpush2.msra.mxu0 0.0
    %5649 = vmatprep.subr.mxu0 0.0
    %5650 = vmatpush2.msra.mxu0 0.0
    %5651 = vmatprep.subr.mxu0 0.0
    %5652 = vmatpush2.msra.mxu0 0.0
    %5653 = vmatprep.subr.mxu0 0.0
    %5654 = vmatpush2.msra.mxu0 0.0
    %5655 = vmatprep.subr.mxu0 0.0
    %5656 = vmatpush2.msra.mxu0 0.0
    %5657 = vmatprep.subr.mxu0 0.0
    %5658 = vmatpush2.msra.mxu0 0.0
    %5659 = vmatprep.mubr.f32.mxu0 0.0
    %5660 = vmatmul.mubr.f32.gmra.mxu0 %v5590
    %v5661 = vpop.f32.mrf.mxu0
    %v5662 = vadd.f32 0.0, %v5661
    %v5663 = vpop.f32.mrf.mxu0
    %5664 = vmatprep.mubr.f32.mxu0 0.0
    %5665 = vmatmul.mubr.f32.gmra.mxu0 %v5593
    %v5666 = vpop.f32.mrf.mxu0
    %v5667 = vadd.f32 0.0, %v5666
    %v5668 = vpop.f32.mrf.mxu0
    %5669 = vdwg.mxu0
    %v5671 = vsel %vm1463, %v5474, 0
    %v5674 = vsel %vm1463, %v5475, 0
    %5676 = vmatprep.subr.mxu0 0.0
    %5677 = vmatpush1.msra.mxu0 0.0
    %5678 = vmatprep.subr.mxu0 0.0
    %5679 = vmatpush1.msra.mxu0 0.0
    %5680 = vmatprep.subr.mxu0 0.0
    %5681 = vmatpush1.msra.mxu0 0.0
    %5682 = vmatprep.subr.mxu0 0.0
    %5683 = vmatpush1.msra.mxu0 0.0
    %5684 = vmatprep.subr.mxu0 0.0
    %5685 = vmatpush1.msra.mxu0 0.0
    %5686 = vmatprep.subr.mxu0 0.0
    %5687 = vmatpush1.msra.mxu0 0.0
    %5688 = vmatprep.subr.mxu0 0.0
    %5689 = vmatpush1.msra.mxu0 0.0
    %5690 = vmatprep.subr.mxu0 0.0
    %5691 = vmatpush1.msra.mxu0 0.0
    %5692 = vmatprep.subr.mxu0 0.0
    %5693 = vmatpush1.msra.mxu0 0.0
    %5694 = vmatprep.subr.mxu0 0.0
    %5695 = vmatpush1.msra.mxu0 0.0
    %5696 = vmatprep.subr.mxu0 0.0
    %5697 = vmatpush1.msra.mxu0 0.0
    %5698 = vmatprep.subr.mxu0 0.0
    %5699 = vmatpush1.msra.mxu0 0.0
    %5700 = vmatprep.subr.mxu0 0.0
    %5701 = vmatpush1.msra.mxu0 0.0
    %5702 = vmatprep.subr.mxu0 0.0
    %5703 = vmatpush1.msra.mxu0 0.0
    %5704 = vmatprep.subr.mxu0 0.0
    %5705 = vmatpush1.msra.mxu0 %v5477
    %5706 = vmatprep.subr.mxu0 0.0
    %5707 = vmatpush1.msra.mxu0 %v5476
    %5708 = vmatprep.subr.mxu0 0.0
    %5709 = vmatpush2.msra.mxu0 0.0
    %5710 = vmatprep.subr.mxu0 0.0
    %5711 = vmatpush2.msra.mxu0 0.0
    %5712 = vmatprep.subr.mxu0 0.0
    %5713 = vmatpush2.msra.mxu0 0.0
    %5714 = vmatprep.subr.mxu0 0.0
    %5715 = vmatpush2.msra.mxu0 0.0
    %5716 = vmatprep.subr.mxu0 0.0
    %5717 = vmatpush2.msra.mxu0 0.0
    %5718 = vmatprep.subr.mxu0 0.0
    %5719 = vmatpush2.msra.mxu0 0.0
    %5720 = vmatprep.subr.mxu0 0.0
    %5721 = vmatpush2.msra.mxu0 0.0
    %5722 = vmatprep.subr.mxu0 0.0
    %5723 = vmatpush2.msra.mxu0 0.0
    %5724 = vmatprep.subr.mxu0 0.0
    %5725 = vmatpush2.msra.mxu0 0.0
    %5726 = vmatprep.subr.mxu0 0.0
    %5727 = vmatpush2.msra.mxu0 0.0
    %5728 = vmatprep.subr.mxu0 0.0
    %5729 = vmatpush2.msra.mxu0 0.0
    %5730 = vmatprep.subr.mxu0 0.0
    %5731 = vmatpush2.msra.mxu0 0.0
    %5732 = vmatprep.subr.mxu0 0.0
    %5733 = vmatpush2.msra.mxu0 0.0
    %5734 = vmatprep.subr.mxu0 0.0
    %5735 = vmatpush2.msra.mxu0 0.0
    %5736 = vmatprep.subr.mxu0 0.0
    %5737 = vmatpush2.msra.mxu0 0.0
    %5738 = vmatprep.subr.mxu0 0.0
    %5739 = vmatpush2.msra.mxu0 0.0
    %5740 = vmatprep.mubr.f32.mxu0 0.0
    %5741 = vmatmul.mubr.f32.gmra.mxu0 %v5671
    %v5742 = vpop.f32.mrf.mxu0
    %v5743 = vadd.f32 %v5662, %v5742
    %v5744 = vpop.f32.mrf.mxu0
    %5745 = vmatprep.mubr.f32.mxu0 0.0
    %5746 = vmatmul.mubr.f32.gmra.mxu0 %v5674
    %v5747 = vpop.f32.mrf.mxu0
    %v5748 = vadd.f32 %v5667, %v5747
    %v5749 = vpop.f32.mrf.mxu0
    %5750 = vdwg.mxu0
    %s5751 = scalar_lea.vmem %s37, 32
    %v5752 = vld [vmem:[%s5751] sm:$0xff]
    %v5753 = vld [vmem:[%s5751 + $0x8] sm:$0xff]
    %v5754 = vld [vmem:[%s5751 + $0x10] sm:$0xff]
    %v5755 = vld [vmem:[%s5751 + $0x18] sm:$0xff]
    %s5756 = scalar_lea.vmem %s39, 1
    %v5757 = vld [vmem:[%s5756] sm:$0x1]
    %v5759 = vlaneseq
    %v5760 = vshrl.u32 %v5759, 7
    %v5761 = vsub.s32 0, %v5760
    %v5762 = vrot.slane %v5757, %v5761
    %v5765 = vsel %vm422, %v5346, 0
    %v5768 = vsel %vm422, %v5351, 0
    %v5771 = vsel %vm422, %v5743, 0
    %v5774 = vsel %vm422, %v5748, 0
    %5776 = vmatprep.subr.mxu0 0.0
    %5777 = vmatpush1.msra.mxu0 0.0
    %5778 = vmatprep.subr.mxu0 0.0
    %5779 = vmatpush1.msra.mxu0 0.0
    %5780 = vmatprep.subr.mxu0 0.0
    %5781 = vmatpush1.msra.mxu0 0.0
    %5782 = vmatprep.subr.mxu0 0.0
    %5783 = vmatpush1.msra.mxu0 0.0
    %5784 = vmatprep.subr.mxu0 0.0
    %5785 = vmatpush1.msra.mxu0 0.0
    %5786 = vmatprep.subr.mxu0 0.0
    %5787 = vmatpush1.msra.mxu0 0.0
    %5788 = vmatprep.subr.mxu0 0.0
    %5789 = vmatpush1.msra.mxu0 0.0
    %5790 = vmatprep.subr.mxu0 0.0
    %5791 = vmatpush1.msra.mxu0 0.0
    %5792 = vmatprep.subr.mxu0 0.0
    %5793 = vmatpush1.msra.mxu0 0.0
    %5794 = vmatprep.subr.mxu0 0.0
    %5795 = vmatpush1.msra.mxu0 0.0
    %5796 = vmatprep.subr.mxu0 0.0
    %5797 = vmatpush1.msra.mxu0 0.0
    %5798 = vmatprep.subr.mxu0 0.0
    %5799 = vmatpush1.msra.mxu0 0.0
    %5800 = vmatprep.subr.mxu0 0.0
    %5801 = vmatpush1.msra.mxu0 %v5755
    %5802 = vmatprep.subr.mxu0 0.0
    %5803 = vmatpush1.msra.mxu0 %v5754
    %5804 = vmatprep.subr.mxu0 0.0
    %5805 = vmatpush1.msra.mxu0 %v5753
    %5806 = vmatprep.subr.mxu0 0.0
    %5807 = vmatpush1.msra.mxu0 %v5752
    %5808 = vmatprep.subr.mxu0 0.0
    %5809 = vmatpush2.msra.mxu0 0.0
    %5810 = vmatprep.subr.mxu0 0.0
    %5811 = vmatpush2.msra.mxu0 0.0
    %5812 = vmatprep.subr.mxu0 0.0
    %5813 = vmatpush2.msra.mxu0 0.0
    %5814 = vmatprep.subr.mxu0 0.0
    %5815 = vmatpush2.msra.mxu0 0.0
    %5816 = vmatprep.subr.mxu0 0.0
    %5817 = vmatpush2.msra.mxu0 0.0
    %5818 = vmatprep.subr.mxu0 0.0
    %5819 = vmatpush2.msra.mxu0 0.0
    %5820 = vmatprep.subr.mxu0 0.0
    %5821 = vmatpush2.msra.mxu0 0.0
    %5822 = vmatprep.subr.mxu0 0.0
    %5823 = vmatpush2.msra.mxu0 0.0
    %5824 = vmatprep.subr.mxu0 0.0
    %5825 = vmatpush2.msra.mxu0 0.0
    %5826 = vmatprep.subr.mxu0 0.0
    %5827 = vmatpush2.msra.mxu0 0.0
    %5828 = vmatprep.subr.mxu0 0.0
    %5829 = vmatpush2.msra.mxu0 0.0
    %5830 = vmatprep.subr.mxu0 0.0
    %5831 = vmatpush2.msra.mxu0 0.0
    %5832 = vmatprep.subr.mxu0 0.0
    %5833 = vmatpush2.msra.mxu0 0.0
    %5834 = vmatprep.subr.mxu0 0.0
    %5835 = vmatpush2.msra.mxu0 0.0
    %5836 = vmatprep.subr.mxu0 0.0
    %5837 = vmatpush2.msra.mxu0 0.0
    %5838 = vmatprep.subr.mxu0 0.0
    %5839 = vmatpush2.msra.mxu0 0.0
    %5840 = vmatprep.mubr.f32.mxu0 0.0
    %5841 = vmatmul.mubr.f32.gmra.mxu0 %v5765
    %v5842 = vpop.f32.mrf.mxu0
    %v5843 = vadd.f32 %v5762, %v5842
    %v5844 = vpop.f32.mrf.mxu0
    %5845 = vmatprep.mubr.f32.mxu0 0.0
    %5846 = vmatmul.mubr.f32.gmra.mxu0 %v5768
    %v5847 = vpop.f32.mrf.mxu0
    %v5848 = vadd.f32 %v5762, %v5847
    %v5849 = vpop.f32.mrf.mxu0
    %5850 = vmatprep.mubr.f32.mxu0 0.0
    %5851 = vmatmul.mubr.f32.gmra.mxu0 %v5771
    %v5852 = vpop.f32.mrf.mxu0
    %v5853 = vadd.f32 %v5762, %v5852
    %v5854 = vpop.f32.mrf.mxu0
    %5855 = vmatprep.mubr.f32.mxu0 0.0
    %5856 = vmatmul.mubr.f32.gmra.mxu0 %v5774
    %v5857 = vpop.f32.mrf.mxu0
    %v5858 = vadd.f32 %v5762, %v5857
    %v5859 = vpop.f32.mrf.mxu0
    %5860 = vdwg.mxu0
    %v5861 = vadd.f32 %v4647, %v5843
    %v5862 = vadd.f32 %v4648, %v5848
    %v5863 = vadd.f32 %v4649, %v5853
    %v5864 = vadd.f32 %v4650, %v5858
    %s5865 = scalar_lea.vmem %s41, 1
    %v5866 = vld [vmem:[%s5865] sm:$0x1]
    %s5867 = scalar_lea.vmem %s43, 1
    %v5868 = vld [vmem:[%s5867] sm:$0x1]
    %v5869 = vsel %vm422, %v5861, 0.0
    %5870 = vadd.xlane.f32.xlu0 %v5869
    %v5871 = vpop.xlane.xlu0 %5870
    %v5872 = vsel %vm422, %v5862, 0.0
    %5873 = vadd.xlane.f32.xlu0 %v5872
    %v5874 = vpop.xlane.xlu0 %5873
    %v5875 = vsel %vm422, %v5863, 0.0
    %5876 = vadd.xlane.f32.xlu0 %v5875
    %v5877 = vpop.xlane.xlu0 %5876
    %v5878 = vsel %vm422, %v5864, 0.0
    %5879 = vadd.xlane.f32.xlu0 %v5878
    %v5880 = vpop.xlane.xlu0 %5879
    %v5881 = vmul.f32 %v5871, %v2285
    %v5882 = vmul.f32 %v5874, %v2285
    %v5883 = vmul.f32 %v5877, %v2285
    %v5884 = vmul.f32 %v5880, %v2285
    %v5885 = vsub.f32 %v5861, %v5881
    %v5886 = vsub.f32 %v5862, %v5882
    %v5887 = vsub.f32 %v5863, %v5883
    %v5888 = vsub.f32 %v5864, %v5884
    %v5889 = vmul.f32 %v5885, %v5885
    %v5890 = vmul.f32 %v5886, %v5886
    %v5891 = vmul.f32 %v5887, %v5887
    %v5892 = vmul.f32 %v5888, %v5888
    %v5893 = vsel %vm422, %v5889, 0.0
    %5894 = vadd.xlane.f32.xlu0 %v5893
    %v5895 = vpop.xlane.xlu0 %5894
    %v5896 = vsel %vm422, %v5890, 0.0
    %5897 = vadd.xlane.f32.xlu0 %v5896
    %v5898 = vpop.xlane.xlu0 %5897
    %v5899 = vsel %vm422, %v5891, 0.0
    %5900 = vadd.xlane.f32.xlu0 %v5899
    %v5901 = vpop.xlane.xlu0 %5900
    %v5902 = vsel %vm422, %v5892, 0.0
    %5903 = vadd.xlane.f32.xlu0 %v5902
    %v5904 = vpop.xlane.xlu0 %5903
    %v5905 = vmul.f32 %v5895, %v2285
    %v5906 = vmul.f32 %v5898, %v2285
    %v5907 = vmul.f32 %v5901, %v2285
    %v5908 = vmul.f32 %v5904, %v2285
    %v5909 = vadd.f32 %v5905, 1e-05
    %v5910 = vadd.f32 %v5906, 1e-05
    %v5911 = vadd.f32 %v5907, 1e-05
    %v5912 = vadd.f32 %v5908, 1e-05
    %v5913 = vrsqrt.pop %v5909
    %v5914 = vrsqrt.pop %v5910
    %v5915 = vrsqrt.pop %v5911
    %v5916 = vrsqrt.pop %v5912
    %v5917 = vmul.f32 %v5885, %v5913
    %v5918 = vmul.f32 %v5886, %v5914
    %v5919 = vmul.f32 %v5887, %v5915
    %v5920 = vmul.f32 %v5888, %v5916
    %v5922 = vlaneseq
    %v5923 = vshrl.u32 %v5922, 7
    %v5924 = vsub.s32 0, %v5923
    %v5925 = vrot.slane %v5866, %v5924
    %v5927 = vmul.f32 %v5917, %v5925
    %v5928 = vmul.f32 %v5918, %v5925
    %v5929 = vmul.f32 %v5919, %v5925
    %v5930 = vmul.f32 %v5920, %v5925
    %v5932 = vlaneseq
    %v5933 = vshrl.u32 %v5932, 7
    %v5934 = vsub.s32 0, %v5933
    %v5935 = vrot.slane %v5868, %v5934
    %v5937 = vadd.f32 %v5927, %v5935
    %v5938 = vadd.f32 %v5928, %v5935
    %v5939 = vadd.f32 %v5929, %v5935
    %v5940 = vadd.f32 %v5930, %v5935
    %v5941 = vpack.c.bf16 %v5938, %v5937
    %v5942 = vpack.c.bf16 %v5940, %v5939
    %s5943 = scalar_lea.vmem %s45, 256
    %v5944 = vld [vmem:[%s5943] sm:$0xff]
    %v5945 = vld [vmem:[%s5943 + $0x8] sm:$0xff]
    %v5946 = vld [vmem:[%s5943 + $0x10] sm:$0xff]
    %v5947 = vld [vmem:[%s5943 + $0x18] sm:$0xff]
    %v5948 = vld [vmem:[%s5943 + $0x20] sm:$0xff]
    %v5949 = vld [vmem:[%s5943 + $0x28] sm:$0xff]
    %v5950 = vld [vmem:[%s5943 + $0x30] sm:$0xff]
    %v5951 = vld [vmem:[%s5943 + $0x38] sm:$0xff]
    %v5952 = vld [vmem:[%s5943 + $0x40] sm:$0xff]
    %v5953 = vld [vmem:[%s5943 + $0x48] sm:$0xff]
    %v5954 = vld [vmem:[%s5943 + $0x50] sm:$0xff]
    %v5955 = vld [vmem:[%s5943 + $0x58] sm:$0xff]
    %v5956 = vld [vmem:[%s5943 + $0x60] sm:$0xff]
    %v5957 = vld [vmem:[%s5943 + $0x68] sm:$0xff]
    %v5958 = vld [vmem:[%s5943 + $0x70] sm:$0xff]
    %v5959 = vld [vmem:[%s5943 + $0x78] sm:$0xff]
    %v5960 = vld [vmem:[%s5943 + $0x80] sm:$0xff]
    %v5961 = vld [vmem:[%s5943 + $0x88] sm:$0xff]
    %v5962 = vld [vmem:[%s5943 + $0x90] sm:$0xff]
    %v5963 = vld [vmem:[%s5943 + $0x98] sm:$0xff]
    %v5964 = vld [vmem:[%s5943 + $0xa0] sm:$0xff]
    %v5965 = vld [vmem:[%s5943 + $0xa8] sm:$0xff]
    %v5966 = vld [vmem:[%s5943 + $0xb0] sm:$0xff]
    %v5967 = vld [vmem:[%s5943 + $0xb8] sm:$0xff]
    %v5968 = vld [vmem:[%s5943 + $0xc0] sm:$0xff]
    %v5969 = vld [vmem:[%s5943 + $0xc8] sm:$0xff]
    %v5970 = vld [vmem:[%s5943 + $0xd0] sm:$0xff]
    %v5971 = vld [vmem:[%s5943 + $0xd8] sm:$0xff]
    %v5972 = vld [vmem:[%s5943 + $0xe0] sm:$0xff]
    %v5973 = vld [vmem:[%s5943 + $0xe8] sm:$0xff]
    %v5974 = vld [vmem:[%s5943 + $0xf0] sm:$0xff]
    %v5975 = vld [vmem:[%s5943 + $0xf8] sm:$0xff]
    %s5976 = scalar_lea.vmem %s47, 16
    %v5977 = vld [vmem:[%s5976] sm:$0xff]
    %v5978 = vld [vmem:[%s5976 + $0x8] sm:$0xff]
    %v5981 = vlaneseq
    %v5982 = vshrl.u32 %v5981, 7
    %v5983 = vsub.s32 0, %v5982
    %v5984 = vrot.slane %v5977, %v5983
    %v5985 = vlaneseq
    %v5986 = vshrl.u32 %v5985, 7
    %v5987 = vsub.s32 1, %v5986
    %v5988 = vrot.slane %v5977, %v5987
    %v5989 = vlaneseq
    %v5990 = vshrl.u32 %v5989, 7
    %v5991 = vsub.s32 2, %v5990
    %v5992 = vrot.slane %v5977, %v5991
    %v5993 = vlaneseq
    %v5994 = vshrl.u32 %v5993, 7
    %v5995 = vsub.s32 3, %v5994
    %v5996 = vrot.slane %v5977, %v5995
    %v5997 = vlaneseq
    %v5998 = vshrl.u32 %v5997, 7
    %v5999 = vsub.s32 4, %v5998
    %v6000 = vrot.slane %v5977, %v5999
    %v6001 = vlaneseq
    %v6002 = vshrl.u32 %v6001, 7
    %v6003 = vsub.s32 5, %v6002
    %v6004 = vrot.slane %v5977, %v6003
    %v6005 = vlaneseq
    %v6006 = vshrl.u32 %v6005, 7
    %v6007 = vsub.s32 6, %v6006
    %v6008 = vrot.slane %v5977, %v6007
    %v6009 = vlaneseq
    %v6010 = vshrl.u32 %v6009, 7
    %v6011 = vsub.s32 7, %v6010
    %v6012 = vrot.slane %v5977, %v6011
    %v6013 = vlaneseq
    %v6014 = vshrl.u32 %v6013, 7
    %v6015 = vsub.s32 0, %v6014
    %v6016 = vrot.slane %v5978, %v6015
    %v6017 = vlaneseq
    %v6018 = vshrl.u32 %v6017, 7
    %v6019 = vsub.s32 1, %v6018
    %v6020 = vrot.slane %v5978, %v6019
    %v6021 = vlaneseq
    %v6022 = vshrl.u32 %v6021, 7
    %v6023 = vsub.s32 2, %v6022
    %v6024 = vrot.slane %v5978, %v6023
    %v6025 = vlaneseq
    %v6026 = vshrl.u32 %v6025, 7
    %v6027 = vsub.s32 3, %v6026
    %v6028 = vrot.slane %v5978, %v6027
    %v6029 = vlaneseq
    %v6030 = vshrl.u32 %v6029, 7
    %v6031 = vsub.s32 4, %v6030
    %v6032 = vrot.slane %v5978, %v6031
    %v6033 = vlaneseq
    %v6034 = vshrl.u32 %v6033, 7
    %v6035 = vsub.s32 5, %v6034
    %v6036 = vrot.slane %v5978, %v6035
    %v6037 = vlaneseq
    %v6038 = vshrl.u32 %v6037, 7
    %v6039 = vsub.s32 6, %v6038
    %v6040 = vrot.slane %v5978, %v6039
    %v6041 = vlaneseq
    %v6042 = vshrl.u32 %v6041, 7
    %v6043 = vsub.s32 7, %v6042
    %v6044 = vrot.slane %v5978, %v6043
    %v6093 = vunpack.c.l.b16 %v5944
    %v6094 = vunpack.c.h.b16 %v5944
    %v6095 = vunpack.c.l.b16 %v5945
    %v6096 = vunpack.c.h.b16 %v5945
    %v6097 = vunpack.c.l.b16 %v5946
    %v6098 = vunpack.c.h.b16 %v5946
    %v6099 = vunpack.c.l.b16 %v5947
    %v6100 = vunpack.c.h.b16 %v5947
    %v6101 = vunpack.c.l.b16 %v5948
    %v6102 = vunpack.c.h.b16 %v5948
    %v6103 = vunpack.c.l.b16 %v5949
    %v6104 = vunpack.c.h.b16 %v5949
    %v6105 = vunpack.c.l.b16 %v5950
    %v6106 = vunpack.c.h.b16 %v5950
    %v6107 = vunpack.c.l.b16 %v5951
    %v6108 = vunpack.c.h.b16 %v5951
    %v6109 = vunpack.c.l.b16 %v5952
    %v6110 = vunpack.c.h.b16 %v5952
    %v6111 = vunpack.c.l.b16 %v5953
    %v6112 = vunpack.c.h.b16 %v5953
    %v6113 = vunpack.c.l.b16 %v5954
    %v6114 = vunpack.c.h.b16 %v5954
    %v6115 = vunpack.c.l.b16 %v5955
    %v6116 = vunpack.c.h.b16 %v5955
    %v6117 = vunpack.c.l.b16 %v5956
    %v6118 = vunpack.c.h.b16 %v5956
    %v6119 = vunpack.c.l.b16 %v5957
    %v6120 = vunpack.c.h.b16 %v5957
    %v6121 = vunpack.c.l.b16 %v5958
    %v6122 = vunpack.c.h.b16 %v5958
    %v6123 = vunpack.c.l.b16 %v5959
    %v6124 = vunpack.c.h.b16 %v5959
    %v6125 = vunpack.c.l.b16 %v5960
    %v6126 = vunpack.c.h.b16 %v5960
    %v6127 = vunpack.c.l.b16 %v5961
    %v6128 = vunpack.c.h.b16 %v5961
    %v6129 = vunpack.c.l.b16 %v5962
    %v6130 = vunpack.c.h.b16 %v5962
    %v6131 = vunpack.c.l.b16 %v5963
    %v6132 = vunpack.c.h.b16 %v5963
    %v6133 = vunpack.c.l.b16 %v5964
    %v6134 = vunpack.c.h.b16 %v5964
    %v6135 = vunpack.c.l.b16 %v5965
    %v6136 = vunpack.c.h.b16 %v5965
    %v6137 = vunpack.c.l.b16 %v5966
    %v6138 = vunpack.c.h.b16 %v5966
    %v6139 = vunpack.c.l.b16 %v5967
    %v6140 = vunpack.c.h.b16 %v5967
    %v6141 = vunpack.c.l.b16 %v5968
    %v6142 = vunpack.c.h.b16 %v5968
    %v6143 = vunpack.c.l.b16 %v5969
    %v6144 = vunpack.c.h.b16 %v5969
    %v6145 = vunpack.c.l.b16 %v5970
    %v6146 = vunpack.c.h.b16 %v5970
    %v6147 = vunpack.c.l.b16 %v5971
    %v6148 = vunpack.c.h.b16 %v5971
    %v6149 = vunpack.c.l.b16 %v5972
    %v6150 = vunpack.c.h.b16 %v5972
    %v6151 = vunpack.c.l.b16 %v5973
    %v6152 = vunpack.c.h.b16 %v5973
    %v6153 = vunpack.c.l.b16 %v5974
    %v6154 = vunpack.c.h.b16 %v5974
    %v6155 = vunpack.c.l.b16 %v5975
    %v6156 = vunpack.c.h.b16 %v5975
    %v6157 = vpack.c.b16 %v6109, %v6093
    %v6158 = vpack.c.b16 %v6110, %v6094
    %v6159 = vpack.c.b16 %v6111, %v6095
    %v6160 = vpack.c.b16 %v6112, %v6096
    %v6161 = vpack.c.b16 %v6113, %v6097
    %v6162 = vpack.c.b16 %v6114, %v6098
    %v6163 = vpack.c.b16 %v6115, %v6099
    %v6164 = vpack.c.b16 %v6116, %v6100
    %v6165 = vpack.c.b16 %v6117, %v6101
    %v6166 = vpack.c.b16 %v6118, %v6102
    %v6167 = vpack.c.b16 %v6119, %v6103
    %v6168 = vpack.c.b16 %v6120, %v6104
    %v6169 = vpack.c.b16 %v6121, %v6105
    %v6170 = vpack.c.b16 %v6122, %v6106
    %v6171 = vpack.c.b16 %v6123, %v6107
    %v6172 = vpack.c.b16 %v6124, %v6108
    %v6173 = vpack.c.b16 %v6141, %v6125
    %v6174 = vpack.c.b16 %v6142, %v6126
    %v6175 = vpack.c.b16 %v6143, %v6127
    %v6176 = vpack.c.b16 %v6144, %v6128
    %v6177 = vpack.c.b16 %v6145, %v6129
    %v6178 = vpack.c.b16 %v6146, %v6130
    %v6179 = vpack.c.b16 %v6147, %v6131
    %v6180 = vpack.c.b16 %v6148, %v6132
    %v6181 = vpack.c.b16 %v6149, %v6133
    %v6182 = vpack.c.b16 %v6150, %v6134
    %v6183 = vpack.c.b16 %v6151, %v6135
    %v6184 = vpack.c.b16 %v6152, %v6136
    %v6185 = vpack.c.b16 %v6153, %v6137
    %v6186 = vpack.c.b16 %v6154, %v6138
    %v6187 = vpack.c.b16 %v6155, %v6139
    %v6188 = vpack.c.b16 %v6156, %v6140
    %v6222 = vsel %vm422, %v5941, 0
    %v6225 = vsel %vm422, %v5942, 0
    %6227 = vmatprep.subr.bf16.mxu0 0
    %6228 = vmatpush1.bf16.msra.mxu0 0
    %6229 = vmatprep.subr.bf16.mxu0 0
    %6230 = vmatpush1.bf16.msra.mxu0 0
    %6231 = vmatprep.subr.bf16.mxu0 0
    %6232 = vmatpush1.bf16.msra.mxu0 0
    %6233 = vmatprep.subr.bf16.mxu0 0
    %6234 = vmatpush1.bf16.msra.mxu0 0
    %6235 = vmatprep.subr.bf16.mxu0 0
    %6236 = vmatpush1.bf16.msra.mxu0 0
    %6237 = vmatprep.subr.bf16.mxu0 0
    %6238 = vmatpush1.bf16.msra.mxu0 0
    %6239 = vmatprep.subr.bf16.mxu0 %v6174
    %6240 = vmatpush1.bf16.msra.mxu0 %v6173
    %6241 = vmatprep.subr.bf16.mxu0 %v6158
    %6242 = vmatpush1.bf16.msra.mxu0 %v6157
    %6243 = vmatprep.subr.bf16.mxu0 0
    %6244 = vmatpush2.bf16.msra.mxu0 0
    %6245 = vmatprep.subr.bf16.mxu0 0
    %6246 = vmatpush2.bf16.msra.mxu0 0
    %6247 = vmatprep.subr.bf16.mxu0 0
    %6248 = vmatpush2.bf16.msra.mxu0 0
    %6249 = vmatprep.subr.bf16.mxu0 0
    %6250 = vmatpush2.bf16.msra.mxu0 0
    %6251 = vmatprep.subr.bf16.mxu0 0
    %6252 = vmatpush2.bf16.msra.mxu0 0
    %6253 = vmatprep.subr.bf16.mxu0 0
    %6254 = vmatpush2.bf16.msra.mxu0 0
    %6255 = vmatprep.subr.bf16.mxu0 0
    %6256 = vmatpush2.bf16.msra.mxu0 0
    %6257 = vmatprep.subr.bf16.mxu0 0
    %6258 = vmatpush2.bf16.msra.mxu0 0
    %6259 = vmatprep.mubr.bf16.mxu0 0
    %6260 = vmatmul.mubr.bf16.gmra.mxu0 %v6222
    %v6261 = vpop.f32.mrf.mxu0
    %v6262 = vadd.f32 %v5984, %v6261
    %v6263 = vpop.f32.mrf.mxu0
    %v6264 = vadd.f32 %v5988, %v6263
    %v6265 = vpop.f32.mrf.mxu0
    %v6266 = vadd.f32 %v5984, %v6265
    %v6267 = vpop.f32.mrf.mxu0
    %v6268 = vadd.f32 %v5988, %v6267
    %6269 = vmatprep.mubr.bf16.mxu0 0
    %6270 = vmatmul.mubr.bf16.gmra.mxu0 %v6225
    %v6271 = vpop.f32.mrf.mxu0
    %v6272 = vadd.f32 %v5984, %v6271
    %v6273 = vpop.f32.mrf.mxu0
    %v6274 = vadd.f32 %v5988, %v6273
    %v6275 = vpop.f32.mrf.mxu0
    %v6276 = vadd.f32 %v5984, %v6275
    %v6277 = vpop.f32.mrf.mxu0
    %v6278 = vadd.f32 %v5988, %v6277
    %6279 = vdwg.mxu0
    %6280 = vmatprep.subr.bf16.mxu0 0
    %6281 = vmatpush1.bf16.msra.mxu0 0
    %6282 = vmatprep.subr.bf16.mxu0 0
    %6283 = vmatpush1.bf16.msra.mxu0 0
    %6284 = vmatprep.subr.bf16.mxu0 0
    %6285 = vmatpush1.bf16.msra.mxu0 0
    %6286 = vmatprep.subr.bf16.mxu0 0
    %6287 = vmatpush1.bf16.msra.mxu0 0
    %6288 = vmatprep.subr.bf16.mxu0 0
    %6289 = vmatpush1.bf16.msra.mxu0 0
    %6290 = vmatprep.subr.bf16.mxu0 0
    %6291 = vmatpush1.bf16.msra.mxu0 0
    %6292 = vmatprep.subr.bf16.mxu0 %v6176
    %6293 = vmatpush1.bf16.msra.mxu0 %v6175
    %6294 = vmatprep.subr.bf16.mxu0 %v6160
    %6295 = vmatpush1.bf16.msra.mxu0 %v6159
    %6296 = vmatprep.subr.bf16.mxu0 0
    %6297 = vmatpush2.bf16.msra.mxu0 0
    %6298 = vmatprep.subr.bf16.mxu0 0
    %6299 = vmatpush2.bf16.msra.mxu0 0
    %6300 = vmatprep.subr.bf16.mxu0 0
    %6301 = vmatpush2.bf16.msra.mxu0 0
    %6302 = vmatprep.subr.bf16.mxu0 0
    %6303 = vmatpush2.bf16.msra.mxu0 0
    %6304 = vmatprep.subr.bf16.mxu0 0
    %6305 = vmatpush2.bf16.msra.mxu0 0
    %6306 = vmatprep.subr.bf16.mxu0 0
    %6307 = vmatpush2.bf16.msra.mxu0 0
    %6308 = vmatprep.subr.bf16.mxu0 0
    %6309 = vmatpush2.bf16.msra.mxu0 0
    %6310 = vmatprep.subr.bf16.mxu0 0
    %6311 = vmatpush2.bf16.msra.mxu0 0
    %6312 = vmatprep.mubr.bf16.mxu0 0
    %6313 = vmatmul.mubr.bf16.gmra.mxu0 %v6222
    %v6314 = vpop.f32.mrf.mxu0
    %v6315 = vadd.f32 %v5992, %v6314
    %v6316 = vpop.f32.mrf.mxu0
    %v6317 = vadd.f32 %v5996, %v6316
    %v6318 = vpop.f32.mrf.mxu0
    %v6319 = vadd.f32 %v5992, %v6318
    %v6320 = vpop.f32.mrf.mxu0
    %v6321 = vadd.f32 %v5996, %v6320
    %6322 = vmatprep.mubr.bf16.mxu0 0
    %6323 = vmatmul.mubr.bf16.gmra.mxu0 %v6225
    %v6324 = vpop.f32.mrf.mxu0
    %v6325 = vadd.f32 %v5992, %v6324
    %v6326 = vpop.f32.mrf.mxu0
    %v6327 = vadd.f32 %v5996, %v6326
    %v6328 = vpop.f32.mrf.mxu0
    %v6329 = vadd.f32 %v5992, %v6328
    %v6330 = vpop.f32.mrf.mxu0
    %v6331 = vadd.f32 %v5996, %v6330
    %6332 = vdwg.mxu0
    %6333 = vmatprep.subr.bf16.mxu0 0
    %6334 = vmatpush1.bf16.msra.mxu0 0
    %6335 = vmatprep.subr.bf16.mxu0 0
    %6336 = vmatpush1.bf16.msra.mxu0 0
    %6337 = vmatprep.subr.bf16.mxu0 0
    %6338 = vmatpush1.bf16.msra.mxu0 0
    %6339 = vmatprep.subr.bf16.mxu0 0
    %6340 = vmatpush1.bf16.msra.mxu0 0
    %6341 = vmatprep.subr.bf16.mxu0 0
    %6342 = vmatpush1.bf16.msra.mxu0 0
    %6343 = vmatprep.subr.bf16.mxu0 0
    %6344 = vmatpush1.bf16.msra.mxu0 0
    %6345 = vmatprep.subr.bf16.mxu0 %v6178
    %6346 = vmatpush1.bf16.msra.mxu0 %v6177
    %6347 = vmatprep.subr.bf16.mxu0 %v6162
    %6348 = vmatpush1.bf16.msra.mxu0 %v6161
    %6349 = vmatprep.subr.bf16.mxu0 0
    %6350 = vmatpush2.bf16.msra.mxu0 0
    %6351 = vmatprep.subr.bf16.mxu0 0
    %6352 = vmatpush2.bf16.msra.mxu0 0
    %6353 = vmatprep.subr.bf16.mxu0 0
    %6354 = vmatpush2.bf16.msra.mxu0 0
    %6355 = vmatprep.subr.bf16.mxu0 0
    %6356 = vmatpush2.bf16.msra.mxu0 0
    %6357 = vmatprep.subr.bf16.mxu0 0
    %6358 = vmatpush2.bf16.msra.mxu0 0
    %6359 = vmatprep.subr.bf16.mxu0 0
    %6360 = vmatpush2.bf16.msra.mxu0 0
    %6361 = vmatprep.subr.bf16.mxu0 0
    %6362 = vmatpush2.bf16.msra.mxu0 0
    %6363 = vmatprep.subr.bf16.mxu0 0
    %6364 = vmatpush2.bf16.msra.mxu0 0
    %6365 = vmatprep.mubr.bf16.mxu0 0
    %6366 = vmatmul.mubr.bf16.gmra.mxu0 %v6222
    %v6367 = vpop.f32.mrf.mxu0
    %v6368 = vadd.f32 %v6000, %v6367
    %v6369 = vpop.f32.mrf.mxu0
    %v6370 = vadd.f32 %v6004, %v6369
    %v6371 = vpop.f32.mrf.mxu0
    %v6372 = vadd.f32 %v6000, %v6371
    %v6373 = vpop.f32.mrf.mxu0
    %v6374 = vadd.f32 %v6004, %v6373
    %6375 = vmatprep.mubr.bf16.mxu0 0
    %6376 = vmatmul.mubr.bf16.gmra.mxu0 %v6225
    %v6377 = vpop.f32.mrf.mxu0
    %v6378 = vadd.f32 %v6000, %v6377
    %v6379 = vpop.f32.mrf.mxu0
    %v6380 = vadd.f32 %v6004, %v6379
    %v6381 = vpop.f32.mrf.mxu0
    %v6382 = vadd.f32 %v6000, %v6381
    %v6383 = vpop.f32.mrf.mxu0
    %v6384 = vadd.f32 %v6004, %v6383
    %6385 = vdwg.mxu0
    %6386 = vmatprep.subr.bf16.mxu0 0
    %6387 = vmatpush1.bf16.msra.mxu0 0
    %6388 = vmatprep.subr.bf16.mxu0 0
    %6389 = vmatpush1.bf16.msra.mxu0 0
    %6390 = vmatprep.subr.bf16.mxu0 0
    %6391 = vmatpush1.bf16.msra.mxu0 0
    %6392 = vmatprep.subr.bf16.mxu0 0
    %6393 = vmatpush1.bf16.msra.mxu0 0
    %6394 = vmatprep.subr.bf16.mxu0 0
    %6395 = vmatpush1.bf16.msra.mxu0 0
    %6396 = vmatprep.subr.bf16.mxu0 0
    %6397 = vmatpush1.bf16.msra.mxu0 0
    %6398 = vmatprep.subr.bf16.mxu0 %v6180
    %6399 = vmatpush1.bf16.msra.mxu0 %v6179
    %6400 = vmatprep.subr.bf16.mxu0 %v6164
    %6401 = vmatpush1.bf16.msra.mxu0 %v6163
    %6402 = vmatprep.subr.bf16.mxu0 0
    %6403 = vmatpush2.bf16.msra.mxu0 0
    %6404 = vmatprep.subr.bf16.mxu0 0
    %6405 = vmatpush2.bf16.msra.mxu0 0
    %6406 = vmatprep.subr.bf16.mxu0 0
    %6407 = vmatpush2.bf16.msra.mxu0 0
    %6408 = vmatprep.subr.bf16.mxu0 0
    %6409 = vmatpush2.bf16.msra.mxu0 0
    %6410 = vmatprep.subr.bf16.mxu0 0
    %6411 = vmatpush2.bf16.msra.mxu0 0
    %6412 = vmatprep.subr.bf16.mxu0 0
    %6413 = vmatpush2.bf16.msra.mxu0 0
    %6414 = vmatprep.subr.bf16.mxu0 0
    %6415 = vmatpush2.bf16.msra.mxu0 0
    %6416 = vmatprep.subr.bf16.mxu0 0
    %6417 = vmatpush2.bf16.msra.mxu0 0
    %6418 = vmatprep.mubr.bf16.mxu0 0
    %6419 = vmatmul.mubr.bf16.gmra.mxu0 %v6222
    %v6420 = vpop.f32.mrf.mxu0
    %v6421 = vadd.f32 %v6008, %v6420
    %v6422 = vpop.f32.mrf.mxu0
    %v6423 = vadd.f32 %v6012, %v6422
    %v6424 = vpop.f32.mrf.mxu0
    %v6425 = vadd.f32 %v6008, %v6424
    %v6426 = vpop.f32.mrf.mxu0
    %v6427 = vadd.f32 %v6012, %v6426
    %6428 = vmatprep.mubr.bf16.mxu0 0
    %6429 = vmatmul.mubr.bf16.gmra.mxu0 %v6225
    %v6430 = vpop.f32.mrf.mxu0
    %v6431 = vadd.f32 %v6008, %v6430
    %v6432 = vpop.f32.mrf.mxu0
    %v6433 = vadd.f32 %v6012, %v6432
    %v6434 = vpop.f32.mrf.mxu0
    %v6435 = vadd.f32 %v6008, %v6434
    %v6436 = vpop.f32.mrf.mxu0
    %v6437 = vadd.f32 %v6012, %v6436
    %6438 = vdwg.mxu0
    %6439 = vmatprep.subr.bf16.mxu0 0
    %6440 = vmatpush1.bf16.msra.mxu0 0
    %6441 = vmatprep.subr.bf16.mxu0 0
    %6442 = vmatpush1.bf16.msra.mxu0 0
    %6443 = vmatprep.subr.bf16.mxu0 0
    %6444 = vmatpush1.bf16.msra.mxu0 0
    %6445 = vmatprep.subr.bf16.mxu0 0
    %6446 = vmatpush1.bf16.msra.mxu0 0
    %6447 = vmatprep.subr.bf16.mxu0 0
    %6448 = vmatpush1.bf16.msra.mxu0 0
    %6449 = vmatprep.subr.bf16.mxu0 0
    %6450 = vmatpush1.bf16.msra.mxu0 0
    %6451 = vmatprep.subr.bf16.mxu0 %v6182
    %6452 = vmatpush1.bf16.msra.mxu0 %v6181
    %6453 = vmatprep.subr.bf16.mxu0 %v6166
    %6454 = vmatpush1.bf16.msra.mxu0 %v6165
    %6455 = vmatprep.subr.bf16.mxu0 0
    %6456 = vmatpush2.bf16.msra.mxu0 0
    %6457 = vmatprep.subr.bf16.mxu0 0
    %6458 = vmatpush2.bf16.msra.mxu0 0
    %6459 = vmatprep.subr.bf16.mxu0 0
    %6460 = vmatpush2.bf16.msra.mxu0 0
    %6461 = vmatprep.subr.bf16.mxu0 0
    %6462 = vmatpush2.bf16.msra.mxu0 0
    %6463 = vmatprep.subr.bf16.mxu0 0
    %6464 = vmatpush2.bf16.msra.mxu0 0
    %6465 = vmatprep.subr.bf16.mxu0 0
    %6466 = vmatpush2.bf16.msra.mxu0 0
    %6467 = vmatprep.subr.bf16.mxu0 0
    %6468 = vmatpush2.bf16.msra.mxu0 0
    %6469 = vmatprep.subr.bf16.mxu0 0
    %6470 = vmatpush2.bf16.msra.mxu0 0
    %6471 = vmatprep.mubr.bf16.mxu0 0
    %6472 = vmatmul.mubr.bf16.gmra.mxu0 %v6222
    %v6473 = vpop.f32.mrf.mxu0
    %v6474 = vadd.f32 %v6016, %v6473
    %v6475 = vpop.f32.mrf.mxu0
    %v6476 = vadd.f32 %v6020, %v6475
    %v6477 = vpop.f32.mrf.mxu0
    %v6478 = vadd.f32 %v6016, %v6477
    %v6479 = vpop.f32.mrf.mxu0
    %v6480 = vadd.f32 %v6020, %v6479
    %6481 = vmatprep.mubr.bf16.mxu0 0
    %6482 = vmatmul.mubr.bf16.gmra.mxu0 %v6225
    %v6483 = vpop.f32.mrf.mxu0
    %v6484 = vadd.f32 %v6016, %v6483
    %v6485 = vpop.f32.mrf.mxu0
    %v6486 = vadd.f32 %v6020, %v6485
    %v6487 = vpop.f32.mrf.mxu0
    %v6488 = vadd.f32 %v6016, %v6487
    %v6489 = vpop.f32.mrf.mxu0
    %v6490 = vadd.f32 %v6020, %v6489
    %6491 = vdwg.mxu0
    %6492 = vmatprep.subr.bf16.mxu0 0
    %6493 = vmatpush1.bf16.msra.mxu0 0
    %6494 = vmatprep.subr.bf16.mxu0 0
    %6495 = vmatpush1.bf16.msra.mxu0 0
    %6496 = vmatprep.subr.bf16.mxu0 0
    %6497 = vmatpush1.bf16.msra.mxu0 0
    %6498 = vmatprep.subr.bf16.mxu0 0
    %6499 = vmatpush1.bf16.msra.mxu0 0
    %6500 = vmatprep.subr.bf16.mxu0 0
    %6501 = vmatpush1.bf16.msra.mxu0 0
    %6502 = vmatprep.subr.bf16.mxu0 0
    %6503 = vmatpush1.bf16.msra.mxu0 0
    %6504 = vmatprep.subr.bf16.mxu0 %v6184
    %6505 = vmatpush1.bf16.msra.mxu0 %v6183
    %6506 = vmatprep.subr.bf16.mxu0 %v6168
    %6507 = vmatpush1.bf16.msra.mxu0 %v6167
    %6508 = vmatprep.subr.bf16.mxu0 0
    %6509 = vmatpush2.bf16.msra.mxu0 0
    %6510 = vmatprep.subr.bf16.mxu0 0
    %6511 = vmatpush2.bf16.msra.mxu0 0
    %6512 = vmatprep.subr.bf16.mxu0 0
    %6513 = vmatpush2.bf16.msra.mxu0 0
    %6514 = vmatprep.subr.bf16.mxu0 0
    %6515 = vmatpush2.bf16.msra.mxu0 0
    %6516 = vmatprep.subr.bf16.mxu0 0
    %6517 = vmatpush2.bf16.msra.mxu0 0
    %6518 = vmatprep.subr.bf16.mxu0 0
    %6519 = vmatpush2.bf16.msra.mxu0 0
    %6520 = vmatprep.subr.bf16.mxu0 0
    %6521 = vmatpush2.bf16.msra.mxu0 0
    %6522 = vmatprep.subr.bf16.mxu0 0
    %6523 = vmatpush2.bf16.msra.mxu0 0
    %6524 = vmatprep.mubr.bf16.mxu0 0
    %6525 = vmatmul.mubr.bf16.gmra.mxu0 %v6222
    %v6526 = vpop.f32.mrf.mxu0
    %v6527 = vadd.f32 %v6024, %v6526
    %v6528 = vpop.f32.mrf.mxu0
    %v6529 = vadd.f32 %v6028, %v6528
    %v6530 = vpop.f32.mrf.mxu0
    %v6531 = vadd.f32 %v6024, %v6530
    %v6532 = vpop.f32.mrf.mxu0
    %v6533 = vadd.f32 %v6028, %v6532
    %6534 = vmatprep.mubr.bf16.mxu0 0
    %6535 = vmatmul.mubr.bf16.gmra.mxu0 %v6225
    %v6536 = vpop.f32.mrf.mxu0
    %v6537 = vadd.f32 %v6024, %v6536
    %v6538 = vpop.f32.mrf.mxu0
    %v6539 = vadd.f32 %v6028, %v6538
    %v6540 = vpop.f32.mrf.mxu0
    %v6541 = vadd.f32 %v6024, %v6540
    %v6542 = vpop.f32.mrf.mxu0
    %v6543 = vadd.f32 %v6028, %v6542
    %6544 = vdwg.mxu0
    %6545 = vmatprep.subr.bf16.mxu0 0
    %6546 = vmatpush1.bf16.msra.mxu0 0
    %6547 = vmatprep.subr.bf16.mxu0 0
    %6548 = vmatpush1.bf16.msra.mxu0 0
    %6549 = vmatprep.subr.bf16.mxu0 0
    %6550 = vmatpush1.bf16.msra.mxu0 0
    %6551 = vmatprep.subr.bf16.mxu0 0
    %6552 = vmatpush1.bf16.msra.mxu0 0
    %6553 = vmatprep.subr.bf16.mxu0 0
    %6554 = vmatpush1.bf16.msra.mxu0 0
    %6555 = vmatprep.subr.bf16.mxu0 0
    %6556 = vmatpush1.bf16.msra.mxu0 0
    %6557 = vmatprep.subr.bf16.mxu0 %v6186
    %6558 = vmatpush1.bf16.msra.mxu0 %v6185
    %6559 = vmatprep.subr.bf16.mxu0 %v6170
    %6560 = vmatpush1.bf16.msra.mxu0 %v6169
    %6561 = vmatprep.subr.bf16.mxu0 0
    %6562 = vmatpush2.bf16.msra.mxu0 0
    %6563 = vmatprep.subr.bf16.mxu0 0
    %6564 = vmatpush2.bf16.msra.mxu0 0
    %6565 = vmatprep.subr.bf16.mxu0 0
    %6566 = vmatpush2.bf16.msra.mxu0 0
    %6567 = vmatprep.subr.bf16.mxu0 0
    %6568 = vmatpush2.bf16.msra.mxu0 0
    %6569 = vmatprep.subr.bf16.mxu0 0
    %6570 = vmatpush2.bf16.msra.mxu0 0
    %6571 = vmatprep.subr.bf16.mxu0 0
    %6572 = vmatpush2.bf16.msra.mxu0 0
    %6573 = vmatprep.subr.bf16.mxu0 0
    %6574 = vmatpush2.bf16.msra.mxu0 0
    %6575 = vmatprep.subr.bf16.mxu0 0
    %6576 = vmatpush2.bf16.msra.mxu0 0
    %6577 = vmatprep.mubr.bf16.mxu0 0
    %6578 = vmatmul.mubr.bf16.gmra.mxu0 %v6222
    %v6579 = vpop.f32.mrf.mxu0
    %v6580 = vadd.f32 %v6032, %v6579
    %v6581 = vpop.f32.mrf.mxu0
    %v6582 = vadd.f32 %v6036, %v6581
    %v6583 = vpop.f32.mrf.mxu0
    %v6584 = vadd.f32 %v6032, %v6583
    %v6585 = vpop.f32.mrf.mxu0
    %v6586 = vadd.f32 %v6036, %v6585
    %6587 = vmatprep.mubr.bf16.mxu0 0
    %6588 = vmatmul.mubr.bf16.gmra.mxu0 %v6225
    %v6589 = vpop.f32.mrf.mxu0
    %v6590 = vadd.f32 %v6032, %v6589
    %v6591 = vpop.f32.mrf.mxu0
    %v6592 = vadd.f32 %v6036, %v6591
    %v6593 = vpop.f32.mrf.mxu0
    %v6594 = vadd.f32 %v6032, %v6593
    %v6595 = vpop.f32.mrf.mxu0
    %v6596 = vadd.f32 %v6036, %v6595
    %6597 = vdwg.mxu0
    %6598 = vmatprep.subr.bf16.mxu0 0
    %6599 = vmatpush1.bf16.msra.mxu0 0
    %6600 = vmatprep.subr.bf16.mxu0 0
    %6601 = vmatpush1.bf16.msra.mxu0 0
    %6602 = vmatprep.subr.bf16.mxu0 0
    %6603 = vmatpush1.bf16.msra.mxu0 0
    %6604 = vmatprep.subr.bf16.mxu0 0
    %6605 = vmatpush1.bf16.msra.mxu0 0
    %6606 = vmatprep.subr.bf16.mxu0 0
    %6607 = vmatpush1.bf16.msra.mxu0 0
    %6608 = vmatprep.subr.bf16.mxu0 0
    %6609 = vmatpush1.bf16.msra.mxu0 0
    %6610 = vmatprep.subr.bf16.mxu0 %v6188
    %6611 = vmatpush1.bf16.msra.mxu0 %v6187
    %6612 = vmatprep.subr.bf16.mxu0 %v6172
    %6613 = vmatpush1.bf16.msra.mxu0 %v6171
    %6614 = vmatprep.subr.bf16.mxu0 0
    %6615 = vmatpush2.bf16.msra.mxu0 0
    %6616 = vmatprep.subr.bf16.mxu0 0
    %6617 = vmatpush2.bf16.msra.mxu0 0
    %6618 = vmatprep.subr.bf16.mxu0 0
    %6619 = vmatpush2.bf16.msra.mxu0 0
    %6620 = vmatprep.subr.bf16.mxu0 0
    %6621 = vmatpush2.bf16.msra.mxu0 0
    %6622 = vmatprep.subr.bf16.mxu0 0
    %6623 = vmatpush2.bf16.msra.mxu0 0
    %6624 = vmatprep.subr.bf16.mxu0 0
    %6625 = vmatpush2.bf16.msra.mxu0 0
    %6626 = vmatprep.subr.bf16.mxu0 0
    %6627 = vmatpush2.bf16.msra.mxu0 0
    %6628 = vmatprep.subr.bf16.mxu0 0
    %6629 = vmatpush2.bf16.msra.mxu0 0
    %6630 = vmatprep.mubr.bf16.mxu0 0
    %6631 = vmatmul.mubr.bf16.gmra.mxu0 %v6222
    %v6632 = vpop.f32.mrf.mxu0
    %v6633 = vadd.f32 %v6040, %v6632
    %v6634 = vpop.f32.mrf.mxu0
    %v6635 = vadd.f32 %v6044, %v6634
    %v6636 = vpop.f32.mrf.mxu0
    %v6637 = vadd.f32 %v6040, %v6636
    %v6638 = vpop.f32.mrf.mxu0
    %v6639 = vadd.f32 %v6044, %v6638
    %6640 = vmatprep.mubr.bf16.mxu0 0
    %6641 = vmatmul.mubr.bf16.gmra.mxu0 %v6225
    %v6642 = vpop.f32.mrf.mxu0
    %v6643 = vadd.f32 %v6040, %v6642
    %v6644 = vpop.f32.mrf.mxu0
    %v6645 = vadd.f32 %v6044, %v6644
    %v6646 = vpop.f32.mrf.mxu0
    %v6647 = vadd.f32 %v6040, %v6646
    %v6648 = vpop.f32.mrf.mxu0
    %v6649 = vadd.f32 %v6044, %v6648
    %6650 = vdwg.mxu0
    %v6651 = vmax.f32 %v6262, 0.0
    %v6652 = vmax.f32 %v6264, 0.0
    %v6653 = vmax.f32 %v6315, 0.0
    %v6654 = vmax.f32 %v6317, 0.0
    %v6655 = vmax.f32 %v6368, 0.0
    %v6656 = vmax.f32 %v6370, 0.0
    %v6657 = vmax.f32 %v6421, 0.0
    %v6658 = vmax.f32 %v6423, 0.0
    %v6659 = vmax.f32 %v6474, 0.0
    %v6660 = vmax.f32 %v6476, 0.0
    %v6661 = vmax.f32 %v6527, 0.0
    %v6662 = vmax.f32 %v6529, 0.0
    %v6663 = vmax.f32 %v6580, 0.0
    %v6664 = vmax.f32 %v6582, 0.0
    %v6665 = vmax.f32 %v6633, 0.0
    %v6666 = vmax.f32 %v6635, 0.0
    %v6667 = vmax.f32 %v6266, 0.0
    %v6668 = vmax.f32 %v6268, 0.0
    %v6669 = vmax.f32 %v6319, 0.0
    %v6670 = vmax.f32 %v6321, 0.0
    %v6671 = vmax.f32 %v6372, 0.0
    %v6672 = vmax.f32 %v6374, 0.0
    %v6673 = vmax.f32 %v6425, 0.0
    %v6674 = vmax.f32 %v6427, 0.0
    %v6675 = vmax.f32 %v6478, 0.0
    %v6676 = vmax.f32 %v6480, 0.0
    %v6677 = vmax.f32 %v6531, 0.0
    %v6678 = vmax.f32 %v6533, 0.0
    %v6679 = vmax.f32 %v6584, 0.0
    %v6680 = vmax.f32 %v6586, 0.0
    %v6681 = vmax.f32 %v6637, 0.0
    %v6682 = vmax.f32 %v6639, 0.0
    %v6683 = vmax.f32 %v6272, 0.0
    %v6684 = vmax.f32 %v6274, 0.0
    %v6685 = vmax.f32 %v6325, 0.0
    %v6686 = vmax.f32 %v6327, 0.0
    %v6687 = vmax.f32 %v6378, 0.0
    %v6688 = vmax.f32 %v6380, 0.0
    %v6689 = vmax.f32 %v6431, 0.0
    %v6690 = vmax.f32 %v6433, 0.0
    %v6691 = vmax.f32 %v6484, 0.0
    %v6692 = vmax.f32 %v6486, 0.0
    %v6693 = vmax.f32 %v6537, 0.0
    %v6694 = vmax.f32 %v6539, 0.0
    %v6695 = vmax.f32 %v6590, 0.0
    %v6696 = vmax.f32 %v6592, 0.0
    %v6697 = vmax.f32 %v6643, 0.0
    %v6698 = vmax.f32 %v6645, 0.0
    %v6699 = vmax.f32 %v6276, 0.0
    %v6700 = vmax.f32 %v6278, 0.0
    %v6701 = vmax.f32 %v6329, 0.0
    %v6702 = vmax.f32 %v6331, 0.0
    %v6703 = vmax.f32 %v6382, 0.0
    %v6704 = vmax.f32 %v6384, 0.0
    %v6705 = vmax.f32 %v6435, 0.0
    %v6706 = vmax.f32 %v6437, 0.0
    %v6707 = vmax.f32 %v6488, 0.0
    %v6708 = vmax.f32 %v6490, 0.0
    %v6709 = vmax.f32 %v6541, 0.0
    %v6710 = vmax.f32 %v6543, 0.0
    %v6711 = vmax.f32 %v6594, 0.0
    %v6712 = vmax.f32 %v6596, 0.0
    %v6713 = vmax.f32 %v6647, 0.0
    %v6714 = vmax.f32 %v6649, 0.0
    %v6715 = vpack.c.bf16 %v6667, %v6651
    %v6716 = vpack.c.bf16 %v6668, %v6652
    %v6717 = vpack.c.bf16 %v6669, %v6653
    %v6718 = vpack.c.bf16 %v6670, %v6654
    %v6719 = vpack.c.bf16 %v6671, %v6655
    %v6720 = vpack.c.bf16 %v6672, %v6656
    %v6721 = vpack.c.bf16 %v6673, %v6657
    %v6722 = vpack.c.bf16 %v6674, %v6658
    %v6723 = vpack.c.bf16 %v6675, %v6659
    %v6724 = vpack.c.bf16 %v6676, %v6660
    %v6725 = vpack.c.bf16 %v6677, %v6661
    %v6726 = vpack.c.bf16 %v6678, %v6662
    %v6727 = vpack.c.bf16 %v6679, %v6663
    %v6728 = vpack.c.bf16 %v6680, %v6664
    %v6729 = vpack.c.bf16 %v6681, %v6665
    %v6730 = vpack.c.bf16 %v6682, %v6666
    %v6731 = vpack.c.bf16 %v6699, %v6683
    %v6732 = vpack.c.bf16 %v6700, %v6684
    %v6733 = vpack.c.bf16 %v6701, %v6685
    %v6734 = vpack.c.bf16 %v6702, %v6686
    %v6735 = vpack.c.bf16 %v6703, %v6687
    %v6736 = vpack.c.bf16 %v6704, %v6688
    %v6737 = vpack.c.bf16 %v6705, %v6689
    %v6738 = vpack.c.bf16 %v6706, %v6690
    %v6739 = vpack.c.bf16 %v6707, %v6691
    %v6740 = vpack.c.bf16 %v6708, %v6692
    %v6741 = vpack.c.bf16 %v6709, %v6693
    %v6742 = vpack.c.bf16 %v6710, %v6694
    %v6743 = vpack.c.bf16 %v6711, %v6695
    %v6744 = vpack.c.bf16 %v6712, %v6696
    %v6745 = vpack.c.bf16 %v6713, %v6697
    %v6746 = vpack.c.bf16 %v6714, %v6698
    %s6747 = scalar_lea.vmem %s49, 1024
    %v6748 = vld [vmem:[%s6747] sm:$0xf]
    %v6749 = vld [vmem:[%s6747 + $0x4] sm:$0xf]
    %v6750 = vld [vmem:[%s6747 + $0x8] sm:$0xf]
    %v6751 = vld [vmem:[%s6747 + $0xc] sm:$0xf]
    %v6752 = vld [vmem:[%s6747 + $0x10] sm:$0xf]
    %v6753 = vld [vmem:[%s6747 + $0x14] sm:$0xf]
    %v6754 = vld [vmem:[%s6747 + $0x18] sm:$0xf]
    %v6755 = vld [vmem:[%s6747 + $0x1c] sm:$0xf]
    %v6756 = vld [vmem:[%s6747 + $0x20] sm:$0xf]
    %v6757 = vld [vmem:[%s6747 + $0x24] sm:$0xf]
    %v6758 = vld [vmem:[%s6747 + $0x28] sm:$0xf]
    %v6759 = vld [vmem:[%s6747 + $0x2c] sm:$0xf]
    %v6760 = vld [vmem:[%s6747 + $0x30] sm:$0xf]
    %v6761 = vld [vmem:[%s6747 + $0x34] sm:$0xf]
    %v6762 = vld [vmem:[%s6747 + $0x38] sm:$0xf]
    %v6763 = vld [vmem:[%s6747 + $0x3c] sm:$0xf]
    %v6764 = vld [vmem:[%s6747 + $0x40] sm:$0xf]
    %v6765 = vld [vmem:[%s6747 + $0x44] sm:$0xf]
    %v6766 = vld [vmem:[%s6747 + $0x48] sm:$0xf]
    %v6767 = vld [vmem:[%s6747 + $0x4c] sm:$0xf]
    %v6768 = vld [vmem:[%s6747 + $0x50] sm:$0xf]
    %v6769 = vld [vmem:[%s6747 + $0x54] sm:$0xf]
    %v6770 = vld [vmem:[%s6747 + $0x58] sm:$0xf]
    %v6771 = vld [vmem:[%s6747 + $0x5c] sm:$0xf]
    %v6772 = vld [vmem:[%s6747 + $0x60] sm:$0xf]
    %v6773 = vld [vmem:[%s6747 + $0x64] sm:$0xf]
    %v6774 = vld [vmem:[%s6747 + $0x68] sm:$0xf]
    %v6775 = vld [vmem:[%s6747 + $0x6c] sm:$0xf]
    %v6776 = vld [vmem:[%s6747 + $0x70] sm:$0xf]
    %v6777 = vld [vmem:[%s6747 + $0x74] sm:$0xf]
    %v6778 = vld [vmem:[%s6747 + $0x78] sm:$0xf]
    %v6779 = vld [vmem:[%s6747 + $0x7c] sm:$0xf]
    %v6780 = vld [vmem:[%s6747 + $0x80] sm:$0xf]
    %v6781 = vld [vmem:[%s6747 + $0x84] sm:$0xf]
    %v6782 = vld [vmem:[%s6747 + $0x88] sm:$0xf]
    %v6783 = vld [vmem:[%s6747 + $0x8c] sm:$0xf]
    %v6784 = vld [vmem:[%s6747 + $0x90] sm:$0xf]
    %v6785 = vld [vmem:[%s6747 + $0x94] sm:$0xf]
    %v6786 = vld [vmem:[%s6747 + $0x98] sm:$0xf]
    %v6787 = vld [vmem:[%s6747 + $0x9c] sm:$0xf]
    %v6788 = vld [vmem:[%s6747 + $0xa0] sm:$0xf]
    %v6789 = vld [vmem:[%s6747 + $0xa4] sm:$0xf]
    %v6790 = vld [vmem:[%s6747 + $0xa8] sm:$0xf]
    %v6791 = vld [vmem:[%s6747 + $0xac] sm:$0xf]
    %v6792 = vld [vmem:[%s6747 + $0xb0] sm:$0xf]
    %v6793 = vld [vmem:[%s6747 + $0xb4] sm:$0xf]
    %v6794 = vld [vmem:[%s6747 + $0xb8] sm:$0xf]
    %v6795 = vld [vmem:[%s6747 + $0xbc] sm:$0xf]
    %v6796 = vld [vmem:[%s6747 + $0xc0] sm:$0xf]
    %v6797 = vld [vmem:[%s6747 + $0xc4] sm:$0xf]
    %v6798 = vld [vmem:[%s6747 + $0xc8] sm:$0xf]
    %v6799 = vld [vmem:[%s6747 + $0xcc] sm:$0xf]
    %v6800 = vld [vmem:[%s6747 + $0xd0] sm:$0xf]
    %v6801 = vld [vmem:[%s6747 + $0xd4] sm:$0xf]
    %v6802 = vld [vmem:[%s6747 + $0xd8] sm:$0xf]
    %v6803 = vld [vmem:[%s6747 + $0xdc] sm:$0xf]
    %v6804 = vld [vmem:[%s6747 + $0xe0] sm:$0xf]
    %v6805 = vld [vmem:[%s6747 + $0xe4] sm:$0xf]
    %v6806 = vld [vmem:[%s6747 + $0xe8] sm:$0xf]
    %v6807 = vld [vmem:[%s6747 + $0xec] sm:$0xf]
    %v6808 = vld [vmem:[%s6747 + $0xf0] sm:$0xf]
    %v6809 = vld [vmem:[%s6747 + $0xf4] sm:$0xf]
    %v6810 = vld [vmem:[%s6747 + $0xf8] sm:$0xf]
    %v6811 = vld [vmem:[%s6747 + $0xfc] sm:$0xf]
    %v6812 = vld [vmem:[%s6747 + $0x100] sm:$0xf]
    %v6813 = vld [vmem:[%s6747 + $0x104] sm:$0xf]
    %v6814 = vld [vmem:[%s6747 + $0x108] sm:$0xf]
    %v6815 = vld [vmem:[%s6747 + $0x10c] sm:$0xf]
    %v6816 = vld [vmem:[%s6747 + $0x110] sm:$0xf]
    %v6817 = vld [vmem:[%s6747 + $0x114] sm:$0xf]
    %v6818 = vld [vmem:[%s6747 + $0x118] sm:$0xf]
    %v6819 = vld [vmem:[%s6747 + $0x11c] sm:$0xf]
    %v6820 = vld [vmem:[%s6747 + $0x120] sm:$0xf]
    %v6821 = vld [vmem:[%s6747 + $0x124] sm:$0xf]
    %v6822 = vld [vmem:[%s6747 + $0x128] sm:$0xf]
    %v6823 = vld [vmem:[%s6747 + $0x12c] sm:$0xf]
    %v6824 = vld [vmem:[%s6747 + $0x130] sm:$0xf]
    %v6825 = vld [vmem:[%s6747 + $0x134] sm:$0xf]
    %v6826 = vld [vmem:[%s6747 + $0x138] sm:$0xf]
    %v6827 = vld [vmem:[%s6747 + $0x13c] sm:$0xf]
    %v6828 = vld [vmem:[%s6747 + $0x140] sm:$0xf]
    %v6829 = vld [vmem:[%s6747 + $0x144] sm:$0xf]
    %v6830 = vld [vmem:[%s6747 + $0x148] sm:$0xf]
    %v6831 = vld [vmem:[%s6747 + $0x14c] sm:$0xf]
    %v6832 = vld [vmem:[%s6747 + $0x150] sm:$0xf]
    %v6833 = vld [vmem:[%s6747 + $0x154] sm:$0xf]
    %v6834 = vld [vmem:[%s6747 + $0x158] sm:$0xf]
    %v6835 = vld [vmem:[%s6747 + $0x15c] sm:$0xf]
    %v6836 = vld [vmem:[%s6747 + $0x160] sm:$0xf]
    %v6837 = vld [vmem:[%s6747 + $0x164] sm:$0xf]
    %v6838 = vld [vmem:[%s6747 + $0x168] sm:$0xf]
    %v6839 = vld [vmem:[%s6747 + $0x16c] sm:$0xf]
    %v6840 = vld [vmem:[%s6747 + $0x170] sm:$0xf]
    %v6841 = vld [vmem:[%s6747 + $0x174] sm:$0xf]
    %v6842 = vld [vmem:[%s6747 + $0x178] sm:$0xf]
    %v6843 = vld [vmem:[%s6747 + $0x17c] sm:$0xf]
    %v6844 = vld [vmem:[%s6747 + $0x180] sm:$0xf]
    %v6845 = vld [vmem:[%s6747 + $0x184] sm:$0xf]
    %v6846 = vld [vmem:[%s6747 + $0x188] sm:$0xf]
    %v6847 = vld [vmem:[%s6747 + $0x18c] sm:$0xf]
    %v6848 = vld [vmem:[%s6747 + $0x190] sm:$0xf]
    %v6849 = vld [vmem:[%s6747 + $0x194] sm:$0xf]
    %v6850 = vld [vmem:[%s6747 + $0x198] sm:$0xf]
    %v6851 = vld [vmem:[%s6747 + $0x19c] sm:$0xf]
    %v6852 = vld [vmem:[%s6747 + $0x1a0] sm:$0xf]
    %v6853 = vld [vmem:[%s6747 + $0x1a4] sm:$0xf]
    %v6854 = vld [vmem:[%s6747 + $0x1a8] sm:$0xf]
    %v6855 = vld [vmem:[%s6747 + $0x1ac] sm:$0xf]
    %v6856 = vld [vmem:[%s6747 + $0x1b0] sm:$0xf]
    %v6857 = vld [vmem:[%s6747 + $0x1b4] sm:$0xf]
    %v6858 = vld [vmem:[%s6747 + $0x1b8] sm:$0xf]
    %v6859 = vld [vmem:[%s6747 + $0x1bc] sm:$0xf]
    %v6860 = vld [vmem:[%s6747 + $0x1c0] sm:$0xf]
    %v6861 = vld [vmem:[%s6747 + $0x1c4] sm:$0xf]
    %v6862 = vld [vmem:[%s6747 + $0x1c8] sm:$0xf]
    %v6863 = vld [vmem:[%s6747 + $0x1cc] sm:$0xf]
    %v6864 = vld [vmem:[%s6747 + $0x1d0] sm:$0xf]
    %v6865 = vld [vmem:[%s6747 + $0x1d4] sm:$0xf]
    %v6866 = vld [vmem:[%s6747 + $0x1d8] sm:$0xf]
    %v6867 = vld [vmem:[%s6747 + $0x1dc] sm:$0xf]
    %v6868 = vld [vmem:[%s6747 + $0x1e0] sm:$0xf]
    %v6869 = vld [vmem:[%s6747 + $0x1e4] sm:$0xf]
    %v6870 = vld [vmem:[%s6747 + $0x1e8] sm:$0xf]
    %v6871 = vld [vmem:[%s6747 + $0x1ec] sm:$0xf]
    %v6872 = vld [vmem:[%s6747 + $0x1f0] sm:$0xf]
    %v6873 = vld [vmem:[%s6747 + $0x1f4] sm:$0xf]
    %v6874 = vld [vmem:[%s6747 + $0x1f8] sm:$0xf]
    %v6875 = vld [vmem:[%s6747 + $0x1fc] sm:$0xf]
    %v6876 = vld [vmem:[%s6747 + $0x200] sm:$0xf]
    %v6877 = vld [vmem:[%s6747 + $0x204] sm:$0xf]
    %v6878 = vld [vmem:[%s6747 + $0x208] sm:$0xf]
    %v6879 = vld [vmem:[%s6747 + $0x20c] sm:$0xf]
    %v6880 = vld [vmem:[%s6747 + $0x210] sm:$0xf]
    %v6881 = vld [vmem:[%s6747 + $0x214] sm:$0xf]
    %v6882 = vld [vmem:[%s6747 + $0x218] sm:$0xf]
    %v6883 = vld [vmem:[%s6747 + $0x21c] sm:$0xf]
    %v6884 = vld [vmem:[%s6747 + $0x220] sm:$0xf]
    %v6885 = vld [vmem:[%s6747 + $0x224] sm:$0xf]
    %v6886 = vld [vmem:[%s6747 + $0x228] sm:$0xf]
    %v6887 = vld [vmem:[%s6747 + $0x22c] sm:$0xf]
    %v6888 = vld [vmem:[%s6747 + $0x230] sm:$0xf]
    %v6889 = vld [vmem:[%s6747 + $0x234] sm:$0xf]
    %v6890 = vld [vmem:[%s6747 + $0x238] sm:$0xf]
    %v6891 = vld [vmem:[%s6747 + $0x23c] sm:$0xf]
    %v6892 = vld [vmem:[%s6747 + $0x240] sm:$0xf]
    %v6893 = vld [vmem:[%s6747 + $0x244] sm:$0xf]
    %v6894 = vld [vmem:[%s6747 + $0x248] sm:$0xf]
    %v6895 = vld [vmem:[%s6747 + $0x24c] sm:$0xf]
    %v6896 = vld [vmem:[%s6747 + $0x250] sm:$0xf]
    %v6897 = vld [vmem:[%s6747 + $0x254] sm:$0xf]
    %v6898 = vld [vmem:[%s6747 + $0x258] sm:$0xf]
    %v6899 = vld [vmem:[%s6747 + $0x25c] sm:$0xf]
    %v6900 = vld [vmem:[%s6747 + $0x260] sm:$0xf]
    %v6901 = vld [vmem:[%s6747 + $0x264] sm:$0xf]
    %v6902 = vld [vmem:[%s6747 + $0x268] sm:$0xf]
    %v6903 = vld [vmem:[%s6747 + $0x26c] sm:$0xf]
    %v6904 = vld [vmem:[%s6747 + $0x270] sm:$0xf]
    %v6905 = vld [vmem:[%s6747 + $0x274] sm:$0xf]
    %v6906 = vld [vmem:[%s6747 + $0x278] sm:$0xf]
    %v6907 = vld [vmem:[%s6747 + $0x27c] sm:$0xf]
    %v6908 = vld [vmem:[%s6747 + $0x280] sm:$0xf]
    %v6909 = vld [vmem:[%s6747 + $0x284] sm:$0xf]
    %v6910 = vld [vmem:[%s6747 + $0x288] sm:$0xf]
    %v6911 = vld [vmem:[%s6747 + $0x28c] sm:$0xf]
    %v6912 = vld [vmem:[%s6747 + $0x290] sm:$0xf]
    %v6913 = vld [vmem:[%s6747 + $0x294] sm:$0xf]
    %v6914 = vld [vmem:[%s6747 + $0x298] sm:$0xf]
    %v6915 = vld [vmem:[%s6747 + $0x29c] sm:$0xf]
    %v6916 = vld [vmem:[%s6747 + $0x2a0] sm:$0xf]
    %v6917 = vld [vmem:[%s6747 + $0x2a4] sm:$0xf]
    %v6918 = vld [vmem:[%s6747 + $0x2a8] sm:$0xf]
    %v6919 = vld [vmem:[%s6747 + $0x2ac] sm:$0xf]
    %v6920 = vld [vmem:[%s6747 + $0x2b0] sm:$0xf]
    %v6921 = vld [vmem:[%s6747 + $0x2b4] sm:$0xf]
    %v6922 = vld [vmem:[%s6747 + $0x2b8] sm:$0xf]
    %v6923 = vld [vmem:[%s6747 + $0x2bc] sm:$0xf]
    %v6924 = vld [vmem:[%s6747 + $0x2c0] sm:$0xf]
    %v6925 = vld [vmem:[%s6747 + $0x2c4] sm:$0xf]
    %v6926 = vld [vmem:[%s6747 + $0x2c8] sm:$0xf]
    %v6927 = vld [vmem:[%s6747 + $0x2cc] sm:$0xf]
    %v6928 = vld [vmem:[%s6747 + $0x2d0] sm:$0xf]
    %v6929 = vld [vmem:[%s6747 + $0x2d4] sm:$0xf]
    %v6930 = vld [vmem:[%s6747 + $0x2d8] sm:$0xf]
    %v6931 = vld [vmem:[%s6747 + $0x2dc] sm:$0xf]
    %v6932 = vld [vmem:[%s6747 + $0x2e0] sm:$0xf]
    %v6933 = vld [vmem:[%s6747 + $0x2e4] sm:$0xf]
    %v6934 = vld [vmem:[%s6747 + $0x2e8] sm:$0xf]
    %v6935 = vld [vmem:[%s6747 + $0x2ec] sm:$0xf]
    %v6936 = vld [vmem:[%s6747 + $0x2f0] sm:$0xf]
    %v6937 = vld [vmem:[%s6747 + $0x2f4] sm:$0xf]
    %v6938 = vld [vmem:[%s6747 + $0x2f8] sm:$0xf]
    %v6939 = vld [vmem:[%s6747 + $0x2fc] sm:$0xf]
    %v6940 = vld [vmem:[%s6747 + $0x300] sm:$0xf]
    %v6941 = vld [vmem:[%s6747 + $0x304] sm:$0xf]
    %v6942 = vld [vmem:[%s6747 + $0x308] sm:$0xf]
    %v6943 = vld [vmem:[%s6747 + $0x30c] sm:$0xf]
    %v6944 = vld [vmem:[%s6747 + $0x310] sm:$0xf]
    %v6945 = vld [vmem:[%s6747 + $0x314] sm:$0xf]
    %v6946 = vld [vmem:[%s6747 + $0x318] sm:$0xf]
    %v6947 = vld [vmem:[%s6747 + $0x31c] sm:$0xf]
    %v6948 = vld [vmem:[%s6747 + $0x320] sm:$0xf]
    %v6949 = vld [vmem:[%s6747 + $0x324] sm:$0xf]
    %v6950 = vld [vmem:[%s6747 + $0x328] sm:$0xf]
    %v6951 = vld [vmem:[%s6747 + $0x32c] sm:$0xf]
    %v6952 = vld [vmem:[%s6747 + $0x330] sm:$0xf]
    %v6953 = vld [vmem:[%s6747 + $0x334] sm:$0xf]
    %v6954 = vld [vmem:[%s6747 + $0x338] sm:$0xf]
    %v6955 = vld [vmem:[%s6747 + $0x33c] sm:$0xf]
    %v6956 = vld [vmem:[%s6747 + $0x340] sm:$0xf]
    %v6957 = vld [vmem:[%s6747 + $0x344] sm:$0xf]
    %v6958 = vld [vmem:[%s6747 + $0x348] sm:$0xf]
    %v6959 = vld [vmem:[%s6747 + $0x34c] sm:$0xf]
    %v6960 = vld [vmem:[%s6747 + $0x350] sm:$0xf]
    %v6961 = vld [vmem:[%s6747 + $0x354] sm:$0xf]
    %v6962 = vld [vmem:[%s6747 + $0x358] sm:$0xf]
    %v6963 = vld [vmem:[%s6747 + $0x35c] sm:$0xf]
    %v6964 = vld [vmem:[%s6747 + $0x360] sm:$0xf]
    %v6965 = vld [vmem:[%s6747 + $0x364] sm:$0xf]
    %v6966 = vld [vmem:[%s6747 + $0x368] sm:$0xf]
    %v6967 = vld [vmem:[%s6747 + $0x36c] sm:$0xf]
    %v6968 = vld [vmem:[%s6747 + $0x370] sm:$0xf]
    %v6969 = vld [vmem:[%s6747 + $0x374] sm:$0xf]
    %v6970 = vld [vmem:[%s6747 + $0x378] sm:$0xf]
    %v6971 = vld [vmem:[%s6747 + $0x37c] sm:$0xf]
    %v6972 = vld [vmem:[%s6747 + $0x380] sm:$0xf]
    %v6973 = vld [vmem:[%s6747 + $0x384] sm:$0xf]
    %v6974 = vld [vmem:[%s6747 + $0x388] sm:$0xf]
    %v6975 = vld [vmem:[%s6747 + $0x38c] sm:$0xf]
    %v6976 = vld [vmem:[%s6747 + $0x390] sm:$0xf]
    %v6977 = vld [vmem:[%s6747 + $0x394] sm:$0xf]
    %v6978 = vld [vmem:[%s6747 + $0x398] sm:$0xf]
    %v6979 = vld [vmem:[%s6747 + $0x39c] sm:$0xf]
    %v6980 = vld [vmem:[%s6747 + $0x3a0] sm:$0xf]
    %v6981 = vld [vmem:[%s6747 + $0x3a4] sm:$0xf]
    %v6982 = vld [vmem:[%s6747 + $0x3a8] sm:$0xf]
    %v6983 = vld [vmem:[%s6747 + $0x3ac] sm:$0xf]
    %v6984 = vld [vmem:[%s6747 + $0x3b0] sm:$0xf]
    %v6985 = vld [vmem:[%s6747 + $0x3b4] sm:$0xf]
    %v6986 = vld [vmem:[%s6747 + $0x3b8] sm:$0xf]
    %v6987 = vld [vmem:[%s6747 + $0x3bc] sm:$0xf]
    %v6988 = vld [vmem:[%s6747 + $0x3c0] sm:$0xf]
    %v6989 = vld [vmem:[%s6747 + $0x3c4] sm:$0xf]
    %v6990 = vld [vmem:[%s6747 + $0x3c8] sm:$0xf]
    %v6991 = vld [vmem:[%s6747 + $0x3cc] sm:$0xf]
    %v6992 = vld [vmem:[%s6747 + $0x3d0] sm:$0xf]
    %v6993 = vld [vmem:[%s6747 + $0x3d4] sm:$0xf]
    %v6994 = vld [vmem:[%s6747 + $0x3d8] sm:$0xf]
    %v6995 = vld [vmem:[%s6747 + $0x3dc] sm:$0xf]
    %v6996 = vld [vmem:[%s6747 + $0x3e0] sm:$0xf]
    %v6997 = vld [vmem:[%s6747 + $0x3e4] sm:$0xf]
    %v6998 = vld [vmem:[%s6747 + $0x3e8] sm:$0xf]
    %v6999 = vld [vmem:[%s6747 + $0x3ec] sm:$0xf]
    %v7000 = vld [vmem:[%s6747 + $0x3f0] sm:$0xf]
    %v7001 = vld [vmem:[%s6747 + $0x3f4] sm:$0xf]
    %v7002 = vld [vmem:[%s6747 + $0x3f8] sm:$0xf]
    %v7003 = vld [vmem:[%s6747 + $0x3fc] sm:$0xf]
    %s7004 = scalar_lea.vmem %s51, 1
    %v7005 = vld [vmem:[%s7004] sm:$0x1]
    %v7007 = vlaneseq
    %v7008 = vshrl.u32 %v7007, 7
    %v7009 = vsub.s32 0, %v7008
    %v7010 = vrot.slane %v7005, %v7009
    %v7268 = vunpack.c.l.b16 %v6748
    %v7269 = vunpack.c.l.b16 %v6749
    %v7270 = vunpack.c.l.b16 %v6750
    %v7271 = vunpack.c.l.b16 %v6751
    %v7272 = vunpack.c.l.b16 %v6752
    %v7273 = vunpack.c.l.b16 %v6753
    %v7274 = vunpack.c.l.b16 %v6754
    %v7275 = vunpack.c.l.b16 %v6755
    %v7276 = vunpack.c.l.b16 %v6756
    %v7277 = vunpack.c.l.b16 %v6757
    %v7278 = vunpack.c.l.b16 %v6758
    %v7279 = vunpack.c.l.b16 %v6759
    %v7280 = vunpack.c.l.b16 %v6760
    %v7281 = vunpack.c.l.b16 %v6761
    %v7282 = vunpack.c.l.b16 %v6762
    %v7283 = vunpack.c.l.b16 %v6763
    %v7284 = vunpack.c.l.b16 %v6764
    %v7285 = vunpack.c.l.b16 %v6765
    %v7286 = vunpack.c.l.b16 %v6766
    %v7287 = vunpack.c.l.b16 %v6767
    %v7288 = vunpack.c.l.b16 %v6768
    %v7289 = vunpack.c.l.b16 %v6769
    %v7290 = vunpack.c.l.b16 %v6770
    %v7291 = vunpack.c.l.b16 %v6771
    %v7292 = vunpack.c.l.b16 %v6772
    %v7293 = vunpack.c.l.b16 %v6773
    %v7294 = vunpack.c.l.b16 %v6774
    %v7295 = vunpack.c.l.b16 %v6775
    %v7296 = vunpack.c.l.b16 %v6776
    %v7297 = vunpack.c.l.b16 %v6777
    %v7298 = vunpack.c.l.b16 %v6778
    %v7299 = vunpack.c.l.b16 %v6779
    %v7300 = vunpack.c.l.b16 %v6780
    %v7301 = vunpack.c.l.b16 %v6781
    %v7302 = vunpack.c.l.b16 %v6782
    %v7303 = vunpack.c.l.b16 %v6783
    %v7304 = vunpack.c.l.b16 %v6784
    %v7305 = vunpack.c.l.b16 %v6785
    %v7306 = vunpack.c.l.b16 %v6786
    %v7307 = vunpack.c.l.b16 %v6787
    %v7308 = vunpack.c.l.b16 %v6788
    %v7309 = vunpack.c.l.b16 %v6789
    %v7310 = vunpack.c.l.b16 %v6790
    %v7311 = vunpack.c.l.b16 %v6791
    %v7312 = vunpack.c.l.b16 %v6792
    %v7313 = vunpack.c.l.b16 %v6793
    %v7314 = vunpack.c.l.b16 %v6794
    %v7315 = vunpack.c.l.b16 %v6795
    %v7316 = vunpack.c.l.b16 %v6796
    %v7317 = vunpack.c.l.b16 %v6797
    %v7318 = vunpack.c.l.b16 %v6798
    %v7319 = vunpack.c.l.b16 %v6799
    %v7320 = vunpack.c.l.b16 %v6800
    %v7321 = vunpack.c.l.b16 %v6801
    %v7322 = vunpack.c.l.b16 %v6802
    %v7323 = vunpack.c.l.b16 %v6803
    %v7324 = vunpack.c.l.b16 %v6804
    %v7325 = vunpack.c.l.b16 %v6805
    %v7326 = vunpack.c.l.b16 %v6806
    %v7327 = vunpack.c.l.b16 %v6807
    %v7328 = vunpack.c.l.b16 %v6808
    %v7329 = vunpack.c.l.b16 %v6809
    %v7330 = vunpack.c.l.b16 %v6810
    %v7331 = vunpack.c.l.b16 %v6811
    %v7332 = vunpack.c.l.b16 %v6812
    %v7333 = vunpack.c.l.b16 %v6813
    %v7334 = vunpack.c.l.b16 %v6814
    %v7335 = vunpack.c.l.b16 %v6815
    %v7336 = vunpack.c.l.b16 %v6816
    %v7337 = vunpack.c.l.b16 %v6817
    %v7338 = vunpack.c.l.b16 %v6818
    %v7339 = vunpack.c.l.b16 %v6819
    %v7340 = vunpack.c.l.b16 %v6820
    %v7341 = vunpack.c.l.b16 %v6821
    %v7342 = vunpack.c.l.b16 %v6822
    %v7343 = vunpack.c.l.b16 %v6823
    %v7344 = vunpack.c.l.b16 %v6824
    %v7345 = vunpack.c.l.b16 %v6825
    %v7346 = vunpack.c.l.b16 %v6826
    %v7347 = vunpack.c.l.b16 %v6827
    %v7348 = vunpack.c.l.b16 %v6828
    %v7349 = vunpack.c.l.b16 %v6829
    %v7350 = vunpack.c.l.b16 %v6830
    %v7351 = vunpack.c.l.b16 %v6831
    %v7352 = vunpack.c.l.b16 %v6832
    %v7353 = vunpack.c.l.b16 %v6833
    %v7354 = vunpack.c.l.b16 %v6834
    %v7355 = vunpack.c.l.b16 %v6835
    %v7356 = vunpack.c.l.b16 %v6836
    %v7357 = vunpack.c.l.b16 %v6837
    %v7358 = vunpack.c.l.b16 %v6838
    %v7359 = vunpack.c.l.b16 %v6839
    %v7360 = vunpack.c.l.b16 %v6840
    %v7361 = vunpack.c.l.b16 %v6841
    %v7362 = vunpack.c.l.b16 %v6842
    %v7363 = vunpack.c.l.b16 %v6843
    %v7364 = vunpack.c.l.b16 %v6844
    %v7365 = vunpack.c.l.b16 %v6845
    %v7366 = vunpack.c.l.b16 %v6846
    %v7367 = vunpack.c.l.b16 %v6847
    %v7368 = vunpack.c.l.b16 %v6848
    %v7369 = vunpack.c.l.b16 %v6849
    %v7370 = vunpack.c.l.b16 %v6850
    %v7371 = vunpack.c.l.b16 %v6851
    %v7372 = vunpack.c.l.b16 %v6852
    %v7373 = vunpack.c.l.b16 %v6853
    %v7374 = vunpack.c.l.b16 %v6854
    %v7375 = vunpack.c.l.b16 %v6855
    %v7376 = vunpack.c.l.b16 %v6856
    %v7377 = vunpack.c.l.b16 %v6857
    %v7378 = vunpack.c.l.b16 %v6858
    %v7379 = vunpack.c.l.b16 %v6859
    %v7380 = vunpack.c.l.b16 %v6860
    %v7381 = vunpack.c.l.b16 %v6861
    %v7382 = vunpack.c.l.b16 %v6862
    %v7383 = vunpack.c.l.b16 %v6863
    %v7384 = vunpack.c.l.b16 %v6864
    %v7385 = vunpack.c.l.b16 %v6865
    %v7386 = vunpack.c.l.b16 %v6866
    %v7387 = vunpack.c.l.b16 %v6867
    %v7388 = vunpack.c.l.b16 %v6868
    %v7389 = vunpack.c.l.b16 %v6869
    %v7390 = vunpack.c.l.b16 %v6870
    %v7391 = vunpack.c.l.b16 %v6871
    %v7392 = vunpack.c.l.b16 %v6872
    %v7393 = vunpack.c.l.b16 %v6873
    %v7394 = vunpack.c.l.b16 %v6874
    %v7395 = vunpack.c.l.b16 %v6875
    %v7396 = vunpack.c.l.b16 %v6876
    %v7397 = vunpack.c.l.b16 %v6877
    %v7398 = vunpack.c.l.b16 %v6878
    %v7399 = vunpack.c.l.b16 %v6879
    %v7400 = vunpack.c.l.b16 %v6880
    %v7401 = vunpack.c.l.b16 %v6881
    %v7402 = vunpack.c.l.b16 %v6882
    %v7403 = vunpack.c.l.b16 %v6883
    %v7404 = vunpack.c.l.b16 %v6884
    %v7405 = vunpack.c.l.b16 %v6885
    %v7406 = vunpack.c.l.b16 %v6886
    %v7407 = vunpack.c.l.b16 %v6887
    %v7408 = vunpack.c.l.b16 %v6888
    %v7409 = vunpack.c.l.b16 %v6889
    %v7410 = vunpack.c.l.b16 %v6890
    %v7411 = vunpack.c.l.b16 %v6891
    %v7412 = vunpack.c.l.b16 %v6892
    %v7413 = vunpack.c.l.b16 %v6893
    %v7414 = vunpack.c.l.b16 %v6894
    %v7415 = vunpack.c.l.b16 %v6895
    %v7416 = vunpack.c.l.b16 %v6896
    %v7417 = vunpack.c.l.b16 %v6897
    %v7418 = vunpack.c.l.b16 %v6898
    %v7419 = vunpack.c.l.b16 %v6899
    %v7420 = vunpack.c.l.b16 %v6900
    %v7421 = vunpack.c.l.b16 %v6901
    %v7422 = vunpack.c.l.b16 %v6902
    %v7423 = vunpack.c.l.b16 %v6903
    %v7424 = vunpack.c.l.b16 %v6904
    %v7425 = vunpack.c.l.b16 %v6905
    %v7426 = vunpack.c.l.b16 %v6906
    %v7427 = vunpack.c.l.b16 %v6907
    %v7428 = vunpack.c.l.b16 %v6908
    %v7429 = vunpack.c.l.b16 %v6909
    %v7430 = vunpack.c.l.b16 %v6910
    %v7431 = vunpack.c.l.b16 %v6911
    %v7432 = vunpack.c.l.b16 %v6912
    %v7433 = vunpack.c.l.b16 %v6913
    %v7434 = vunpack.c.l.b16 %v6914
    %v7435 = vunpack.c.l.b16 %v6915
    %v7436 = vunpack.c.l.b16 %v6916
    %v7437 = vunpack.c.l.b16 %v6917
    %v7438 = vunpack.c.l.b16 %v6918
    %v7439 = vunpack.c.l.b16 %v6919
    %v7440 = vunpack.c.l.b16 %v6920
    %v7441 = vunpack.c.l.b16 %v6921
    %v7442 = vunpack.c.l.b16 %v6922
    %v7443 = vunpack.c.l.b16 %v6923
    %v7444 = vunpack.c.l.b16 %v6924
    %v7445 = vunpack.c.l.b16 %v6925
    %v7446 = vunpack.c.l.b16 %v6926
    %v7447 = vunpack.c.l.b16 %v6927
    %v7448 = vunpack.c.l.b16 %v6928
    %v7449 = vunpack.c.l.b16 %v6929
    %v7450 = vunpack.c.l.b16 %v6930
    %v7451 = vunpack.c.l.b16 %v6931
    %v7452 = vunpack.c.l.b16 %v6932
    %v7453 = vunpack.c.l.b16 %v6933
    %v7454 = vunpack.c.l.b16 %v6934
    %v7455 = vunpack.c.l.b16 %v6935
    %v7456 = vunpack.c.l.b16 %v6936
    %v7457 = vunpack.c.l.b16 %v6937
    %v7458 = vunpack.c.l.b16 %v6938
    %v7459 = vunpack.c.l.b16 %v6939
    %v7460 = vunpack.c.l.b16 %v6940
    %v7461 = vunpack.c.l.b16 %v6941
    %v7462 = vunpack.c.l.b16 %v6942
    %v7463 = vunpack.c.l.b16 %v6943
    %v7464 = vunpack.c.l.b16 %v6944
    %v7465 = vunpack.c.l.b16 %v6945
    %v7466 = vunpack.c.l.b16 %v6946
    %v7467 = vunpack.c.l.b16 %v6947
    %v7468 = vunpack.c.l.b16 %v6948
    %v7469 = vunpack.c.l.b16 %v6949
    %v7470 = vunpack.c.l.b16 %v6950
    %v7471 = vunpack.c.l.b16 %v6951
    %v7472 = vunpack.c.l.b16 %v6952
    %v7473 = vunpack.c.l.b16 %v6953
    %v7474 = vunpack.c.l.b16 %v6954
    %v7475 = vunpack.c.l.b16 %v6955
    %v7476 = vunpack.c.l.b16 %v6956
    %v7477 = vunpack.c.l.b16 %v6957
    %v7478 = vunpack.c.l.b16 %v6958
    %v7479 = vunpack.c.l.b16 %v6959
    %v7480 = vunpack.c.l.b16 %v6960
    %v7481 = vunpack.c.l.b16 %v6961
    %v7482 = vunpack.c.l.b16 %v6962
    %v7483 = vunpack.c.l.b16 %v6963
    %v7484 = vunpack.c.l.b16 %v6964
    %v7485 = vunpack.c.l.b16 %v6965
    %v7486 = vunpack.c.l.b16 %v6966
    %v7487 = vunpack.c.l.b16 %v6967
    %v7488 = vunpack.c.l.b16 %v6968
    %v7489 = vunpack.c.l.b16 %v6969
    %v7490 = vunpack.c.l.b16 %v6970
    %v7491 = vunpack.c.l.b16 %v6971
    %v7492 = vunpack.c.l.b16 %v6972
    %v7493 = vunpack.c.l.b16 %v6973
    %v7494 = vunpack.c.l.b16 %v6974
    %v7495 = vunpack.c.l.b16 %v6975
    %v7496 = vunpack.c.l.b16 %v6976
    %v7497 = vunpack.c.l.b16 %v6977
    %v7498 = vunpack.c.l.b16 %v6978
    %v7499 = vunpack.c.l.b16 %v6979
    %v7500 = vunpack.c.l.b16 %v6980
    %v7501 = vunpack.c.l.b16 %v6981
    %v7502 = vunpack.c.l.b16 %v6982
    %v7503 = vunpack.c.l.b16 %v6983
    %v7504 = vunpack.c.l.b16 %v6984
    %v7505 = vunpack.c.l.b16 %v6985
    %v7506 = vunpack.c.l.b16 %v6986
    %v7507 = vunpack.c.l.b16 %v6987
    %v7508 = vunpack.c.l.b16 %v6988
    %v7509 = vunpack.c.l.b16 %v6989
    %v7510 = vunpack.c.l.b16 %v6990
    %v7511 = vunpack.c.l.b16 %v6991
    %v7512 = vunpack.c.l.b16 %v6992
    %v7513 = vunpack.c.l.b16 %v6993
    %v7514 = vunpack.c.l.b16 %v6994
    %v7515 = vunpack.c.l.b16 %v6995
    %v7516 = vunpack.c.l.b16 %v6996
    %v7517 = vunpack.c.l.b16 %v6997
    %v7518 = vunpack.c.l.b16 %v6998
    %v7519 = vunpack.c.l.b16 %v6999
    %v7520 = vunpack.c.l.b16 %v7000
    %v7521 = vunpack.c.l.b16 %v7001
    %v7522 = vunpack.c.l.b16 %v7002
    %v7523 = vunpack.c.l.b16 %v7003
    %v7524 = vpack.c.b16 %v7269, %v7268
    %v7525 = vpack.c.b16 %v7271, %v7270
    %v7526 = vpack.c.b16 %v7273, %v7272
    %v7527 = vpack.c.b16 %v7275, %v7274
    %v7528 = vpack.c.b16 %v7277, %v7276
    %v7529 = vpack.c.b16 %v7279, %v7278
    %v7530 = vpack.c.b16 %v7281, %v7280
    %v7531 = vpack.c.b16 %v7283, %v7282
    %v7532 = vpack.c.b16 %v7285, %v7284
    %v7533 = vpack.c.b16 %v7287, %v7286
    %v7534 = vpack.c.b16 %v7289, %v7288
    %v7535 = vpack.c.b16 %v7291, %v7290
    %v7536 = vpack.c.b16 %v7293, %v7292
    %v7537 = vpack.c.b16 %v7295, %v7294
    %v7538 = vpack.c.b16 %v7297, %v7296
    %v7539 = vpack.c.b16 %v7299, %v7298
    %v7540 = vpack.c.b16 %v7301, %v7300
    %v7541 = vpack.c.b16 %v7303, %v7302
    %v7542 = vpack.c.b16 %v7305, %v7304
    %v7543 = vpack.c.b16 %v7307, %v7306
    %v7544 = vpack.c.b16 %v7309, %v7308
    %v7545 = vpack.c.b16 %v7311, %v7310
    %v7546 = vpack.c.b16 %v7313, %v7312
    %v7547 = vpack.c.b16 %v7315, %v7314
    %v7548 = vpack.c.b16 %v7317, %v7316
    %v7549 = vpack.c.b16 %v7319, %v7318
    %v7550 = vpack.c.b16 %v7321, %v7320
    %v7551 = vpack.c.b16 %v7323, %v7322
    %v7552 = vpack.c.b16 %v7325, %v7324
    %v7553 = vpack.c.b16 %v7327, %v7326
    %v7554 = vpack.c.b16 %v7329, %v7328
    %v7555 = vpack.c.b16 %v7331, %v7330
    %v7556 = vpack.c.b16 %v7333, %v7332
    %v7557 = vpack.c.b16 %v7335, %v7334
    %v7558 = vpack.c.b16 %v7337, %v7336
    %v7559 = vpack.c.b16 %v7339, %v7338
    %v7560 = vpack.c.b16 %v7341, %v7340
    %v7561 = vpack.c.b16 %v7343, %v7342
    %v7562 = vpack.c.b16 %v7345, %v7344
    %v7563 = vpack.c.b16 %v7347, %v7346
    %v7564 = vpack.c.b16 %v7349, %v7348
    %v7565 = vpack.c.b16 %v7351, %v7350
    %v7566 = vpack.c.b16 %v7353, %v7352
    %v7567 = vpack.c.b16 %v7355, %v7354
    %v7568 = vpack.c.b16 %v7357, %v7356
    %v7569 = vpack.c.b16 %v7359, %v7358
    %v7570 = vpack.c.b16 %v7361, %v7360
    %v7571 = vpack.c.b16 %v7363, %v7362
    %v7572 = vpack.c.b16 %v7365, %v7364
    %v7573 = vpack.c.b16 %v7367, %v7366
    %v7574 = vpack.c.b16 %v7369, %v7368
    %v7575 = vpack.c.b16 %v7371, %v7370
    %v7576 = vpack.c.b16 %v7373, %v7372
    %v7577 = vpack.c.b16 %v7375, %v7374
    %v7578 = vpack.c.b16 %v7377, %v7376
    %v7579 = vpack.c.b16 %v7379, %v7378
    %v7580 = vpack.c.b16 %v7381, %v7380
    %v7581 = vpack.c.b16 %v7383, %v7382
    %v7582 = vpack.c.b16 %v7385, %v7384
    %v7583 = vpack.c.b16 %v7387, %v7386
    %v7584 = vpack.c.b16 %v7389, %v7388
    %v7585 = vpack.c.b16 %v7391, %v7390
    %v7586 = vpack.c.b16 %v7393, %v7392
    %v7587 = vpack.c.b16 %v7395, %v7394
    %v7588 = vpack.c.b16 %v7397, %v7396
    %v7589 = vpack.c.b16 %v7399, %v7398
    %v7590 = vpack.c.b16 %v7401, %v7400
    %v7591 = vpack.c.b16 %v7403, %v7402
    %v7592 = vpack.c.b16 %v7405, %v7404
    %v7593 = vpack.c.b16 %v7407, %v7406
    %v7594 = vpack.c.b16 %v7409, %v7408
    %v7595 = vpack.c.b16 %v7411, %v7410
    %v7596 = vpack.c.b16 %v7413, %v7412
    %v7597 = vpack.c.b16 %v7415, %v7414
    %v7598 = vpack.c.b16 %v7417, %v7416
    %v7599 = vpack.c.b16 %v7419, %v7418
    %v7600 = vpack.c.b16 %v7421, %v7420
    %v7601 = vpack.c.b16 %v7423, %v7422
    %v7602 = vpack.c.b16 %v7425, %v7424
    %v7603 = vpack.c.b16 %v7427, %v7426
    %v7604 = vpack.c.b16 %v7429, %v7428
    %v7605 = vpack.c.b16 %v7431, %v7430
    %v7606 = vpack.c.b16 %v7433, %v7432
    %v7607 = vpack.c.b16 %v7435, %v7434
    %v7608 = vpack.c.b16 %v7437, %v7436
    %v7609 = vpack.c.b16 %v7439, %v7438
    %v7610 = vpack.c.b16 %v7441, %v7440
    %v7611 = vpack.c.b16 %v7443, %v7442
    %v7612 = vpack.c.b16 %v7445, %v7444
    %v7613 = vpack.c.b16 %v7447, %v7446
    %v7614 = vpack.c.b16 %v7449, %v7448
    %v7615 = vpack.c.b16 %v7451, %v7450
    %v7616 = vpack.c.b16 %v7453, %v7452
    %v7617 = vpack.c.b16 %v7455, %v7454
    %v7618 = vpack.c.b16 %v7457, %v7456
    %v7619 = vpack.c.b16 %v7459, %v7458
    %v7620 = vpack.c.b16 %v7461, %v7460
    %v7621 = vpack.c.b16 %v7463, %v7462
    %v7622 = vpack.c.b16 %v7465, %v7464
    %v7623 = vpack.c.b16 %v7467, %v7466
    %v7624 = vpack.c.b16 %v7469, %v7468
    %v7625 = vpack.c.b16 %v7471, %v7470
    %v7626 = vpack.c.b16 %v7473, %v7472
    %v7627 = vpack.c.b16 %v7475, %v7474
    %v7628 = vpack.c.b16 %v7477, %v7476
    %v7629 = vpack.c.b16 %v7479, %v7478
    %v7630 = vpack.c.b16 %v7481, %v7480
    %v7631 = vpack.c.b16 %v7483, %v7482
    %v7632 = vpack.c.b16 %v7485, %v7484
    %v7633 = vpack.c.b16 %v7487, %v7486
    %v7634 = vpack.c.b16 %v7489, %v7488
    %v7635 = vpack.c.b16 %v7491, %v7490
    %v7636 = vpack.c.b16 %v7493, %v7492
    %v7637 = vpack.c.b16 %v7495, %v7494
    %v7638 = vpack.c.b16 %v7497, %v7496
    %v7639 = vpack.c.b16 %v7499, %v7498
    %v7640 = vpack.c.b16 %v7501, %v7500
    %v7641 = vpack.c.b16 %v7503, %v7502
    %v7642 = vpack.c.b16 %v7505, %v7504
    %v7643 = vpack.c.b16 %v7507, %v7506
    %v7644 = vpack.c.b16 %v7509, %v7508
    %v7645 = vpack.c.b16 %v7511, %v7510
    %v7646 = vpack.c.b16 %v7513, %v7512
    %v7647 = vpack.c.b16 %v7515, %v7514
    %v7648 = vpack.c.b16 %v7517, %v7516
    %v7649 = vpack.c.b16 %v7519, %v7518
    %v7650 = vpack.c.b16 %v7521, %v7520
    %v7651 = vpack.c.b16 %v7523, %v7522
    %7780 = vmatprep.subr.bf16.mxu0 0
    %7781 = vmatpush1.bf16.msra.mxu0 %v7531
    %7782 = vmatprep.subr.bf16.mxu0 0
    %7783 = vmatpush1.bf16.msra.mxu0 %v7530
    %7784 = vmatprep.subr.bf16.mxu0 0
    %7785 = vmatpush1.bf16.msra.mxu0 %v7529
    %7786 = vmatprep.subr.bf16.mxu0 0
    %7787 = vmatpush1.bf16.msra.mxu0 %v7528
    %7788 = vmatprep.subr.bf16.mxu0 0
    %7789 = vmatpush1.bf16.msra.mxu0 %v7527
    %7790 = vmatprep.subr.bf16.mxu0 0
    %7791 = vmatpush1.bf16.msra.mxu0 %v7526
    %7792 = vmatprep.subr.bf16.mxu0 0
    %7793 = vmatpush1.bf16.msra.mxu0 %v7525
    %7794 = vmatprep.subr.bf16.mxu0 0
    %7795 = vmatpush1.bf16.msra.mxu0 %v7524
    %7796 = vmatprep.subr.bf16.mxu0 0
    %7797 = vmatpush2.bf16.msra.mxu0 %v7539
    %7798 = vmatprep.subr.bf16.mxu0 0
    %7799 = vmatpush2.bf16.msra.mxu0 %v7538
    %7800 = vmatprep.subr.bf16.mxu0 0
    %7801 = vmatpush2.bf16.msra.mxu0 %v7537
    %7802 = vmatprep.subr.bf16.mxu0 0
    %7803 = vmatpush2.bf16.msra.mxu0 %v7536
    %7804 = vmatprep.subr.bf16.mxu0 0
    %7805 = vmatpush2.bf16.msra.mxu0 %v7535
    %7806 = vmatprep.subr.bf16.mxu0 0
    %7807 = vmatpush2.bf16.msra.mxu0 %v7534
    %7808 = vmatprep.subr.bf16.mxu0 0
    %7809 = vmatpush2.bf16.msra.mxu0 %v7533
    %7810 = vmatprep.subr.bf16.mxu0 0
    %7811 = vmatpush2.bf16.msra.mxu0 %v7532
    %7812 = vmatprep.mubr.bf16.mxu0 %v6716
    %7813 = vmatmul.mubr.bf16.gmra.mxu0 %v6715
    %v7814 = vpop.f32.mrf.mxu0
    %v7815 = vadd.f32 %v7010, %v7814
    %v7816 = vpop.f32.mrf.mxu0
    %v7817 = vpop.f32.mrf.mxu0
    %v7818 = vpop.f32.mrf.mxu0
    %7819 = vmatprep.mubr.bf16.mxu0 %v6732
    %7820 = vmatmul.mubr.bf16.gmra.mxu0 %v6731
    %v7821 = vpop.f32.mrf.mxu0
    %v7822 = vadd.f32 %v7010, %v7821
    %v7823 = vpop.f32.mrf.mxu0
    %v7824 = vpop.f32.mrf.mxu0
    %v7825 = vpop.f32.mrf.mxu0
    %7826 = vdwg.mxu0
    %7827 = vmatprep.subr.bf16.mxu0 0
    %7828 = vmatpush1.bf16.msra.mxu0 %v7547
    %7829 = vmatprep.subr.bf16.mxu0 0
    %7830 = vmatpush1.bf16.msra.mxu0 %v7546
    %7831 = vmatprep.subr.bf16.mxu0 0
    %7832 = vmatpush1.bf16.msra.mxu0 %v7545
    %7833 = vmatprep.subr.bf16.mxu0 0
    %7834 = vmatpush1.bf16.msra.mxu0 %v7544
    %7835 = vmatprep.subr.bf16.mxu0 0
    %7836 = vmatpush1.bf16.msra.mxu0 %v7543
    %7837 = vmatprep.subr.bf16.mxu0 0
    %7838 = vmatpush1.bf16.msra.mxu0 %v7542
    %7839 = vmatprep.subr.bf16.mxu0 0
    %7840 = vmatpush1.bf16.msra.mxu0 %v7541
    %7841 = vmatprep.subr.bf16.mxu0 0
    %7842 = vmatpush1.bf16.msra.mxu0 %v7540
    %7843 = vmatprep.subr.bf16.mxu0 0
    %7844 = vmatpush2.bf16.msra.mxu0 %v7555
    %7845 = vmatprep.subr.bf16.mxu0 0
    %7846 = vmatpush2.bf16.msra.mxu0 %v7554
    %7847 = vmatprep.subr.bf16.mxu0 0
    %7848 = vmatpush2.bf16.msra.mxu0 %v7553
    %7849 = vmatprep.subr.bf16.mxu0 0
    %7850 = vmatpush2.bf16.msra.mxu0 %v7552
    %7851 = vmatprep.subr.bf16.mxu0 0
    %7852 = vmatpush2.bf16.msra.mxu0 %v7551
    %7853 = vmatprep.subr.bf16.mxu0 0
    %7854 = vmatpush2.bf16.msra.mxu0 %v7550
    %7855 = vmatprep.subr.bf16.mxu0 0
    %7856 = vmatpush2.bf16.msra.mxu0 %v7549
    %7857 = vmatprep.subr.bf16.mxu0 0
    %7858 = vmatpush2.bf16.msra.mxu0 %v7548
    %7859 = vmatprep.mubr.bf16.mxu0 %v6718
    %7860 = vmatmul.mubr.bf16.gmra.mxu0 %v6717
    %v7861 = vpop.f32.mrf.mxu0
    %v7862 = vadd.f32 %v7815, %v7861
    %v7863 = vpop.f32.mrf.mxu0
    %v7864 = vpop.f32.mrf.mxu0
    %v7865 = vpop.f32.mrf.mxu0
    %7866 = vmatprep.mubr.bf16.mxu0 %v6734
    %7867 = vmatmul.mubr.bf16.gmra.mxu0 %v6733
    %v7868 = vpop.f32.mrf.mxu0
    %v7869 = vadd.f32 %v7822, %v7868
    %v7870 = vpop.f32.mrf.mxu0
    %v7871 = vpop.f32.mrf.mxu0
    %v7872 = vpop.f32.mrf.mxu0
    %7873 = vdwg.mxu0
    %7874 = vmatprep.subr.bf16.mxu0 0
    %7875 = vmatpush1.bf16.msra.mxu0 %v7563
    %7876 = vmatprep.subr.bf16.mxu0 0
    %7877 = vmatpush1.bf16.msra.mxu0 %v7562
    %7878 = vmatprep.subr.bf16.mxu0 0
    %7879 = vmatpush1.bf16.msra.mxu0 %v7561
    %7880 = vmatprep.subr.bf16.mxu0 0
    %7881 = vmatpush1.bf16.msra.mxu0 %v7560
    %7882 = vmatprep.subr.bf16.mxu0 0
    %7883 = vmatpush1.bf16.msra.mxu0 %v7559
    %7884 = vmatprep.subr.bf16.mxu0 0
    %7885 = vmatpush1.bf16.msra.mxu0 %v7558
    %7886 = vmatprep.subr.bf16.mxu0 0
    %7887 = vmatpush1.bf16.msra.mxu0 %v7557
    %7888 = vmatprep.subr.bf16.mxu0 0
    %7889 = vmatpush1.bf16.msra.mxu0 %v7556
    %7890 = vmatprep.subr.bf16.mxu0 0
    %7891 = vmatpush2.bf16.msra.mxu0 %v7571
    %7892 = vmatprep.subr.bf16.mxu0 0
    %7893 = vmatpush2.bf16.msra.mxu0 %v7570
    %7894 = vmatprep.subr.bf16.mxu0 0
    %7895 = vmatpush2.bf16.msra.mxu0 %v7569
    %7896 = vmatprep.subr.bf16.mxu0 0
    %7897 = vmatpush2.bf16.msra.mxu0 %v7568
    %7898 = vmatprep.subr.bf16.mxu0 0
    %7899 = vmatpush2.bf16.msra.mxu0 %v7567
    %7900 = vmatprep.subr.bf16.mxu0 0
    %7901 = vmatpush2.bf16.msra.mxu0 %v7566
    %7902 = vmatprep.subr.bf16.mxu0 0
    %7903 = vmatpush2.bf16.msra.mxu0 %v7565
    %7904 = vmatprep.subr.bf16.mxu0 0
    %7905 = vmatpush2.bf16.msra.mxu0 %v7564
    %7906 = vmatprep.mubr.bf16.mxu0 %v6720
    %7907 = vmatmul.mubr.bf16.gmra.mxu0 %v6719
    %v7908 = vpop.f32.mrf.mxu0
    %v7909 = vadd.f32 %v7862, %v7908
    %v7910 = vpop.f32.mrf.mxu0
    %v7911 = vpop.f32.mrf.mxu0
    %v7912 = vpop.f32.mrf.mxu0
    %7913 = vmatprep.mubr.bf16.mxu0 %v6736
    %7914 = vmatmul.mubr.bf16.gmra.mxu0 %v6735
    %v7915 = vpop.f32.mrf.mxu0
    %v7916 = vadd.f32 %v7869, %v7915
    %v7917 = vpop.f32.mrf.mxu0
    %v7918 = vpop.f32.mrf.mxu0
    %v7919 = vpop.f32.mrf.mxu0
    %7920 = vdwg.mxu0
    %7921 = vmatprep.subr.bf16.mxu0 0
    %7922 = vmatpush1.bf16.msra.mxu0 %v7579
    %7923 = vmatprep.subr.bf16.mxu0 0
    %7924 = vmatpush1.bf16.msra.mxu0 %v7578
    %7925 = vmatprep.subr.bf16.mxu0 0
    %7926 = vmatpush1.bf16.msra.mxu0 %v7577
    %7927 = vmatprep.subr.bf16.mxu0 0
    %7928 = vmatpush1.bf16.msra.mxu0 %v7576
    %7929 = vmatprep.subr.bf16.mxu0 0
    %7930 = vmatpush1.bf16.msra.mxu0 %v7575
    %7931 = vmatprep.subr.bf16.mxu0 0
    %7932 = vmatpush1.bf16.msra.mxu0 %v7574
    %7933 = vmatprep.subr.bf16.mxu0 0
    %7934 = vmatpush1.bf16.msra.mxu0 %v7573
    %7935 = vmatprep.subr.bf16.mxu0 0
    %7936 = vmatpush1.bf16.msra.mxu0 %v7572
    %7937 = vmatprep.subr.bf16.mxu0 0
    %7938 = vmatpush2.bf16.msra.mxu0 %v7587
    %7939 = vmatprep.subr.bf16.mxu0 0
    %7940 = vmatpush2.bf16.msra.mxu0 %v7586
    %7941 = vmatprep.subr.bf16.mxu0 0
    %7942 = vmatpush2.bf16.msra.mxu0 %v7585
    %7943 = vmatprep.subr.bf16.mxu0 0
    %7944 = vmatpush2.bf16.msra.mxu0 %v7584
    %7945 = vmatprep.subr.bf16.mxu0 0
    %7946 = vmatpush2.bf16.msra.mxu0 %v7583
    %7947 = vmatprep.subr.bf16.mxu0 0
    %7948 = vmatpush2.bf16.msra.mxu0 %v7582
    %7949 = vmatprep.subr.bf16.mxu0 0
    %7950 = vmatpush2.bf16.msra.mxu0 %v7581
    %7951 = vmatprep.subr.bf16.mxu0 0
    %7952 = vmatpush2.bf16.msra.mxu0 %v7580
    %7953 = vmatprep.mubr.bf16.mxu0 %v6722
    %7954 = vmatmul.mubr.bf16.gmra.mxu0 %v6721
    %v7955 = vpop.f32.mrf.mxu0
    %v7956 = vadd.f32 %v7909, %v7955
    %v7957 = vpop.f32.mrf.mxu0
    %v7958 = vpop.f32.mrf.mxu0
    %v7959 = vpop.f32.mrf.mxu0
    %7960 = vmatprep.mubr.bf16.mxu0 %v6738
    %7961 = vmatmul.mubr.bf16.gmra.mxu0 %v6737
    %v7962 = vpop.f32.mrf.mxu0
    %v7963 = vadd.f32 %v7916, %v7962
    %v7964 = vpop.f32.mrf.mxu0
    %v7965 = vpop.f32.mrf.mxu0
    %v7966 = vpop.f32.mrf.mxu0
    %7967 = vdwg.mxu0
    %7968 = vmatprep.subr.bf16.mxu0 0
    %7969 = vmatpush1.bf16.msra.mxu0 %v7595
    %7970 = vmatprep.subr.bf16.mxu0 0
    %7971 = vmatpush1.bf16.msra.mxu0 %v7594
    %7972 = vmatprep.subr.bf16.mxu0 0
    %7973 = vmatpush1.bf16.msra.mxu0 %v7593
    %7974 = vmatprep.subr.bf16.mxu0 0
    %7975 = vmatpush1.bf16.msra.mxu0 %v7592
    %7976 = vmatprep.subr.bf16.mxu0 0
    %7977 = vmatpush1.bf16.msra.mxu0 %v7591
    %7978 = vmatprep.subr.bf16.mxu0 0
    %7979 = vmatpush1.bf16.msra.mxu0 %v7590
    %7980 = vmatprep.subr.bf16.mxu0 0
    %7981 = vmatpush1.bf16.msra.mxu0 %v7589
    %7982 = vmatprep.subr.bf16.mxu0 0
    %7983 = vmatpush1.bf16.msra.mxu0 %v7588
    %7984 = vmatprep.subr.bf16.mxu0 0
    %7985 = vmatpush2.bf16.msra.mxu0 %v7603
    %7986 = vmatprep.subr.bf16.mxu0 0
    %7987 = vmatpush2.bf16.msra.mxu0 %v7602
    %7988 = vmatprep.subr.bf16.mxu0 0
    %7989 = vmatpush2.bf16.msra.mxu0 %v7601
    %7990 = vmatprep.subr.bf16.mxu0 0
    %7991 = vmatpush2.bf16.msra.mxu0 %v7600
    %7992 = vmatprep.subr.bf16.mxu0 0
    %7993 = vmatpush2.bf16.msra.mxu0 %v7599
    %7994 = vmatprep.subr.bf16.mxu0 0
    %7995 = vmatpush2.bf16.msra.mxu0 %v7598
    %7996 = vmatprep.subr.bf16.mxu0 0
    %7997 = vmatpush2.bf16.msra.mxu0 %v7597
    %7998 = vmatprep.subr.bf16.mxu0 0
    %7999 = vmatpush2.bf16.msra.mxu0 %v7596
    %8000 = vmatprep.mubr.bf16.mxu0 %v6724
    %8001 = vmatmul.mubr.bf16.gmra.mxu0 %v6723
    %v8002 = vpop.f32.mrf.mxu0
    %v8003 = vadd.f32 %v7956, %v8002
    %v8004 = vpop.f32.mrf.mxu0
    %v8005 = vpop.f32.mrf.mxu0
    %v8006 = vpop.f32.mrf.mxu0
    %8007 = vmatprep.mubr.bf16.mxu0 %v6740
    %8008 = vmatmul.mubr.bf16.gmra.mxu0 %v6739
    %v8009 = vpop.f32.mrf.mxu0
    %v8010 = vadd.f32 %v7963, %v8009
    %v8011 = vpop.f32.mrf.mxu0
    %v8012 = vpop.f32.mrf.mxu0
    %v8013 = vpop.f32.mrf.mxu0
    %8014 = vdwg.mxu0
    %8015 = vmatprep.subr.bf16.mxu0 0
    %8016 = vmatpush1.bf16.msra.mxu0 %v7611
    %8017 = vmatprep.subr.bf16.mxu0 0
    %8018 = vmatpush1.bf16.msra.mxu0 %v7610
    %8019 = vmatprep.subr.bf16.mxu0 0
    %8020 = vmatpush1.bf16.msra.mxu0 %v7609
    %8021 = vmatprep.subr.bf16.mxu0 0
    %8022 = vmatpush1.bf16.msra.mxu0 %v7608
    %8023 = vmatprep.subr.bf16.mxu0 0
    %8024 = vmatpush1.bf16.msra.mxu0 %v7607
    %8025 = vmatprep.subr.bf16.mxu0 0
    %8026 = vmatpush1.bf16.msra.mxu0 %v7606
    %8027 = vmatprep.subr.bf16.mxu0 0
    %8028 = vmatpush1.bf16.msra.mxu0 %v7605
    %8029 = vmatprep.subr.bf16.mxu0 0
    %8030 = vmatpush1.bf16.msra.mxu0 %v7604
    %8031 = vmatprep.subr.bf16.mxu0 0
    %8032 = vmatpush2.bf16.msra.mxu0 %v7619
    %8033 = vmatprep.subr.bf16.mxu0 0
    %8034 = vmatpush2.bf16.msra.mxu0 %v7618
    %8035 = vmatprep.subr.bf16.mxu0 0
    %8036 = vmatpush2.bf16.msra.mxu0 %v7617
    %8037 = vmatprep.subr.bf16.mxu0 0
    %8038 = vmatpush2.bf16.msra.mxu0 %v7616
    %8039 = vmatprep.subr.bf16.mxu0 0
    %8040 = vmatpush2.bf16.msra.mxu0 %v7615
    %8041 = vmatprep.subr.bf16.mxu0 0
    %8042 = vmatpush2.bf16.msra.mxu0 %v7614
    %8043 = vmatprep.subr.bf16.mxu0 0
    %8044 = vmatpush2.bf16.msra.mxu0 %v7613
    %8045 = vmatprep.subr.bf16.mxu0 0
    %8046 = vmatpush2.bf16.msra.mxu0 %v7612
    %8047 = vmatprep.mubr.bf16.mxu0 %v6726
    %8048 = vmatmul.mubr.bf16.gmra.mxu0 %v6725
    %v8049 = vpop.f32.mrf.mxu0
    %v8050 = vadd.f32 %v8003, %v8049
    %v8051 = vpop.f32.mrf.mxu0
    %v8052 = vpop.f32.mrf.mxu0
    %v8053 = vpop.f32.mrf.mxu0
    %8054 = vmatprep.mubr.bf16.mxu0 %v6742
    %8055 = vmatmul.mubr.bf16.gmra.mxu0 %v6741
    %v8056 = vpop.f32.mrf.mxu0
    %v8057 = vadd.f32 %v8010, %v8056
    %v8058 = vpop.f32.mrf.mxu0
    %v8059 = vpop.f32.mrf.mxu0
    %v8060 = vpop.f32.mrf.mxu0
    %8061 = vdwg.mxu0
    %8062 = vmatprep.subr.bf16.mxu0 0
    %8063 = vmatpush1.bf16.msra.mxu0 %v7627
    %8064 = vmatprep.subr.bf16.mxu0 0
    %8065 = vmatpush1.bf16.msra.mxu0 %v7626
    %8066 = vmatprep.subr.bf16.mxu0 0
    %8067 = vmatpush1.bf16.msra.mxu0 %v7625
    %8068 = vmatprep.subr.bf16.mxu0 0
    %8069 = vmatpush1.bf16.msra.mxu0 %v7624
    %8070 = vmatprep.subr.bf16.mxu0 0
    %8071 = vmatpush1.bf16.msra.mxu0 %v7623
    %8072 = vmatprep.subr.bf16.mxu0 0
    %8073 = vmatpush1.bf16.msra.mxu0 %v7622
    %8074 = vmatprep.subr.bf16.mxu0 0
    %8075 = vmatpush1.bf16.msra.mxu0 %v7621
    %8076 = vmatprep.subr.bf16.mxu0 0
    %8077 = vmatpush1.bf16.msra.mxu0 %v7620
    %8078 = vmatprep.subr.bf16.mxu0 0
    %8079 = vmatpush2.bf16.msra.mxu0 %v7635
    %8080 = vmatprep.subr.bf16.mxu0 0
    %8081 = vmatpush2.bf16.msra.mxu0 %v7634
    %8082 = vmatprep.subr.bf16.mxu0 0
    %8083 = vmatpush2.bf16.msra.mxu0 %v7633
    %8084 = vmatprep.subr.bf16.mxu0 0
    %8085 = vmatpush2.bf16.msra.mxu0 %v7632
    %8086 = vmatprep.subr.bf16.mxu0 0
    %8087 = vmatpush2.bf16.msra.mxu0 %v7631
    %8088 = vmatprep.subr.bf16.mxu0 0
    %8089 = vmatpush2.bf16.msra.mxu0 %v7630
    %8090 = vmatprep.subr.bf16.mxu0 0
    %8091 = vmatpush2.bf16.msra.mxu0 %v7629
    %8092 = vmatprep.subr.bf16.mxu0 0
    %8093 = vmatpush2.bf16.msra.mxu0 %v7628
    %8094 = vmatprep.mubr.bf16.mxu0 %v6728
    %8095 = vmatmul.mubr.bf16.gmra.mxu0 %v6727
    %v8096 = vpop.f32.mrf.mxu0
    %v8097 = vadd.f32 %v8050, %v8096
    %v8098 = vpop.f32.mrf.mxu0
    %v8099 = vpop.f32.mrf.mxu0
    %v8100 = vpop.f32.mrf.mxu0
    %8101 = vmatprep.mubr.bf16.mxu0 %v6744
    %8102 = vmatmul.mubr.bf16.gmra.mxu0 %v6743
    %v8103 = vpop.f32.mrf.mxu0
    %v8104 = vadd.f32 %v8057, %v8103
    %v8105 = vpop.f32.mrf.mxu0
    %v8106 = vpop.f32.mrf.mxu0
    %v8107 = vpop.f32.mrf.mxu0
    %8108 = vdwg.mxu0
    %8109 = vmatprep.subr.bf16.mxu0 0
    %8110 = vmatpush1.bf16.msra.mxu0 %v7643
    %8111 = vmatprep.subr.bf16.mxu0 0
    %8112 = vmatpush1.bf16.msra.mxu0 %v7642
    %8113 = vmatprep.subr.bf16.mxu0 0
    %8114 = vmatpush1.bf16.msra.mxu0 %v7641
    %8115 = vmatprep.subr.bf16.mxu0 0
    %8116 = vmatpush1.bf16.msra.mxu0 %v7640
    %8117 = vmatprep.subr.bf16.mxu0 0
    %8118 = vmatpush1.bf16.msra.mxu0 %v7639
    %8119 = vmatprep.subr.bf16.mxu0 0
    %8120 = vmatpush1.bf16.msra.mxu0 %v7638
    %8121 = vmatprep.subr.bf16.mxu0 0
    %8122 = vmatpush1.bf16.msra.mxu0 %v7637
    %8123 = vmatprep.subr.bf16.mxu0 0
    %8124 = vmatpush1.bf16.msra.mxu0 %v7636
    %8125 = vmatprep.subr.bf16.mxu0 0
    %8126 = vmatpush2.bf16.msra.mxu0 %v7651
    %8127 = vmatprep.subr.bf16.mxu0 0
    %8128 = vmatpush2.bf16.msra.mxu0 %v7650
    %8129 = vmatprep.subr.bf16.mxu0 0
    %8130 = vmatpush2.bf16.msra.mxu0 %v7649
    %8131 = vmatprep.subr.bf16.mxu0 0
    %8132 = vmatpush2.bf16.msra.mxu0 %v7648
    %8133 = vmatprep.subr.bf16.mxu0 0
    %8134 = vmatpush2.bf16.msra.mxu0 %v7647
    %8135 = vmatprep.subr.bf16.mxu0 0
    %8136 = vmatpush2.bf16.msra.mxu0 %v7646
    %8137 = vmatprep.subr.bf16.mxu0 0
    %8138 = vmatpush2.bf16.msra.mxu0 %v7645
    %8139 = vmatprep.subr.bf16.mxu0 0
    %8140 = vmatpush2.bf16.msra.mxu0 %v7644
    %8141 = vmatprep.mubr.bf16.mxu0 %v6730
    %8142 = vmatmul.mubr.bf16.gmra.mxu0 %v6729
    %v8143 = vpop.f32.mrf.mxu0
    %v8144 = vadd.f32 %v8097, %v8143
    %v8145 = vpop.f32.mrf.mxu0
    %v8146 = vpop.f32.mrf.mxu0
    %v8147 = vpop.f32.mrf.mxu0
    %8148 = vmatprep.mubr.bf16.mxu0 %v6746
    %8149 = vmatmul.mubr.bf16.gmra.mxu0 %v6745
    %v8150 = vpop.f32.mrf.mxu0
    %v8151 = vadd.f32 %v8104, %v8150
    %v8152 = vpop.f32.mrf.mxu0
    %v8153 = vpop.f32.mrf.mxu0
    %v8154 = vpop.f32.mrf.mxu0
    %8155 = vdwg.mxu0
    %v8156 = vadd.f32 %v5937, %v8144
    %v8157 = vadd.f32 %v5939, %v8151
    %s8158 = scalar_lea.vmem %s53, 1
    %v8159 = vld [vmem:[%s8158] sm:$0x1]
    %s8160 = scalar_lea.vmem %s55, 1
    %v8161 = vld [vmem:[%s8160] sm:$0x1]
    %v8162 = vsel %vm422, %v8156, 0.0
    %8163 = vadd.xlane.f32.xlu0 %v8162
    %v8164 = vpop.xlane.xlu0 %8163
    %v8165 = vsel %vm422, %v8157, 0.0
    %8166 = vadd.xlane.f32.xlu0 %v8165
    %v8167 = vpop.xlane.xlu0 %8166
    %v8168 = vmul.f32 %v8164, %v2285
    %v8169 = vmul.f32 %v8167, %v2285
    %v8170 = vsub.f32 %v8156, %v8168
    %v8171 = vsub.f32 %v8157, %v8169
    %v8172 = vmul.f32 %v8170, %v8170
    %v8173 = vmul.f32 %v8171, %v8171
    %v8174 = vsel %vm422, %v8172, 0.0
    %8175 = vadd.xlane.f32.xlu0 %v8174
    %v8176 = vpop.xlane.xlu0 %8175
    %v8177 = vsel %vm422, %v8173, 0.0
    %8178 = vadd.xlane.f32.xlu0 %v8177
    %v8179 = vpop.xlane.xlu0 %8178
    %v8180 = vmul.f32 %v8176, %v2285
    %v8181 = vmul.f32 %v8179, %v2285
    %v8182 = vadd.f32 %v8180, 1e-05
    %v8183 = vadd.f32 %v8181, 1e-05
    %v8184 = vrsqrt.pop %v8182
    %v8185 = vrsqrt.pop %v8183
    %v8186 = vmul.f32 %v8170, %v8184
    %v8187 = vmul.f32 %v8171, %v8185
    %v8189 = vlaneseq
    %v8190 = vshrl.u32 %v8189, 7
    %v8191 = vsub.s32 0, %v8190
    %v8192 = vrot.slane %v8159, %v8191
    %v8194 = vmul.f32 %v8186, %v8192
    %v8195 = vmul.f32 %v8187, %v8192
    %v8197 = vlaneseq
    %v8198 = vshrl.u32 %v8197, 7
    %v8199 = vsub.s32 0, %v8198
    %v8200 = vrot.slane %v8161, %v8199
    %v8202 = vadd.f32 %v8194, %v8200
    %v8203 = vadd.f32 %v8195, %v8200
    %v8205 = vrot.slane %v8203, 7
    %vm8207 = vcmask 1040384
    %v8208 = vsel %vm8207, %v8202, %v8205
    %v8209 = vld [vmem:[%s57] sm:$0xff]
    %v8210 = vld [vmem:[%s57 + $0x8] sm:$0xff]
    %v8211 = vld [vmem:[%s57 + $0x10] sm:$0xff]
    %v8212 = vld [vmem:[%s57 + $0x18] sm:$0xff]
    %v8213 = vld [vmem:[%s59] sm:$0x1]
    %v8215 = vlaneseq
    %v8216 = vshrl.u32 %v8215, 7
    %v8217 = vsub.s32 0, %v8216
    %v8218 = vrot.slane %v8213, %v8217
    %v8221 = vsel %vm422, %v8208, 0
    %8223 = vmatprep.subr.mxu0 0.0
    %8224 = vmatpush1.msra.mxu0 0.0
    %8225 = vmatprep.subr.mxu0 0.0
    %8226 = vmatpush1.msra.mxu0 0.0
    %8227 = vmatprep.subr.mxu0 0.0
    %8228 = vmatpush1.msra.mxu0 0.0
    %8229 = vmatprep.subr.mxu0 0.0
    %8230 = vmatpush1.msra.mxu0 0.0
    %8231 = vmatprep.subr.mxu0 0.0
    %8232 = vmatpush1.msra.mxu0 0.0
    %8233 = vmatprep.subr.mxu0 0.0
    %8234 = vmatpush1.msra.mxu0 0.0
    %8235 = vmatprep.subr.mxu0 0.0
    %8236 = vmatpush1.msra.mxu0 0.0
    %8237 = vmatprep.subr.mxu0 0.0
    %8238 = vmatpush1.msra.mxu0 0.0
    %8239 = vmatprep.subr.mxu0 0.0
    %8240 = vmatpush1.msra.mxu0 0.0
    %8241 = vmatprep.subr.mxu0 0.0
    %8242 = vmatpush1.msra.mxu0 0.0
    %8243 = vmatprep.subr.mxu0 0.0
    %8244 = vmatpush1.msra.mxu0 0.0
    %8245 = vmatprep.subr.mxu0 0.0
    %8246 = vmatpush1.msra.mxu0 0.0
    %8247 = vmatprep.subr.mxu0 0.0
    %8248 = vmatpush1.msra.mxu0 %v8212
    %8249 = vmatprep.subr.mxu0 0.0
    %8250 = vmatpush1.msra.mxu0 %v8211
    %8251 = vmatprep.subr.mxu0 0.0
    %8252 = vmatpush1.msra.mxu0 %v8210
    %8253 = vmatprep.subr.mxu0 0.0
    %8254 = vmatpush1.msra.mxu0 %v8209
    %8255 = vmatprep.subr.mxu0 0.0
    %8256 = vmatpush2.msra.mxu0 0.0
    %8257 = vmatprep.subr.mxu0 0.0
    %8258 = vmatpush2.msra.mxu0 0.0
    %8259 = vmatprep.subr.mxu0 0.0
    %8260 = vmatpush2.msra.mxu0 0.0
    %8261 = vmatprep.subr.mxu0 0.0
    %8262 = vmatpush2.msra.mxu0 0.0
    %8263 = vmatprep.subr.mxu0 0.0
    %8264 = vmatpush2.msra.mxu0 0.0
    %8265 = vmatprep.subr.mxu0 0.0
    %8266 = vmatpush2.msra.mxu0 0.0
    %8267 = vmatprep.subr.mxu0 0.0
    %8268 = vmatpush2.msra.mxu0 0.0
    %8269 = vmatprep.subr.mxu0 0.0
    %8270 = vmatpush2.msra.mxu0 0.0
    %8271 = vmatprep.subr.mxu0 0.0
    %8272 = vmatpush2.msra.mxu0 0.0
    %8273 = vmatprep.subr.mxu0 0.0
    %8274 = vmatpush2.msra.mxu0 0.0
    %8275 = vmatprep.subr.mxu0 0.0
    %8276 = vmatpush2.msra.mxu0 0.0
    %8277 = vmatprep.subr.mxu0 0.0
    %8278 = vmatpush2.msra.mxu0 0.0
    %8279 = vmatprep.subr.mxu0 0.0
    %8280 = vmatpush2.msra.mxu0 0.0
    %8281 = vmatprep.subr.mxu0 0.0
    %8282 = vmatpush2.msra.mxu0 0.0
    %8283 = vmatprep.subr.mxu0 0.0
    %8284 = vmatpush2.msra.mxu0 0.0
    %8285 = vmatprep.subr.mxu0 0.0
    %8286 = vmatpush2.msra.mxu0 0.0
    %8287 = vmatprep.mubr.f32.mxu0 0.0
    %8288 = vmatmul.mubr.f32.gmra.mxu0 %v8221
    %v8289 = vpop.f32.mrf.mxu0
    %v8290 = vadd.f32 %v8218, %v8289
    %v8291 = vpop.f32.mrf.mxu0
    %8292 = vdwg.mxu0
    %v8293 = vmax.f32 %v8290, 0.0
    %v8294 = vld [vmem:[%s61] sm:$0xff]
    %v8295 = vld [vmem:[%s61 + $0x8] sm:$0xff]
    %v8296 = vld [vmem:[%s61 + $0x10] sm:$0xff]
    %v8297 = vld [vmem:[%s61 + $0x18] sm:$0xff]
    %v8298 = vld [vmem:[%s63] sm:$0x1]
    %v8300 = vlaneseq
    %v8301 = vshrl.u32 %v8300, 7
    %v8302 = vsub.s32 0, %v8301
    %v8303 = vrot.slane %v8298, %v8302
    %v8306 = vsel %vm422, %v8293, 0
    %8308 = vmatprep.subr.mxu0 0.0
    %8309 = vmatpush1.msra.mxu0 0.0
    %8310 = vmatprep.subr.mxu0 0.0
    %8311 = vmatpush1.msra.mxu0 0.0
    %8312 = vmatprep.subr.mxu0 0.0
    %8313 = vmatpush1.msra.mxu0 0.0
    %8314 = vmatprep.subr.mxu0 0.0
    %8315 = vmatpush1.msra.mxu0 0.0
    %8316 = vmatprep.subr.mxu0 0.0
    %8317 = vmatpush1.msra.mxu0 0.0
    %8318 = vmatprep.subr.mxu0 0.0
    %8319 = vmatpush1.msra.mxu0 0.0
    %8320 = vmatprep.subr.mxu0 0.0
    %8321 = vmatpush1.msra.mxu0 0.0
    %8322 = vmatprep.subr.mxu0 0.0
    %8323 = vmatpush1.msra.mxu0 0.0
    %8324 = vmatprep.subr.mxu0 0.0
    %8325 = vmatpush1.msra.mxu0 0.0
    %8326 = vmatprep.subr.mxu0 0.0
    %8327 = vmatpush1.msra.mxu0 0.0
    %8328 = vmatprep.subr.mxu0 0.0
    %8329 = vmatpush1.msra.mxu0 0.0
    %8330 = vmatprep.subr.mxu0 0.0
    %8331 = vmatpush1.msra.mxu0 0.0
    %8332 = vmatprep.subr.mxu0 0.0
    %8333 = vmatpush1.msra.mxu0 %v8297
    %8334 = vmatprep.subr.mxu0 0.0
    %8335 = vmatpush1.msra.mxu0 %v8296
    %8336 = vmatprep.subr.mxu0 0.0
    %8337 = vmatpush1.msra.mxu0 %v8295
    %8338 = vmatprep.subr.mxu0 0.0
    %8339 = vmatpush1.msra.mxu0 %v8294
    %8340 = vmatprep.subr.mxu0 0.0
    %8341 = vmatpush2.msra.mxu0 0.0
    %8342 = vmatprep.subr.mxu0 0.0
    %8343 = vmatpush2.msra.mxu0 0.0
    %8344 = vmatprep.subr.mxu0 0.0
    %8345 = vmatpush2.msra.mxu0 0.0
    %8346 = vmatprep.subr.mxu0 0.0
    %8347 = vmatpush2.msra.mxu0 0.0
    %8348 = vmatprep.subr.mxu0 0.0
    %8349 = vmatpush2.msra.mxu0 0.0
    %8350 = vmatprep.subr.mxu0 0.0
    %8351 = vmatpush2.msra.mxu0 0.0
    %8352 = vmatprep.subr.mxu0 0.0
    %8353 = vmatpush2.msra.mxu0 0.0
    %8354 = vmatprep.subr.mxu0 0.0
    %8355 = vmatpush2.msra.mxu0 0.0
    %8356 = vmatprep.subr.mxu0 0.0
    %8357 = vmatpush2.msra.mxu0 0.0
    %8358 = vmatprep.subr.mxu0 0.0
    %8359 = vmatpush2.msra.mxu0 0.0
    %8360 = vmatprep.subr.mxu0 0.0
    %8361 = vmatpush2.msra.mxu0 0.0
    %8362 = vmatprep.subr.mxu0 0.0
    %8363 = vmatpush2.msra.mxu0 0.0
    %8364 = vmatprep.subr.mxu0 0.0
    %8365 = vmatpush2.msra.mxu0 0.0
    %8366 = vmatprep.subr.mxu0 0.0
    %8367 = vmatpush2.msra.mxu0 0.0
    %8368 = vmatprep.subr.mxu0 0.0
    %8369 = vmatpush2.msra.mxu0 0.0
    %8370 = vmatprep.subr.mxu0 0.0
    %8371 = vmatpush2.msra.mxu0 0.0
    %8372 = vmatprep.mubr.f32.mxu0 0.0
    %8373 = vmatmul.mubr.f32.gmra.mxu0 %v8306
    %v8374 = vpop.f32.mrf.mxu0
    %v8375 = vadd.f32 %v8303, %v8374
    %v8376 = vpop.f32.mrf.mxu0
    %8377 = vdwg.mxu0
    %vm8378 = vcmask 9216
    %8379 = vst.msk [vmem:[#allocation2] sm:$0x3] %vm8378, %v8375
    // Predicated region
    $region130: #{tpu_custom_call.1} parent=1 // pred_check
      _
    $region131: #{tpu_custom_call.1} parent=1 // pred_check_branch
      %8381 = sbr.rel (0) target = $region133
    $region132: #{tpu_custom_call.1} parent=1 // pred_region
      %s8383 = ssub.s32 32, 32
      %8384 = vsyncadd [#allocation3], %s8383
      %s8386 = sshll.u32 [#allocation2], 4
      %s8387 = int_to_ptr.vmem [resolvable:$true] %s8386
      %8389 = dma.vmem_to_hbm [thread:$0]  %s8387, 32, %s65, [#allocation3]
    $region133: #{tpu_custom_call.1} parent=1 // pred_fallthru
      _
    // Predicated region
    $region134: #{tpu_custom_call.1} parent=1 // pred_check
      _
    $region135: #{tpu_custom_call.1} parent=1 // pred_check_branch
      %8391 = sbr.rel (0) target = $region137
    $region136: #{tpu_custom_call.1} parent=1 // pred_region
      %8392 = dma.done [#allocation3], 32
    $region137: #{tpu_custom_call.1} parent=1 // pred_fallthru
      _
    %8393 = vsyncpa [#allocation3], 1

</llo_original>
